<compile_context>
chip_gen: v6e
topology: v6e:2x2x1
jax: 0.10.0
libtpu: 0.0.40
codegen_flags: <defaults>
</compile_context>

<pallas_src>
import functools
import math

import jax
import jax.numpy as jnp
from jax import lax
from jax.experimental import pallas as pl
from jax.experimental.pallas import tpu as pltpu


def _spa_marginal_topk_kernel(f_ref, cent_ref, amat_ref, sims_ref, idx_ref, *,
                              topk, num_spixels):
    """One pixel tile (all batches): logits -> softmax over superpixels -> top-k.

    f_ref:    (B, TP, D)  bf16 projected pixel features
    cent_ref: (B, D, S)   bf16 pre-scaled (1/sqrt(D)) superpixel centroids
    amat_ref: (TP, B*S)   f32 marginal assignment, already in 's (b k)' layout
    sims_ref: (B, TP, K)  f32 top-k probabilities
    idx_ref:  (B, TP, K)  i32 top-k superpixel indices
    """
    B, TP, _ = f_ref.shape
    S = num_spixels
    s_iota = lax.broadcasted_iota(jnp.int32, (TP, S), 1)
    neg_inf = jnp.float32(-jnp.inf)

    for b in range(B):  # B is small and static -> unrolled
        # MXU: bf16 operands, f32 accumulate.
        logits = jnp.dot(f_ref[b], cent_ref[b],
                         preferred_element_type=jnp.float32)            # (TP, S)

        # softmax over superpixels (scale already folded into cent).
        m = jnp.max(logits, axis=-1, keepdims=True)
        e = jnp.exp(logits - m)
        denom = jnp.sum(e, axis=-1, keepdims=True)
        amat_b = e * pl.reciprocal(denom, approx=True)                  # (TP, S)

        # write directly into the rearranged 'b s k -> s (b k)' output slab.
        amat_ref[:, b * S:(b + 1) * S] = amat_b

        # top-k via iterative max-and-mask; direct column stores, no wide selects.
        work = amat_b
        for j in range(topk):
            mx = jnp.max(work, axis=-1, keepdims=True)                  # (TP, 1)
            am = jnp.min(jnp.where(work == mx, s_iota, S),
                         axis=-1, keepdims=True)                        # (TP, 1) i32
            sims_ref[b, :, j:j + 1] = mx
            idx_ref[b, :, j:j + 1] = am
            work = jnp.where(s_iota == am, neg_inf, work)


def _choose_tile_p(P, max_tp):
    assert P % 8 == 0, "pixel count must be a multiple of 8"
    tp = min(P, max_tp)
    while P % tp != 0 or tp % 8 != 0:
        tp -= 1
    return tp


def spa_gmm_sampling_forward(x, w_proj, *, sp_grid=(4, 4), topk=8, tile_p=1024):
    """Forward pass of SpaGmmSampling up to the reference's exit() point.

    Returns (amatrix rearranged 'b s k -> s (b k)', sims, indices, num_spixels).
    """
    B, C, H, W = x.shape
    P = H * W
    sh, sw = sp_grid
    S = sh * sw
    assert topk <= S and H % sh == 0 and W % sw == 0
    D = w_proj.shape[1]

    TP = _choose_tile_p(P, tile_p)
    NP = P // TP

    # --- wrapper-side prep (tiny / memory-layout work, left to XLA) ----------
    w32 = w_proj.astype(jnp.float32)
    xf = jnp.transpose(x, (0, 2, 3, 1)).astype(jnp.float32)             # (B,H,W,C)

    # projected pixel features
    f = xf.reshape(B, P, C) @ w32                                       # (B,P,D)

    # regular-grid superpixel centroids = cell means, projected (linearity:
    # mean(x @ w) == mean(x) @ w), with the 1/sqrt(D) scale folded in.
    cent = xf.reshape(B, sh, H // sh, sw, W // sw, C).mean(axis=(2, 4))
    cent = cent.reshape(B, S, C) @ w32                                  # (B,S,D)
    scale = 1.0 / jnp.sqrt(jnp.float32(D))
    cent_t = jnp.swapaxes(cent, 1, 2) * scale                           # (B,D,S)

    f_bf = f.astype(jnp.bfloat16)
    cent_bf = cent_t.astype(jnp.bfloat16)

    kernel = functools.partial(_spa_marginal_topk_kernel,
                               topk=topk, num_spixels=S)

    amatrix_r, sims, indices = pl.pallas_call(
        kernel,
        out_shape=(
            jax.ShapeDtypeStruct((P, B * S), jnp.float32),
            jax.ShapeDtypeStruct((B, P, topk), jnp.float32),
            jax.ShapeDtypeStruct((B, P, topk), jnp.int32),
        ),
        grid_spec=pltpu.PrefetchScalarGridSpec(
            num_scalar_prefetch=0,
            grid=(NP,),
            in_specs=[
                pl.BlockSpec((B, TP, D), lambda p: (0, p, 0)),   # projected features
                pl.BlockSpec((B, D, S), lambda p: (0, 0, 0)),    # centroids (resident)
            ],
            out_specs=[
                pl.BlockSpec((TP, B * S), lambda p: (p, 0)),     # amatrix, final layout
                pl.BlockSpec((B, TP, topk), lambda p: (0, p, 0)),
                pl.BlockSpec((B, TP, topk), lambda p: (0, p, 0)),
            ],
        ),
        compiler_params=pltpu.CompilerParams(
            dimension_semantics=("parallel",),
            vmem_limit_bytes=32 * 1024 * 1024,
        ),
    )(f_bf, cent_bf)

    # TODO(synk): the reference forward calls print('not here.'); exit() right
    # after the rearrange, so the torch.multinomial sampling loop,
    # mask_from_labels and the external self.attn module are unreachable dead
    # code and are not implemented.
    return amatrix_r, sims, indices, S


if __name__ == "__main__":
    key = jax.random.PRNGKey(0)
    kx, kw = jax.random.split(key)
    B, C, H, W = 2, 4, 16, 16
    D = 32                      # hidden width of synthetic est_marginal_sp
    topk = 8                    # module default is 32; scaled down to 16 superpixels
    x = jax.random.normal(kx, (B, C, H, W), dtype=jnp.float32)
    w_proj = 0.1 * jax.random.normal(kw, (C, D), dtype=jnp.float32)

    amatrix, sims, indices, num_spixels = spa_gmm_sampling_forward(
        x, w_proj, sp_grid=(4, 4), topk=topk, tile_p=128)
    jax.block_until_ready((amatrix, sims, indices))

    P = H * W
    assert amatrix.shape == (P, B * num_spixels)
    assert sims.shape == (B, P, topk)
    assert indices.shape == (B, P, topk)

    # light sanity: softmax rows sum to ~1 (approx reciprocal), top-k non-increasing.
    row_sums = amatrix.reshape(P, B, num_spixels).sum(axis=-1)
    assert float(jnp.max(jnp.abs(row_sums - 1.0))) < 5e-2
    assert bool(jnp.all(sims[..., :-1] >= sims[..., 1:] - 1e-6))

    print("KERNEL_OK")
</pallas_src>

<mosaic_0001>
module attributes {stable_mosaic.version = 11 : i64} {
  func.func @_spa_marginal_topk_kernel(%arg0: i32, %arg1: memref<2x128x32xbf16, #tpu.memory_space<vmem>>, %arg2: memref<2x32x16xbf16, #tpu.memory_space<vmem>>, %arg3: memref<128x32xf32, #tpu.memory_space<vmem>>, %arg4: memref<2x128x8xf32, #tpu.memory_space<vmem>>, %arg5: memref<2x128x8xi32, #tpu.memory_space<vmem>>) attributes {dimension_semantics = [#tpu.dimension_semantics<parallel>], iteration_bounds = array<i64: 2>, scalar_prefetch = 0 : i64, scratch_operands = 0 : i64, tpu.core_type = #tpu.core_type<tc>, window_params = [{transform_indices = @transform_0, window_bounds = array<i64: 2, 128, 32>}, {pipeline_mode = #tpu.pipeline_mode<synchronous>, transform_indices = @transform_1, window_bounds = array<i64: 2, 32, 16>}, {transform_indices = @transform_2, window_bounds = array<i64: 128, 32>}, {transform_indices = @transform_3, window_bounds = array<i64: 2, 128, 8>}, {transform_indices = @transform_4, window_bounds = array<i64: 2, 128, 8>}]} {
    %0 = tpu.iota {dimensions = array<i32: 1>} : vector<128x16xi32>
    %c0 = arith.constant 0 : index
    %c0_0 = arith.constant 0 : index
    %c0_1 = arith.constant 0 : index
    %1 = vector.load %arg1[%c0, %c0_0, %c0_1] : memref<2x128x32xbf16, #tpu.memory_space<vmem>>, vector<1x128x32xbf16>
    %2 = vector.shape_cast %1 : vector<1x128x32xbf16> to vector<128x32xbf16>
    %c0_2 = arith.constant 0 : index
    %c0_3 = arith.constant 0 : index
    %c0_4 = arith.constant 0 : index
    %3 = vector.load %arg2[%c0_2, %c0_3, %c0_4] : memref<2x32x16xbf16, #tpu.memory_space<vmem>>, vector<1x32x16xbf16>
    %4 = vector.shape_cast %3 : vector<1x32x16xbf16> to vector<32x16xbf16>
    %cst = arith.constant dense<0.000000e+00> : vector<128x16xf32>
    %5 = tpu.matmul %2, %4, %cst {dimension_numbers = #tpu.dot_dimension_numbers<[1], [0], [0], [1], [0, 0, 1, 1], [], []>} : vector<128x32xbf16>, vector<32x16xbf16>, vector<128x16xf32> -> vector<128x16xf32>
    %cst_5 = arith.constant dense<0xFF800000> : vector<128xf32>
    %6 = vector.multi_reduction <maximumf>, %5, %cst_5 [1] : vector<128x16xf32> to vector<128xf32>
    %7 = vector.shape_cast %6 : vector<128xf32> to vector<128x1xf32>
    %8 = vector.broadcast %7 : vector<128x1xf32> to vector<128x16xf32>
    %9 = arith.subf %5, %8 : vector<128x16xf32>
    %10 = math.exp %9 : vector<128x16xf32>
    %cst_6 = arith.constant dense<0.000000e+00> : vector<128xf32>
    %11 = vector.multi_reduction <add>, %10, %cst_6 [1] : vector<128x16xf32> to vector<128xf32>
    %12 = vector.shape_cast %11 : vector<128xf32> to vector<128x1xf32>
    %13 = tpu.reciprocal %12 {approx = true} : vector<128x1xf32> -> vector<128x1xf32>
    %14 = vector.broadcast %13 : vector<128x1xf32> to vector<128x16xf32>
    %15 = arith.mulf %10, %14 : vector<128x16xf32>
    %c0_7 = arith.constant 0 : index
    %c0_8 = arith.constant 0 : index
    %16 = vector.load %arg3[%c0_7, %c0_8] : memref<128x32xf32, #tpu.memory_space<vmem>>, vector<128x16xf32>
    tpu.vector_store %arg3[%c0_7, %c0_8], %15 {strides = array<i32>} : memref<128x32xf32, #tpu.memory_space<vmem>>, vector<128x16xf32>,
    %cst_9 = arith.constant dense<0xFF800000> : vector<128xf32>
    %17 = vector.multi_reduction <maximumf>, %15, %cst_9 [1] : vector<128x16xf32> to vector<128xf32>
    %18 = vector.shape_cast %17 : vector<128xf32> to vector<128x1xf32>
    %19 = vector.broadcast %18 : vector<128x1xf32> to vector<128x16xf32>
    %20 = arith.cmpf oeq, %15, %19 : vector<128x16xf32>
    %c16_i32 = arith.constant 16 : i32
    %21 = vector.broadcast %c16_i32 : i32 to vector<128x16xi32>
    %22 = arith.select %20, %0, %21 : vector<128x16xi1>, vector<128x16xi32>
    %cst_10 = arith.constant dense<2147483647> : vector<128xi32>
    %23 = vector.multi_reduction <minsi>, %22, %cst_10 [1] : vector<128x16xi32> to vector<128xi32>
    %24 = vector.shape_cast %23 : vector<128xi32> to vector<128x1xi32>
    %c0_11 = arith.constant 0 : index
    %c0_12 = arith.constant 0 : index
    %c0_13 = arith.constant 0 : index
    %25 = vector.load %arg4[%c0_11, %c0_12, %c0_13] : memref<2x128x8xf32, #tpu.memory_space<vmem>>, vector<1x128x1xf32>
    %26 = vector.shape_cast %25 : vector<1x128x1xf32> to vector<128x1xf32>
    %27 = vector.shape_cast %18 : vector<128x1xf32> to vector<1x128x1xf32>
    tpu.vector_store %arg4[%c0_11, %c0_12, %c0_13], %27 {strides = array<i32>} : memref<2x128x8xf32, #tpu.memory_space<vmem>>, vector<1x128x1xf32>,
    %c0_14 = arith.constant 0 : index
    %c0_15 = arith.constant 0 : index
    %c0_16 = arith.constant 0 : index
    %28 = vector.load %arg5[%c0_14, %c0_15, %c0_16] : memref<2x128x8xi32, #tpu.memory_space<vmem>>, vector<1x128x1xi32>
    %29 = vector.shape_cast %28 : vector<1x128x1xi32> to vector<128x1xi32>
    %30 = vector.shape_cast %24 : vector<128x1xi32> to vector<1x128x1xi32>
    tpu.vector_store %arg5[%c0_14, %c0_15, %c0_16], %30 {strides = array<i32>} : memref<2x128x8xi32, #tpu.memory_space<vmem>>, vector<1x128x1xi32>,
    %31 = vector.broadcast %24 : vector<128x1xi32> to vector<128x16xi32>
    %32 = arith.cmpi eq, %0, %31 : vector<128x16xi32>
    %cst_17 = arith.constant 0xFF800000 : f32
    %33 = vector.broadcast %cst_17 : f32 to vector<128x16xf32>
    %34 = arith.select %32, %33, %15 : vector<128x16xi1>, vector<128x16xf32>
    %cst_18 = arith.constant dense<0xFF800000> : vector<128xf32>
    %35 = vector.multi_reduction <maximumf>, %34, %cst_18 [1] : vector<128x16xf32> to vector<128xf32>
    %36 = vector.shape_cast %35 : vector<128xf32> to vector<128x1xf32>
    %37 = vector.broadcast %36 : vector<128x1xf32> to vector<128x16xf32>
    %38 = arith.cmpf oeq, %34, %37 : vector<128x16xf32>
    %c16_i32_19 = arith.constant 16 : i32
    %39 = vector.broadcast %c16_i32_19 : i32 to vector<128x16xi32>
    %40 = arith.select %38, %0, %39 : vector<128x16xi1>, vector<128x16xi32>
    %cst_20 = arith.constant dense<2147483647> : vector<128xi32>
    %41 = vector.multi_reduction <minsi>, %40, %cst_20 [1] : vector<128x16xi32> to vector<128xi32>
    %42 = vector.shape_cast %41 : vector<128xi32> to vector<128x1xi32>
    %c0_21 = arith.constant 0 : index
    %c0_22 = arith.constant 0 : index
    %c1 = arith.constant 1 : index
    %43 = vector.load %arg4[%c0_21, %c0_22, %c1] : memref<2x128x8xf32, #tpu.memory_space<vmem>>, vector<1x128x1xf32>
    %44 = vector.shape_cast %43 : vector<1x128x1xf32> to vector<128x1xf32>
    %45 = vector.shape_cast %36 : vector<128x1xf32> to vector<1x128x1xf32>
    tpu.vector_store %arg4[%c0_21, %c0_22, %c1], %45 {strides = array<i32>} : memref<2x128x8xf32, #tpu.memory_space<vmem>>, vector<1x128x1xf32>,
    %c0_23 = arith.constant 0 : index
    %c0_24 = arith.constant 0 : index
    %c1_25 = arith.constant 1 : index
    %46 = vector.load %arg5[%c0_23, %c0_24, %c1_25] : memref<2x128x8xi32, #tpu.memory_space<vmem>>, vector<1x128x1xi32>
    %47 = vector.shape_cast %46 : vector<1x128x1xi32> to vector<128x1xi32>
    %48 = vector.shape_cast %42 : vector<128x1xi32> to vector<1x128x1xi32>
    tpu.vector_store %arg5[%c0_23, %c0_24, %c1_25], %48 {strides = array<i32>} : memref<2x128x8xi32, #tpu.memory_space<vmem>>, vector<1x128x1xi32>,
    %49 = vector.broadcast %42 : vector<128x1xi32> to vector<128x16xi32>
    %50 = arith.cmpi eq, %0, %49 : vector<128x16xi32>
    %cst_26 = arith.constant 0xFF800000 : f32
    %51 = vector.broadcast %cst_26 : f32 to vector<128x16xf32>
    %52 = arith.select %50, %51, %34 : vector<128x16xi1>, vector<128x16xf32>
    %cst_27 = arith.constant dense<0xFF800000> : vector<128xf32>
    %53 = vector.multi_reduction <maximumf>, %52, %cst_27 [1] : vector<128x16xf32> to vector<128xf32>
    %54 = vector.shape_cast %53 : vector<128xf32> to vector<128x1xf32>
    %55 = vector.broadcast %54 : vector<128x1xf32> to vector<128x16xf32>
    %56 = arith.cmpf oeq, %52, %55 : vector<128x16xf32>
    %c16_i32_28 = arith.constant 16 : i32
    %57 = vector.broadcast %c16_i32_28 : i32 to vector<128x16xi32>
    %58 = arith.select %56, %0, %57 : vector<128x16xi1>, vector<128x16xi32>
    %cst_29 = arith.constant dense<2147483647> : vector<128xi32>
    %59 = vector.multi_reduction <minsi>, %58, %cst_29 [1] : vector<128x16xi32> to vector<128xi32>
    %60 = vector.shape_cast %59 : vector<128xi32> to vector<128x1xi32>
    %c0_30 = arith.constant 0 : index
    %c0_31 = arith.constant 0 : index
    %c2 = arith.constant 2 : index
    %61 = vector.load %arg4[%c0_30, %c0_31, %c2] : memref<2x128x8xf32, #tpu.memory_space<vmem>>, vector<1x128x1xf32>
    %62 = vector.shape_cast %61 : vector<1x128x1xf32> to vector<128x1xf32>
    %63 = vector.shape_cast %54 : vector<128x1xf32> to vector<1x128x1xf32>
    tpu.vector_store %arg4[%c0_30, %c0_31, %c2], %63 {strides = array<i32>} : memref<2x128x8xf32, #tpu.memory_space<vmem>>, vector<1x128x1xf32>,
    %c0_32 = arith.constant 0 : index
    %c0_33 = arith.constant 0 : index
    %c2_34 = arith.constant 2 : index
    %64 = vector.load %arg5[%c0_32, %c0_33, %c2_34] : memref<2x128x8xi32, #tpu.memory_space<vmem>>, vector<1x128x1xi32>
    %65 = vector.shape_cast %64 : vector<1x128x1xi32> to vector<128x1xi32>
    %66 = vector.shape_cast %60 : vector<128x1xi32> to vector<1x128x1xi32>
    tpu.vector_store %arg5[%c0_32, %c0_33, %c2_34], %66 {strides = array<i32>} : memref<2x128x8xi32, #tpu.memory_space<vmem>>, vector<1x128x1xi32>,
    %67 = vector.broadcast %60 : vector<128x1xi32> to vector<128x16xi32>
    %68 = arith.cmpi eq, %0, %67 : vector<128x16xi32>
    %cst_35 = arith.constant 0xFF800000 : f32
    %69 = vector.broadcast %cst_35 : f32 to vector<128x16xf32>
    %70 = arith.select %68, %69, %52 : vector<128x16xi1>, vector<128x16xf32>
    %cst_36 = arith.constant dense<0xFF800000> : vector<128xf32>
    %71 = vector.multi_reduction <maximumf>, %70, %cst_36 [1] : vector<128x16xf32> to vector<128xf32>
    %72 = vector.shape_cast %71 : vector<128xf32> to vector<128x1xf32>
    %73 = vector.broadcast %72 : vector<128x1xf32> to vector<128x16xf32>
    %74 = arith.cmpf oeq, %70, %73 : vector<128x16xf32>
    %c16_i32_37 = arith.constant 16 : i32
    %75 = vector.broadcast %c16_i32_37 : i32 to vector<128x16xi32>
    %76 = arith.select %74, %0, %75 : vector<128x16xi1>, vector<128x16xi32>
    %cst_38 = arith.constant dense<2147483647> : vector<128xi32>
    %77 = vector.multi_reduction <minsi>, %76, %cst_38 [1] : vector<128x16xi32> to vector<128xi32>
    %78 = vector.shape_cast %77 : vector<128xi32> to vector<128x1xi32>
    %c0_39 = arith.constant 0 : index
    %c0_40 = arith.constant 0 : index
    %c3 = arith.constant 3 : index
    %79 = vector.load %arg4[%c0_39, %c0_40, %c3] : memref<2x128x8xf32, #tpu.memory_space<vmem>>, vector<1x128x1xf32>
    %80 = vector.shape_cast %79 : vector<1x128x1xf32> to vector<128x1xf32>
    %81 = vector.shape_cast %72 : vector<128x1xf32> to vector<1x128x1xf32>
    tpu.vector_store %arg4[%c0_39, %c0_40, %c3], %81 {strides = array<i32>} : memref<2x128x8xf32, #tpu.memory_space<vmem>>, vector<1x128x1xf32>,
    %c0_41 = arith.constant 0 : index
    %c0_42 = arith.constant 0 : index
    %c3_43 = arith.constant 3 : index
    %82 = vector.load %arg5[%c0_41, %c0_42, %c3_43] : memref<2x128x8xi32, #tpu.memory_space<vmem>>, vector<1x128x1xi32>
    %83 = vector.shape_cast %82 : vector<1x128x1xi32> to vector<128x1xi32>
    %84 = vector.shape_cast %78 : vector<128x1xi32> to vector<1x128x1xi32>
    tpu.vector_store %arg5[%c0_41, %c0_42, %c3_43], %84 {strides = array<i32>} : memref<2x128x8xi32, #tpu.memory_space<vmem>>, vector<1x128x1xi32>,
    %85 = vector.broadcast %78 : vector<128x1xi32> to vector<128x16xi32>
    %86 = arith.cmpi eq, %0, %85 : vector<128x16xi32>
    %cst_44 = arith.constant 0xFF800000 : f32
    %87 = vector.broadcast %cst_44 : f32 to vector<128x16xf32>
    %88 = arith.select %86, %87, %70 : vector<128x16xi1>, vector<128x16xf32>
    %cst_45 = arith.constant dense<0xFF800000> : vector<128xf32>
    %89 = vector.multi_reduction <maximumf>, %88, %cst_45 [1] : vector<128x16xf32> to vector<128xf32>
    %90 = vector.shape_cast %89 : vector<128xf32> to vector<128x1xf32>
    %91 = vector.broadcast %90 : vector<128x1xf32> to vector<128x16xf32>
    %92 = arith.cmpf oeq, %88, %91 : vector<128x16xf32>
    %c16_i32_46 = arith.constant 16 : i32
    %93 = vector.broadcast %c16_i32_46 : i32 to vector<128x16xi32>
    %94 = arith.select %92, %0, %93 : vector<128x16xi1>, vector<128x16xi32>
    %cst_47 = arith.constant dense<2147483647> : vector<128xi32>
    %95 = vector.multi_reduction <minsi>, %94, %cst_47 [1] : vector<128x16xi32> to vector<128xi32>
    %96 = vector.shape_cast %95 : vector<128xi32> to vector<128x1xi32>
    %c0_48 = arith.constant 0 : index
    %c0_49 = arith.constant 0 : index
    %c4 = arith.constant 4 : index
    %97 = vector.load %arg4[%c0_48, %c0_49, %c4] : memref<2x128x8xf32, #tpu.memory_space<vmem>>, vector<1x128x1xf32>
    %98 = vector.shape_cast %97 : vector<1x128x1xf32> to vector<128x1xf32>
    %99 = vector.shape_cast %90 : vector<128x1xf32> to vector<1x128x1xf32>
    tpu.vector_store %arg4[%c0_48, %c0_49, %c4], %99 {strides = array<i32>} : memref<2x128x8xf32, #tpu.memory_space<vmem>>, vector<1x128x1xf32>,
    %c0_50 = arith.constant 0 : index
    %c0_51 = arith.constant 0 : index
    %c4_52 = arith.constant 4 : index
    %100 = vector.load %arg5[%c0_50, %c0_51, %c4_52] : memref<2x128x8xi32, #tpu.memory_space<vmem>>, vector<1x128x1xi32>
    %101 = vector.shape_cast %100 : vector<1x128x1xi32> to vector<128x1xi32>
    %102 = vector.shape_cast %96 : vector<128x1xi32> to vector<1x128x1xi32>
    tpu.vector_store %arg5[%c0_50, %c0_51, %c4_52], %102 {strides = array<i32>} : memref<2x128x8xi32, #tpu.memory_space<vmem>>, vector<1x128x1xi32>,
    %103 = vector.broadcast %96 : vector<128x1xi32> to vector<128x16xi32>
    %104 = arith.cmpi eq, %0, %103 : vector<128x16xi32>
    %cst_53 = arith.constant 0xFF800000 : f32
    %105 = vector.broadcast %cst_53 : f32 to vector<128x16xf32>
    %106 = arith.select %104, %105, %88 : vector<128x16xi1>, vector<128x16xf32>
    %cst_54 = arith.constant dense<0xFF800000> : vector<128xf32>
    %107 = vector.multi_reduction <maximumf>, %106, %cst_54 [1] : vector<128x16xf32> to vector<128xf32>
    %108 = vector.shape_cast %107 : vector<128xf32> to vector<128x1xf32>
    %109 = vector.broadcast %108 : vector<128x1xf32> to vector<128x16xf32>
    %110 = arith.cmpf oeq, %106, %109 : vector<128x16xf32>
    %c16_i32_55 = arith.constant 16 : i32
    %111 = vector.broadcast %c16_i32_55 : i32 to vector<128x16xi32>
    %112 = arith.select %110, %0, %111 : vector<128x16xi1>, vector<128x16xi32>
    %cst_56 = arith.constant dense<2147483647> : vector<128xi32>
    %113 = vector.multi_reduction <minsi>, %112, %cst_56 [1] : vector<128x16xi32> to vector<128xi32>
    %114 = vector.shape_cast %113 : vector<128xi32> to vector<128x1xi32>
    %c0_57 = arith.constant 0 : index
    %c0_58 = arith.constant 0 : index
    %c5 = arith.constant 5 : index
    %115 = vector.load %arg4[%c0_57, %c0_58, %c5] : memref<2x128x8xf32, #tpu.memory_space<vmem>>, vector<1x128x1xf32>
    %116 = vector.shape_cast %115 : vector<1x128x1xf32> to vector<128x1xf32>
    %117 = vector.shape_cast %108 : vector<128x1xf32> to vector<1x128x1xf32>
    tpu.vector_store %arg4[%c0_57, %c0_58, %c5], %117 {strides = array<i32>} : memref<2x128x8xf32, #tpu.memory_space<vmem>>, vector<1x128x1xf32>,
    %c0_59 = arith.constant 0 : index
    %c0_60 = arith.constant 0 : index
    %c5_61 = arith.constant 5 : index
    %118 = vector.load %arg5[%c0_59, %c0_60, %c5_61] : memref<2x128x8xi32, #tpu.memory_space<vmem>>, vector<1x128x1xi32>
    %119 = vector.shape_cast %118 : vector<1x128x1xi32> to vector<128x1xi32>
    %120 = vector.shape_cast %114 : vector<128x1xi32> to vector<1x128x1xi32>
    tpu.vector_store %arg5[%c0_59, %c0_60, %c5_61], %120 {strides = array<i32>} : memref<2x128x8xi32, #tpu.memory_space<vmem>>, vector<1x128x1xi32>,
    %121 = vector.broadcast %114 : vector<128x1xi32> to vector<128x16xi32>
    %122 = arith.cmpi eq, %0, %121 : vector<128x16xi32>
    %cst_62 = arith.constant 0xFF800000 : f32
    %123 = vector.broadcast %cst_62 : f32 to vector<128x16xf32>
    %124 = arith.select %122, %123, %106 : vector<128x16xi1>, vector<128x16xf32>
    %cst_63 = arith.constant dense<0xFF800000> : vector<128xf32>
    %125 = vector.multi_reduction <maximumf>, %124, %cst_63 [1] : vector<128x16xf32> to vector<128xf32>
    %126 = vector.shape_cast %125 : vector<128xf32> to vector<128x1xf32>
    %127 = vector.broadcast %126 : vector<128x1xf32> to vector<128x16xf32>
    %128 = arith.cmpf oeq, %124, %127 : vector<128x16xf32>
    %c16_i32_64 = arith.constant 16 : i32
    %129 = vector.broadcast %c16_i32_64 : i32 to vector<128x16xi32>
    %130 = arith.select %128, %0, %129 : vector<128x16xi1>, vector<128x16xi32>
    %cst_65 = arith.constant dense<2147483647> : vector<128xi32>
    %131 = vector.multi_reduction <minsi>, %130, %cst_65 [1] : vector<128x16xi32> to vector<128xi32>
    %132 = vector.shape_cast %131 : vector<128xi32> to vector<128x1xi32>
    %c0_66 = arith.constant 0 : index
    %c0_67 = arith.constant 0 : index
    %c6 = arith.constant 6 : index
    %133 = vector.load %arg4[%c0_66, %c0_67, %c6] : memref<2x128x8xf32, #tpu.memory_space<vmem>>, vector<1x128x1xf32>
    %134 = vector.shape_cast %133 : vector<1x128x1xf32> to vector<128x1xf32>
    %135 = vector.shape_cast %126 : vector<128x1xf32> to vector<1x128x1xf32>
    tpu.vector_store %arg4[%c0_66, %c0_67, %c6], %135 {strides = array<i32>} : memref<2x128x8xf32, #tpu.memory_space<vmem>>, vector<1x128x1xf32>,
    %c0_68 = arith.constant 0 : index
    %c0_69 = arith.constant 0 : index
    %c6_70 = arith.constant 6 : index
    %136 = vector.load %arg5[%c0_68, %c0_69, %c6_70] : memref<2x128x8xi32, #tpu.memory_space<vmem>>, vector<1x128x1xi32>
    %137 = vector.shape_cast %136 : vector<1x128x1xi32> to vector<128x1xi32>
    %138 = vector.shape_cast %132 : vector<128x1xi32> to vector<1x128x1xi32>
    tpu.vector_store %arg5[%c0_68, %c0_69, %c6_70], %138 {strides = array<i32>} : memref<2x128x8xi32, #tpu.memory_space<vmem>>, vector<1x128x1xi32>,
    %139 = vector.broadcast %132 : vector<128x1xi32> to vector<128x16xi32>
    %140 = arith.cmpi eq, %0, %139 : vector<128x16xi32>
    %cst_71 = arith.constant 0xFF800000 : f32
    %141 = vector.broadcast %cst_71 : f32 to vector<128x16xf32>
    %142 = arith.select %140, %141, %124 : vector<128x16xi1>, vector<128x16xf32>
    %cst_72 = arith.constant dense<0xFF800000> : vector<128xf32>
    %143 = vector.multi_reduction <maximumf>, %142, %cst_72 [1] : vector<128x16xf32> to vector<128xf32>
    %144 = vector.shape_cast %143 : vector<128xf32> to vector<128x1xf32>
    %145 = vector.broadcast %144 : vector<128x1xf32> to vector<128x16xf32>
    %146 = arith.cmpf oeq, %142, %145 : vector<128x16xf32>
    %c16_i32_73 = arith.constant 16 : i32
    %147 = vector.broadcast %c16_i32_73 : i32 to vector<128x16xi32>
    %148 = arith.select %146, %0, %147 : vector<128x16xi1>, vector<128x16xi32>
    %cst_74 = arith.constant dense<2147483647> : vector<128xi32>
    %149 = vector.multi_reduction <minsi>, %148, %cst_74 [1] : vector<128x16xi32> to vector<128xi32>
    %150 = vector.shape_cast %149 : vector<128xi32> to vector<128x1xi32>
    %c0_75 = arith.constant 0 : index
    %c0_76 = arith.constant 0 : index
    %c7 = arith.constant 7 : index
    %151 = vector.load %arg4[%c0_75, %c0_76, %c7] : memref<2x128x8xf32, #tpu.memory_space<vmem>>, vector<1x128x1xf32>
    %152 = vector.shape_cast %151 : vector<1x128x1xf32> to vector<128x1xf32>
    %153 = vector.shape_cast %144 : vector<128x1xf32> to vector<1x128x1xf32>
    tpu.vector_store %arg4[%c0_75, %c0_76, %c7], %153 {strides = array<i32>} : memref<2x128x8xf32, #tpu.memory_space<vmem>>, vector<1x128x1xf32>,
    %c0_77 = arith.constant 0 : index
    %c0_78 = arith.constant 0 : index
    %c7_79 = arith.constant 7 : index
    %154 = vector.load %arg5[%c0_77, %c0_78, %c7_79] : memref<2x128x8xi32, #tpu.memory_space<vmem>>, vector<1x128x1xi32>
    %155 = vector.shape_cast %154 : vector<1x128x1xi32> to vector<128x1xi32>
    %156 = vector.shape_cast %150 : vector<128x1xi32> to vector<1x128x1xi32>
    tpu.vector_store %arg5[%c0_77, %c0_78, %c7_79], %156 {strides = array<i32>} : memref<2x128x8xi32, #tpu.memory_space<vmem>>, vector<1x128x1xi32>,
    %c1_80 = arith.constant 1 : index
    %c0_81 = arith.constant 0 : index
    %c0_82 = arith.constant 0 : index
    %157 = vector.load %arg1[%c1_80, %c0_81, %c0_82] : memref<2x128x32xbf16, #tpu.memory_space<vmem>>, vector<1x128x32xbf16>
    %158 = vector.shape_cast %157 : vector<1x128x32xbf16> to vector<128x32xbf16>
    %c1_83 = arith.constant 1 : index
    %c0_84 = arith.constant 0 : index
    %c0_85 = arith.constant 0 : index
    %159 = vector.load %arg2[%c1_83, %c0_84, %c0_85] : memref<2x32x16xbf16, #tpu.memory_space<vmem>>, vector<1x32x16xbf16>
    %160 = vector.shape_cast %159 : vector<1x32x16xbf16> to vector<32x16xbf16>
    %cst_86 = arith.constant dense<0.000000e+00> : vector<128x16xf32>
    %161 = tpu.matmul %158, %160, %cst_86 {dimension_numbers = #tpu.dot_dimension_numbers<[1], [0], [0], [1], [0, 0, 1, 1], [], []>} : vector<128x32xbf16>, vector<32x16xbf16>, vector<128x16xf32> -> vector<128x16xf32>
    %cst_87 = arith.constant dense<0xFF800000> : vector<128xf32>
    %162 = vector.multi_reduction <maximumf>, %161, %cst_87 [1] : vector<128x16xf32> to vector<128xf32>
    %163 = vector.shape_cast %162 : vector<128xf32> to vector<128x1xf32>
    %164 = vector.broadcast %163 : vector<128x1xf32> to vector<128x16xf32>
    %165 = arith.subf %161, %164 : vector<128x16xf32>
    %166 = math.exp %165 : vector<128x16xf32>
    %cst_88 = arith.constant dense<0.000000e+00> : vector<128xf32>
    %167 = vector.multi_reduction <add>, %166, %cst_88 [1] : vector<128x16xf32> to vector<128xf32>
    %168 = vector.shape_cast %167 : vector<128xf32> to vector<128x1xf32>
    %169 = tpu.reciprocal %168 {approx = true} : vector<128x1xf32> -> vector<128x1xf32>
    %170 = vector.broadcast %169 : vector<128x1xf32> to vector<128x16xf32>
    %171 = arith.mulf %166, %170 : vector<128x16xf32>
    %c0_89 = arith.constant 0 : index
    %c16 = arith.constant 16 : index
    %172 = vector.load %arg3[%c0_89, %c16] : memref<128x32xf32, #tpu.memory_space<vmem>>, vector<128x16xf32>
    tpu.vector_store %arg3[%c0_89, %c16], %171 {strides = array<i32>} : memref<128x32xf32, #tpu.memory_space<vmem>>, vector<128x16xf32>,
    %cst_90 = arith.constant dense<0xFF800000> : vector<128xf32>
    %173 = vector.multi_reduction <maximumf>, %171, %cst_90 [1] : vector<128x16xf32> to vector<128xf32>
    %174 = vector.shape_cast %173 : vector<128xf32> to vector<128x1xf32>
    %175 = vector.broadcast %174 : vector<128x1xf32> to vector<128x16xf32>
    %176 = arith.cmpf oeq, %171, %175 : vector<128x16xf32>
    %c16_i32_91 = arith.constant 16 : i32
    %177 = vector.broadcast %c16_i32_91 : i32 to vector<128x16xi32>
    %178 = arith.select %176, %0, %177 : vector<128x16xi1>, vector<128x16xi32>
    %cst_92 = arith.constant dense<2147483647> : vector<128xi32>
    %179 = vector.multi_reduction <minsi>, %178, %cst_92 [1] : vector<128x16xi32> to vector<128xi32>
    %180 = vector.shape_cast %179 : vector<128xi32> to vector<128x1xi32>
    %c1_93 = arith.constant 1 : index
    %c0_94 = arith.constant 0 : index
    %c0_95 = arith.constant 0 : index
    %181 = vector.load %arg4[%c1_93, %c0_94, %c0_95] : memref<2x128x8xf32, #tpu.memory_space<vmem>>, vector<1x128x1xf32>
    %182 = vector.shape_cast %181 : vector<1x128x1xf32> to vector<128x1xf32>
    %183 = vector.shape_cast %174 : vector<128x1xf32> to vector<1x128x1xf32>
    tpu.vector_store %arg4[%c1_93, %c0_94, %c0_95], %183 {strides = array<i32>} : memref<2x128x8xf32, #tpu.memory_space<vmem>>, vector<1x128x1xf32>,
    %c1_96 = arith.constant 1 : index
    %c0_97 = arith.constant 0 : index
    %c0_98 = arith.constant 0 : index
    %184 = vector.load %arg5[%c1_96, %c0_97, %c0_98] : memref<2x128x8xi32, #tpu.memory_space<vmem>>, vector<1x128x1xi32>
    %185 = vector.shape_cast %184 : vector<1x128x1xi32> to vector<128x1xi32>
    %186 = vector.shape_cast %180 : vector<128x1xi32> to vector<1x128x1xi32>
    tpu.vector_store %arg5[%c1_96, %c0_97, %c0_98], %186 {strides = array<i32>} : memref<2x128x8xi32, #tpu.memory_space<vmem>>, vector<1x128x1xi32>,
    %187 = vector.broadcast %180 : vector<128x1xi32> to vector<128x16xi32>
    %188 = arith.cmpi eq, %0, %187 : vector<128x16xi32>
    %cst_99 = arith.constant 0xFF800000 : f32
    %189 = vector.broadcast %cst_99 : f32 to vector<128x16xf32>
    %190 = arith.select %188, %189, %171 : vector<128x16xi1>, vector<128x16xf32>
    %cst_100 = arith.constant dense<0xFF800000> : vector<128xf32>
    %191 = vector.multi_reduction <maximumf>, %190, %cst_100 [1] : vector<128x16xf32> to vector<128xf32>
    %192 = vector.shape_cast %191 : vector<128xf32> to vector<128x1xf32>
    %193 = vector.broadcast %192 : vector<128x1xf32> to vector<128x16xf32>
    %194 = arith.cmpf oeq, %190, %193 : vector<128x16xf32>
    %c16_i32_101 = arith.constant 16 : i32
    %195 = vector.broadcast %c16_i32_101 : i32 to vector<128x16xi32>
    %196 = arith.select %194, %0, %195 : vector<128x16xi1>, vector<128x16xi32>
    %cst_102 = arith.constant dense<2147483647> : vector<128xi32>
    %197 = vector.multi_reduction <minsi>, %196, %cst_102 [1] : vector<128x16xi32> to vector<128xi32>
    %198 = vector.shape_cast %197 : vector<128xi32> to vector<128x1xi32>
    %c1_103 = arith.constant 1 : index
    %c0_104 = arith.constant 0 : index
    %c1_105 = arith.constant 1 : index
    %199 = vector.load %arg4[%c1_103, %c0_104, %c1_105] : memref<2x128x8xf32, #tpu.memory_space<vmem>>, vector<1x128x1xf32>
    %200 = vector.shape_cast %199 : vector<1x128x1xf32> to vector<128x1xf32>
    %201 = vector.shape_cast %192 : vector<128x1xf32> to vector<1x128x1xf32>
    tpu.vector_store %arg4[%c1_103, %c0_104, %c1_105], %201 {strides = array<i32>} : memref<2x128x8xf32, #tpu.memory_space<vmem>>, vector<1x128x1xf32>,
    %c1_106 = arith.constant 1 : index
    %c0_107 = arith.constant 0 : index
    %c1_108 = arith.constant 1 : index
    %202 = vector.load %arg5[%c1_106, %c0_107, %c1_108] : memref<2x128x8xi32, #tpu.memory_space<vmem>>, vector<1x128x1xi32>
    %203 = vector.shape_cast %202 : vector<1x128x1xi32> to vector<128x1xi32>
    %204 = vector.shape_cast %198 : vector<128x1xi32> to vector<1x128x1xi32>
    tpu.vector_store %arg5[%c1_106, %c0_107, %c1_108], %204 {strides = array<i32>} : memref<2x128x8xi32, #tpu.memory_space<vmem>>, vector<1x128x1xi32>,
    %205 = vector.broadcast %198 : vector<128x1xi32> to vector<128x16xi32>
    %206 = arith.cmpi eq, %0, %205 : vector<128x16xi32>
    %cst_109 = arith.constant 0xFF800000 : f32
    %207 = vector.broadcast %cst_109 : f32 to vector<128x16xf32>
    %208 = arith.select %206, %207, %190 : vector<128x16xi1>, vector<128x16xf32>
    %cst_110 = arith.constant dense<0xFF800000> : vector<128xf32>
    %209 = vector.multi_reduction <maximumf>, %208, %cst_110 [1] : vector<128x16xf32> to vector<128xf32>
    %210 = vector.shape_cast %209 : vector<128xf32> to vector<128x1xf32>
    %211 = vector.broadcast %210 : vector<128x1xf32> to vector<128x16xf32>
    %212 = arith.cmpf oeq, %208, %211 : vector<128x16xf32>
    %c16_i32_111 = arith.constant 16 : i32
    %213 = vector.broadcast %c16_i32_111 : i32 to vector<128x16xi32>
    %214 = arith.select %212, %0, %213 : vector<128x16xi1>, vector<128x16xi32>
    %cst_112 = arith.constant dense<2147483647> : vector<128xi32>
    %215 = vector.multi_reduction <minsi>, %214, %cst_112 [1] : vector<128x16xi32> to vector<128xi32>
    %216 = vector.shape_cast %215 : vector<128xi32> to vector<128x1xi32>
    %c1_113 = arith.constant 1 : index
    %c0_114 = arith.constant 0 : index
    %c2_115 = arith.constant 2 : index
    %217 = vector.load %arg4[%c1_113, %c0_114, %c2_115] : memref<2x128x8xf32, #tpu.memory_space<vmem>>, vector<1x128x1xf32>
    %218 = vector.shape_cast %217 : vector<1x128x1xf32> to vector<128x1xf32>
    %219 = vector.shape_cast %210 : vector<128x1xf32> to vector<1x128x1xf32>
    tpu.vector_store %arg4[%c1_113, %c0_114, %c2_115], %219 {strides = array<i32>} : memref<2x128x8xf32, #tpu.memory_space<vmem>>, vector<1x128x1xf32>,
    %c1_116 = arith.constant 1 : index
    %c0_117 = arith.constant 0 : index
    %c2_118 = arith.constant 2 : index
    %220 = vector.load %arg5[%c1_116, %c0_117, %c2_118] : memref<2x128x8xi32, #tpu.memory_space<vmem>>, vector<1x128x1xi32>
    %221 = vector.shape_cast %220 : vector<1x128x1xi32> to vector<128x1xi32>
    %222 = vector.shape_cast %216 : vector<128x1xi32> to vector<1x128x1xi32>
    tpu.vector_store %arg5[%c1_116, %c0_117, %c2_118], %222 {strides = array<i32>} : memref<2x128x8xi32, #tpu.memory_space<vmem>>, vector<1x128x1xi32>,
    %223 = vector.broadcast %216 : vector<128x1xi32> to vector<128x16xi32>
    %224 = arith.cmpi eq, %0, %223 : vector<128x16xi32>
    %cst_119 = arith.constant 0xFF800000 : f32
    %225 = vector.broadcast %cst_119 : f32 to vector<128x16xf32>
    %226 = arith.select %224, %225, %208 : vector<128x16xi1>, vector<128x16xf32>
    %cst_120 = arith.constant dense<0xFF800000> : vector<128xf32>
    %227 = vector.multi_reduction <maximumf>, %226, %cst_120 [1] : vector<128x16xf32> to vector<128xf32>
    %228 = vector.shape_cast %227 : vector<128xf32> to vector<128x1xf32>
    %229 = vector.broadcast %228 : vector<128x1xf32> to vector<128x16xf32>
    %230 = arith.cmpf oeq, %226, %229 : vector<128x16xf32>
    %c16_i32_121 = arith.constant 16 : i32
    %231 = vector.broadcast %c16_i32_121 : i32 to vector<128x16xi32>
    %232 = arith.select %230, %0, %231 : vector<128x16xi1>, vector<128x16xi32>
    %cst_122 = arith.constant dense<2147483647> : vector<128xi32>
    %233 = vector.multi_reduction <minsi>, %232, %cst_122 [1] : vector<128x16xi32> to vector<128xi32>
    %234 = vector.shape_cast %233 : vector<128xi32> to vector<128x1xi32>
    %c1_123 = arith.constant 1 : index
    %c0_124 = arith.constant 0 : index
    %c3_125 = arith.constant 3 : index
    %235 = vector.load %arg4[%c1_123, %c0_124, %c3_125] : memref<2x128x8xf32, #tpu.memory_space<vmem>>, vector<1x128x1xf32>
    %236 = vector.shape_cast %235 : vector<1x128x1xf32> to vector<128x1xf32>
    %237 = vector.shape_cast %228 : vector<128x1xf32> to vector<1x128x1xf32>
    tpu.vector_store %arg4[%c1_123, %c0_124, %c3_125], %237 {strides = array<i32>} : memref<2x128x8xf32, #tpu.memory_space<vmem>>, vector<1x128x1xf32>,
    %c1_126 = arith.constant 1 : index
    %c0_127 = arith.constant 0 : index
    %c3_128 = arith.constant 3 : index
    %238 = vector.load %arg5[%c1_126, %c0_127, %c3_128] : memref<2x128x8xi32, #tpu.memory_space<vmem>>, vector<1x128x1xi32>
    %239 = vector.shape_cast %238 : vector<1x128x1xi32> to vector<128x1xi32>
    %240 = vector.shape_cast %234 : vector<128x1xi32> to vector<1x128x1xi32>
    tpu.vector_store %arg5[%c1_126, %c0_127, %c3_128], %240 {strides = array<i32>} : memref<2x128x8xi32, #tpu.memory_space<vmem>>, vector<1x128x1xi32>,
    %241 = vector.broadcast %234 : vector<128x1xi32> to vector<128x16xi32>
    %242 = arith.cmpi eq, %0, %241 : vector<128x16xi32>
    %cst_129 = arith.constant 0xFF800000 : f32
    %243 = vector.broadcast %cst_129 : f32 to vector<128x16xf32>
    %244 = arith.select %242, %243, %226 : vector<128x16xi1>, vector<128x16xf32>
    %cst_130 = arith.constant dense<0xFF800000> : vector<128xf32>
    %245 = vector.multi_reduction <maximumf>, %244, %cst_130 [1] : vector<128x16xf32> to vector<128xf32>
    %246 = vector.shape_cast %245 : vector<128xf32> to vector<128x1xf32>
    %247 = vector.broadcast %246 : vector<128x1xf32> to vector<128x16xf32>
    %248 = arith.cmpf oeq, %244, %247 : vector<128x16xf32>
    %c16_i32_131 = arith.constant 16 : i32
    %249 = vector.broadcast %c16_i32_131 : i32 to vector<128x16xi32>
    %250 = arith.select %248, %0, %249 : vector<128x16xi1>, vector<128x16xi32>
    %cst_132 = arith.constant dense<2147483647> : vector<128xi32>
    %251 = vector.multi_reduction <minsi>, %250, %cst_132 [1] : vector<128x16xi32> to vector<128xi32>
    %252 = vector.shape_cast %251 : vector<128xi32> to vector<128x1xi32>
    %c1_133 = arith.constant 1 : index
    %c0_134 = arith.constant 0 : index
    %c4_135 = arith.constant 4 : index
    %253 = vector.load %arg4[%c1_133, %c0_134, %c4_135] : memref<2x128x8xf32, #tpu.memory_space<vmem>>, vector<1x128x1xf32>
    %254 = vector.shape_cast %253 : vector<1x128x1xf32> to vector<128x1xf32>
    %255 = vector.shape_cast %246 : vector<128x1xf32> to vector<1x128x1xf32>
    tpu.vector_store %arg4[%c1_133, %c0_134, %c4_135], %255 {strides = array<i32>} : memref<2x128x8xf32, #tpu.memory_space<vmem>>, vector<1x128x1xf32>,
    %c1_136 = arith.constant 1 : index
    %c0_137 = arith.constant 0 : index
    %c4_138 = arith.constant 4 : index
    %256 = vector.load %arg5[%c1_136, %c0_137, %c4_138] : memref<2x128x8xi32, #tpu.memory_space<vmem>>, vector<1x128x1xi32>
    %257 = vector.shape_cast %256 : vector<1x128x1xi32> to vector<128x1xi32>
    %258 = vector.shape_cast %252 : vector<128x1xi32> to vector<1x128x1xi32>
    tpu.vector_store %arg5[%c1_136, %c0_137, %c4_138], %258 {strides = array<i32>} : memref<2x128x8xi32, #tpu.memory_space<vmem>>, vector<1x128x1xi32>,
    %259 = vector.broadcast %252 : vector<128x1xi32> to vector<128x16xi32>
    %260 = arith.cmpi eq, %0, %259 : vector<128x16xi32>
    %cst_139 = arith.constant 0xFF800000 : f32
    %261 = vector.broadcast %cst_139 : f32 to vector<128x16xf32>
    %262 = arith.select %260, %261, %244 : vector<128x16xi1>, vector<128x16xf32>
    %cst_140 = arith.constant dense<0xFF800000> : vector<128xf32>
    %263 = vector.multi_reduction <maximumf>, %262, %cst_140 [1] : vector<128x16xf32> to vector<128xf32>
    %264 = vector.shape_cast %263 : vector<128xf32> to vector<128x1xf32>
    %265 = vector.broadcast %264 : vector<128x1xf32> to vector<128x16xf32>
    %266 = arith.cmpf oeq, %262, %265 : vector<128x16xf32>
    %c16_i32_141 = arith.constant 16 : i32
    %267 = vector.broadcast %c16_i32_141 : i32 to vector<128x16xi32>
    %268 = arith.select %266, %0, %267 : vector<128x16xi1>, vector<128x16xi32>
    %cst_142 = arith.constant dense<2147483647> : vector<128xi32>
    %269 = vector.multi_reduction <minsi>, %268, %cst_142 [1] : vector<128x16xi32> to vector<128xi32>
    %270 = vector.shape_cast %269 : vector<128xi32> to vector<128x1xi32>
    %c1_143 = arith.constant 1 : index
    %c0_144 = arith.constant 0 : index
    %c5_145 = arith.constant 5 : index
    %271 = vector.load %arg4[%c1_143, %c0_144, %c5_145] : memref<2x128x8xf32, #tpu.memory_space<vmem>>, vector<1x128x1xf32>
    %272 = vector.shape_cast %271 : vector<1x128x1xf32> to vector<128x1xf32>
    %273 = vector.shape_cast %264 : vector<128x1xf32> to vector<1x128x1xf32>
    tpu.vector_store %arg4[%c1_143, %c0_144, %c5_145], %273 {strides = array<i32>} : memref<2x128x8xf32, #tpu.memory_space<vmem>>, vector<1x128x1xf32>,
    %c1_146 = arith.constant 1 : index
    %c0_147 = arith.constant 0 : index
    %c5_148 = arith.constant 5 : index
    %274 = vector.load %arg5[%c1_146, %c0_147, %c5_148] : memref<2x128x8xi32, #tpu.memory_space<vmem>>, vector<1x128x1xi32>
    %275 = vector.shape_cast %274 : vector<1x128x1xi32> to vector<128x1xi32>
    %276 = vector.shape_cast %270 : vector<128x1xi32> to vector<1x128x1xi32>
    tpu.vector_store %arg5[%c1_146, %c0_147, %c5_148], %276 {strides = array<i32>} : memref<2x128x8xi32, #tpu.memory_space<vmem>>, vector<1x128x1xi32>,
    %277 = vector.broadcast %270 : vector<128x1xi32> to vector<128x16xi32>
    %278 = arith.cmpi eq, %0, %277 : vector<128x16xi32>
    %cst_149 = arith.constant 0xFF800000 : f32
    %279 = vector.broadcast %cst_149 : f32 to vector<128x16xf32>
    %280 = arith.select %278, %279, %262 : vector<128x16xi1>, vector<128x16xf32>
    %cst_150 = arith.constant dense<0xFF800000> : vector<128xf32>
    %281 = vector.multi_reduction <maximumf>, %280, %cst_150 [1] : vector<128x16xf32> to vector<128xf32>
    %282 = vector.shape_cast %281 : vector<128xf32> to vector<128x1xf32>
    %283 = vector.broadcast %282 : vector<128x1xf32> to vector<128x16xf32>
    %284 = arith.cmpf oeq, %280, %283 : vector<128x16xf32>
    %c16_i32_151 = arith.constant 16 : i32
    %285 = vector.broadcast %c16_i32_151 : i32 to vector<128x16xi32>
    %286 = arith.select %284, %0, %285 : vector<128x16xi1>, vector<128x16xi32>
    %cst_152 = arith.constant dense<2147483647> : vector<128xi32>
    %287 = vector.multi_reduction <minsi>, %286, %cst_152 [1] : vector<128x16xi32> to vector<128xi32>
    %288 = vector.shape_cast %287 : vector<128xi32> to vector<128x1xi32>
    %c1_153 = arith.constant 1 : index
    %c0_154 = arith.constant 0 : index
    %c6_155 = arith.constant 6 : index
    %289 = vector.load %arg4[%c1_153, %c0_154, %c6_155] : memref<2x128x8xf32, #tpu.memory_space<vmem>>, vector<1x128x1xf32>
    %290 = vector.shape_cast %289 : vector<1x128x1xf32> to vector<128x1xf32>
    %291 = vector.shape_cast %282 : vector<128x1xf32> to vector<1x128x1xf32>
    tpu.vector_store %arg4[%c1_153, %c0_154, %c6_155], %291 {strides = array<i32>} : memref<2x128x8xf32, #tpu.memory_space<vmem>>, vector<1x128x1xf32>,
    %c1_156 = arith.constant 1 : index
    %c0_157 = arith.constant 0 : index
    %c6_158 = arith.constant 6 : index
    %292 = vector.load %arg5[%c1_156, %c0_157, %c6_158] : memref<2x128x8xi32, #tpu.memory_space<vmem>>, vector<1x128x1xi32>
    %293 = vector.shape_cast %292 : vector<1x128x1xi32> to vector<128x1xi32>
    %294 = vector.shape_cast %288 : vector<128x1xi32> to vector<1x128x1xi32>
    tpu.vector_store %arg5[%c1_156, %c0_157, %c6_158], %294 {strides = array<i32>} : memref<2x128x8xi32, #tpu.memory_space<vmem>>, vector<1x128x1xi32>,
    %295 = vector.broadcast %288 : vector<128x1xi32> to vector<128x16xi32>
    %296 = arith.cmpi eq, %0, %295 : vector<128x16xi32>
    %cst_159 = arith.constant 0xFF800000 : f32
    %297 = vector.broadcast %cst_159 : f32 to vector<128x16xf32>
    %298 = arith.select %296, %297, %280 : vector<128x16xi1>, vector<128x16xf32>
    %cst_160 = arith.constant dense<0xFF800000> : vector<128xf32>
    %299 = vector.multi_reduction <maximumf>, %298, %cst_160 [1] : vector<128x16xf32> to vector<128xf32>
    %300 = vector.shape_cast %299 : vector<128xf32> to vector<128x1xf32>
    %301 = vector.broadcast %300 : vector<128x1xf32> to vector<128x16xf32>
    %302 = arith.cmpf oeq, %298, %301 : vector<128x16xf32>
    %c16_i32_161 = arith.constant 16 : i32
    %303 = vector.broadcast %c16_i32_161 : i32 to vector<128x16xi32>
    %304 = arith.select %302, %0, %303 : vector<128x16xi1>, vector<128x16xi32>
    %cst_162 = arith.constant dense<2147483647> : vector<128xi32>
    %305 = vector.multi_reduction <minsi>, %304, %cst_162 [1] : vector<128x16xi32> to vector<128xi32>
    %306 = vector.shape_cast %305 : vector<128xi32> to vector<128x1xi32>
    %c1_163 = arith.constant 1 : index
    %c0_164 = arith.constant 0 : index
    %c7_165 = arith.constant 7 : index
    %307 = vector.load %arg4[%c1_163, %c0_164, %c7_165] : memref<2x128x8xf32, #tpu.memory_space<vmem>>, vector<1x128x1xf32>
    %308 = vector.shape_cast %307 : vector<1x128x1xf32> to vector<128x1xf32>
    %309 = vector.shape_cast %300 : vector<128x1xf32> to vector<1x128x1xf32>
    tpu.vector_store %arg4[%c1_163, %c0_164, %c7_165], %309 {strides = array<i32>} : memref<2x128x8xf32, #tpu.memory_space<vmem>>, vector<1x128x1xf32>,
    %c1_166 = arith.constant 1 : index
    %c0_167 = arith.constant 0 : index
    %c7_168 = arith.constant 7 : index
    %310 = vector.load %arg5[%c1_166, %c0_167, %c7_168] : memref<2x128x8xi32, #tpu.memory_space<vmem>>, vector<1x128x1xi32>
    %311 = vector.shape_cast %310 : vector<1x128x1xi32> to vector<128x1xi32>
    %312 = vector.shape_cast %306 : vector<128x1xi32> to vector<1x128x1xi32>
    tpu.vector_store %arg5[%c1_166, %c0_167, %c7_168], %312 {strides = array<i32>} : memref<2x128x8xi32, #tpu.memory_space<vmem>>, vector<1x128x1xi32>,
    return
  }
  func.func @transform_0(%arg0: i32) -> (i32, i32, i32) {
    %c0_i32 = arith.constant 0 : i32
    %c0_i32_0 = arith.constant 0 : i32
    %c0_i32_1 = arith.constant 0 : i32
    return %c0_i32, %arg0, %c0_i32_0 : i32, i32, i32
  }
  func.func @transform_1(%arg0: i32) -> (i32, i32, i32) {
    %c0_i32 = arith.constant 0 : i32
    %c0_i32_0 = arith.constant 0 : i32
    %c0_i32_1 = arith.constant 0 : i32
    %c0_i32_2 = arith.constant 0 : i32
    return %c0_i32, %c0_i32_0, %c0_i32_1 : i32, i32, i32
  }
  func.func @transform_2(%arg0: i32) -> (i32, i32) {
    %c0_i32 = arith.constant 0 : i32
    %c0_i32_0 = arith.constant 0 : i32
    return %arg0, %c0_i32 : i32, i32
  }
  func.func @transform_3(%arg0: i32) -> (i32, i32, i32) {
    %c0_i32 = arith.constant 0 : i32
    %c0_i32_0 = arith.constant 0 : i32
    %c0_i32_1 = arith.constant 0 : i32
    return %c0_i32, %arg0, %c0_i32_0 : i32, i32, i32
  }
  func.func @transform_4(%arg0: i32) -> (i32, i32, i32) {
    %c0_i32 = arith.constant 0 : i32
    %c0_i32_0 = arith.constant 0 : i32
    %c0_i32_1 = arith.constant 0 : i32
    return %c0_i32, %arg0, %c0_i32_0 : i32, i32, i32
  }
}

</mosaic_0001>

<llo_original>
// kernel: tpu_custom_call.1
$region0: #{tpu_custom_call.1}
  #allocation0 [shape = 'u32[]', space=smem, size = 0x4, offset = 0x4, fixed_abs, tag = 'smem constant byte address 0x4 - core index']
  #allocation1 [shape = 'u32[144,128]{1,0:T(1,128)}', space=vmem, size = 0x12000, scoped, tag = 'internal scratch']
  %s0 = inlined_call_operand.vmem [shape: bf16[2,256,32], index: 0, kind: input, shape index: {}]
  %s1 = inlined_call_operand.vmem [shape: bf16[2,32,16], index: 1, kind: input, shape index: {}]
  %s2 = inlined_call_operand.vmem [shape: f32[256,32], index: 2, kind: output, shape index: {0}]
  %s3 = inlined_call_operand.vmem [shape: f32[2,256,8], index: 3, kind: output, shape index: {1}]
  %s4 = inlined_call_operand.vmem [shape: s32[2,256,8], index: 4, kind: output, shape index: {2}]
  %5 = xla_tuple %s2, %s3, %s4
  %s6 = sld [smem:[#allocation0]]
  $region166: #{tpu_custom_call.1} parent=0
    _
  %s8 = ssub.s32 1, %s6
  %s9 = scalar_select 0, %s8, %s6
  $region1: #{tpu_custom_call.1} parent=0
    #allocation2 [shape = 'u8[131072]{0}', space=vmem, size = 0x20000, scoped, tag = 'input window, operand 0']
    #allocation3 [shape = 'u8[262144]{0}', space=vmem, size = 0x40000, scoped, tag = 'output window, operand 1']
    #allocation4 [shape = 'u8[262144]{0}', space=vmem, size = 0x40000, scoped, tag = 'output window, operand 2']
    loop: start=0, step=1, limit=4
    $region2: #{tpu_custom_call.1} parent=1 // loop_pre_header
      _
    $region3: #{tpu_custom_call.1} parent=1 // loop_header
      %s11 = sphi 0, %s15
      %p12 = scmp.ge.s32.totalorder %s11, 4
      %s21 = sphi 0, %s23
      %s24 = sphi 0, %s21
      %s25 = sphi 0, %s24
      %s41 = sphi 0, %s25
      %s45 = sphi 0, %s45
      %s47 = sphi 0, %s45
      %s48 = sphi 0, %s47
      %s62 = sphi 0, %s48
      %s68 = sphi 0, %s70
      %s71 = sphi 0, %s68
      %s72 = sphi 0, %s71
      %s88 = sphi 0, %s72
      %s94 = sphi 0, %s96
      %s97 = sphi 0, %s94
      %s98 = sphi 0, %s97
      %s114 = sphi 0, %s98
      %s120 = sphi 0, %s122
      %s123 = sphi 0, %s120
      %s124 = sphi 0, %s123
      %s140 = sphi 0, %s124
    $region4: #{tpu_custom_call.1} parent=1 // loop_header_branch
      %14 = sbr.rel (%p12) target = $region8
    $region5: #{tpu_custom_call.1} parent=1 // loop_body
      %s16 = ssub.s32 %s11, 1
      %s17 = ssub.s32 %s11, 2
      %s18 = sadd.s32 %s11, 1
      %s19 = ssub.s32 %s11, %s18
      %p20 = scmp.eq.s32.totalorder %s19, 0
      %s22 = sadd.s32 %s21, 1
      %s23 = scalar_select %p20, %s21, %s22
      %p26 = pneg %p20
      %p27 = scmp.eq.s32.totalorder %s11, 1
      %p28 = por %p26, %p27
      %p29 = scmp.ne.s32.totalorder %s21, %s24
      %p30 = scmp.eq.s32.totalorder %s11, 0
      %p31 = por %p29, %p30
      %p32 = scmp.ne.s32.totalorder %s21, %s24
      %p33 = scmp.eq.s32.totalorder %s16, 1
      %p34 = por %p32, %p33
      %p35 = scmp.ne.s32.totalorder %s24, %s25
      %p36 = scmp.eq.s32.totalorder %s16, 0
      %p37 = por %p35, %p36
      %p38 = scmp.ne.s32.totalorder %s24, %s25
      %p39 = scmp.eq.s32.totalorder %s17, 1
      %p40 = por %p38, %p39
      %p42 = scmp.ne.s32.totalorder %s25, %s41
      %p43 = scmp.eq.s32.totalorder %s17, 0
      %p44 = por %p42, %p43
      %s46 = sadd.s32 %s45, 1
      %p49 = scmp.eq.s32.totalorder %s11, 1
      %p50 = scmp.ne.s32.totalorder %s45, %s47
      %p51 = scmp.eq.s32.totalorder %s11, 0
      %p52 = por %p50, %p51
      %p53 = scmp.ne.s32.totalorder %s45, %s47
      %p54 = scmp.eq.s32.totalorder %s16, 1
      %p55 = por %p53, %p54
      %p56 = scmp.ne.s32.totalorder %s47, %s48
      %p57 = scmp.eq.s32.totalorder %s16, 0
      %p58 = por %p56, %p57
      %p59 = scmp.ne.s32.totalorder %s47, %s48
      %p60 = scmp.eq.s32.totalorder %s17, 1
      %p61 = por %p59, %p60
      %p63 = scmp.ne.s32.totalorder %s48, %s62
      %p64 = scmp.eq.s32.totalorder %s17, 0
      %p65 = por %p63, %p64
      %s66 = ssub.s32 %s11, %s18
      %p67 = scmp.eq.s32.totalorder %s66, 0
      %s69 = sadd.s32 %s68, 1
      %s70 = scalar_select %p67, %s68, %s69
      %p73 = pneg %p67
      %p74 = scmp.eq.s32.totalorder %s11, 1
      %p75 = por %p73, %p74
      %p76 = scmp.ne.s32.totalorder %s68, %s71
      %p77 = scmp.eq.s32.totalorder %s11, 0
      %p78 = por %p76, %p77
      %p79 = scmp.ne.s32.totalorder %s68, %s71
      %p80 = scmp.eq.s32.totalorder %s16, 1
      %p81 = por %p79, %p80
      %p82 = scmp.ne.s32.totalorder %s71, %s72
      %p83 = scmp.eq.s32.totalorder %s16, 0
      %p84 = por %p82, %p83
      %p85 = scmp.ne.s32.totalorder %s71, %s72
      %p86 = scmp.eq.s32.totalorder %s17, 1
      %p87 = por %p85, %p86
      %p89 = scmp.ne.s32.totalorder %s72, %s88
      %p90 = scmp.eq.s32.totalorder %s17, 0
      %p91 = por %p89, %p90
      %s92 = ssub.s32 %s11, %s18
      %p93 = scmp.eq.s32.totalorder %s92, 0
      %s95 = sadd.s32 %s94, 1
      %s96 = scalar_select %p93, %s94, %s95
      %p99 = pneg %p93
      %p100 = scmp.eq.s32.totalorder %s11, 1
      %p101 = por %p99, %p100
      %p102 = scmp.ne.s32.totalorder %s94, %s97
      %p103 = scmp.eq.s32.totalorder %s11, 0
      %p104 = por %p102, %p103
      %p105 = scmp.ne.s32.totalorder %s94, %s97
      %p106 = scmp.eq.s32.totalorder %s16, 1
      %p107 = por %p105, %p106
      %p108 = scmp.ne.s32.totalorder %s97, %s98
      %p109 = scmp.eq.s32.totalorder %s16, 0
      %p110 = por %p108, %p109
      %p111 = scmp.ne.s32.totalorder %s97, %s98
      %p112 = scmp.eq.s32.totalorder %s17, 1
      %p113 = por %p111, %p112
      %p115 = scmp.ne.s32.totalorder %s98, %s114
      %p116 = scmp.eq.s32.totalorder %s17, 0
      %p117 = por %p115, %p116
      %s118 = ssub.s32 %s11, %s18
      %p119 = scmp.eq.s32.totalorder %s118, 0
      %s121 = sadd.s32 %s120, 1
      %s122 = scalar_select %p119, %s120, %s121
      %p125 = pneg %p119
      %p126 = scmp.eq.s32.totalorder %s11, 1
      %p127 = por %p125, %p126
      %p128 = scmp.ne.s32.totalorder %s120, %s123
      %p129 = scmp.eq.s32.totalorder %s11, 0
      %p130 = por %p128, %p129
      %p131 = scmp.ne.s32.totalorder %s120, %s123
      %p132 = scmp.eq.s32.totalorder %s16, 1
      %p133 = por %p131, %p132
      %p134 = scmp.ne.s32.totalorder %s123, %s124
      %p135 = scmp.eq.s32.totalorder %s16, 0
      %p136 = por %p134, %p135
      %p137 = scmp.ne.s32.totalorder %s123, %s124
      %p138 = scmp.eq.s32.totalorder %s17, 1
      %p139 = por %p137, %p138
      %p141 = scmp.ne.s32.totalorder %s124, %s140
      %p142 = scmp.eq.s32.totalorder %s17, 0
      %p143 = por %p141, %p142
      %p144 = scmp.le.s32.totalorder 1, %s11
      %p145 = scmp.lt.s32.totalorder %s11, 3
      %p146 = pnand %p144, %p145
      %p147 = pneg %p146
      // Predicated region
      $region9: #{tpu_custom_call.1} parent=5 // pred_check
        _
      $region10: #{tpu_custom_call.1} parent=5 // pred_check_branch
        %149 = sbr.rel (%p146) target = $region12
      $region11: #{tpu_custom_call.1} parent=5 // pred_region
        %s150 = ssub.s32 %s11, 1
        // Predicated region
        $region13: #{tpu_custom_call.1} parent=11 // pred_check
          %p151 = pneg %p58
        $region14: #{tpu_custom_call.1} parent=11 // pred_check_branch
          %153 = sbr.rel (%p151) target = $region16
        $region15: #{tpu_custom_call.1} parent=11 // pred_region
          _
        $region16: #{tpu_custom_call.1} parent=11 // pred_fallthru
          _
      $region12: #{tpu_custom_call.1} parent=5 // pred_fallthru
        _
      %p154 = scmp.lt.s32.totalorder %s11, 2
      // Predicated region
      $region17: #{tpu_custom_call.1} parent=5 // pred_check
        %p155 = pneg %p154
      $region18: #{tpu_custom_call.1} parent=5 // pred_check_branch
        %157 = sbr.rel (%p155) target = $region20
      $region19: #{tpu_custom_call.1} parent=5 // pred_region
        // Predicated region
        $region21: #{tpu_custom_call.1} parent=19 // pred_check
          %p158 = pneg %p31
        $region22: #{tpu_custom_call.1} parent=19 // pred_check_branch
          %160 = sbr.rel (%p158) target = $region24
        $region23: #{tpu_custom_call.1} parent=19 // pred_region
          %s161 = sand.u32 %s21, 1
          %s162 = sand.u32 %s21, 1
          %s163 = smul.addr %s162, 128
          %s164 = scalar_lea.vmem [#allocation2], %s163
          %s165 = smul.u32 16, %s11
          %s166 = smul.addr %s165, 4
          %s167 = scalar_lea.vmem %s0, %s166
          // Predicated region
          $region25: #{tpu_custom_call.1} parent=23 // pred_check
            _
          $region26: #{tpu_custom_call.1} parent=23 // pred_check_branch
            %169 = sbr.rel (0) target = $region28
          $region27: #{tpu_custom_call.1} parent=23 // pred_region
            // Predicated region
            $region29: #{tpu_custom_call.1} parent=27 // pred_check
              _
            $region30: #{tpu_custom_call.1} parent=27 // pred_check_branch
              %171 = sbr.rel target = $region32
            $region31: #{tpu_custom_call.1} parent=27 // pred_region
              // Predicated region
              $region44: #{tpu_custom_call.1} parent=31 // pred_check
                _
              $region45: #{tpu_custom_call.1} parent=31 // pred_check_branch
                %249 = sbr.rel (0) target = $region47
              $region46: #{tpu_custom_call.1} parent=31 // pred_region
                loop: start=0, step=1, limit=1
                $region48: #{tpu_custom_call.1} parent=46 // loop_pre_header
                  _
                $region49: #{tpu_custom_call.1} parent=46 // loop_header
                  %s251 = sphi 0, %s255
                  %p252 = scmp.ge.s32.totalorder %s251, 1
                  %s256 = sphi %s167, %s167
                  %s257 = sphi %s164, %s164
                $region50: #{tpu_custom_call.1} parent=46 // loop_header_branch
                  %254 = sbr.rel (%p252) target = $region54
                $region51: #{tpu_custom_call.1} parent=46 // loop_body
                  _
                $region52: #{tpu_custom_call.1} parent=46 // loop_footer
                  %s255 = sadd.s32 1, %s251
                $region53: #{tpu_custom_call.1} parent=46 // loop_footer_branch
                  %250 = sbr.rel target = $region49
                $region54: #{tpu_custom_call.1} parent=46 // loop_exit
                  _
                %s259 = ssub.s32 16, 1
                loop: start=0, step=1, limit=1
                $region55: #{tpu_custom_call.1} parent=46 // loop_pre_header
                  _
                $region56: #{tpu_custom_call.1} parent=46 // loop_header
                  %s261 = sphi 0, %s265
                  %p262 = scmp.ge.s32.totalorder %s261, 1
                  %s266 = sphi %s167, %s167
                  %s267 = sphi %s164, %s164
                $region57: #{tpu_custom_call.1} parent=46 // loop_header_branch
                  %264 = sbr.rel (%p262) target = $region61
                $region58: #{tpu_custom_call.1} parent=46 // loop_body
                  %v268 = vld [vmem:[%s266] sm:%s259]
                  %269 = vst [vmem:[%s267] sm:%s259] %v268
                  %v270 = vld [vmem:[%s266 + $0x4] sm:%s259]
                  %271 = vst [vmem:[%s267 + $0x4] sm:%s259] %v270
                  %v272 = vld [vmem:[%s266 + $0x8] sm:%s259]
                  %273 = vst [vmem:[%s267 + $0x8] sm:%s259] %v272
                  %v274 = vld [vmem:[%s266 + $0xc] sm:%s259]
                  %275 = vst [vmem:[%s267 + $0xc] sm:%s259] %v274
                  %v276 = vld [vmem:[%s266 + $0x10] sm:%s259]
                  %277 = vst [vmem:[%s267 + $0x10] sm:%s259] %v276
                  %v278 = vld [vmem:[%s266 + $0x14] sm:%s259]
                  %279 = vst [vmem:[%s267 + $0x14] sm:%s259] %v278
                  %v280 = vld [vmem:[%s266 + $0x18] sm:%s259]
                  %281 = vst [vmem:[%s267 + $0x18] sm:%s259] %v280
                  %v282 = vld [vmem:[%s266 + $0x1c] sm:%s259]
                  %283 = vst [vmem:[%s267 + $0x1c] sm:%s259] %v282
                  %v284 = vld [vmem:[%s266 + $0x20] sm:%s259]
                  %285 = vst [vmem:[%s267 + $0x20] sm:%s259] %v284
                  %v286 = vld [vmem:[%s266 + $0x24] sm:%s259]
                  %287 = vst [vmem:[%s267 + $0x24] sm:%s259] %v286
                  %v288 = vld [vmem:[%s266 + $0x28] sm:%s259]
                  %289 = vst [vmem:[%s267 + $0x28] sm:%s259] %v288
                  %v290 = vld [vmem:[%s266 + $0x2c] sm:%s259]
                  %291 = vst [vmem:[%s267 + $0x2c] sm:%s259] %v290
                  %v292 = vld [vmem:[%s266 + $0x30] sm:%s259]
                  %293 = vst [vmem:[%s267 + $0x30] sm:%s259] %v292
                  %v294 = vld [vmem:[%s266 + $0x34] sm:%s259]
                  %295 = vst [vmem:[%s267 + $0x34] sm:%s259] %v294
                  %v296 = vld [vmem:[%s266 + $0x38] sm:%s259]
                  %297 = vst [vmem:[%s267 + $0x38] sm:%s259] %v296
                  %v298 = vld [vmem:[%s266 + $0x3c] sm:%s259]
                  %299 = vst [vmem:[%s267 + $0x3c] sm:%s259] %v298
                  %v300 = vld [vmem:[%s266 + $0x80] sm:%s259]
                  %301 = vst [vmem:[%s267 + $0x40] sm:%s259] %v300
                  %v302 = vld [vmem:[%s266 + $0x84] sm:%s259]
                  %303 = vst [vmem:[%s267 + $0x44] sm:%s259] %v302
                  %v304 = vld [vmem:[%s266 + $0x88] sm:%s259]
                  %305 = vst [vmem:[%s267 + $0x48] sm:%s259] %v304
                  %v306 = vld [vmem:[%s266 + $0x8c] sm:%s259]
                  %307 = vst [vmem:[%s267 + $0x4c] sm:%s259] %v306
                  %v308 = vld [vmem:[%s266 + $0x90] sm:%s259]
                  %309 = vst [vmem:[%s267 + $0x50] sm:%s259] %v308
                  %v310 = vld [vmem:[%s266 + $0x94] sm:%s259]
                  %311 = vst [vmem:[%s267 + $0x54] sm:%s259] %v310
                  %v312 = vld [vmem:[%s266 + $0x98] sm:%s259]
                  %313 = vst [vmem:[%s267 + $0x58] sm:%s259] %v312
                  %v314 = vld [vmem:[%s266 + $0x9c] sm:%s259]
                  %315 = vst [vmem:[%s267 + $0x5c] sm:%s259] %v314
                  %v316 = vld [vmem:[%s266 + $0xa0] sm:%s259]
                  %317 = vst [vmem:[%s267 + $0x60] sm:%s259] %v316
                  %v318 = vld [vmem:[%s266 + $0xa4] sm:%s259]
                  %319 = vst [vmem:[%s267 + $0x64] sm:%s259] %v318
                  %v320 = vld [vmem:[%s266 + $0xa8] sm:%s259]
                  %321 = vst [vmem:[%s267 + $0x68] sm:%s259] %v320
                  %v322 = vld [vmem:[%s266 + $0xac] sm:%s259]
                  %323 = vst [vmem:[%s267 + $0x6c] sm:%s259] %v322
                  %v324 = vld [vmem:[%s266 + $0xb0] sm:%s259]
                  %325 = vst [vmem:[%s267 + $0x70] sm:%s259] %v324
                  %v326 = vld [vmem:[%s266 + $0xb4] sm:%s259]
                  %327 = vst [vmem:[%s267 + $0x74] sm:%s259] %v326
                  %v328 = vld [vmem:[%s266 + $0xb8] sm:%s259]
                  %329 = vst [vmem:[%s267 + $0x78] sm:%s259] %v328
                  %v330 = vld [vmem:[%s266 + $0xbc] sm:%s259]
                  %331 = vst [vmem:[%s267 + $0x7c] sm:%s259] %v330
                $region59: #{tpu_custom_call.1} parent=46 // loop_footer
                  %s265 = sadd.s32 1, %s261
                $region60: #{tpu_custom_call.1} parent=46 // loop_footer_branch
                  %260 = sbr.rel target = $region56
                $region61: #{tpu_custom_call.1} parent=46 // loop_exit
                  _
              $region47: #{tpu_custom_call.1} parent=31 // pred_fallthru
                _
            $region32: #{tpu_custom_call.1} parent=27 // pred_fallthru
              _
            // Predicated region
            $region33: #{tpu_custom_call.1} parent=27 // pred_check
              _
            $region34: #{tpu_custom_call.1} parent=27 // pred_check_branch
              %173 = sbr.rel (0) target = $region36
            $region35: #{tpu_custom_call.1} parent=27 // pred_region
              %s175 = ssub.s32 16, 1
              loop: start=0, step=1, limit=1
              $region37: #{tpu_custom_call.1} parent=35 // loop_pre_header
                _
              $region38: #{tpu_custom_call.1} parent=35 // loop_header
                %s177 = sphi 0, %s181
                %p178 = scmp.ge.s32.totalorder %s177, 1
                %s182 = sphi %s167, %s167
                %s183 = sphi %s164, %s164
              $region39: #{tpu_custom_call.1} parent=35 // loop_header_branch
                %180 = sbr.rel (%p178) target = $region43
              $region40: #{tpu_custom_call.1} parent=35 // loop_body
                %v184 = vld [vmem:[%s182] sm:%s175]
                %185 = vst [vmem:[%s183] sm:%s175] %v184
                %v186 = vld [vmem:[%s182 + $0x4] sm:%s175]
                %187 = vst [vmem:[%s183 + $0x4] sm:%s175] %v186
                %v188 = vld [vmem:[%s182 + $0x8] sm:%s175]
                %189 = vst [vmem:[%s183 + $0x8] sm:%s175] %v188
                %v190 = vld [vmem:[%s182 + $0xc] sm:%s175]
                %191 = vst [vmem:[%s183 + $0xc] sm:%s175] %v190
                %v192 = vld [vmem:[%s182 + $0x10] sm:%s175]
                %193 = vst [vmem:[%s183 + $0x10] sm:%s175] %v192
                %v194 = vld [vmem:[%s182 + $0x14] sm:%s175]
                %195 = vst [vmem:[%s183 + $0x14] sm:%s175] %v194
                %v196 = vld [vmem:[%s182 + $0x18] sm:%s175]
                %197 = vst [vmem:[%s183 + $0x18] sm:%s175] %v196
                %v198 = vld [vmem:[%s182 + $0x1c] sm:%s175]
                %199 = vst [vmem:[%s183 + $0x1c] sm:%s175] %v198
                %v200 = vld [vmem:[%s182 + $0x20] sm:%s175]
                %201 = vst [vmem:[%s183 + $0x20] sm:%s175] %v200
                %v202 = vld [vmem:[%s182 + $0x24] sm:%s175]
                %203 = vst [vmem:[%s183 + $0x24] sm:%s175] %v202
                %v204 = vld [vmem:[%s182 + $0x28] sm:%s175]
                %205 = vst [vmem:[%s183 + $0x28] sm:%s175] %v204
                %v206 = vld [vmem:[%s182 + $0x2c] sm:%s175]
                %207 = vst [vmem:[%s183 + $0x2c] sm:%s175] %v206
                %v208 = vld [vmem:[%s182 + $0x30] sm:%s175]
                %209 = vst [vmem:[%s183 + $0x30] sm:%s175] %v208
                %v210 = vld [vmem:[%s182 + $0x34] sm:%s175]
                %211 = vst [vmem:[%s183 + $0x34] sm:%s175] %v210
                %v212 = vld [vmem:[%s182 + $0x38] sm:%s175]
                %213 = vst [vmem:[%s183 + $0x38] sm:%s175] %v212
                %v214 = vld [vmem:[%s182 + $0x3c] sm:%s175]
                %215 = vst [vmem:[%s183 + $0x3c] sm:%s175] %v214
                %v216 = vld [vmem:[%s182 + $0x80] sm:%s175]
                %217 = vst [vmem:[%s183 + $0x40] sm:%s175] %v216
                %v218 = vld [vmem:[%s182 + $0x84] sm:%s175]
                %219 = vst [vmem:[%s183 + $0x44] sm:%s175] %v218
                %v220 = vld [vmem:[%s182 + $0x88] sm:%s175]
                %221 = vst [vmem:[%s183 + $0x48] sm:%s175] %v220
                %v222 = vld [vmem:[%s182 + $0x8c] sm:%s175]
                %223 = vst [vmem:[%s183 + $0x4c] sm:%s175] %v222
                %v224 = vld [vmem:[%s182 + $0x90] sm:%s175]
                %225 = vst [vmem:[%s183 + $0x50] sm:%s175] %v224
                %v226 = vld [vmem:[%s182 + $0x94] sm:%s175]
                %227 = vst [vmem:[%s183 + $0x54] sm:%s175] %v226
                %v228 = vld [vmem:[%s182 + $0x98] sm:%s175]
                %229 = vst [vmem:[%s183 + $0x58] sm:%s175] %v228
                %v230 = vld [vmem:[%s182 + $0x9c] sm:%s175]
                %231 = vst [vmem:[%s183 + $0x5c] sm:%s175] %v230
                %v232 = vld [vmem:[%s182 + $0xa0] sm:%s175]
                %233 = vst [vmem:[%s183 + $0x60] sm:%s175] %v232
                %v234 = vld [vmem:[%s182 + $0xa4] sm:%s175]
                %235 = vst [vmem:[%s183 + $0x64] sm:%s175] %v234
                %v236 = vld [vmem:[%s182 + $0xa8] sm:%s175]
                %237 = vst [vmem:[%s183 + $0x68] sm:%s175] %v236
                %v238 = vld [vmem:[%s182 + $0xac] sm:%s175]
                %239 = vst [vmem:[%s183 + $0x6c] sm:%s175] %v238
                %v240 = vld [vmem:[%s182 + $0xb0] sm:%s175]
                %241 = vst [vmem:[%s183 + $0x70] sm:%s175] %v240
                %v242 = vld [vmem:[%s182 + $0xb4] sm:%s175]
                %243 = vst [vmem:[%s183 + $0x74] sm:%s175] %v242
                %v244 = vld [vmem:[%s182 + $0xb8] sm:%s175]
                %245 = vst [vmem:[%s183 + $0x78] sm:%s175] %v244
                %v246 = vld [vmem:[%s182 + $0xbc] sm:%s175]
                %247 = vst [vmem:[%s183 + $0x7c] sm:%s175] %v246
              $region41: #{tpu_custom_call.1} parent=35 // loop_footer
                %s181 = sadd.s32 1, %s177
              $region42: #{tpu_custom_call.1} parent=35 // loop_footer_branch
                %176 = sbr.rel target = $region38
              $region43: #{tpu_custom_call.1} parent=35 // loop_exit
                _
            $region36: #{tpu_custom_call.1} parent=27 // pred_fallthru
              _
          $region28: #{tpu_custom_call.1} parent=23 // pred_fallthru
            _
          %332 = vnop
        $region24: #{tpu_custom_call.1} parent=19 // pred_fallthru
          _
      $region20: #{tpu_custom_call.1} parent=5 // pred_fallthru
        _
      %p333 = scmp.le.s32.totalorder 1, %s11
      %p334 = scmp.lt.s32.totalorder %s11, 3
      %p335 = pnand %p333, %p334
      %p336 = pneg %p335
      // Predicated region
      $region62: #{tpu_custom_call.1} parent=5 // pred_check
        _
      $region63: #{tpu_custom_call.1} parent=5 // pred_check_branch
        %338 = sbr.rel (%p335) target = $region65
      $region64: #{tpu_custom_call.1} parent=5 // pred_region
        %s339 = ssub.s32 %s11, 1
        %s340 = sand.u32 %s24, 1
        %s341 = sand.u32 %s24, 1
        %s342 = smul.addr %s341, 128
        %s343 = scalar_lea.vmem [#allocation2], %s342
        // Predicated region
        $region66: #{tpu_custom_call.1} parent=64 // pred_check
          %p344 = pneg %p37
        $region67: #{tpu_custom_call.1} parent=64 // pred_check_branch
          %346 = sbr.rel (%p344) target = $region69
        $region68: #{tpu_custom_call.1} parent=64 // pred_region
          _
        $region69: #{tpu_custom_call.1} parent=64 // pred_fallthru
          _
        %s347 = sand.u32 %s24, 1
        %s348 = sand.u32 %s24, 1
        %s349 = smul.addr %s348, 128
        %s350 = scalar_lea.vmem [#allocation2], %s349
        %p351 = pneg %p37
        %p352 = pneg %p34
        %p353 = pneg %p58
        %p354 = pneg %p55
        %p355 = pneg %p84
        %p356 = pneg %p81
        %s357 = smul.u32 16, %s16
        %p358 = scmp.lt.s32.totalorder %s357, 31
        %s359 = scalar_select %p358, %s357, 31
        %s360 = smul.addr %s359, 8
        %s361 = scalar_lea.vmem %s2, %s360
        %p362 = pneg %p110
        %p363 = pneg %p107
        %s364 = sand.u32 %s97, 1
        %s365 = sand.u32 %s97, 1
        %s366 = smul.addr %s365, 256
        %s367 = scalar_lea.vmem [#allocation3], %s366
        %p368 = pneg %p136
        %p369 = pneg %p133
        %s370 = sand.u32 %s123, 1
        %s371 = sand.u32 %s123, 1
        %s372 = smul.addr %s371, 256
        %s373 = scalar_lea.vmem [#allocation4], %s372
        %s374 = smul.u32 16, %s16
        %s375 = smul.u32 16, %s16
        %p376 = scmp.lt.s32.totalorder %s375, 31
        %s377 = scalar_select %p376, %s375, 31
        %s378 = smul.addr %s377, 8
        %s379 = scalar_lea.vmem %s2, %s378
        %s380 = smul.u32 16, %s16
        %s381 = smul.u32 16, %s16
        %s382 = smul.u32 16, %s16
        %v384 = vlaneseq
        %v385 = vand.u32 %v384, 127
        %v386 = vld [vmem:[%s343] sm:$0xf]
        %v387 = vld [vmem:[%s343 + $0x4] sm:$0xf]
        %v388 = vld [vmem:[%s343 + $0x8] sm:$0xf]
        %v389 = vld [vmem:[%s343 + $0xc] sm:$0xf]
        %v390 = vld [vmem:[%s343 + $0x10] sm:$0xf]
        %v391 = vld [vmem:[%s343 + $0x14] sm:$0xf]
        %v392 = vld [vmem:[%s343 + $0x18] sm:$0xf]
        %v393 = vld [vmem:[%s343 + $0x1c] sm:$0xf]
        %v394 = vld [vmem:[%s343 + $0x20] sm:$0xf]
        %v395 = vld [vmem:[%s343 + $0x24] sm:$0xf]
        %v396 = vld [vmem:[%s343 + $0x28] sm:$0xf]
        %v397 = vld [vmem:[%s343 + $0x2c] sm:$0xf]
        %v398 = vld [vmem:[%s343 + $0x30] sm:$0xf]
        %v399 = vld [vmem:[%s343 + $0x34] sm:$0xf]
        %v400 = vld [vmem:[%s343 + $0x38] sm:$0xf]
        %v401 = vld [vmem:[%s343 + $0x3c] sm:$0xf]
        %v402 = vld [vmem:[%s1] sm:$0xf]
        %v403 = vld [vmem:[%s1 + $0x4] sm:$0xf]
        %v404 = vld [vmem:[%s1 + $0x8] sm:$0xf]
        %v405 = vld [vmem:[%s1 + $0xc] sm:$0xf]
        %v422 = vunpack.c.l.b16 %v386
        %v423 = vunpack.c.l.b16 %v387
        %v424 = vunpack.c.l.b16 %v388
        %v425 = vunpack.c.l.b16 %v389
        %v426 = vunpack.c.l.b16 %v390
        %v427 = vunpack.c.l.b16 %v391
        %v428 = vunpack.c.l.b16 %v392
        %v429 = vunpack.c.l.b16 %v393
        %v430 = vunpack.c.l.b16 %v394
        %v431 = vunpack.c.l.b16 %v395
        %v432 = vunpack.c.l.b16 %v396
        %v433 = vunpack.c.l.b16 %v397
        %v434 = vunpack.c.l.b16 %v398
        %v435 = vunpack.c.l.b16 %v399
        %v436 = vunpack.c.l.b16 %v400
        %v437 = vunpack.c.l.b16 %v401
        %v438 = vpack.c.b16 %v423, %v422
        %v439 = vpack.c.b16 %v425, %v424
        %v440 = vpack.c.b16 %v427, %v426
        %v441 = vpack.c.b16 %v429, %v428
        %v442 = vpack.c.b16 %v431, %v430
        %v443 = vpack.c.b16 %v433, %v432
        %v444 = vpack.c.b16 %v435, %v434
        %v445 = vpack.c.b16 %v437, %v436
        %v450 = vunpack.c.l.b16 %v402
        %v451 = vunpack.c.l.b16 %v403
        %v452 = vunpack.c.l.b16 %v404
        %v453 = vunpack.c.l.b16 %v405
        %v454 = vpack.c.b16 %v451, %v450
        %v455 = vpack.c.b16 %v453, %v452
        %vm458 = vcmask 261120
        %v460 = vsel %vm458, %v438, 0
        %v463 = vsel %vm458, %v439, 0
        %v466 = vsel %vm458, %v440, 0
        %v469 = vsel %vm458, %v441, 0
        %v472 = vsel %vm458, %v442, 0
        %v475 = vsel %vm458, %v443, 0
        %v478 = vsel %vm458, %v444, 0
        %v481 = vsel %vm458, %v445, 0
        %483 = vmatprep.subr.bf16.mxu0 0
        %484 = vmatpush1.bf16.msra.mxu0 0
        %485 = vmatprep.subr.bf16.mxu0 0
        %486 = vmatpush1.bf16.msra.mxu0 0
        %487 = vmatprep.subr.bf16.mxu0 0
        %488 = vmatpush1.bf16.msra.mxu0 0
        %489 = vmatprep.subr.bf16.mxu0 0
        %490 = vmatpush1.bf16.msra.mxu0 0
        %491 = vmatprep.subr.bf16.mxu0 0
        %492 = vmatpush1.bf16.msra.mxu0 0
        %493 = vmatprep.subr.bf16.mxu0 0
        %494 = vmatpush1.bf16.msra.mxu0 0
        %495 = vmatprep.subr.bf16.mxu0 0
        %496 = vmatpush1.bf16.msra.mxu0 %v455
        %497 = vmatprep.subr.bf16.mxu0 0
        %498 = vmatpush1.bf16.msra.mxu0 %v454
        %499 = vmatprep.subr.bf16.mxu0 0
        %500 = vmatpush2.bf16.msra.mxu0 0
        %501 = vmatprep.subr.bf16.mxu0 0
        %502 = vmatpush2.bf16.msra.mxu0 0
        %503 = vmatprep.subr.bf16.mxu0 0
        %504 = vmatpush2.bf16.msra.mxu0 0
        %505 = vmatprep.subr.bf16.mxu0 0
        %506 = vmatpush2.bf16.msra.mxu0 0
        %507 = vmatprep.subr.bf16.mxu0 0
        %508 = vmatpush2.bf16.msra.mxu0 0
        %509 = vmatprep.subr.bf16.mxu0 0
        %510 = vmatpush2.bf16.msra.mxu0 0
        %511 = vmatprep.subr.bf16.mxu0 0
        %512 = vmatpush2.bf16.msra.mxu0 0
        %513 = vmatprep.subr.bf16.mxu0 0
        %514 = vmatpush2.bf16.msra.mxu0 0
        %515 = vmatprep.mubr.bf16.mxu0 0
        %516 = vmatmul.mubr.bf16.gmra.mxu0 %v460
        %v517 = vpop.f32.mrf.mxu0
        %v518 = vadd.f32 0.0, %v517
        %v519 = vpop.f32.mrf.mxu0
        %v520 = vpop.f32.mrf.mxu0
        %v521 = vadd.f32 0.0, %v520
        %v522 = vpop.f32.mrf.mxu0
        %523 = vmatprep.mubr.bf16.mxu0 0
        %524 = vmatmul.mubr.bf16.gmra.mxu0 %v463
        %v525 = vpop.f32.mrf.mxu0
        %v526 = vadd.f32 0.0, %v525
        %v527 = vpop.f32.mrf.mxu0
        %v528 = vpop.f32.mrf.mxu0
        %v529 = vadd.f32 0.0, %v528
        %v530 = vpop.f32.mrf.mxu0
        %531 = vmatprep.mubr.bf16.mxu0 0
        %532 = vmatmul.mubr.bf16.gmra.mxu0 %v466
        %v533 = vpop.f32.mrf.mxu0
        %v534 = vadd.f32 0.0, %v533
        %v535 = vpop.f32.mrf.mxu0
        %v536 = vpop.f32.mrf.mxu0
        %v537 = vadd.f32 0.0, %v536
        %v538 = vpop.f32.mrf.mxu0
        %539 = vmatprep.mubr.bf16.mxu0 0
        %540 = vmatmul.mubr.bf16.gmra.mxu0 %v469
        %v541 = vpop.f32.mrf.mxu0
        %v542 = vadd.f32 0.0, %v541
        %v543 = vpop.f32.mrf.mxu0
        %v544 = vpop.f32.mrf.mxu0
        %v545 = vadd.f32 0.0, %v544
        %v546 = vpop.f32.mrf.mxu0
        %547 = vmatprep.mubr.bf16.mxu0 0
        %548 = vmatmul.mubr.bf16.gmra.mxu0 %v472
        %v549 = vpop.f32.mrf.mxu0
        %v550 = vadd.f32 0.0, %v549
        %v551 = vpop.f32.mrf.mxu0
        %v552 = vpop.f32.mrf.mxu0
        %v553 = vadd.f32 0.0, %v552
        %v554 = vpop.f32.mrf.mxu0
        %555 = vmatprep.mubr.bf16.mxu0 0
        %556 = vmatmul.mubr.bf16.gmra.mxu0 %v475
        %v557 = vpop.f32.mrf.mxu0
        %v558 = vadd.f32 0.0, %v557
        %v559 = vpop.f32.mrf.mxu0
        %v560 = vpop.f32.mrf.mxu0
        %v561 = vadd.f32 0.0, %v560
        %v562 = vpop.f32.mrf.mxu0
        %563 = vmatprep.mubr.bf16.mxu0 0
        %564 = vmatmul.mubr.bf16.gmra.mxu0 %v478
        %v565 = vpop.f32.mrf.mxu0
        %v566 = vadd.f32 0.0, %v565
        %v567 = vpop.f32.mrf.mxu0
        %v568 = vpop.f32.mrf.mxu0
        %v569 = vadd.f32 0.0, %v568
        %v570 = vpop.f32.mrf.mxu0
        %571 = vmatprep.mubr.bf16.mxu0 0
        %572 = vmatmul.mubr.bf16.gmra.mxu0 %v481
        %v573 = vpop.f32.mrf.mxu0
        %v574 = vadd.f32 0.0, %v573
        %v575 = vpop.f32.mrf.mxu0
        %v576 = vpop.f32.mrf.mxu0
        %v577 = vadd.f32 0.0, %v576
        %v578 = vpop.f32.mrf.mxu0
        %579 = vdwg.mxu0
        %vm580 = vcmask 130048
        %v581 = vsel %vm580, %v518, -inf
        %582 = vmax.xlane.f32.xlu0 %v581
        %v583 = vpop.xlane.xlu0 %582
        %v584 = vsel %vm580, %v521, -inf
        %585 = vmax.xlane.f32.xlu0 %v584
        %v586 = vpop.xlane.xlu0 %585
        %v587 = vsel %vm580, %v526, -inf
        %588 = vmax.xlane.f32.xlu0 %v587
        %v589 = vpop.xlane.xlu0 %588
        %v590 = vsel %vm580, %v529, -inf
        %591 = vmax.xlane.f32.xlu0 %v590
        %v592 = vpop.xlane.xlu0 %591
        %v593 = vsel %vm580, %v534, -inf
        %594 = vmax.xlane.f32.xlu0 %v593
        %v595 = vpop.xlane.xlu0 %594
        %v596 = vsel %vm580, %v537, -inf
        %597 = vmax.xlane.f32.xlu0 %v596
        %v598 = vpop.xlane.xlu0 %597
        %v599 = vsel %vm580, %v542, -inf
        %600 = vmax.xlane.f32.xlu0 %v599
        %v601 = vpop.xlane.xlu0 %600
        %v602 = vsel %vm580, %v545, -inf
        %603 = vmax.xlane.f32.xlu0 %v602
        %v604 = vpop.xlane.xlu0 %603
        %v605 = vsel %vm580, %v550, -inf
        %606 = vmax.xlane.f32.xlu0 %v605
        %v607 = vpop.xlane.xlu0 %606
        %v608 = vsel %vm580, %v553, -inf
        %609 = vmax.xlane.f32.xlu0 %v608
        %v610 = vpop.xlane.xlu0 %609
        %v611 = vsel %vm580, %v558, -inf
        %612 = vmax.xlane.f32.xlu0 %v611
        %v613 = vpop.xlane.xlu0 %612
        %v614 = vsel %vm580, %v561, -inf
        %615 = vmax.xlane.f32.xlu0 %v614
        %v616 = vpop.xlane.xlu0 %615
        %v617 = vsel %vm580, %v566, -inf
        %618 = vmax.xlane.f32.xlu0 %v617
        %v619 = vpop.xlane.xlu0 %618
        %v620 = vsel %vm580, %v569, -inf
        %621 = vmax.xlane.f32.xlu0 %v620
        %v622 = vpop.xlane.xlu0 %621
        %v623 = vsel %vm580, %v574, -inf
        %624 = vmax.xlane.f32.xlu0 %v623
        %v625 = vpop.xlane.xlu0 %624
        %v626 = vsel %vm580, %v577, -inf
        %627 = vmax.xlane.f32.xlu0 %v626
        %v628 = vpop.xlane.xlu0 %627
        %v629 = vsub.f32 %v518, %v583
        %v630 = vsub.f32 %v521, %v586
        %v631 = vsub.f32 %v526, %v589
        %v632 = vsub.f32 %v529, %v592
        %v633 = vsub.f32 %v534, %v595
        %v634 = vsub.f32 %v537, %v598
        %v635 = vsub.f32 %v542, %v601
        %v636 = vsub.f32 %v545, %v604
        %v637 = vsub.f32 %v550, %v607
        %v638 = vsub.f32 %v553, %v610
        %v639 = vsub.f32 %v558, %v613
        %v640 = vsub.f32 %v561, %v616
        %v641 = vsub.f32 %v566, %v619
        %v642 = vsub.f32 %v569, %v622
        %v643 = vsub.f32 %v574, %v625
        %v644 = vsub.f32 %v577, %v628
        %v645 = vmul.f32 %v629, 1.442695
        %v646 = vpow.pop %v645
        %v647 = vmul.f32 %v630, 1.442695
        %v648 = vpow.pop %v647
        %v649 = vmul.f32 %v631, 1.442695
        %v650 = vpow.pop %v649
        %v651 = vmul.f32 %v632, 1.442695
        %v652 = vpow.pop %v651
        %v653 = vmul.f32 %v633, 1.442695
        %v654 = vpow.pop %v653
        %v655 = vmul.f32 %v634, 1.442695
        %v656 = vpow.pop %v655
        %v657 = vmul.f32 %v635, 1.442695
        %v658 = vpow.pop %v657
        %v659 = vmul.f32 %v636, 1.442695
        %v660 = vpow.pop %v659
        %v661 = vmul.f32 %v637, 1.442695
        %v662 = vpow.pop %v661
        %v663 = vmul.f32 %v638, 1.442695
        %v664 = vpow.pop %v663
        %v665 = vmul.f32 %v639, 1.442695
        %v666 = vpow.pop %v665
        %v667 = vmul.f32 %v640, 1.442695
        %v668 = vpow.pop %v667
        %v669 = vmul.f32 %v641, 1.442695
        %v670 = vpow.pop %v669
        %v671 = vmul.f32 %v642, 1.442695
        %v672 = vpow.pop %v671
        %v673 = vmul.f32 %v643, 1.442695
        %v674 = vpow.pop %v673
        %v675 = vmul.f32 %v644, 1.442695
        %v676 = vpow.pop %v675
        %v677 = vsel %vm580, %v646, 0.0
        %678 = vadd.xlane.f32.xlu0 %v677
        %v679 = vpop.xlane.xlu0 %678
        %v680 = vsel %vm580, %v648, 0.0
        %681 = vadd.xlane.f32.xlu0 %v680
        %v682 = vpop.xlane.xlu0 %681
        %v683 = vsel %vm580, %v650, 0.0
        %684 = vadd.xlane.f32.xlu0 %v683
        %v685 = vpop.xlane.xlu0 %684
        %v686 = vsel %vm580, %v652, 0.0
        %687 = vadd.xlane.f32.xlu0 %v686
        %v688 = vpop.xlane.xlu0 %687
        %v689 = vsel %vm580, %v654, 0.0
        %690 = vadd.xlane.f32.xlu0 %v689
        %v691 = vpop.xlane.xlu0 %690
        %v692 = vsel %vm580, %v656, 0.0
        %693 = vadd.xlane.f32.xlu0 %v692
        %v694 = vpop.xlane.xlu0 %693
        %v695 = vsel %vm580, %v658, 0.0
        %696 = vadd.xlane.f32.xlu0 %v695
        %v697 = vpop.xlane.xlu0 %696
        %v698 = vsel %vm580, %v660, 0.0
        %699 = vadd.xlane.f32.xlu0 %v698
        %v700 = vpop.xlane.xlu0 %699
        %v701 = vsel %vm580, %v662, 0.0
        %702 = vadd.xlane.f32.xlu0 %v701
        %v703 = vpop.xlane.xlu0 %702
        %v704 = vsel %vm580, %v664, 0.0
        %705 = vadd.xlane.f32.xlu0 %v704
        %v706 = vpop.xlane.xlu0 %705
        %v707 = vsel %vm580, %v666, 0.0
        %708 = vadd.xlane.f32.xlu0 %v707
        %v709 = vpop.xlane.xlu0 %708
        %v710 = vsel %vm580, %v668, 0.0
        %711 = vadd.xlane.f32.xlu0 %v710
        %v712 = vpop.xlane.xlu0 %711
        %v713 = vsel %vm580, %v670, 0.0
        %714 = vadd.xlane.f32.xlu0 %v713
        %v715 = vpop.xlane.xlu0 %714
        %v716 = vsel %vm580, %v672, 0.0
        %717 = vadd.xlane.f32.xlu0 %v716
        %v718 = vpop.xlane.xlu0 %717
        %v719 = vsel %vm580, %v674, 0.0
        %720 = vadd.xlane.f32.xlu0 %v719
        %v721 = vpop.xlane.xlu0 %720
        %v722 = vsel %vm580, %v676, 0.0
        %723 = vadd.xlane.f32.xlu0 %v722
        %v724 = vpop.xlane.xlu0 %723
        %v725 = vrcp.pop %v679
        %v726 = vrcp.pop %v682
        %v727 = vrcp.pop %v685
        %v728 = vrcp.pop %v688
        %v729 = vrcp.pop %v691
        %v730 = vrcp.pop %v694
        %v731 = vrcp.pop %v697
        %v732 = vrcp.pop %v700
        %v733 = vrcp.pop %v703
        %v734 = vrcp.pop %v706
        %v735 = vrcp.pop %v709
        %v736 = vrcp.pop %v712
        %v737 = vrcp.pop %v715
        %v738 = vrcp.pop %v718
        %v739 = vrcp.pop %v721
        %v740 = vrcp.pop %v724
        %v741 = vmul.f32 %v646, %v725
        %v742 = vmul.f32 %v648, %v726
        %v743 = vmul.f32 %v650, %v727
        %v744 = vmul.f32 %v652, %v728
        %v745 = vmul.f32 %v654, %v729
        %v746 = vmul.f32 %v656, %v730
        %v747 = vmul.f32 %v658, %v731
        %v748 = vmul.f32 %v660, %v732
        %v749 = vmul.f32 %v662, %v733
        %v750 = vmul.f32 %v664, %v734
        %v751 = vmul.f32 %v666, %v735
        %v752 = vmul.f32 %v668, %v736
        %v753 = vmul.f32 %v670, %v737
        %v754 = vmul.f32 %v672, %v738
        %v755 = vmul.f32 %v674, %v739
        %v756 = vmul.f32 %v676, %v740
        %757 = vst.msk [vmem:[%s379] sm:$0xff] %vm580, %v741
        %758 = vst.msk [vmem:[%s379 + $0x8] sm:$0xff] %vm580, %v742
        %759 = vst.msk [vmem:[%s379 + $0x10] sm:$0xff] %vm580, %v743
        %760 = vst.msk [vmem:[%s379 + $0x18] sm:$0xff] %vm580, %v744
        %761 = vst.msk [vmem:[%s379 + $0x20] sm:$0xff] %vm580, %v745
        %762 = vst.msk [vmem:[%s379 + $0x28] sm:$0xff] %vm580, %v746
        %763 = vst.msk [vmem:[%s379 + $0x30] sm:$0xff] %vm580, %v747
        %764 = vst.msk [vmem:[%s379 + $0x38] sm:$0xff] %vm580, %v748
        %765 = vst.msk [vmem:[%s379 + $0x40] sm:$0xff] %vm580, %v749
        %766 = vst.msk [vmem:[%s379 + $0x48] sm:$0xff] %vm580, %v750
        %767 = vst.msk [vmem:[%s379 + $0x50] sm:$0xff] %vm580, %v751
        %768 = vst.msk [vmem:[%s379 + $0x58] sm:$0xff] %vm580, %v752
        %769 = vst.msk [vmem:[%s379 + $0x60] sm:$0xff] %vm580, %v753
        %770 = vst.msk [vmem:[%s379 + $0x68] sm:$0xff] %vm580, %v754
        %771 = vst.msk [vmem:[%s379 + $0x70] sm:$0xff] %vm580, %v755
        %772 = vst.msk [vmem:[%s379 + $0x78] sm:$0xff] %vm580, %v756
        %v773 = vsel %vm580, %v741, -inf
        %774 = vmax.xlane.f32.xlu0 %v773
        %v775 = vpop.xlane.xlu0 %774
        %v776 = vsel %vm580, %v742, -inf
        %777 = vmax.xlane.f32.xlu0 %v776
        %v778 = vpop.xlane.xlu0 %777
        %v779 = vsel %vm580, %v743, -inf
        %780 = vmax.xlane.f32.xlu0 %v779
        %v781 = vpop.xlane.xlu0 %780
        %v782 = vsel %vm580, %v744, -inf
        %783 = vmax.xlane.f32.xlu0 %v782
        %v784 = vpop.xlane.xlu0 %783
        %v785 = vsel %vm580, %v745, -inf
        %786 = vmax.xlane.f32.xlu0 %v785
        %v787 = vpop.xlane.xlu0 %786
        %v788 = vsel %vm580, %v746, -inf
        %789 = vmax.xlane.f32.xlu0 %v788
        %v790 = vpop.xlane.xlu0 %789
        %v791 = vsel %vm580, %v747, -inf
        %792 = vmax.xlane.f32.xlu0 %v791
        %v793 = vpop.xlane.xlu0 %792
        %v794 = vsel %vm580, %v748, -inf
        %795 = vmax.xlane.f32.xlu0 %v794
        %v796 = vpop.xlane.xlu0 %795
        %v797 = vsel %vm580, %v749, -inf
        %798 = vmax.xlane.f32.xlu0 %v797
        %v799 = vpop.xlane.xlu0 %798
        %v800 = vsel %vm580, %v750, -inf
        %801 = vmax.xlane.f32.xlu0 %v800
        %v802 = vpop.xlane.xlu0 %801
        %v803 = vsel %vm580, %v751, -inf
        %804 = vmax.xlane.f32.xlu0 %v803
        %v805 = vpop.xlane.xlu0 %804
        %v806 = vsel %vm580, %v752, -inf
        %807 = vmax.xlane.f32.xlu0 %v806
        %v808 = vpop.xlane.xlu0 %807
        %v809 = vsel %vm580, %v753, -inf
        %810 = vmax.xlane.f32.xlu0 %v809
        %v811 = vpop.xlane.xlu0 %810
        %v812 = vsel %vm580, %v754, -inf
        %813 = vmax.xlane.f32.xlu0 %v812
        %v814 = vpop.xlane.xlu0 %813
        %v815 = vsel %vm580, %v755, -inf
        %816 = vmax.xlane.f32.xlu0 %v815
        %v817 = vpop.xlane.xlu0 %816
        %v818 = vsel %vm580, %v756, -inf
        %819 = vmax.xlane.f32.xlu0 %v818
        %v820 = vpop.xlane.xlu0 %819
        %vm821 = vcmp.eq.f32.partialorder %v741, %v775
        %vm822 = vcmp.eq.f32.partialorder %v742, %v778
        %vm823 = vcmp.eq.f32.partialorder %v743, %v781
        %vm824 = vcmp.eq.f32.partialorder %v744, %v784
        %vm825 = vcmp.eq.f32.partialorder %v745, %v787
        %vm826 = vcmp.eq.f32.partialorder %v746, %v790
        %vm827 = vcmp.eq.f32.partialorder %v747, %v793
        %vm828 = vcmp.eq.f32.partialorder %v748, %v796
        %vm829 = vcmp.eq.f32.partialorder %v749, %v799
        %vm830 = vcmp.eq.f32.partialorder %v750, %v802
        %vm831 = vcmp.eq.f32.partialorder %v751, %v805
        %vm832 = vcmp.eq.f32.partialorder %v752, %v808
        %vm833 = vcmp.eq.f32.partialorder %v753, %v811
        %vm834 = vcmp.eq.f32.partialorder %v754, %v814
        %vm835 = vcmp.eq.f32.partialorder %v755, %v817
        %vm836 = vcmp.eq.f32.partialorder %v756, %v820
        %v837 = vsel %vm821, %v385, 16
        %v838 = vsel %vm822, %v385, 16
        %v839 = vsel %vm823, %v385, 16
        %v840 = vsel %vm824, %v385, 16
        %v841 = vsel %vm825, %v385, 16
        %v842 = vsel %vm826, %v385, 16
        %v843 = vsel %vm827, %v385, 16
        %v844 = vsel %vm828, %v385, 16
        %v845 = vsel %vm829, %v385, 16
        %v846 = vsel %vm830, %v385, 16
        %v847 = vsel %vm831, %v385, 16
        %v848 = vsel %vm832, %v385, 16
        %v849 = vsel %vm833, %v385, 16
        %v850 = vsel %vm834, %v385, 16
        %v851 = vsel %vm835, %v385, 16
        %v852 = vsel %vm836, %v385, 16
        %v853 = vsel %vm580, %v837, 2147483647
        %v854 = vand.u32 %v853, 65535
        %v855 = vshra.s32 %v853, 16
        %v856 = vcvt.s32.f32 %v854
        %v857 = vcvt.s32.f32 %v855
        %858 = vmin.xlane.f32.xlu0 %v857
        %v859 = vpop.xlane.xlu0 %858
        %vm860 = vcmp.eq.f32.partialorder %v857, %v859
        %v861 = vsel %vm860, %v856, inf
        %862 = vmin.xlane.f32.xlu0 %v861
        %v863 = vpop.xlane.xlu0 %862
        %v864 = vcvt.f32.s32 %v863
        %v865 = vcvt.f32.s32 %v859
        %v866 = vshll.u32 %v865, 16
        %v867 = vadd.s32 %v866, %v864
        %v868 = vsel %vm580, %v838, 2147483647
        %v869 = vand.u32 %v868, 65535
        %v870 = vshra.s32 %v868, 16
        %v871 = vcvt.s32.f32 %v869
        %v872 = vcvt.s32.f32 %v870
        %873 = vmin.xlane.f32.xlu0 %v872
        %v874 = vpop.xlane.xlu0 %873
        %vm875 = vcmp.eq.f32.partialorder %v872, %v874
        %v876 = vsel %vm875, %v871, inf
        %877 = vmin.xlane.f32.xlu0 %v876
        %v878 = vpop.xlane.xlu0 %877
        %v879 = vcvt.f32.s32 %v878
        %v880 = vcvt.f32.s32 %v874
        %v881 = vshll.u32 %v880, 16
        %v882 = vadd.s32 %v881, %v879
        %v883 = vsel %vm580, %v839, 2147483647
        %v884 = vand.u32 %v883, 65535
        %v885 = vshra.s32 %v883, 16
        %v886 = vcvt.s32.f32 %v884
        %v887 = vcvt.s32.f32 %v885
        %888 = vmin.xlane.f32.xlu0 %v887
        %v889 = vpop.xlane.xlu0 %888
        %vm890 = vcmp.eq.f32.partialorder %v887, %v889
        %v891 = vsel %vm890, %v886, inf
        %892 = vmin.xlane.f32.xlu0 %v891
        %v893 = vpop.xlane.xlu0 %892
        %v894 = vcvt.f32.s32 %v893
        %v895 = vcvt.f32.s32 %v889
        %v896 = vshll.u32 %v895, 16
        %v897 = vadd.s32 %v896, %v894
        %v898 = vsel %vm580, %v840, 2147483647
        %v899 = vand.u32 %v898, 65535
        %v900 = vshra.s32 %v898, 16
        %v901 = vcvt.s32.f32 %v899
        %v902 = vcvt.s32.f32 %v900
        %903 = vmin.xlane.f32.xlu0 %v902
        %v904 = vpop.xlane.xlu0 %903
        %vm905 = vcmp.eq.f32.partialorder %v902, %v904
        %v906 = vsel %vm905, %v901, inf
        %907 = vmin.xlane.f32.xlu0 %v906
        %v908 = vpop.xlane.xlu0 %907
        %v909 = vcvt.f32.s32 %v908
        %v910 = vcvt.f32.s32 %v904
        %v911 = vshll.u32 %v910, 16
        %v912 = vadd.s32 %v911, %v909
        %v913 = vsel %vm580, %v841, 2147483647
        %v914 = vand.u32 %v913, 65535
        %v915 = vshra.s32 %v913, 16
        %v916 = vcvt.s32.f32 %v914
        %v917 = vcvt.s32.f32 %v915
        %918 = vmin.xlane.f32.xlu0 %v917
        %v919 = vpop.xlane.xlu0 %918
        %vm920 = vcmp.eq.f32.partialorder %v917, %v919
        %v921 = vsel %vm920, %v916, inf
        %922 = vmin.xlane.f32.xlu0 %v921
        %v923 = vpop.xlane.xlu0 %922
        %v924 = vcvt.f32.s32 %v923
        %v925 = vcvt.f32.s32 %v919
        %v926 = vshll.u32 %v925, 16
        %v927 = vadd.s32 %v926, %v924
        %v928 = vsel %vm580, %v842, 2147483647
        %v929 = vand.u32 %v928, 65535
        %v930 = vshra.s32 %v928, 16
        %v931 = vcvt.s32.f32 %v929
        %v932 = vcvt.s32.f32 %v930
        %933 = vmin.xlane.f32.xlu0 %v932
        %v934 = vpop.xlane.xlu0 %933
        %vm935 = vcmp.eq.f32.partialorder %v932, %v934
        %v936 = vsel %vm935, %v931, inf
        %937 = vmin.xlane.f32.xlu0 %v936
        %v938 = vpop.xlane.xlu0 %937
        %v939 = vcvt.f32.s32 %v938
        %v940 = vcvt.f32.s32 %v934
        %v941 = vshll.u32 %v940, 16
        %v942 = vadd.s32 %v941, %v939
        %v943 = vsel %vm580, %v843, 2147483647
        %v944 = vand.u32 %v943, 65535
        %v945 = vshra.s32 %v943, 16
        %v946 = vcvt.s32.f32 %v944
        %v947 = vcvt.s32.f32 %v945
        %948 = vmin.xlane.f32.xlu0 %v947
        %v949 = vpop.xlane.xlu0 %948
        %vm950 = vcmp.eq.f32.partialorder %v947, %v949
        %v951 = vsel %vm950, %v946, inf
        %952 = vmin.xlane.f32.xlu0 %v951
        %v953 = vpop.xlane.xlu0 %952
        %v954 = vcvt.f32.s32 %v953
        %v955 = vcvt.f32.s32 %v949
        %v956 = vshll.u32 %v955, 16
        %v957 = vadd.s32 %v956, %v954
        %v958 = vsel %vm580, %v844, 2147483647
        %v959 = vand.u32 %v958, 65535
        %v960 = vshra.s32 %v958, 16
        %v961 = vcvt.s32.f32 %v959
        %v962 = vcvt.s32.f32 %v960
        %963 = vmin.xlane.f32.xlu0 %v962
        %v964 = vpop.xlane.xlu0 %963
        %vm965 = vcmp.eq.f32.partialorder %v962, %v964
        %v966 = vsel %vm965, %v961, inf
        %967 = vmin.xlane.f32.xlu0 %v966
        %v968 = vpop.xlane.xlu0 %967
        %v969 = vcvt.f32.s32 %v968
        %v970 = vcvt.f32.s32 %v964
        %v971 = vshll.u32 %v970, 16
        %v972 = vadd.s32 %v971, %v969
        %v973 = vsel %vm580, %v845, 2147483647
        %v974 = vand.u32 %v973, 65535
        %v975 = vshra.s32 %v973, 16
        %v976 = vcvt.s32.f32 %v974
        %v977 = vcvt.s32.f32 %v975
        %978 = vmin.xlane.f32.xlu0 %v977
        %v979 = vpop.xlane.xlu0 %978
        %vm980 = vcmp.eq.f32.partialorder %v977, %v979
        %v981 = vsel %vm980, %v976, inf
        %982 = vmin.xlane.f32.xlu0 %v981
        %v983 = vpop.xlane.xlu0 %982
        %v984 = vcvt.f32.s32 %v983
        %v985 = vcvt.f32.s32 %v979
        %v986 = vshll.u32 %v985, 16
        %v987 = vadd.s32 %v986, %v984
        %v988 = vsel %vm580, %v846, 2147483647
        %v989 = vand.u32 %v988, 65535
        %v990 = vshra.s32 %v988, 16
        %v991 = vcvt.s32.f32 %v989
        %v992 = vcvt.s32.f32 %v990
        %993 = vmin.xlane.f32.xlu0 %v992
        %v994 = vpop.xlane.xlu0 %993
        %vm995 = vcmp.eq.f32.partialorder %v992, %v994
        %v996 = vsel %vm995, %v991, inf
        %997 = vmin.xlane.f32.xlu0 %v996
        %v998 = vpop.xlane.xlu0 %997
        %v999 = vcvt.f32.s32 %v998
        %v1000 = vcvt.f32.s32 %v994
        %v1001 = vshll.u32 %v1000, 16
        %v1002 = vadd.s32 %v1001, %v999
        %v1003 = vsel %vm580, %v847, 2147483647
        %v1004 = vand.u32 %v1003, 65535
        %v1005 = vshra.s32 %v1003, 16
        %v1006 = vcvt.s32.f32 %v1004
        %v1007 = vcvt.s32.f32 %v1005
        %1008 = vmin.xlane.f32.xlu0 %v1007
        %v1009 = vpop.xlane.xlu0 %1008
        %vm1010 = vcmp.eq.f32.partialorder %v1007, %v1009
        %v1011 = vsel %vm1010, %v1006, inf
        %1012 = vmin.xlane.f32.xlu0 %v1011
        %v1013 = vpop.xlane.xlu0 %1012
        %v1014 = vcvt.f32.s32 %v1013
        %v1015 = vcvt.f32.s32 %v1009
        %v1016 = vshll.u32 %v1015, 16
        %v1017 = vadd.s32 %v1016, %v1014
        %v1018 = vsel %vm580, %v848, 2147483647
        %v1019 = vand.u32 %v1018, 65535
        %v1020 = vshra.s32 %v1018, 16
        %v1021 = vcvt.s32.f32 %v1019
        %v1022 = vcvt.s32.f32 %v1020
        %1023 = vmin.xlane.f32.xlu0 %v1022
        %v1024 = vpop.xlane.xlu0 %1023
        %vm1025 = vcmp.eq.f32.partialorder %v1022, %v1024
        %v1026 = vsel %vm1025, %v1021, inf
        %1027 = vmin.xlane.f32.xlu0 %v1026
        %v1028 = vpop.xlane.xlu0 %1027
        %v1029 = vcvt.f32.s32 %v1028
        %v1030 = vcvt.f32.s32 %v1024
        %v1031 = vshll.u32 %v1030, 16
        %v1032 = vadd.s32 %v1031, %v1029
        %v1033 = vsel %vm580, %v849, 2147483647
        %v1034 = vand.u32 %v1033, 65535
        %v1035 = vshra.s32 %v1033, 16
        %v1036 = vcvt.s32.f32 %v1034
        %v1037 = vcvt.s32.f32 %v1035
        %1038 = vmin.xlane.f32.xlu0 %v1037
        %v1039 = vpop.xlane.xlu0 %1038
        %vm1040 = vcmp.eq.f32.partialorder %v1037, %v1039
        %v1041 = vsel %vm1040, %v1036, inf
        %1042 = vmin.xlane.f32.xlu0 %v1041
        %v1043 = vpop.xlane.xlu0 %1042
        %v1044 = vcvt.f32.s32 %v1043
        %v1045 = vcvt.f32.s32 %v1039
        %v1046 = vshll.u32 %v1045, 16
        %v1047 = vadd.s32 %v1046, %v1044
        %v1048 = vsel %vm580, %v850, 2147483647
        %v1049 = vand.u32 %v1048, 65535
        %v1050 = vshra.s32 %v1048, 16
        %v1051 = vcvt.s32.f32 %v1049
        %v1052 = vcvt.s32.f32 %v1050
        %1053 = vmin.xlane.f32.xlu0 %v1052
        %v1054 = vpop.xlane.xlu0 %1053
        %vm1055 = vcmp.eq.f32.partialorder %v1052, %v1054
        %v1056 = vsel %vm1055, %v1051, inf
        %1057 = vmin.xlane.f32.xlu0 %v1056
        %v1058 = vpop.xlane.xlu0 %1057
        %v1059 = vcvt.f32.s32 %v1058
        %v1060 = vcvt.f32.s32 %v1054
        %v1061 = vshll.u32 %v1060, 16
        %v1062 = vadd.s32 %v1061, %v1059
        %v1063 = vsel %vm580, %v851, 2147483647
        %v1064 = vand.u32 %v1063, 65535
        %v1065 = vshra.s32 %v1063, 16
        %v1066 = vcvt.s32.f32 %v1064
        %v1067 = vcvt.s32.f32 %v1065
        %1068 = vmin.xlane.f32.xlu0 %v1067
        %v1069 = vpop.xlane.xlu0 %1068
        %vm1070 = vcmp.eq.f32.partialorder %v1067, %v1069
        %v1071 = vsel %vm1070, %v1066, inf
        %1072 = vmin.xlane.f32.xlu0 %v1071
        %v1073 = vpop.xlane.xlu0 %1072
        %v1074 = vcvt.f32.s32 %v1073
        %v1075 = vcvt.f32.s32 %v1069
        %v1076 = vshll.u32 %v1075, 16
        %v1077 = vadd.s32 %v1076, %v1074
        %v1078 = vsel %vm580, %v852, 2147483647
        %v1079 = vand.u32 %v1078, 65535
        %v1080 = vshra.s32 %v1078, 16
        %v1081 = vcvt.s32.f32 %v1079
        %v1082 = vcvt.s32.f32 %v1080
        %1083 = vmin.xlane.f32.xlu0 %v1082
        %v1084 = vpop.xlane.xlu0 %1083
        %vm1085 = vcmp.eq.f32.partialorder %v1082, %v1084
        %v1086 = vsel %vm1085, %v1081, inf
        %1087 = vmin.xlane.f32.xlu0 %v1086
        %v1088 = vpop.xlane.xlu0 %1087
        %v1089 = vcvt.f32.s32 %v1088
        %v1090 = vcvt.f32.s32 %v1084
        %v1091 = vshll.u32 %v1090, 16
        %v1092 = vadd.s32 %v1091, %v1089
        %vm1093 = vcmask 7168
        %1094 = vst.msk [vmem:[%s367] sm:$0xff] %vm1093, %v775
        %1095 = vst.msk [vmem:[%s367 + $0x8] sm:$0xff] %vm1093, %v778
        %1096 = vst.msk [vmem:[%s367 + $0x10] sm:$0xff] %vm1093, %v781
        %1097 = vst.msk [vmem:[%s367 + $0x18] sm:$0xff] %vm1093, %v784
        %1098 = vst.msk [vmem:[%s367 + $0x20] sm:$0xff] %vm1093, %v787
        %1099 = vst.msk [vmem:[%s367 + $0x28] sm:$0xff] %vm1093, %v790
        %1100 = vst.msk [vmem:[%s367 + $0x30] sm:$0xff] %vm1093, %v793
        %1101 = vst.msk [vmem:[%s367 + $0x38] sm:$0xff] %vm1093, %v796
        %1102 = vst.msk [vmem:[%s367 + $0x40] sm:$0xff] %vm1093, %v799
        %1103 = vst.msk [vmem:[%s367 + $0x48] sm:$0xff] %vm1093, %v802
        %1104 = vst.msk [vmem:[%s367 + $0x50] sm:$0xff] %vm1093, %v805
        %1105 = vst.msk [vmem:[%s367 + $0x58] sm:$0xff] %vm1093, %v808
        %1106 = vst.msk [vmem:[%s367 + $0x60] sm:$0xff] %vm1093, %v811
        %1107 = vst.msk [vmem:[%s367 + $0x68] sm:$0xff] %vm1093, %v814
        %1108 = vst.msk [vmem:[%s367 + $0x70] sm:$0xff] %vm1093, %v817
        %1109 = vst.msk [vmem:[%s367 + $0x78] sm:$0xff] %vm1093, %v820
        %1110 = vst.msk [vmem:[%s373] sm:$0xff] %vm1093, %v867
        %1111 = vst.msk [vmem:[%s373 + $0x8] sm:$0xff] %vm1093, %v882
        %1112 = vst.msk [vmem:[%s373 + $0x10] sm:$0xff] %vm1093, %v897
        %1113 = vst.msk [vmem:[%s373 + $0x18] sm:$0xff] %vm1093, %v912
        %1114 = vst.msk [vmem:[%s373 + $0x20] sm:$0xff] %vm1093, %v927
        %1115 = vst.msk [vmem:[%s373 + $0x28] sm:$0xff] %vm1093, %v942
        %1116 = vst.msk [vmem:[%s373 + $0x30] sm:$0xff] %vm1093, %v957
        %1117 = vst.msk [vmem:[%s373 + $0x38] sm:$0xff] %vm1093, %v972
        %1118 = vst.msk [vmem:[%s373 + $0x40] sm:$0xff] %vm1093, %v987
        %1119 = vst.msk [vmem:[%s373 + $0x48] sm:$0xff] %vm1093, %v1002
        %1120 = vst.msk [vmem:[%s373 + $0x50] sm:$0xff] %vm1093, %v1017
        %1121 = vst.msk [vmem:[%s373 + $0x58] sm:$0xff] %vm1093, %v1032
        %1122 = vst.msk [vmem:[%s373 + $0x60] sm:$0xff] %vm1093, %v1047
        %1123 = vst.msk [vmem:[%s373 + $0x68] sm:$0xff] %vm1093, %v1062
        %1124 = vst.msk [vmem:[%s373 + $0x70] sm:$0xff] %vm1093, %v1077
        %1125 = vst.msk [vmem:[%s373 + $0x78] sm:$0xff] %vm1093, %v1092
        %vm1126 = vcmp.eq.s32.totalorder %v385, %v867
        %vm1127 = vcmp.eq.s32.totalorder %v385, %v882
        %vm1128 = vcmp.eq.s32.totalorder %v385, %v897
        %vm1129 = vcmp.eq.s32.totalorder %v385, %v912
        %vm1130 = vcmp.eq.s32.totalorder %v385, %v927
        %vm1131 = vcmp.eq.s32.totalorder %v385, %v942
        %vm1132 = vcmp.eq.s32.totalorder %v385, %v957
        %vm1133 = vcmp.eq.s32.totalorder %v385, %v972
        %vm1134 = vcmp.eq.s32.totalorder %v385, %v987
        %vm1135 = vcmp.eq.s32.totalorder %v385, %v1002
        %vm1136 = vcmp.eq.s32.totalorder %v385, %v1017
        %vm1137 = vcmp.eq.s32.totalorder %v385, %v1032
        %vm1138 = vcmp.eq.s32.totalorder %v385, %v1047
        %vm1139 = vcmp.eq.s32.totalorder %v385, %v1062
        %vm1140 = vcmp.eq.s32.totalorder %v385, %v1077
        %vm1141 = vcmp.eq.s32.totalorder %v385, %v1092
        %v1142 = vsel %vm1126, -inf, %v741
        %v1143 = vsel %vm1127, -inf, %v742
        %v1144 = vsel %vm1128, -inf, %v743
        %v1145 = vsel %vm1129, -inf, %v744
        %v1146 = vsel %vm1130, -inf, %v745
        %v1147 = vsel %vm1131, -inf, %v746
        %v1148 = vsel %vm1132, -inf, %v747
        %v1149 = vsel %vm1133, -inf, %v748
        %v1150 = vsel %vm1134, -inf, %v749
        %v1151 = vsel %vm1135, -inf, %v750
        %v1152 = vsel %vm1136, -inf, %v751
        %v1153 = vsel %vm1137, -inf, %v752
        %v1154 = vsel %vm1138, -inf, %v753
        %v1155 = vsel %vm1139, -inf, %v754
        %v1156 = vsel %vm1140, -inf, %v755
        %v1157 = vsel %vm1141, -inf, %v756
        %v1158 = vsel %vm580, %v1142, -inf
        %1159 = vmax.xlane.f32.xlu0 %v1158
        %v1160 = vpop.xlane.xlu0 %1159
        %v1161 = vsel %vm580, %v1143, -inf
        %1162 = vmax.xlane.f32.xlu0 %v1161
        %v1163 = vpop.xlane.xlu0 %1162
        %v1164 = vsel %vm580, %v1144, -inf
        %1165 = vmax.xlane.f32.xlu0 %v1164
        %v1166 = vpop.xlane.xlu0 %1165
        %v1167 = vsel %vm580, %v1145, -inf
        %1168 = vmax.xlane.f32.xlu0 %v1167
        %v1169 = vpop.xlane.xlu0 %1168
        %v1170 = vsel %vm580, %v1146, -inf
        %1171 = vmax.xlane.f32.xlu0 %v1170
        %v1172 = vpop.xlane.xlu0 %1171
        %v1173 = vsel %vm580, %v1147, -inf
        %1174 = vmax.xlane.f32.xlu0 %v1173
        %v1175 = vpop.xlane.xlu0 %1174
        %v1176 = vsel %vm580, %v1148, -inf
        %1177 = vmax.xlane.f32.xlu0 %v1176
        %v1178 = vpop.xlane.xlu0 %1177
        %v1179 = vsel %vm580, %v1149, -inf
        %1180 = vmax.xlane.f32.xlu0 %v1179
        %v1181 = vpop.xlane.xlu0 %1180
        %v1182 = vsel %vm580, %v1150, -inf
        %1183 = vmax.xlane.f32.xlu0 %v1182
        %v1184 = vpop.xlane.xlu0 %1183
        %v1185 = vsel %vm580, %v1151, -inf
        %1186 = vmax.xlane.f32.xlu0 %v1185
        %v1187 = vpop.xlane.xlu0 %1186
        %v1188 = vsel %vm580, %v1152, -inf
        %1189 = vmax.xlane.f32.xlu0 %v1188
        %v1190 = vpop.xlane.xlu0 %1189
        %v1191 = vsel %vm580, %v1153, -inf
        %1192 = vmax.xlane.f32.xlu0 %v1191
        %v1193 = vpop.xlane.xlu0 %1192
        %v1194 = vsel %vm580, %v1154, -inf
        %1195 = vmax.xlane.f32.xlu0 %v1194
        %v1196 = vpop.xlane.xlu0 %1195
        %v1197 = vsel %vm580, %v1155, -inf
        %1198 = vmax.xlane.f32.xlu0 %v1197
        %v1199 = vpop.xlane.xlu0 %1198
        %v1200 = vsel %vm580, %v1156, -inf
        %1201 = vmax.xlane.f32.xlu0 %v1200
        %v1202 = vpop.xlane.xlu0 %1201
        %v1203 = vsel %vm580, %v1157, -inf
        %1204 = vmax.xlane.f32.xlu0 %v1203
        %v1205 = vpop.xlane.xlu0 %1204
        %vm1206 = vcmp.eq.f32.partialorder %v1142, %v1160
        %vm1207 = vcmp.eq.f32.partialorder %v1143, %v1163
        %vm1208 = vcmp.eq.f32.partialorder %v1144, %v1166
        %vm1209 = vcmp.eq.f32.partialorder %v1145, %v1169
        %vm1210 = vcmp.eq.f32.partialorder %v1146, %v1172
        %vm1211 = vcmp.eq.f32.partialorder %v1147, %v1175
        %vm1212 = vcmp.eq.f32.partialorder %v1148, %v1178
        %vm1213 = vcmp.eq.f32.partialorder %v1149, %v1181
        %vm1214 = vcmp.eq.f32.partialorder %v1150, %v1184
        %vm1215 = vcmp.eq.f32.partialorder %v1151, %v1187
        %vm1216 = vcmp.eq.f32.partialorder %v1152, %v1190
        %vm1217 = vcmp.eq.f32.partialorder %v1153, %v1193
        %vm1218 = vcmp.eq.f32.partialorder %v1154, %v1196
        %vm1219 = vcmp.eq.f32.partialorder %v1155, %v1199
        %vm1220 = vcmp.eq.f32.partialorder %v1156, %v1202
        %vm1221 = vcmp.eq.f32.partialorder %v1157, %v1205
        %v1222 = vsel %vm1206, %v385, 16
        %v1223 = vsel %vm1207, %v385, 16
        %v1224 = vsel %vm1208, %v385, 16
        %v1225 = vsel %vm1209, %v385, 16
        %v1226 = vsel %vm1210, %v385, 16
        %v1227 = vsel %vm1211, %v385, 16
        %v1228 = vsel %vm1212, %v385, 16
        %v1229 = vsel %vm1213, %v385, 16
        %v1230 = vsel %vm1214, %v385, 16
        %v1231 = vsel %vm1215, %v385, 16
        %v1232 = vsel %vm1216, %v385, 16
        %v1233 = vsel %vm1217, %v385, 16
        %v1234 = vsel %vm1218, %v385, 16
        %v1235 = vsel %vm1219, %v385, 16
        %v1236 = vsel %vm1220, %v385, 16
        %v1237 = vsel %vm1221, %v385, 16
        %v1238 = vsel %vm580, %v1222, 2147483647
        %v1239 = vand.u32 %v1238, 65535
        %v1240 = vshra.s32 %v1238, 16
        %v1241 = vcvt.s32.f32 %v1239
        %v1242 = vcvt.s32.f32 %v1240
        %1243 = vmin.xlane.f32.xlu0 %v1242
        %v1244 = vpop.xlane.xlu0 %1243
        %vm1245 = vcmp.eq.f32.partialorder %v1242, %v1244
        %v1246 = vsel %vm1245, %v1241, inf
        %1247 = vmin.xlane.f32.xlu0 %v1246
        %v1248 = vpop.xlane.xlu0 %1247
        %v1249 = vcvt.f32.s32 %v1248
        %v1250 = vcvt.f32.s32 %v1244
        %v1251 = vshll.u32 %v1250, 16
        %v1252 = vadd.s32 %v1251, %v1249
        %v1253 = vsel %vm580, %v1223, 2147483647
        %v1254 = vand.u32 %v1253, 65535
        %v1255 = vshra.s32 %v1253, 16
        %v1256 = vcvt.s32.f32 %v1254
        %v1257 = vcvt.s32.f32 %v1255
        %1258 = vmin.xlane.f32.xlu0 %v1257
        %v1259 = vpop.xlane.xlu0 %1258
        %vm1260 = vcmp.eq.f32.partialorder %v1257, %v1259
        %v1261 = vsel %vm1260, %v1256, inf
        %1262 = vmin.xlane.f32.xlu0 %v1261
        %v1263 = vpop.xlane.xlu0 %1262
        %v1264 = vcvt.f32.s32 %v1263
        %v1265 = vcvt.f32.s32 %v1259
        %v1266 = vshll.u32 %v1265, 16
        %v1267 = vadd.s32 %v1266, %v1264
        %v1268 = vsel %vm580, %v1224, 2147483647
        %v1269 = vand.u32 %v1268, 65535
        %v1270 = vshra.s32 %v1268, 16
        %v1271 = vcvt.s32.f32 %v1269
        %v1272 = vcvt.s32.f32 %v1270
        %1273 = vmin.xlane.f32.xlu0 %v1272
        %v1274 = vpop.xlane.xlu0 %1273
        %vm1275 = vcmp.eq.f32.partialorder %v1272, %v1274
        %v1276 = vsel %vm1275, %v1271, inf
        %1277 = vmin.xlane.f32.xlu0 %v1276
        %v1278 = vpop.xlane.xlu0 %1277
        %v1279 = vcvt.f32.s32 %v1278
        %v1280 = vcvt.f32.s32 %v1274
        %v1281 = vshll.u32 %v1280, 16
        %v1282 = vadd.s32 %v1281, %v1279
        %v1283 = vsel %vm580, %v1225, 2147483647
        %v1284 = vand.u32 %v1283, 65535
        %v1285 = vshra.s32 %v1283, 16
        %v1286 = vcvt.s32.f32 %v1284
        %v1287 = vcvt.s32.f32 %v1285
        %1288 = vmin.xlane.f32.xlu0 %v1287
        %v1289 = vpop.xlane.xlu0 %1288
        %vm1290 = vcmp.eq.f32.partialorder %v1287, %v1289
        %v1291 = vsel %vm1290, %v1286, inf
        %1292 = vmin.xlane.f32.xlu0 %v1291
        %v1293 = vpop.xlane.xlu0 %1292
        %v1294 = vcvt.f32.s32 %v1293
        %v1295 = vcvt.f32.s32 %v1289
        %v1296 = vshll.u32 %v1295, 16
        %v1297 = vadd.s32 %v1296, %v1294
        %v1298 = vsel %vm580, %v1226, 2147483647
        %v1299 = vand.u32 %v1298, 65535
        %v1300 = vshra.s32 %v1298, 16
        %v1301 = vcvt.s32.f32 %v1299
        %v1302 = vcvt.s32.f32 %v1300
        %1303 = vmin.xlane.f32.xlu0 %v1302
        %v1304 = vpop.xlane.xlu0 %1303
        %vm1305 = vcmp.eq.f32.partialorder %v1302, %v1304
        %v1306 = vsel %vm1305, %v1301, inf
        %1307 = vmin.xlane.f32.xlu0 %v1306
        %v1308 = vpop.xlane.xlu0 %1307
        %v1309 = vcvt.f32.s32 %v1308
        %v1310 = vcvt.f32.s32 %v1304
        %v1311 = vshll.u32 %v1310, 16
        %v1312 = vadd.s32 %v1311, %v1309
        %v1313 = vsel %vm580, %v1227, 2147483647
        %v1314 = vand.u32 %v1313, 65535
        %v1315 = vshra.s32 %v1313, 16
        %v1316 = vcvt.s32.f32 %v1314
        %v1317 = vcvt.s32.f32 %v1315
        %1318 = vmin.xlane.f32.xlu0 %v1317
        %v1319 = vpop.xlane.xlu0 %1318
        %vm1320 = vcmp.eq.f32.partialorder %v1317, %v1319
        %v1321 = vsel %vm1320, %v1316, inf
        %1322 = vmin.xlane.f32.xlu0 %v1321
        %v1323 = vpop.xlane.xlu0 %1322
        %v1324 = vcvt.f32.s32 %v1323
        %v1325 = vcvt.f32.s32 %v1319
        %v1326 = vshll.u32 %v1325, 16
        %v1327 = vadd.s32 %v1326, %v1324
        %v1328 = vsel %vm580, %v1228, 2147483647
        %v1329 = vand.u32 %v1328, 65535
        %v1330 = vshra.s32 %v1328, 16
        %v1331 = vcvt.s32.f32 %v1329
        %v1332 = vcvt.s32.f32 %v1330
        %1333 = vmin.xlane.f32.xlu0 %v1332
        %v1334 = vpop.xlane.xlu0 %1333
        %vm1335 = vcmp.eq.f32.partialorder %v1332, %v1334
        %v1336 = vsel %vm1335, %v1331, inf
        %1337 = vmin.xlane.f32.xlu0 %v1336
        %v1338 = vpop.xlane.xlu0 %1337
        %v1339 = vcvt.f32.s32 %v1338
        %v1340 = vcvt.f32.s32 %v1334
        %v1341 = vshll.u32 %v1340, 16
        %v1342 = vadd.s32 %v1341, %v1339
        %v1343 = vsel %vm580, %v1229, 2147483647
        %v1344 = vand.u32 %v1343, 65535
        %v1345 = vshra.s32 %v1343, 16
        %v1346 = vcvt.s32.f32 %v1344
        %v1347 = vcvt.s32.f32 %v1345
        %1348 = vmin.xlane.f32.xlu0 %v1347
        %v1349 = vpop.xlane.xlu0 %1348
        %vm1350 = vcmp.eq.f32.partialorder %v1347, %v1349
        %v1351 = vsel %vm1350, %v1346, inf
        %1352 = vmin.xlane.f32.xlu0 %v1351
        %v1353 = vpop.xlane.xlu0 %1352
        %v1354 = vcvt.f32.s32 %v1353
        %v1355 = vcvt.f32.s32 %v1349
        %v1356 = vshll.u32 %v1355, 16
        %v1357 = vadd.s32 %v1356, %v1354
        %v1358 = vsel %vm580, %v1230, 2147483647
        %v1359 = vand.u32 %v1358, 65535
        %v1360 = vshra.s32 %v1358, 16
        %v1361 = vcvt.s32.f32 %v1359
        %v1362 = vcvt.s32.f32 %v1360
        %1363 = vmin.xlane.f32.xlu0 %v1362
        %v1364 = vpop.xlane.xlu0 %1363
        %vm1365 = vcmp.eq.f32.partialorder %v1362, %v1364
        %v1366 = vsel %vm1365, %v1361, inf
        %1367 = vmin.xlane.f32.xlu0 %v1366
        %v1368 = vpop.xlane.xlu0 %1367
        %v1369 = vcvt.f32.s32 %v1368
        %v1370 = vcvt.f32.s32 %v1364
        %v1371 = vshll.u32 %v1370, 16
        %v1372 = vadd.s32 %v1371, %v1369
        %v1373 = vsel %vm580, %v1231, 2147483647
        %v1374 = vand.u32 %v1373, 65535
        %v1375 = vshra.s32 %v1373, 16
        %v1376 = vcvt.s32.f32 %v1374
        %v1377 = vcvt.s32.f32 %v1375
        %1378 = vmin.xlane.f32.xlu0 %v1377
        %v1379 = vpop.xlane.xlu0 %1378
        %vm1380 = vcmp.eq.f32.partialorder %v1377, %v1379
        %v1381 = vsel %vm1380, %v1376, inf
        %1382 = vmin.xlane.f32.xlu0 %v1381
        %v1383 = vpop.xlane.xlu0 %1382
        %v1384 = vcvt.f32.s32 %v1383
        %v1385 = vcvt.f32.s32 %v1379
        %v1386 = vshll.u32 %v1385, 16
        %v1387 = vadd.s32 %v1386, %v1384
        %v1388 = vsel %vm580, %v1232, 2147483647
        %v1389 = vand.u32 %v1388, 65535
        %v1390 = vshra.s32 %v1388, 16
        %v1391 = vcvt.s32.f32 %v1389
        %v1392 = vcvt.s32.f32 %v1390
        %1393 = vmin.xlane.f32.xlu0 %v1392
        %v1394 = vpop.xlane.xlu0 %1393
        %vm1395 = vcmp.eq.f32.partialorder %v1392, %v1394
        %v1396 = vsel %vm1395, %v1391, inf
        %1397 = vmin.xlane.f32.xlu0 %v1396
        %v1398 = vpop.xlane.xlu0 %1397
        %v1399 = vcvt.f32.s32 %v1398
        %v1400 = vcvt.f32.s32 %v1394
        %v1401 = vshll.u32 %v1400, 16
        %v1402 = vadd.s32 %v1401, %v1399
        %v1403 = vsel %vm580, %v1233, 2147483647
        %v1404 = vand.u32 %v1403, 65535
        %v1405 = vshra.s32 %v1403, 16
        %v1406 = vcvt.s32.f32 %v1404
        %v1407 = vcvt.s32.f32 %v1405
        %1408 = vmin.xlane.f32.xlu0 %v1407
        %v1409 = vpop.xlane.xlu0 %1408
        %vm1410 = vcmp.eq.f32.partialorder %v1407, %v1409
        %v1411 = vsel %vm1410, %v1406, inf
        %1412 = vmin.xlane.f32.xlu0 %v1411
        %v1413 = vpop.xlane.xlu0 %1412
        %v1414 = vcvt.f32.s32 %v1413
        %v1415 = vcvt.f32.s32 %v1409
        %v1416 = vshll.u32 %v1415, 16
        %v1417 = vadd.s32 %v1416, %v1414
        %v1418 = vsel %vm580, %v1234, 2147483647
        %v1419 = vand.u32 %v1418, 65535
        %v1420 = vshra.s32 %v1418, 16
        %v1421 = vcvt.s32.f32 %v1419
        %v1422 = vcvt.s32.f32 %v1420
        %1423 = vmin.xlane.f32.xlu0 %v1422
        %v1424 = vpop.xlane.xlu0 %1423
        %vm1425 = vcmp.eq.f32.partialorder %v1422, %v1424
        %v1426 = vsel %vm1425, %v1421, inf
        %1427 = vmin.xlane.f32.xlu0 %v1426
        %v1428 = vpop.xlane.xlu0 %1427
        %v1429 = vcvt.f32.s32 %v1428
        %v1430 = vcvt.f32.s32 %v1424
        %v1431 = vshll.u32 %v1430, 16
        %v1432 = vadd.s32 %v1431, %v1429
        %v1433 = vsel %vm580, %v1235, 2147483647
        %v1434 = vand.u32 %v1433, 65535
        %v1435 = vshra.s32 %v1433, 16
        %v1436 = vcvt.s32.f32 %v1434
        %v1437 = vcvt.s32.f32 %v1435
        %1438 = vmin.xlane.f32.xlu0 %v1437
        %v1439 = vpop.xlane.xlu0 %1438
        %vm1440 = vcmp.eq.f32.partialorder %v1437, %v1439
        %v1441 = vsel %vm1440, %v1436, inf
        %1442 = vmin.xlane.f32.xlu0 %v1441
        %v1443 = vpop.xlane.xlu0 %1442
        %v1444 = vcvt.f32.s32 %v1443
        %v1445 = vcvt.f32.s32 %v1439
        %v1446 = vshll.u32 %v1445, 16
        %v1447 = vadd.s32 %v1446, %v1444
        %v1448 = vsel %vm580, %v1236, 2147483647
        %v1449 = vand.u32 %v1448, 65535
        %v1450 = vshra.s32 %v1448, 16
        %v1451 = vcvt.s32.f32 %v1449
        %v1452 = vcvt.s32.f32 %v1450
        %1453 = vmin.xlane.f32.xlu0 %v1452
        %v1454 = vpop.xlane.xlu0 %1453
        %vm1455 = vcmp.eq.f32.partialorder %v1452, %v1454
        %v1456 = vsel %vm1455, %v1451, inf
        %1457 = vmin.xlane.f32.xlu0 %v1456
        %v1458 = vpop.xlane.xlu0 %1457
        %v1459 = vcvt.f32.s32 %v1458
        %v1460 = vcvt.f32.s32 %v1454
        %v1461 = vshll.u32 %v1460, 16
        %v1462 = vadd.s32 %v1461, %v1459
        %v1463 = vsel %vm580, %v1237, 2147483647
        %v1464 = vand.u32 %v1463, 65535
        %v1465 = vshra.s32 %v1463, 16
        %v1466 = vcvt.s32.f32 %v1464
        %v1467 = vcvt.s32.f32 %v1465
        %1468 = vmin.xlane.f32.xlu0 %v1467
        %v1469 = vpop.xlane.xlu0 %1468
        %vm1470 = vcmp.eq.f32.partialorder %v1467, %v1469
        %v1471 = vsel %vm1470, %v1466, inf
        %1472 = vmin.xlane.f32.xlu0 %v1471
        %v1473 = vpop.xlane.xlu0 %1472
        %v1474 = vcvt.f32.s32 %v1473
        %v1475 = vcvt.f32.s32 %v1469
        %v1476 = vshll.u32 %v1475, 16
        %v1477 = vadd.s32 %v1476, %v1474
        %vm1478 = vcmask 15368
        %1479 = vst.msk [vmem:[%s367] sm:$0xff] %vm1478, %v1160
        %1480 = vst.msk [vmem:[%s367 + $0x8] sm:$0xff] %vm1478, %v1163
        %1481 = vst.msk [vmem:[%s367 + $0x10] sm:$0xff] %vm1478, %v1166
        %1482 = vst.msk [vmem:[%s367 + $0x18] sm:$0xff] %vm1478, %v1169
        %1483 = vst.msk [vmem:[%s367 + $0x20] sm:$0xff] %vm1478, %v1172
        %1484 = vst.msk [vmem:[%s367 + $0x28] sm:$0xff] %vm1478, %v1175
        %1485 = vst.msk [vmem:[%s367 + $0x30] sm:$0xff] %vm1478, %v1178
        %1486 = vst.msk [vmem:[%s367 + $0x38] sm:$0xff] %vm1478, %v1181
        %1487 = vst.msk [vmem:[%s367 + $0x40] sm:$0xff] %vm1478, %v1184
        %1488 = vst.msk [vmem:[%s367 + $0x48] sm:$0xff] %vm1478, %v1187
        %1489 = vst.msk [vmem:[%s367 + $0x50] sm:$0xff] %vm1478, %v1190
        %1490 = vst.msk [vmem:[%s367 + $0x58] sm:$0xff] %vm1478, %v1193
        %1491 = vst.msk [vmem:[%s367 + $0x60] sm:$0xff] %vm1478, %v1196
        %1492 = vst.msk [vmem:[%s367 + $0x68] sm:$0xff] %vm1478, %v1199
        %1493 = vst.msk [vmem:[%s367 + $0x70] sm:$0xff] %vm1478, %v1202
        %1494 = vst.msk [vmem:[%s367 + $0x78] sm:$0xff] %vm1478, %v1205
        %1495 = vst.msk [vmem:[%s373] sm:$0xff] %vm1478, %v1252
        %1496 = vst.msk [vmem:[%s373 + $0x8] sm:$0xff] %vm1478, %v1267
        %1497 = vst.msk [vmem:[%s373 + $0x10] sm:$0xff] %vm1478, %v1282
        %1498 = vst.msk [vmem:[%s373 + $0x18] sm:$0xff] %vm1478, %v1297
        %1499 = vst.msk [vmem:[%s373 + $0x20] sm:$0xff] %vm1478, %v1312
        %1500 = vst.msk [vmem:[%s373 + $0x28] sm:$0xff] %vm1478, %v1327
        %1501 = vst.msk [vmem:[%s373 + $0x30] sm:$0xff] %vm1478, %v1342
        %1502 = vst.msk [vmem:[%s373 + $0x38] sm:$0xff] %vm1478, %v1357
        %1503 = vst.msk [vmem:[%s373 + $0x40] sm:$0xff] %vm1478, %v1372
        %1504 = vst.msk [vmem:[%s373 + $0x48] sm:$0xff] %vm1478, %v1387
        %1505 = vst.msk [vmem:[%s373 + $0x50] sm:$0xff] %vm1478, %v1402
        %1506 = vst.msk [vmem:[%s373 + $0x58] sm:$0xff] %vm1478, %v1417
        %1507 = vst.msk [vmem:[%s373 + $0x60] sm:$0xff] %vm1478, %v1432
        %1508 = vst.msk [vmem:[%s373 + $0x68] sm:$0xff] %vm1478, %v1447
        %1509 = vst.msk [vmem:[%s373 + $0x70] sm:$0xff] %vm1478, %v1462
        %1510 = vst.msk [vmem:[%s373 + $0x78] sm:$0xff] %vm1478, %v1477
        %vm1511 = vcmp.eq.s32.totalorder %v385, %v1252
        %vm1512 = vcmp.eq.s32.totalorder %v385, %v1267
        %vm1513 = vcmp.eq.s32.totalorder %v385, %v1282
        %vm1514 = vcmp.eq.s32.totalorder %v385, %v1297
        %vm1515 = vcmp.eq.s32.totalorder %v385, %v1312
        %vm1516 = vcmp.eq.s32.totalorder %v385, %v1327
        %vm1517 = vcmp.eq.s32.totalorder %v385, %v1342
        %vm1518 = vcmp.eq.s32.totalorder %v385, %v1357
        %vm1519 = vcmp.eq.s32.totalorder %v385, %v1372
        %vm1520 = vcmp.eq.s32.totalorder %v385, %v1387
        %vm1521 = vcmp.eq.s32.totalorder %v385, %v1402
        %vm1522 = vcmp.eq.s32.totalorder %v385, %v1417
        %vm1523 = vcmp.eq.s32.totalorder %v385, %v1432
        %vm1524 = vcmp.eq.s32.totalorder %v385, %v1447
        %vm1525 = vcmp.eq.s32.totalorder %v385, %v1462
        %vm1526 = vcmp.eq.s32.totalorder %v385, %v1477
        %v1527 = vsel %vm1511, -inf, %v1142
        %v1528 = vsel %vm1512, -inf, %v1143
        %v1529 = vsel %vm1513, -inf, %v1144
        %v1530 = vsel %vm1514, -inf, %v1145
        %v1531 = vsel %vm1515, -inf, %v1146
        %v1532 = vsel %vm1516, -inf, %v1147
        %v1533 = vsel %vm1517, -inf, %v1148
        %v1534 = vsel %vm1518, -inf, %v1149
        %v1535 = vsel %vm1519, -inf, %v1150
        %v1536 = vsel %vm1520, -inf, %v1151
        %v1537 = vsel %vm1521, -inf, %v1152
        %v1538 = vsel %vm1522, -inf, %v1153
        %v1539 = vsel %vm1523, -inf, %v1154
        %v1540 = vsel %vm1524, -inf, %v1155
        %v1541 = vsel %vm1525, -inf, %v1156
        %v1542 = vsel %vm1526, -inf, %v1157
        %v1543 = vsel %vm580, %v1527, -inf
        %1544 = vmax.xlane.f32.xlu0 %v1543
        %v1545 = vpop.xlane.xlu0 %1544
        %v1546 = vsel %vm580, %v1528, -inf
        %1547 = vmax.xlane.f32.xlu0 %v1546
        %v1548 = vpop.xlane.xlu0 %1547
        %v1549 = vsel %vm580, %v1529, -inf
        %1550 = vmax.xlane.f32.xlu0 %v1549
        %v1551 = vpop.xlane.xlu0 %1550
        %v1552 = vsel %vm580, %v1530, -inf
        %1553 = vmax.xlane.f32.xlu0 %v1552
        %v1554 = vpop.xlane.xlu0 %1553
        %v1555 = vsel %vm580, %v1531, -inf
        %1556 = vmax.xlane.f32.xlu0 %v1555
        %v1557 = vpop.xlane.xlu0 %1556
        %v1558 = vsel %vm580, %v1532, -inf
        %1559 = vmax.xlane.f32.xlu0 %v1558
        %v1560 = vpop.xlane.xlu0 %1559
        %v1561 = vsel %vm580, %v1533, -inf
        %1562 = vmax.xlane.f32.xlu0 %v1561
        %v1563 = vpop.xlane.xlu0 %1562
        %v1564 = vsel %vm580, %v1534, -inf
        %1565 = vmax.xlane.f32.xlu0 %v1564
        %v1566 = vpop.xlane.xlu0 %1565
        %v1567 = vsel %vm580, %v1535, -inf
        %1568 = vmax.xlane.f32.xlu0 %v1567
        %v1569 = vpop.xlane.xlu0 %1568
        %v1570 = vsel %vm580, %v1536, -inf
        %1571 = vmax.xlane.f32.xlu0 %v1570
        %v1572 = vpop.xlane.xlu0 %1571
        %v1573 = vsel %vm580, %v1537, -inf
        %1574 = vmax.xlane.f32.xlu0 %v1573
        %v1575 = vpop.xlane.xlu0 %1574
        %v1576 = vsel %vm580, %v1538, -inf
        %1577 = vmax.xlane.f32.xlu0 %v1576
        %v1578 = vpop.xlane.xlu0 %1577
        %v1579 = vsel %vm580, %v1539, -inf
        %1580 = vmax.xlane.f32.xlu0 %v1579
        %v1581 = vpop.xlane.xlu0 %1580
        %v1582 = vsel %vm580, %v1540, -inf
        %1583 = vmax.xlane.f32.xlu0 %v1582
        %v1584 = vpop.xlane.xlu0 %1583
        %v1585 = vsel %vm580, %v1541, -inf
        %1586 = vmax.xlane.f32.xlu0 %v1585
        %v1587 = vpop.xlane.xlu0 %1586
        %v1588 = vsel %vm580, %v1542, -inf
        %1589 = vmax.xlane.f32.xlu0 %v1588
        %v1590 = vpop.xlane.xlu0 %1589
        %vm1591 = vcmp.eq.f32.partialorder %v1527, %v1545
        %vm1592 = vcmp.eq.f32.partialorder %v1528, %v1548
        %vm1593 = vcmp.eq.f32.partialorder %v1529, %v1551
        %vm1594 = vcmp.eq.f32.partialorder %v1530, %v1554
        %vm1595 = vcmp.eq.f32.partialorder %v1531, %v1557
        %vm1596 = vcmp.eq.f32.partialorder %v1532, %v1560
        %vm1597 = vcmp.eq.f32.partialorder %v1533, %v1563
        %vm1598 = vcmp.eq.f32.partialorder %v1534, %v1566
        %vm1599 = vcmp.eq.f32.partialorder %v1535, %v1569
        %vm1600 = vcmp.eq.f32.partialorder %v1536, %v1572
        %vm1601 = vcmp.eq.f32.partialorder %v1537, %v1575
        %vm1602 = vcmp.eq.f32.partialorder %v1538, %v1578
        %vm1603 = vcmp.eq.f32.partialorder %v1539, %v1581
        %vm1604 = vcmp.eq.f32.partialorder %v1540, %v1584
        %vm1605 = vcmp.eq.f32.partialorder %v1541, %v1587
        %vm1606 = vcmp.eq.f32.partialorder %v1542, %v1590
        %v1607 = vsel %vm1591, %v385, 16
        %v1608 = vsel %vm1592, %v385, 16
        %v1609 = vsel %vm1593, %v385, 16
        %v1610 = vsel %vm1594, %v385, 16
        %v1611 = vsel %vm1595, %v385, 16
        %v1612 = vsel %vm1596, %v385, 16
        %v1613 = vsel %vm1597, %v385, 16
        %v1614 = vsel %vm1598, %v385, 16
        %v1615 = vsel %vm1599, %v385, 16
        %v1616 = vsel %vm1600, %v385, 16
        %v1617 = vsel %vm1601, %v385, 16
        %v1618 = vsel %vm1602, %v385, 16
        %v1619 = vsel %vm1603, %v385, 16
        %v1620 = vsel %vm1604, %v385, 16
        %v1621 = vsel %vm1605, %v385, 16
        %v1622 = vsel %vm1606, %v385, 16
        %v1623 = vsel %vm580, %v1607, 2147483647
        %v1624 = vand.u32 %v1623, 65535
        %v1625 = vshra.s32 %v1623, 16
        %v1626 = vcvt.s32.f32 %v1624
        %v1627 = vcvt.s32.f32 %v1625
        %1628 = vmin.xlane.f32.xlu0 %v1627
        %v1629 = vpop.xlane.xlu0 %1628
        %vm1630 = vcmp.eq.f32.partialorder %v1627, %v1629
        %v1631 = vsel %vm1630, %v1626, inf
        %1632 = vmin.xlane.f32.xlu0 %v1631
        %v1633 = vpop.xlane.xlu0 %1632
        %v1634 = vcvt.f32.s32 %v1633
        %v1635 = vcvt.f32.s32 %v1629
        %v1636 = vshll.u32 %v1635, 16
        %v1637 = vadd.s32 %v1636, %v1634
        %v1638 = vsel %vm580, %v1608, 2147483647
        %v1639 = vand.u32 %v1638, 65535
        %v1640 = vshra.s32 %v1638, 16
        %v1641 = vcvt.s32.f32 %v1639
        %v1642 = vcvt.s32.f32 %v1640
        %1643 = vmin.xlane.f32.xlu0 %v1642
        %v1644 = vpop.xlane.xlu0 %1643
        %vm1645 = vcmp.eq.f32.partialorder %v1642, %v1644
        %v1646 = vsel %vm1645, %v1641, inf
        %1647 = vmin.xlane.f32.xlu0 %v1646
        %v1648 = vpop.xlane.xlu0 %1647
        %v1649 = vcvt.f32.s32 %v1648
        %v1650 = vcvt.f32.s32 %v1644
        %v1651 = vshll.u32 %v1650, 16
        %v1652 = vadd.s32 %v1651, %v1649
        %v1653 = vsel %vm580, %v1609, 2147483647
        %v1654 = vand.u32 %v1653, 65535
        %v1655 = vshra.s32 %v1653, 16
        %v1656 = vcvt.s32.f32 %v1654
        %v1657 = vcvt.s32.f32 %v1655
        %1658 = vmin.xlane.f32.xlu0 %v1657
        %v1659 = vpop.xlane.xlu0 %1658
        %vm1660 = vcmp.eq.f32.partialorder %v1657, %v1659
        %v1661 = vsel %vm1660, %v1656, inf
        %1662 = vmin.xlane.f32.xlu0 %v1661
        %v1663 = vpop.xlane.xlu0 %1662
        %v1664 = vcvt.f32.s32 %v1663
        %v1665 = vcvt.f32.s32 %v1659
        %v1666 = vshll.u32 %v1665, 16
        %v1667 = vadd.s32 %v1666, %v1664
        %v1668 = vsel %vm580, %v1610, 2147483647
        %v1669 = vand.u32 %v1668, 65535
        %v1670 = vshra.s32 %v1668, 16
        %v1671 = vcvt.s32.f32 %v1669
        %v1672 = vcvt.s32.f32 %v1670
        %1673 = vmin.xlane.f32.xlu0 %v1672
        %v1674 = vpop.xlane.xlu0 %1673
        %vm1675 = vcmp.eq.f32.partialorder %v1672, %v1674
        %v1676 = vsel %vm1675, %v1671, inf
        %1677 = vmin.xlane.f32.xlu0 %v1676
        %v1678 = vpop.xlane.xlu0 %1677
        %v1679 = vcvt.f32.s32 %v1678
        %v1680 = vcvt.f32.s32 %v1674
        %v1681 = vshll.u32 %v1680, 16
        %v1682 = vadd.s32 %v1681, %v1679
        %v1683 = vsel %vm580, %v1611, 2147483647
        %v1684 = vand.u32 %v1683, 65535
        %v1685 = vshra.s32 %v1683, 16
        %v1686 = vcvt.s32.f32 %v1684
        %v1687 = vcvt.s32.f32 %v1685
        %1688 = vmin.xlane.f32.xlu0 %v1687
        %v1689 = vpop.xlane.xlu0 %1688
        %vm1690 = vcmp.eq.f32.partialorder %v1687, %v1689
        %v1691 = vsel %vm1690, %v1686, inf
        %1692 = vmin.xlane.f32.xlu0 %v1691
        %v1693 = vpop.xlane.xlu0 %1692
        %v1694 = vcvt.f32.s32 %v1693
        %v1695 = vcvt.f32.s32 %v1689
        %v1696 = vshll.u32 %v1695, 16
        %v1697 = vadd.s32 %v1696, %v1694
        %v1698 = vsel %vm580, %v1612, 2147483647
        %v1699 = vand.u32 %v1698, 65535
        %v1700 = vshra.s32 %v1698, 16
        %v1701 = vcvt.s32.f32 %v1699
        %v1702 = vcvt.s32.f32 %v1700
        %1703 = vmin.xlane.f32.xlu0 %v1702
        %v1704 = vpop.xlane.xlu0 %1703
        %vm1705 = vcmp.eq.f32.partialorder %v1702, %v1704
        %v1706 = vsel %vm1705, %v1701, inf
        %1707 = vmin.xlane.f32.xlu0 %v1706
        %v1708 = vpop.xlane.xlu0 %1707
        %v1709 = vcvt.f32.s32 %v1708
        %v1710 = vcvt.f32.s32 %v1704
        %v1711 = vshll.u32 %v1710, 16
        %v1712 = vadd.s32 %v1711, %v1709
        %v1713 = vsel %vm580, %v1613, 2147483647
        %v1714 = vand.u32 %v1713, 65535
        %v1715 = vshra.s32 %v1713, 16
        %v1716 = vcvt.s32.f32 %v1714
        %v1717 = vcvt.s32.f32 %v1715
        %1718 = vmin.xlane.f32.xlu0 %v1717
        %v1719 = vpop.xlane.xlu0 %1718
        %vm1720 = vcmp.eq.f32.partialorder %v1717, %v1719
        %v1721 = vsel %vm1720, %v1716, inf
        %1722 = vmin.xlane.f32.xlu0 %v1721
        %v1723 = vpop.xlane.xlu0 %1722
        %v1724 = vcvt.f32.s32 %v1723
        %v1725 = vcvt.f32.s32 %v1719
        %v1726 = vshll.u32 %v1725, 16
        %v1727 = vadd.s32 %v1726, %v1724
        %v1728 = vsel %vm580, %v1614, 2147483647
        %v1729 = vand.u32 %v1728, 65535
        %v1730 = vshra.s32 %v1728, 16
        %v1731 = vcvt.s32.f32 %v1729
        %v1732 = vcvt.s32.f32 %v1730
        %1733 = vmin.xlane.f32.xlu0 %v1732
        %v1734 = vpop.xlane.xlu0 %1733
        %vm1735 = vcmp.eq.f32.partialorder %v1732, %v1734
        %v1736 = vsel %vm1735, %v1731, inf
        %1737 = vmin.xlane.f32.xlu0 %v1736
        %v1738 = vpop.xlane.xlu0 %1737
        %v1739 = vcvt.f32.s32 %v1738
        %v1740 = vcvt.f32.s32 %v1734
        %v1741 = vshll.u32 %v1740, 16
        %v1742 = vadd.s32 %v1741, %v1739
        %v1743 = vsel %vm580, %v1615, 2147483647
        %v1744 = vand.u32 %v1743, 65535
        %v1745 = vshra.s32 %v1743, 16
        %v1746 = vcvt.s32.f32 %v1744
        %v1747 = vcvt.s32.f32 %v1745
        %1748 = vmin.xlane.f32.xlu0 %v1747
        %v1749 = vpop.xlane.xlu0 %1748
        %vm1750 = vcmp.eq.f32.partialorder %v1747, %v1749
        %v1751 = vsel %vm1750, %v1746, inf
        %1752 = vmin.xlane.f32.xlu0 %v1751
        %v1753 = vpop.xlane.xlu0 %1752
        %v1754 = vcvt.f32.s32 %v1753
        %v1755 = vcvt.f32.s32 %v1749
        %v1756 = vshll.u32 %v1755, 16
        %v1757 = vadd.s32 %v1756, %v1754
        %v1758 = vsel %vm580, %v1616, 2147483647
        %v1759 = vand.u32 %v1758, 65535
        %v1760 = vshra.s32 %v1758, 16
        %v1761 = vcvt.s32.f32 %v1759
        %v1762 = vcvt.s32.f32 %v1760
        %1763 = vmin.xlane.f32.xlu0 %v1762
        %v1764 = vpop.xlane.xlu0 %1763
        %vm1765 = vcmp.eq.f32.partialorder %v1762, %v1764
        %v1766 = vsel %vm1765, %v1761, inf
        %1767 = vmin.xlane.f32.xlu0 %v1766
        %v1768 = vpop.xlane.xlu0 %1767
        %v1769 = vcvt.f32.s32 %v1768
        %v1770 = vcvt.f32.s32 %v1764
        %v1771 = vshll.u32 %v1770, 16
        %v1772 = vadd.s32 %v1771, %v1769
        %v1773 = vsel %vm580, %v1617, 2147483647
        %v1774 = vand.u32 %v1773, 65535
        %v1775 = vshra.s32 %v1773, 16
        %v1776 = vcvt.s32.f32 %v1774
        %v1777 = vcvt.s32.f32 %v1775
        %1778 = vmin.xlane.f32.xlu0 %v1777
        %v1779 = vpop.xlane.xlu0 %1778
        %vm1780 = vcmp.eq.f32.partialorder %v1777, %v1779
        %v1781 = vsel %vm1780, %v1776, inf
        %1782 = vmin.xlane.f32.xlu0 %v1781
        %v1783 = vpop.xlane.xlu0 %1782
        %v1784 = vcvt.f32.s32 %v1783
        %v1785 = vcvt.f32.s32 %v1779
        %v1786 = vshll.u32 %v1785, 16
        %v1787 = vadd.s32 %v1786, %v1784
        %v1788 = vsel %vm580, %v1618, 2147483647
        %v1789 = vand.u32 %v1788, 65535
        %v1790 = vshra.s32 %v1788, 16
        %v1791 = vcvt.s32.f32 %v1789
        %v1792 = vcvt.s32.f32 %v1790
        %1793 = vmin.xlane.f32.xlu0 %v1792
        %v1794 = vpop.xlane.xlu0 %1793
        %vm1795 = vcmp.eq.f32.partialorder %v1792, %v1794
        %v1796 = vsel %vm1795, %v1791, inf
        %1797 = vmin.xlane.f32.xlu0 %v1796
        %v1798 = vpop.xlane.xlu0 %1797
        %v1799 = vcvt.f32.s32 %v1798
        %v1800 = vcvt.f32.s32 %v1794
        %v1801 = vshll.u32 %v1800, 16
        %v1802 = vadd.s32 %v1801, %v1799
        %v1803 = vsel %vm580, %v1619, 2147483647
        %v1804 = vand.u32 %v1803, 65535
        %v1805 = vshra.s32 %v1803, 16
        %v1806 = vcvt.s32.f32 %v1804
        %v1807 = vcvt.s32.f32 %v1805
        %1808 = vmin.xlane.f32.xlu0 %v1807
        %v1809 = vpop.xlane.xlu0 %1808
        %vm1810 = vcmp.eq.f32.partialorder %v1807, %v1809
        %v1811 = vsel %vm1810, %v1806, inf
        %1812 = vmin.xlane.f32.xlu0 %v1811
        %v1813 = vpop.xlane.xlu0 %1812
        %v1814 = vcvt.f32.s32 %v1813
        %v1815 = vcvt.f32.s32 %v1809
        %v1816 = vshll.u32 %v1815, 16
        %v1817 = vadd.s32 %v1816, %v1814
        %v1818 = vsel %vm580, %v1620, 2147483647
        %v1819 = vand.u32 %v1818, 65535
        %v1820 = vshra.s32 %v1818, 16
        %v1821 = vcvt.s32.f32 %v1819
        %v1822 = vcvt.s32.f32 %v1820
        %1823 = vmin.xlane.f32.xlu0 %v1822
        %v1824 = vpop.xlane.xlu0 %1823
        %vm1825 = vcmp.eq.f32.partialorder %v1822, %v1824
        %v1826 = vsel %vm1825, %v1821, inf
        %1827 = vmin.xlane.f32.xlu0 %v1826
        %v1828 = vpop.xlane.xlu0 %1827
        %v1829 = vcvt.f32.s32 %v1828
        %v1830 = vcvt.f32.s32 %v1824
        %v1831 = vshll.u32 %v1830, 16
        %v1832 = vadd.s32 %v1831, %v1829
        %v1833 = vsel %vm580, %v1621, 2147483647
        %v1834 = vand.u32 %v1833, 65535
        %v1835 = vshra.s32 %v1833, 16
        %v1836 = vcvt.s32.f32 %v1834
        %v1837 = vcvt.s32.f32 %v1835
        %1838 = vmin.xlane.f32.xlu0 %v1837
        %v1839 = vpop.xlane.xlu0 %1838
        %vm1840 = vcmp.eq.f32.partialorder %v1837, %v1839
        %v1841 = vsel %vm1840, %v1836, inf
        %1842 = vmin.xlane.f32.xlu0 %v1841
        %v1843 = vpop.xlane.xlu0 %1842
        %v1844 = vcvt.f32.s32 %v1843
        %v1845 = vcvt.f32.s32 %v1839
        %v1846 = vshll.u32 %v1845, 16
        %v1847 = vadd.s32 %v1846, %v1844
        %v1848 = vsel %vm580, %v1622, 2147483647
        %v1849 = vand.u32 %v1848, 65535
        %v1850 = vshra.s32 %v1848, 16
        %v1851 = vcvt.s32.f32 %v1849
        %v1852 = vcvt.s32.f32 %v1850
        %1853 = vmin.xlane.f32.xlu0 %v1852
        %v1854 = vpop.xlane.xlu0 %1853
        %vm1855 = vcmp.eq.f32.partialorder %v1852, %v1854
        %v1856 = vsel %vm1855, %v1851, inf
        %1857 = vmin.xlane.f32.xlu0 %v1856
        %v1858 = vpop.xlane.xlu0 %1857
        %v1859 = vcvt.f32.s32 %v1858
        %v1860 = vcvt.f32.s32 %v1854
        %v1861 = vshll.u32 %v1860, 16
        %v1862 = vadd.s32 %v1861, %v1859
        %vm1863 = vcmask 23568
        %1864 = vst.msk [vmem:[%s367] sm:$0xff] %vm1863, %v1545
        %1865 = vst.msk [vmem:[%s367 + $0x8] sm:$0xff] %vm1863, %v1548
        %1866 = vst.msk [vmem:[%s367 + $0x10] sm:$0xff] %vm1863, %v1551
        %1867 = vst.msk [vmem:[%s367 + $0x18] sm:$0xff] %vm1863, %v1554
        %1868 = vst.msk [vmem:[%s367 + $0x20] sm:$0xff] %vm1863, %v1557
        %1869 = vst.msk [vmem:[%s367 + $0x28] sm:$0xff] %vm1863, %v1560
        %1870 = vst.msk [vmem:[%s367 + $0x30] sm:$0xff] %vm1863, %v1563
        %1871 = vst.msk [vmem:[%s367 + $0x38] sm:$0xff] %vm1863, %v1566
        %1872 = vst.msk [vmem:[%s367 + $0x40] sm:$0xff] %vm1863, %v1569
        %1873 = vst.msk [vmem:[%s367 + $0x48] sm:$0xff] %vm1863, %v1572
        %1874 = vst.msk [vmem:[%s367 + $0x50] sm:$0xff] %vm1863, %v1575
        %1875 = vst.msk [vmem:[%s367 + $0x58] sm:$0xff] %vm1863, %v1578
        %1876 = vst.msk [vmem:[%s367 + $0x60] sm:$0xff] %vm1863, %v1581
        %1877 = vst.msk [vmem:[%s367 + $0x68] sm:$0xff] %vm1863, %v1584
        %1878 = vst.msk [vmem:[%s367 + $0x70] sm:$0xff] %vm1863, %v1587
        %1879 = vst.msk [vmem:[%s367 + $0x78] sm:$0xff] %vm1863, %v1590
        %1880 = vst.msk [vmem:[%s373] sm:$0xff] %vm1863, %v1637
        %1881 = vst.msk [vmem:[%s373 + $0x8] sm:$0xff] %vm1863, %v1652
        %1882 = vst.msk [vmem:[%s373 + $0x10] sm:$0xff] %vm1863, %v1667
        %1883 = vst.msk [vmem:[%s373 + $0x18] sm:$0xff] %vm1863, %v1682
        %1884 = vst.msk [vmem:[%s373 + $0x20] sm:$0xff] %vm1863, %v1697
        %1885 = vst.msk [vmem:[%s373 + $0x28] sm:$0xff] %vm1863, %v1712
        %1886 = vst.msk [vmem:[%s373 + $0x30] sm:$0xff] %vm1863, %v1727
        %1887 = vst.msk [vmem:[%s373 + $0x38] sm:$0xff] %vm1863, %v1742
        %1888 = vst.msk [vmem:[%s373 + $0x40] sm:$0xff] %vm1863, %v1757
        %1889 = vst.msk [vmem:[%s373 + $0x48] sm:$0xff] %vm1863, %v1772
        %1890 = vst.msk [vmem:[%s373 + $0x50] sm:$0xff] %vm1863, %v1787
        %1891 = vst.msk [vmem:[%s373 + $0x58] sm:$0xff] %vm1863, %v1802
        %1892 = vst.msk [vmem:[%s373 + $0x60] sm:$0xff] %vm1863, %v1817
        %1893 = vst.msk [vmem:[%s373 + $0x68] sm:$0xff] %vm1863, %v1832
        %1894 = vst.msk [vmem:[%s373 + $0x70] sm:$0xff] %vm1863, %v1847
        %1895 = vst.msk [vmem:[%s373 + $0x78] sm:$0xff] %vm1863, %v1862
        %vm1896 = vcmp.eq.s32.totalorder %v385, %v1637
        %vm1897 = vcmp.eq.s32.totalorder %v385, %v1652
        %vm1898 = vcmp.eq.s32.totalorder %v385, %v1667
        %vm1899 = vcmp.eq.s32.totalorder %v385, %v1682
        %vm1900 = vcmp.eq.s32.totalorder %v385, %v1697
        %vm1901 = vcmp.eq.s32.totalorder %v385, %v1712
        %vm1902 = vcmp.eq.s32.totalorder %v385, %v1727
        %vm1903 = vcmp.eq.s32.totalorder %v385, %v1742
        %vm1904 = vcmp.eq.s32.totalorder %v385, %v1757
        %vm1905 = vcmp.eq.s32.totalorder %v385, %v1772
        %vm1906 = vcmp.eq.s32.totalorder %v385, %v1787
        %vm1907 = vcmp.eq.s32.totalorder %v385, %v1802
        %vm1908 = vcmp.eq.s32.totalorder %v385, %v1817
        %vm1909 = vcmp.eq.s32.totalorder %v385, %v1832
        %vm1910 = vcmp.eq.s32.totalorder %v385, %v1847
        %vm1911 = vcmp.eq.s32.totalorder %v385, %v1862
        %v1912 = vsel %vm1896, -inf, %v1527
        %v1913 = vsel %vm1897, -inf, %v1528
        %v1914 = vsel %vm1898, -inf, %v1529
        %v1915 = vsel %vm1899, -inf, %v1530
        %v1916 = vsel %vm1900, -inf, %v1531
        %v1917 = vsel %vm1901, -inf, %v1532
        %v1918 = vsel %vm1902, -inf, %v1533
        %v1919 = vsel %vm1903, -inf, %v1534
        %v1920 = vsel %vm1904, -inf, %v1535
        %v1921 = vsel %vm1905, -inf, %v1536
        %v1922 = vsel %vm1906, -inf, %v1537
        %v1923 = vsel %vm1907, -inf, %v1538
        %v1924 = vsel %vm1908, -inf, %v1539
        %v1925 = vsel %vm1909, -inf, %v1540
        %v1926 = vsel %vm1910, -inf, %v1541
        %v1927 = vsel %vm1911, -inf, %v1542
        %v1928 = vsel %vm580, %v1912, -inf
        %1929 = vmax.xlane.f32.xlu0 %v1928
        %v1930 = vpop.xlane.xlu0 %1929
        %v1931 = vsel %vm580, %v1913, -inf
        %1932 = vmax.xlane.f32.xlu0 %v1931
        %v1933 = vpop.xlane.xlu0 %1932
        %v1934 = vsel %vm580, %v1914, -inf
        %1935 = vmax.xlane.f32.xlu0 %v1934
        %v1936 = vpop.xlane.xlu0 %1935
        %v1937 = vsel %vm580, %v1915, -inf
        %1938 = vmax.xlane.f32.xlu0 %v1937
        %v1939 = vpop.xlane.xlu0 %1938
        %v1940 = vsel %vm580, %v1916, -inf
        %1941 = vmax.xlane.f32.xlu0 %v1940
        %v1942 = vpop.xlane.xlu0 %1941
        %v1943 = vsel %vm580, %v1917, -inf
        %1944 = vmax.xlane.f32.xlu0 %v1943
        %v1945 = vpop.xlane.xlu0 %1944
        %v1946 = vsel %vm580, %v1918, -inf
        %1947 = vmax.xlane.f32.xlu0 %v1946
        %v1948 = vpop.xlane.xlu0 %1947
        %v1949 = vsel %vm580, %v1919, -inf
        %1950 = vmax.xlane.f32.xlu0 %v1949
        %v1951 = vpop.xlane.xlu0 %1950
        %v1952 = vsel %vm580, %v1920, -inf
        %1953 = vmax.xlane.f32.xlu0 %v1952
        %v1954 = vpop.xlane.xlu0 %1953
        %v1955 = vsel %vm580, %v1921, -inf
        %1956 = vmax.xlane.f32.xlu0 %v1955
        %v1957 = vpop.xlane.xlu0 %1956
        %v1958 = vsel %vm580, %v1922, -inf
        %1959 = vmax.xlane.f32.xlu0 %v1958
        %v1960 = vpop.xlane.xlu0 %1959
        %v1961 = vsel %vm580, %v1923, -inf
        %1962 = vmax.xlane.f32.xlu0 %v1961
        %v1963 = vpop.xlane.xlu0 %1962
        %v1964 = vsel %vm580, %v1924, -inf
        %1965 = vmax.xlane.f32.xlu0 %v1964
        %v1966 = vpop.xlane.xlu0 %1965
        %v1967 = vsel %vm580, %v1925, -inf
        %1968 = vmax.xlane.f32.xlu0 %v1967
        %v1969 = vpop.xlane.xlu0 %1968
        %v1970 = vsel %vm580, %v1926, -inf
        %1971 = vmax.xlane.f32.xlu0 %v1970
        %v1972 = vpop.xlane.xlu0 %1971
        %v1973 = vsel %vm580, %v1927, -inf
        %1974 = vmax.xlane.f32.xlu0 %v1973
        %v1975 = vpop.xlane.xlu0 %1974
        %vm1976 = vcmp.eq.f32.partialorder %v1912, %v1930
        %vm1977 = vcmp.eq.f32.partialorder %v1913, %v1933
        %vm1978 = vcmp.eq.f32.partialorder %v1914, %v1936
        %vm1979 = vcmp.eq.f32.partialorder %v1915, %v1939
        %vm1980 = vcmp.eq.f32.partialorder %v1916, %v1942
        %vm1981 = vcmp.eq.f32.partialorder %v1917, %v1945
        %vm1982 = vcmp.eq.f32.partialorder %v1918, %v1948
        %vm1983 = vcmp.eq.f32.partialorder %v1919, %v1951
        %vm1984 = vcmp.eq.f32.partialorder %v1920, %v1954
        %vm1985 = vcmp.eq.f32.partialorder %v1921, %v1957
        %vm1986 = vcmp.eq.f32.partialorder %v1922, %v1960
        %vm1987 = vcmp.eq.f32.partialorder %v1923, %v1963
        %vm1988 = vcmp.eq.f32.partialorder %v1924, %v1966
        %vm1989 = vcmp.eq.f32.partialorder %v1925, %v1969
        %vm1990 = vcmp.eq.f32.partialorder %v1926, %v1972
        %vm1991 = vcmp.eq.f32.partialorder %v1927, %v1975
        %v1992 = vsel %vm1976, %v385, 16
        %v1993 = vsel %vm1977, %v385, 16
        %v1994 = vsel %vm1978, %v385, 16
        %v1995 = vsel %vm1979, %v385, 16
        %v1996 = vsel %vm1980, %v385, 16
        %v1997 = vsel %vm1981, %v385, 16
        %v1998 = vsel %vm1982, %v385, 16
        %v1999 = vsel %vm1983, %v385, 16
        %v2000 = vsel %vm1984, %v385, 16
        %v2001 = vsel %vm1985, %v385, 16
        %v2002 = vsel %vm1986, %v385, 16
        %v2003 = vsel %vm1987, %v385, 16
        %v2004 = vsel %vm1988, %v385, 16
        %v2005 = vsel %vm1989, %v385, 16
        %v2006 = vsel %vm1990, %v385, 16
        %v2007 = vsel %vm1991, %v385, 16
        %v2008 = vsel %vm580, %v1992, 2147483647
        %v2009 = vand.u32 %v2008, 65535
        %v2010 = vshra.s32 %v2008, 16
        %v2011 = vcvt.s32.f32 %v2009
        %v2012 = vcvt.s32.f32 %v2010
        %2013 = vmin.xlane.f32.xlu0 %v2012
        %v2014 = vpop.xlane.xlu0 %2013
        %vm2015 = vcmp.eq.f32.partialorder %v2012, %v2014
        %v2016 = vsel %vm2015, %v2011, inf
        %2017 = vmin.xlane.f32.xlu0 %v2016
        %v2018 = vpop.xlane.xlu0 %2017
        %v2019 = vcvt.f32.s32 %v2018
        %v2020 = vcvt.f32.s32 %v2014
        %v2021 = vshll.u32 %v2020, 16
        %v2022 = vadd.s32 %v2021, %v2019
        %v2023 = vsel %vm580, %v1993, 2147483647
        %v2024 = vand.u32 %v2023, 65535
        %v2025 = vshra.s32 %v2023, 16
        %v2026 = vcvt.s32.f32 %v2024
        %v2027 = vcvt.s32.f32 %v2025
        %2028 = vmin.xlane.f32.xlu0 %v2027
        %v2029 = vpop.xlane.xlu0 %2028
        %vm2030 = vcmp.eq.f32.partialorder %v2027, %v2029
        %v2031 = vsel %vm2030, %v2026, inf
        %2032 = vmin.xlane.f32.xlu0 %v2031
        %v2033 = vpop.xlane.xlu0 %2032
        %v2034 = vcvt.f32.s32 %v2033
        %v2035 = vcvt.f32.s32 %v2029
        %v2036 = vshll.u32 %v2035, 16
        %v2037 = vadd.s32 %v2036, %v2034
        %v2038 = vsel %vm580, %v1994, 2147483647
        %v2039 = vand.u32 %v2038, 65535
        %v2040 = vshra.s32 %v2038, 16
        %v2041 = vcvt.s32.f32 %v2039
        %v2042 = vcvt.s32.f32 %v2040
        %2043 = vmin.xlane.f32.xlu0 %v2042
        %v2044 = vpop.xlane.xlu0 %2043
        %vm2045 = vcmp.eq.f32.partialorder %v2042, %v2044
        %v2046 = vsel %vm2045, %v2041, inf
        %2047 = vmin.xlane.f32.xlu0 %v2046
        %v2048 = vpop.xlane.xlu0 %2047
        %v2049 = vcvt.f32.s32 %v2048
        %v2050 = vcvt.f32.s32 %v2044
        %v2051 = vshll.u32 %v2050, 16
        %v2052 = vadd.s32 %v2051, %v2049
        %v2053 = vsel %vm580, %v1995, 2147483647
        %v2054 = vand.u32 %v2053, 65535
        %v2055 = vshra.s32 %v2053, 16
        %v2056 = vcvt.s32.f32 %v2054
        %v2057 = vcvt.s32.f32 %v2055
        %2058 = vmin.xlane.f32.xlu0 %v2057
        %v2059 = vpop.xlane.xlu0 %2058
        %vm2060 = vcmp.eq.f32.partialorder %v2057, %v2059
        %v2061 = vsel %vm2060, %v2056, inf
        %2062 = vmin.xlane.f32.xlu0 %v2061
        %v2063 = vpop.xlane.xlu0 %2062
        %v2064 = vcvt.f32.s32 %v2063
        %v2065 = vcvt.f32.s32 %v2059
        %v2066 = vshll.u32 %v2065, 16
        %v2067 = vadd.s32 %v2066, %v2064
        %v2068 = vsel %vm580, %v1996, 2147483647
        %v2069 = vand.u32 %v2068, 65535
        %v2070 = vshra.s32 %v2068, 16
        %v2071 = vcvt.s32.f32 %v2069
        %v2072 = vcvt.s32.f32 %v2070
        %2073 = vmin.xlane.f32.xlu0 %v2072
        %v2074 = vpop.xlane.xlu0 %2073
        %vm2075 = vcmp.eq.f32.partialorder %v2072, %v2074
        %v2076 = vsel %vm2075, %v2071, inf
        %2077 = vmin.xlane.f32.xlu0 %v2076
        %v2078 = vpop.xlane.xlu0 %2077
        %v2079 = vcvt.f32.s32 %v2078
        %v2080 = vcvt.f32.s32 %v2074
        %v2081 = vshll.u32 %v2080, 16
        %v2082 = vadd.s32 %v2081, %v2079
        %v2083 = vsel %vm580, %v1997, 2147483647
        %v2084 = vand.u32 %v2083, 65535
        %v2085 = vshra.s32 %v2083, 16
        %v2086 = vcvt.s32.f32 %v2084
        %v2087 = vcvt.s32.f32 %v2085
        %2088 = vmin.xlane.f32.xlu0 %v2087
        %v2089 = vpop.xlane.xlu0 %2088
        %vm2090 = vcmp.eq.f32.partialorder %v2087, %v2089
        %v2091 = vsel %vm2090, %v2086, inf
        %2092 = vmin.xlane.f32.xlu0 %v2091
        %v2093 = vpop.xlane.xlu0 %2092
        %v2094 = vcvt.f32.s32 %v2093
        %v2095 = vcvt.f32.s32 %v2089
        %v2096 = vshll.u32 %v2095, 16
        %v2097 = vadd.s32 %v2096, %v2094
        %v2098 = vsel %vm580, %v1998, 2147483647
        %v2099 = vand.u32 %v2098, 65535
        %v2100 = vshra.s32 %v2098, 16
        %v2101 = vcvt.s32.f32 %v2099
        %v2102 = vcvt.s32.f32 %v2100
        %2103 = vmin.xlane.f32.xlu0 %v2102
        %v2104 = vpop.xlane.xlu0 %2103
        %vm2105 = vcmp.eq.f32.partialorder %v2102, %v2104
        %v2106 = vsel %vm2105, %v2101, inf
        %2107 = vmin.xlane.f32.xlu0 %v2106
        %v2108 = vpop.xlane.xlu0 %2107
        %v2109 = vcvt.f32.s32 %v2108
        %v2110 = vcvt.f32.s32 %v2104
        %v2111 = vshll.u32 %v2110, 16
        %v2112 = vadd.s32 %v2111, %v2109
        %v2113 = vsel %vm580, %v1999, 2147483647
        %v2114 = vand.u32 %v2113, 65535
        %v2115 = vshra.s32 %v2113, 16
        %v2116 = vcvt.s32.f32 %v2114
        %v2117 = vcvt.s32.f32 %v2115
        %2118 = vmin.xlane.f32.xlu0 %v2117
        %v2119 = vpop.xlane.xlu0 %2118
        %vm2120 = vcmp.eq.f32.partialorder %v2117, %v2119
        %v2121 = vsel %vm2120, %v2116, inf
        %2122 = vmin.xlane.f32.xlu0 %v2121
        %v2123 = vpop.xlane.xlu0 %2122
        %v2124 = vcvt.f32.s32 %v2123
        %v2125 = vcvt.f32.s32 %v2119
        %v2126 = vshll.u32 %v2125, 16
        %v2127 = vadd.s32 %v2126, %v2124
        %v2128 = vsel %vm580, %v2000, 2147483647
        %v2129 = vand.u32 %v2128, 65535
        %v2130 = vshra.s32 %v2128, 16
        %v2131 = vcvt.s32.f32 %v2129
        %v2132 = vcvt.s32.f32 %v2130
        %2133 = vmin.xlane.f32.xlu0 %v2132
        %v2134 = vpop.xlane.xlu0 %2133
        %vm2135 = vcmp.eq.f32.partialorder %v2132, %v2134
        %v2136 = vsel %vm2135, %v2131, inf
        %2137 = vmin.xlane.f32.xlu0 %v2136
        %v2138 = vpop.xlane.xlu0 %2137
        %v2139 = vcvt.f32.s32 %v2138
        %v2140 = vcvt.f32.s32 %v2134
        %v2141 = vshll.u32 %v2140, 16
        %v2142 = vadd.s32 %v2141, %v2139
        %v2143 = vsel %vm580, %v2001, 2147483647
        %v2144 = vand.u32 %v2143, 65535
        %v2145 = vshra.s32 %v2143, 16
        %v2146 = vcvt.s32.f32 %v2144
        %v2147 = vcvt.s32.f32 %v2145
        %2148 = vmin.xlane.f32.xlu0 %v2147
        %v2149 = vpop.xlane.xlu0 %2148
        %vm2150 = vcmp.eq.f32.partialorder %v2147, %v2149
        %v2151 = vsel %vm2150, %v2146, inf
        %2152 = vmin.xlane.f32.xlu0 %v2151
        %v2153 = vpop.xlane.xlu0 %2152
        %v2154 = vcvt.f32.s32 %v2153
        %v2155 = vcvt.f32.s32 %v2149
        %v2156 = vshll.u32 %v2155, 16
        %v2157 = vadd.s32 %v2156, %v2154
        %v2158 = vsel %vm580, %v2002, 2147483647
        %v2159 = vand.u32 %v2158, 65535
        %v2160 = vshra.s32 %v2158, 16
        %v2161 = vcvt.s32.f32 %v2159
        %v2162 = vcvt.s32.f32 %v2160
        %2163 = vmin.xlane.f32.xlu0 %v2162
        %v2164 = vpop.xlane.xlu0 %2163
        %vm2165 = vcmp.eq.f32.partialorder %v2162, %v2164
        %v2166 = vsel %vm2165, %v2161, inf
        %2167 = vmin.xlane.f32.xlu0 %v2166
        %v2168 = vpop.xlane.xlu0 %2167
        %v2169 = vcvt.f32.s32 %v2168
        %v2170 = vcvt.f32.s32 %v2164
        %v2171 = vshll.u32 %v2170, 16
        %v2172 = vadd.s32 %v2171, %v2169
        %v2173 = vsel %vm580, %v2003, 2147483647
        %v2174 = vand.u32 %v2173, 65535
        %v2175 = vshra.s32 %v2173, 16
        %v2176 = vcvt.s32.f32 %v2174
        %v2177 = vcvt.s32.f32 %v2175
        %2178 = vmin.xlane.f32.xlu0 %v2177
        %v2179 = vpop.xlane.xlu0 %2178
        %vm2180 = vcmp.eq.f32.partialorder %v2177, %v2179
        %v2181 = vsel %vm2180, %v2176, inf
        %2182 = vmin.xlane.f32.xlu0 %v2181
        %v2183 = vpop.xlane.xlu0 %2182
        %v2184 = vcvt.f32.s32 %v2183
        %v2185 = vcvt.f32.s32 %v2179
        %v2186 = vshll.u32 %v2185, 16
        %v2187 = vadd.s32 %v2186, %v2184
        %v2188 = vsel %vm580, %v2004, 2147483647
        %v2189 = vand.u32 %v2188, 65535
        %v2190 = vshra.s32 %v2188, 16
        %v2191 = vcvt.s32.f32 %v2189
        %v2192 = vcvt.s32.f32 %v2190
        %2193 = vmin.xlane.f32.xlu0 %v2192
        %v2194 = vpop.xlane.xlu0 %2193
        %vm2195 = vcmp.eq.f32.partialorder %v2192, %v2194
        %v2196 = vsel %vm2195, %v2191, inf
        %2197 = vmin.xlane.f32.xlu0 %v2196
        %v2198 = vpop.xlane.xlu0 %2197
        %v2199 = vcvt.f32.s32 %v2198
        %v2200 = vcvt.f32.s32 %v2194
        %v2201 = vshll.u32 %v2200, 16
        %v2202 = vadd.s32 %v2201, %v2199
        %v2203 = vsel %vm580, %v2005, 2147483647
        %v2204 = vand.u32 %v2203, 65535
        %v2205 = vshra.s32 %v2203, 16
        %v2206 = vcvt.s32.f32 %v2204
        %v2207 = vcvt.s32.f32 %v2205
        %2208 = vmin.xlane.f32.xlu0 %v2207
        %v2209 = vpop.xlane.xlu0 %2208
        %vm2210 = vcmp.eq.f32.partialorder %v2207, %v2209
        %v2211 = vsel %vm2210, %v2206, inf
        %2212 = vmin.xlane.f32.xlu0 %v2211
        %v2213 = vpop.xlane.xlu0 %2212
        %v2214 = vcvt.f32.s32 %v2213
        %v2215 = vcvt.f32.s32 %v2209
        %v2216 = vshll.u32 %v2215, 16
        %v2217 = vadd.s32 %v2216, %v2214
        %v2218 = vsel %vm580, %v2006, 2147483647
        %v2219 = vand.u32 %v2218, 65535
        %v2220 = vshra.s32 %v2218, 16
        %v2221 = vcvt.s32.f32 %v2219
        %v2222 = vcvt.s32.f32 %v2220
        %2223 = vmin.xlane.f32.xlu0 %v2222
        %v2224 = vpop.xlane.xlu0 %2223
        %vm2225 = vcmp.eq.f32.partialorder %v2222, %v2224
        %v2226 = vsel %vm2225, %v2221, inf
        %2227 = vmin.xlane.f32.xlu0 %v2226
        %v2228 = vpop.xlane.xlu0 %2227
        %v2229 = vcvt.f32.s32 %v2228
        %v2230 = vcvt.f32.s32 %v2224
        %v2231 = vshll.u32 %v2230, 16
        %v2232 = vadd.s32 %v2231, %v2229
        %v2233 = vsel %vm580, %v2007, 2147483647
        %v2234 = vand.u32 %v2233, 65535
        %v2235 = vshra.s32 %v2233, 16
        %v2236 = vcvt.s32.f32 %v2234
        %v2237 = vcvt.s32.f32 %v2235
        %2238 = vmin.xlane.f32.xlu0 %v2237
        %v2239 = vpop.xlane.xlu0 %2238
        %vm2240 = vcmp.eq.f32.partialorder %v2237, %v2239
        %v2241 = vsel %vm2240, %v2236, inf
        %2242 = vmin.xlane.f32.xlu0 %v2241
        %v2243 = vpop.xlane.xlu0 %2242
        %v2244 = vcvt.f32.s32 %v2243
        %v2245 = vcvt.f32.s32 %v2239
        %v2246 = vshll.u32 %v2245, 16
        %v2247 = vadd.s32 %v2246, %v2244
        %vm2248 = vcmask 31768
        %2249 = vst.msk [vmem:[%s367] sm:$0xff] %vm2248, %v1930
        %2250 = vst.msk [vmem:[%s367 + $0x8] sm:$0xff] %vm2248, %v1933
        %2251 = vst.msk [vmem:[%s367 + $0x10] sm:$0xff] %vm2248, %v1936
        %2252 = vst.msk [vmem:[%s367 + $0x18] sm:$0xff] %vm2248, %v1939
        %2253 = vst.msk [vmem:[%s367 + $0x20] sm:$0xff] %vm2248, %v1942
        %2254 = vst.msk [vmem:[%s367 + $0x28] sm:$0xff] %vm2248, %v1945
        %2255 = vst.msk [vmem:[%s367 + $0x30] sm:$0xff] %vm2248, %v1948
        %2256 = vst.msk [vmem:[%s367 + $0x38] sm:$0xff] %vm2248, %v1951
        %2257 = vst.msk [vmem:[%s367 + $0x40] sm:$0xff] %vm2248, %v1954
        %2258 = vst.msk [vmem:[%s367 + $0x48] sm:$0xff] %vm2248, %v1957
        %2259 = vst.msk [vmem:[%s367 + $0x50] sm:$0xff] %vm2248, %v1960
        %2260 = vst.msk [vmem:[%s367 + $0x58] sm:$0xff] %vm2248, %v1963
        %2261 = vst.msk [vmem:[%s367 + $0x60] sm:$0xff] %vm2248, %v1966
        %2262 = vst.msk [vmem:[%s367 + $0x68] sm:$0xff] %vm2248, %v1969
        %2263 = vst.msk [vmem:[%s367 + $0x70] sm:$0xff] %vm2248, %v1972
        %2264 = vst.msk [vmem:[%s367 + $0x78] sm:$0xff] %vm2248, %v1975
        %2265 = vst.msk [vmem:[%s373] sm:$0xff] %vm2248, %v2022
        %2266 = vst.msk [vmem:[%s373 + $0x8] sm:$0xff] %vm2248, %v2037
        %2267 = vst.msk [vmem:[%s373 + $0x10] sm:$0xff] %vm2248, %v2052
        %2268 = vst.msk [vmem:[%s373 + $0x18] sm:$0xff] %vm2248, %v2067
        %2269 = vst.msk [vmem:[%s373 + $0x20] sm:$0xff] %vm2248, %v2082
        %2270 = vst.msk [vmem:[%s373 + $0x28] sm:$0xff] %vm2248, %v2097
        %2271 = vst.msk [vmem:[%s373 + $0x30] sm:$0xff] %vm2248, %v2112
        %2272 = vst.msk [vmem:[%s373 + $0x38] sm:$0xff] %vm2248, %v2127
        %2273 = vst.msk [vmem:[%s373 + $0x40] sm:$0xff] %vm2248, %v2142
        %2274 = vst.msk [vmem:[%s373 + $0x48] sm:$0xff] %vm2248, %v2157
        %2275 = vst.msk [vmem:[%s373 + $0x50] sm:$0xff] %vm2248, %v2172
        %2276 = vst.msk [vmem:[%s373 + $0x58] sm:$0xff] %vm2248, %v2187
        %2277 = vst.msk [vmem:[%s373 + $0x60] sm:$0xff] %vm2248, %v2202
        %2278 = vst.msk [vmem:[%s373 + $0x68] sm:$0xff] %vm2248, %v2217
        %2279 = vst.msk [vmem:[%s373 + $0x70] sm:$0xff] %vm2248, %v2232
        %2280 = vst.msk [vmem:[%s373 + $0x78] sm:$0xff] %vm2248, %v2247
        %vm2281 = vcmp.eq.s32.totalorder %v385, %v2022
        %vm2282 = vcmp.eq.s32.totalorder %v385, %v2037
        %vm2283 = vcmp.eq.s32.totalorder %v385, %v2052
        %vm2284 = vcmp.eq.s32.totalorder %v385, %v2067
        %vm2285 = vcmp.eq.s32.totalorder %v385, %v2082
        %vm2286 = vcmp.eq.s32.totalorder %v385, %v2097
        %vm2287 = vcmp.eq.s32.totalorder %v385, %v2112
        %vm2288 = vcmp.eq.s32.totalorder %v385, %v2127
        %vm2289 = vcmp.eq.s32.totalorder %v385, %v2142
        %vm2290 = vcmp.eq.s32.totalorder %v385, %v2157
        %vm2291 = vcmp.eq.s32.totalorder %v385, %v2172
        %vm2292 = vcmp.eq.s32.totalorder %v385, %v2187
        %vm2293 = vcmp.eq.s32.totalorder %v385, %v2202
        %vm2294 = vcmp.eq.s32.totalorder %v385, %v2217
        %vm2295 = vcmp.eq.s32.totalorder %v385, %v2232
        %vm2296 = vcmp.eq.s32.totalorder %v385, %v2247
        %v2297 = vsel %vm2281, -inf, %v1912
        %v2298 = vsel %vm2282, -inf, %v1913
        %v2299 = vsel %vm2283, -inf, %v1914
        %v2300 = vsel %vm2284, -inf, %v1915
        %v2301 = vsel %vm2285, -inf, %v1916
        %v2302 = vsel %vm2286, -inf, %v1917
        %v2303 = vsel %vm2287, -inf, %v1918
        %v2304 = vsel %vm2288, -inf, %v1919
        %v2305 = vsel %vm2289, -inf, %v1920
        %v2306 = vsel %vm2290, -inf, %v1921
        %v2307 = vsel %vm2291, -inf, %v1922
        %v2308 = vsel %vm2292, -inf, %v1923
        %v2309 = vsel %vm2293, -inf, %v1924
        %v2310 = vsel %vm2294, -inf, %v1925
        %v2311 = vsel %vm2295, -inf, %v1926
        %v2312 = vsel %vm2296, -inf, %v1927
        %v2313 = vsel %vm580, %v2297, -inf
        %2314 = vmax.xlane.f32.xlu0 %v2313
        %v2315 = vpop.xlane.xlu0 %2314
        %v2316 = vsel %vm580, %v2298, -inf
        %2317 = vmax.xlane.f32.xlu0 %v2316
        %v2318 = vpop.xlane.xlu0 %2317
        %v2319 = vsel %vm580, %v2299, -inf
        %2320 = vmax.xlane.f32.xlu0 %v2319
        %v2321 = vpop.xlane.xlu0 %2320
        %v2322 = vsel %vm580, %v2300, -inf
        %2323 = vmax.xlane.f32.xlu0 %v2322
        %v2324 = vpop.xlane.xlu0 %2323
        %v2325 = vsel %vm580, %v2301, -inf
        %2326 = vmax.xlane.f32.xlu0 %v2325
        %v2327 = vpop.xlane.xlu0 %2326
        %v2328 = vsel %vm580, %v2302, -inf
        %2329 = vmax.xlane.f32.xlu0 %v2328
        %v2330 = vpop.xlane.xlu0 %2329
        %v2331 = vsel %vm580, %v2303, -inf
        %2332 = vmax.xlane.f32.xlu0 %v2331
        %v2333 = vpop.xlane.xlu0 %2332
        %v2334 = vsel %vm580, %v2304, -inf
        %2335 = vmax.xlane.f32.xlu0 %v2334
        %v2336 = vpop.xlane.xlu0 %2335
        %v2337 = vsel %vm580, %v2305, -inf
        %2338 = vmax.xlane.f32.xlu0 %v2337
        %v2339 = vpop.xlane.xlu0 %2338
        %v2340 = vsel %vm580, %v2306, -inf
        %2341 = vmax.xlane.f32.xlu0 %v2340
        %v2342 = vpop.xlane.xlu0 %2341
        %v2343 = vsel %vm580, %v2307, -inf
        %2344 = vmax.xlane.f32.xlu0 %v2343
        %v2345 = vpop.xlane.xlu0 %2344
        %v2346 = vsel %vm580, %v2308, -inf
        %2347 = vmax.xlane.f32.xlu0 %v2346
        %v2348 = vpop.xlane.xlu0 %2347
        %v2349 = vsel %vm580, %v2309, -inf
        %2350 = vmax.xlane.f32.xlu0 %v2349
        %v2351 = vpop.xlane.xlu0 %2350
        %v2352 = vsel %vm580, %v2310, -inf
        %2353 = vmax.xlane.f32.xlu0 %v2352
        %v2354 = vpop.xlane.xlu0 %2353
        %v2355 = vsel %vm580, %v2311, -inf
        %2356 = vmax.xlane.f32.xlu0 %v2355
        %v2357 = vpop.xlane.xlu0 %2356
        %v2358 = vsel %vm580, %v2312, -inf
        %2359 = vmax.xlane.f32.xlu0 %v2358
        %v2360 = vpop.xlane.xlu0 %2359
        %vm2361 = vcmp.eq.f32.partialorder %v2297, %v2315
        %vm2362 = vcmp.eq.f32.partialorder %v2298, %v2318
        %vm2363 = vcmp.eq.f32.partialorder %v2299, %v2321
        %vm2364 = vcmp.eq.f32.partialorder %v2300, %v2324
        %vm2365 = vcmp.eq.f32.partialorder %v2301, %v2327
        %vm2366 = vcmp.eq.f32.partialorder %v2302, %v2330
        %vm2367 = vcmp.eq.f32.partialorder %v2303, %v2333
        %vm2368 = vcmp.eq.f32.partialorder %v2304, %v2336
        %vm2369 = vcmp.eq.f32.partialorder %v2305, %v2339
        %vm2370 = vcmp.eq.f32.partialorder %v2306, %v2342
        %vm2371 = vcmp.eq.f32.partialorder %v2307, %v2345
        %vm2372 = vcmp.eq.f32.partialorder %v2308, %v2348
        %vm2373 = vcmp.eq.f32.partialorder %v2309, %v2351
        %vm2374 = vcmp.eq.f32.partialorder %v2310, %v2354
        %vm2375 = vcmp.eq.f32.partialorder %v2311, %v2357
        %vm2376 = vcmp.eq.f32.partialorder %v2312, %v2360
        %v2377 = vsel %vm2361, %v385, 16
        %v2378 = vsel %vm2362, %v385, 16
        %v2379 = vsel %vm2363, %v385, 16
        %v2380 = vsel %vm2364, %v385, 16
        %v2381 = vsel %vm2365, %v385, 16
        %v2382 = vsel %vm2366, %v385, 16
        %v2383 = vsel %vm2367, %v385, 16
        %v2384 = vsel %vm2368, %v385, 16
        %v2385 = vsel %vm2369, %v385, 16
        %v2386 = vsel %vm2370, %v385, 16
        %v2387 = vsel %vm2371, %v385, 16
        %v2388 = vsel %vm2372, %v385, 16
        %v2389 = vsel %vm2373, %v385, 16
        %v2390 = vsel %vm2374, %v385, 16
        %v2391 = vsel %vm2375, %v385, 16
        %v2392 = vsel %vm2376, %v385, 16
        %v2393 = vsel %vm580, %v2377, 2147483647
        %v2394 = vand.u32 %v2393, 65535
        %v2395 = vshra.s32 %v2393, 16
        %v2396 = vcvt.s32.f32 %v2394
        %v2397 = vcvt.s32.f32 %v2395
        %2398 = vmin.xlane.f32.xlu0 %v2397
        %v2399 = vpop.xlane.xlu0 %2398
        %vm2400 = vcmp.eq.f32.partialorder %v2397, %v2399
        %v2401 = vsel %vm2400, %v2396, inf
        %2402 = vmin.xlane.f32.xlu0 %v2401
        %v2403 = vpop.xlane.xlu0 %2402
        %v2404 = vcvt.f32.s32 %v2403
        %v2405 = vcvt.f32.s32 %v2399
        %v2406 = vshll.u32 %v2405, 16
        %v2407 = vadd.s32 %v2406, %v2404
        %v2408 = vsel %vm580, %v2378, 2147483647
        %v2409 = vand.u32 %v2408, 65535
        %v2410 = vshra.s32 %v2408, 16
        %v2411 = vcvt.s32.f32 %v2409
        %v2412 = vcvt.s32.f32 %v2410
        %2413 = vmin.xlane.f32.xlu0 %v2412
        %v2414 = vpop.xlane.xlu0 %2413
        %vm2415 = vcmp.eq.f32.partialorder %v2412, %v2414
        %v2416 = vsel %vm2415, %v2411, inf
        %2417 = vmin.xlane.f32.xlu0 %v2416
        %v2418 = vpop.xlane.xlu0 %2417
        %v2419 = vcvt.f32.s32 %v2418
        %v2420 = vcvt.f32.s32 %v2414
        %v2421 = vshll.u32 %v2420, 16
        %v2422 = vadd.s32 %v2421, %v2419
        %v2423 = vsel %vm580, %v2379, 2147483647
        %v2424 = vand.u32 %v2423, 65535
        %v2425 = vshra.s32 %v2423, 16
        %v2426 = vcvt.s32.f32 %v2424
        %v2427 = vcvt.s32.f32 %v2425
        %2428 = vmin.xlane.f32.xlu0 %v2427
        %v2429 = vpop.xlane.xlu0 %2428
        %vm2430 = vcmp.eq.f32.partialorder %v2427, %v2429
        %v2431 = vsel %vm2430, %v2426, inf
        %2432 = vmin.xlane.f32.xlu0 %v2431
        %v2433 = vpop.xlane.xlu0 %2432
        %v2434 = vcvt.f32.s32 %v2433
        %v2435 = vcvt.f32.s32 %v2429
        %v2436 = vshll.u32 %v2435, 16
        %v2437 = vadd.s32 %v2436, %v2434
        %v2438 = vsel %vm580, %v2380, 2147483647
        %v2439 = vand.u32 %v2438, 65535
        %v2440 = vshra.s32 %v2438, 16
        %v2441 = vcvt.s32.f32 %v2439
        %v2442 = vcvt.s32.f32 %v2440
        %2443 = vmin.xlane.f32.xlu0 %v2442
        %v2444 = vpop.xlane.xlu0 %2443
        %vm2445 = vcmp.eq.f32.partialorder %v2442, %v2444
        %v2446 = vsel %vm2445, %v2441, inf
        %2447 = vmin.xlane.f32.xlu0 %v2446
        %v2448 = vpop.xlane.xlu0 %2447
        %v2449 = vcvt.f32.s32 %v2448
        %v2450 = vcvt.f32.s32 %v2444
        %v2451 = vshll.u32 %v2450, 16
        %v2452 = vadd.s32 %v2451, %v2449
        %v2453 = vsel %vm580, %v2381, 2147483647
        %v2454 = vand.u32 %v2453, 65535
        %v2455 = vshra.s32 %v2453, 16
        %v2456 = vcvt.s32.f32 %v2454
        %v2457 = vcvt.s32.f32 %v2455
        %2458 = vmin.xlane.f32.xlu0 %v2457
        %v2459 = vpop.xlane.xlu0 %2458
        %vm2460 = vcmp.eq.f32.partialorder %v2457, %v2459
        %v2461 = vsel %vm2460, %v2456, inf
        %2462 = vmin.xlane.f32.xlu0 %v2461
        %v2463 = vpop.xlane.xlu0 %2462
        %v2464 = vcvt.f32.s32 %v2463
        %v2465 = vcvt.f32.s32 %v2459
        %v2466 = vshll.u32 %v2465, 16
        %v2467 = vadd.s32 %v2466, %v2464
        %v2468 = vsel %vm580, %v2382, 2147483647
        %v2469 = vand.u32 %v2468, 65535
        %v2470 = vshra.s32 %v2468, 16
        %v2471 = vcvt.s32.f32 %v2469
        %v2472 = vcvt.s32.f32 %v2470
        %2473 = vmin.xlane.f32.xlu0 %v2472
        %v2474 = vpop.xlane.xlu0 %2473
        %vm2475 = vcmp.eq.f32.partialorder %v2472, %v2474
        %v2476 = vsel %vm2475, %v2471, inf
        %2477 = vmin.xlane.f32.xlu0 %v2476
        %v2478 = vpop.xlane.xlu0 %2477
        %v2479 = vcvt.f32.s32 %v2478
        %v2480 = vcvt.f32.s32 %v2474
        %v2481 = vshll.u32 %v2480, 16
        %v2482 = vadd.s32 %v2481, %v2479
        %v2483 = vsel %vm580, %v2383, 2147483647
        %v2484 = vand.u32 %v2483, 65535
        %v2485 = vshra.s32 %v2483, 16
        %v2486 = vcvt.s32.f32 %v2484
        %v2487 = vcvt.s32.f32 %v2485
        %2488 = vmin.xlane.f32.xlu0 %v2487
        %v2489 = vpop.xlane.xlu0 %2488
        %vm2490 = vcmp.eq.f32.partialorder %v2487, %v2489
        %v2491 = vsel %vm2490, %v2486, inf
        %2492 = vmin.xlane.f32.xlu0 %v2491
        %v2493 = vpop.xlane.xlu0 %2492
        %v2494 = vcvt.f32.s32 %v2493
        %v2495 = vcvt.f32.s32 %v2489
        %v2496 = vshll.u32 %v2495, 16
        %v2497 = vadd.s32 %v2496, %v2494
        %v2498 = vsel %vm580, %v2384, 2147483647
        %v2499 = vand.u32 %v2498, 65535
        %v2500 = vshra.s32 %v2498, 16
        %v2501 = vcvt.s32.f32 %v2499
        %v2502 = vcvt.s32.f32 %v2500
        %2503 = vmin.xlane.f32.xlu0 %v2502
        %v2504 = vpop.xlane.xlu0 %2503
        %vm2505 = vcmp.eq.f32.partialorder %v2502, %v2504
        %v2506 = vsel %vm2505, %v2501, inf
        %2507 = vmin.xlane.f32.xlu0 %v2506
        %v2508 = vpop.xlane.xlu0 %2507
        %v2509 = vcvt.f32.s32 %v2508
        %v2510 = vcvt.f32.s32 %v2504
        %v2511 = vshll.u32 %v2510, 16
        %v2512 = vadd.s32 %v2511, %v2509
        %v2513 = vsel %vm580, %v2385, 2147483647
        %v2514 = vand.u32 %v2513, 65535
        %v2515 = vshra.s32 %v2513, 16
        %v2516 = vcvt.s32.f32 %v2514
        %v2517 = vcvt.s32.f32 %v2515
        %2518 = vmin.xlane.f32.xlu0 %v2517
        %v2519 = vpop.xlane.xlu0 %2518
        %vm2520 = vcmp.eq.f32.partialorder %v2517, %v2519
        %v2521 = vsel %vm2520, %v2516, inf
        %2522 = vmin.xlane.f32.xlu0 %v2521
        %v2523 = vpop.xlane.xlu0 %2522
        %v2524 = vcvt.f32.s32 %v2523
        %v2525 = vcvt.f32.s32 %v2519
        %v2526 = vshll.u32 %v2525, 16
        %v2527 = vadd.s32 %v2526, %v2524
        %v2528 = vsel %vm580, %v2386, 2147483647
        %v2529 = vand.u32 %v2528, 65535
        %v2530 = vshra.s32 %v2528, 16
        %v2531 = vcvt.s32.f32 %v2529
        %v2532 = vcvt.s32.f32 %v2530
        %2533 = vmin.xlane.f32.xlu0 %v2532
        %v2534 = vpop.xlane.xlu0 %2533
        %vm2535 = vcmp.eq.f32.partialorder %v2532, %v2534
        %v2536 = vsel %vm2535, %v2531, inf
        %2537 = vmin.xlane.f32.xlu0 %v2536
        %v2538 = vpop.xlane.xlu0 %2537
        %v2539 = vcvt.f32.s32 %v2538
        %v2540 = vcvt.f32.s32 %v2534
        %v2541 = vshll.u32 %v2540, 16
        %v2542 = vadd.s32 %v2541, %v2539
        %v2543 = vsel %vm580, %v2387, 2147483647
        %v2544 = vand.u32 %v2543, 65535
        %v2545 = vshra.s32 %v2543, 16
        %v2546 = vcvt.s32.f32 %v2544
        %v2547 = vcvt.s32.f32 %v2545
        %2548 = vmin.xlane.f32.xlu0 %v2547
        %v2549 = vpop.xlane.xlu0 %2548
        %vm2550 = vcmp.eq.f32.partialorder %v2547, %v2549
        %v2551 = vsel %vm2550, %v2546, inf
        %2552 = vmin.xlane.f32.xlu0 %v2551
        %v2553 = vpop.xlane.xlu0 %2552
        %v2554 = vcvt.f32.s32 %v2553
        %v2555 = vcvt.f32.s32 %v2549
        %v2556 = vshll.u32 %v2555, 16
        %v2557 = vadd.s32 %v2556, %v2554
        %v2558 = vsel %vm580, %v2388, 2147483647
        %v2559 = vand.u32 %v2558, 65535
        %v2560 = vshra.s32 %v2558, 16
        %v2561 = vcvt.s32.f32 %v2559
        %v2562 = vcvt.s32.f32 %v2560
        %2563 = vmin.xlane.f32.xlu0 %v2562
        %v2564 = vpop.xlane.xlu0 %2563
        %vm2565 = vcmp.eq.f32.partialorder %v2562, %v2564
        %v2566 = vsel %vm2565, %v2561, inf
        %2567 = vmin.xlane.f32.xlu0 %v2566
        %v2568 = vpop.xlane.xlu0 %2567
        %v2569 = vcvt.f32.s32 %v2568
        %v2570 = vcvt.f32.s32 %v2564
        %v2571 = vshll.u32 %v2570, 16
        %v2572 = vadd.s32 %v2571, %v2569
        %v2573 = vsel %vm580, %v2389, 2147483647
        %v2574 = vand.u32 %v2573, 65535
        %v2575 = vshra.s32 %v2573, 16
        %v2576 = vcvt.s32.f32 %v2574
        %v2577 = vcvt.s32.f32 %v2575
        %2578 = vmin.xlane.f32.xlu0 %v2577
        %v2579 = vpop.xlane.xlu0 %2578
        %vm2580 = vcmp.eq.f32.partialorder %v2577, %v2579
        %v2581 = vsel %vm2580, %v2576, inf
        %2582 = vmin.xlane.f32.xlu0 %v2581
        %v2583 = vpop.xlane.xlu0 %2582
        %v2584 = vcvt.f32.s32 %v2583
        %v2585 = vcvt.f32.s32 %v2579
        %v2586 = vshll.u32 %v2585, 16
        %v2587 = vadd.s32 %v2586, %v2584
        %v2588 = vsel %vm580, %v2390, 2147483647
        %v2589 = vand.u32 %v2588, 65535
        %v2590 = vshra.s32 %v2588, 16
        %v2591 = vcvt.s32.f32 %v2589
        %v2592 = vcvt.s32.f32 %v2590
        %2593 = vmin.xlane.f32.xlu0 %v2592
        %v2594 = vpop.xlane.xlu0 %2593
        %vm2595 = vcmp.eq.f32.partialorder %v2592, %v2594
        %v2596 = vsel %vm2595, %v2591, inf
        %2597 = vmin.xlane.f32.xlu0 %v2596
        %v2598 = vpop.xlane.xlu0 %2597
        %v2599 = vcvt.f32.s32 %v2598
        %v2600 = vcvt.f32.s32 %v2594
        %v2601 = vshll.u32 %v2600, 16
        %v2602 = vadd.s32 %v2601, %v2599
        %v2603 = vsel %vm580, %v2391, 2147483647
        %v2604 = vand.u32 %v2603, 65535
        %v2605 = vshra.s32 %v2603, 16
        %v2606 = vcvt.s32.f32 %v2604
        %v2607 = vcvt.s32.f32 %v2605
        %2608 = vmin.xlane.f32.xlu0 %v2607
        %v2609 = vpop.xlane.xlu0 %2608
        %vm2610 = vcmp.eq.f32.partialorder %v2607, %v2609
        %v2611 = vsel %vm2610, %v2606, inf
        %2612 = vmin.xlane.f32.xlu0 %v2611
        %v2613 = vpop.xlane.xlu0 %2612
        %v2614 = vcvt.f32.s32 %v2613
        %v2615 = vcvt.f32.s32 %v2609
        %v2616 = vshll.u32 %v2615, 16
        %v2617 = vadd.s32 %v2616, %v2614
        %v2618 = vsel %vm580, %v2392, 2147483647
        %v2619 = vand.u32 %v2618, 65535
        %v2620 = vshra.s32 %v2618, 16
        %v2621 = vcvt.s32.f32 %v2619
        %v2622 = vcvt.s32.f32 %v2620
        %2623 = vmin.xlane.f32.xlu0 %v2622
        %v2624 = vpop.xlane.xlu0 %2623
        %vm2625 = vcmp.eq.f32.partialorder %v2622, %v2624
        %v2626 = vsel %vm2625, %v2621, inf
        %2627 = vmin.xlane.f32.xlu0 %v2626
        %v2628 = vpop.xlane.xlu0 %2627
        %v2629 = vcvt.f32.s32 %v2628
        %v2630 = vcvt.f32.s32 %v2624
        %v2631 = vshll.u32 %v2630, 16
        %v2632 = vadd.s32 %v2631, %v2629
        %vm2633 = vcmask 39968
        %2634 = vst.msk [vmem:[%s367] sm:$0xff] %vm2633, %v2315
        %2635 = vst.msk [vmem:[%s367 + $0x8] sm:$0xff] %vm2633, %v2318
        %2636 = vst.msk [vmem:[%s367 + $0x10] sm:$0xff] %vm2633, %v2321
        %2637 = vst.msk [vmem:[%s367 + $0x18] sm:$0xff] %vm2633, %v2324
        %2638 = vst.msk [vmem:[%s367 + $0x20] sm:$0xff] %vm2633, %v2327
        %2639 = vst.msk [vmem:[%s367 + $0x28] sm:$0xff] %vm2633, %v2330
        %2640 = vst.msk [vmem:[%s367 + $0x30] sm:$0xff] %vm2633, %v2333
        %2641 = vst.msk [vmem:[%s367 + $0x38] sm:$0xff] %vm2633, %v2336
        %2642 = vst.msk [vmem:[%s367 + $0x40] sm:$0xff] %vm2633, %v2339
        %2643 = vst.msk [vmem:[%s367 + $0x48] sm:$0xff] %vm2633, %v2342
        %2644 = vst.msk [vmem:[%s367 + $0x50] sm:$0xff] %vm2633, %v2345
        %2645 = vst.msk [vmem:[%s367 + $0x58] sm:$0xff] %vm2633, %v2348
        %2646 = vst.msk [vmem:[%s367 + $0x60] sm:$0xff] %vm2633, %v2351
        %2647 = vst.msk [vmem:[%s367 + $0x68] sm:$0xff] %vm2633, %v2354
        %2648 = vst.msk [vmem:[%s367 + $0x70] sm:$0xff] %vm2633, %v2357
        %2649 = vst.msk [vmem:[%s367 + $0x78] sm:$0xff] %vm2633, %v2360
        %2650 = vst.msk [vmem:[%s373] sm:$0xff] %vm2633, %v2407
        %2651 = vst.msk [vmem:[%s373 + $0x8] sm:$0xff] %vm2633, %v2422
        %2652 = vst.msk [vmem:[%s373 + $0x10] sm:$0xff] %vm2633, %v2437
        %2653 = vst.msk [vmem:[%s373 + $0x18] sm:$0xff] %vm2633, %v2452
        %2654 = vst.msk [vmem:[%s373 + $0x20] sm:$0xff] %vm2633, %v2467
        %2655 = vst.msk [vmem:[%s373 + $0x28] sm:$0xff] %vm2633, %v2482
        %2656 = vst.msk [vmem:[%s373 + $0x30] sm:$0xff] %vm2633, %v2497
        %2657 = vst.msk [vmem:[%s373 + $0x38] sm:$0xff] %vm2633, %v2512
        %2658 = vst.msk [vmem:[%s373 + $0x40] sm:$0xff] %vm2633, %v2527
        %2659 = vst.msk [vmem:[%s373 + $0x48] sm:$0xff] %vm2633, %v2542
        %2660 = vst.msk [vmem:[%s373 + $0x50] sm:$0xff] %vm2633, %v2557
        %2661 = vst.msk [vmem:[%s373 + $0x58] sm:$0xff] %vm2633, %v2572
        %2662 = vst.msk [vmem:[%s373 + $0x60] sm:$0xff] %vm2633, %v2587
        %2663 = vst.msk [vmem:[%s373 + $0x68] sm:$0xff] %vm2633, %v2602
        %2664 = vst.msk [vmem:[%s373 + $0x70] sm:$0xff] %vm2633, %v2617
        %2665 = vst.msk [vmem:[%s373 + $0x78] sm:$0xff] %vm2633, %v2632
        %vm2666 = vcmp.eq.s32.totalorder %v385, %v2407
        %vm2667 = vcmp.eq.s32.totalorder %v385, %v2422
        %vm2668 = vcmp.eq.s32.totalorder %v385, %v2437
        %vm2669 = vcmp.eq.s32.totalorder %v385, %v2452
        %vm2670 = vcmp.eq.s32.totalorder %v385, %v2467
        %vm2671 = vcmp.eq.s32.totalorder %v385, %v2482
        %vm2672 = vcmp.eq.s32.totalorder %v385, %v2497
        %vm2673 = vcmp.eq.s32.totalorder %v385, %v2512
        %vm2674 = vcmp.eq.s32.totalorder %v385, %v2527
        %vm2675 = vcmp.eq.s32.totalorder %v385, %v2542
        %vm2676 = vcmp.eq.s32.totalorder %v385, %v2557
        %vm2677 = vcmp.eq.s32.totalorder %v385, %v2572
        %vm2678 = vcmp.eq.s32.totalorder %v385, %v2587
        %vm2679 = vcmp.eq.s32.totalorder %v385, %v2602
        %vm2680 = vcmp.eq.s32.totalorder %v385, %v2617
        %vm2681 = vcmp.eq.s32.totalorder %v385, %v2632
        %v2682 = vsel %vm2666, -inf, %v2297
        %v2683 = vsel %vm2667, -inf, %v2298
        %v2684 = vsel %vm2668, -inf, %v2299
        %v2685 = vsel %vm2669, -inf, %v2300
        %v2686 = vsel %vm2670, -inf, %v2301
        %v2687 = vsel %vm2671, -inf, %v2302
        %v2688 = vsel %vm2672, -inf, %v2303
        %v2689 = vsel %vm2673, -inf, %v2304
        %v2690 = vsel %vm2674, -inf, %v2305
        %v2691 = vsel %vm2675, -inf, %v2306
        %v2692 = vsel %vm2676, -inf, %v2307
        %v2693 = vsel %vm2677, -inf, %v2308
        %v2694 = vsel %vm2678, -inf, %v2309
        %v2695 = vsel %vm2679, -inf, %v2310
        %v2696 = vsel %vm2680, -inf, %v2311
        %v2697 = vsel %vm2681, -inf, %v2312
        %v2698 = vsel %vm580, %v2682, -inf
        %2699 = vmax.xlane.f32.xlu0 %v2698
        %v2700 = vpop.xlane.xlu0 %2699
        %v2701 = vsel %vm580, %v2683, -inf
        %2702 = vmax.xlane.f32.xlu0 %v2701
        %v2703 = vpop.xlane.xlu0 %2702
        %v2704 = vsel %vm580, %v2684, -inf
        %2705 = vmax.xlane.f32.xlu0 %v2704
        %v2706 = vpop.xlane.xlu0 %2705
        %v2707 = vsel %vm580, %v2685, -inf
        %2708 = vmax.xlane.f32.xlu0 %v2707
        %v2709 = vpop.xlane.xlu0 %2708
        %v2710 = vsel %vm580, %v2686, -inf
        %2711 = vmax.xlane.f32.xlu0 %v2710
        %v2712 = vpop.xlane.xlu0 %2711
        %v2713 = vsel %vm580, %v2687, -inf
        %2714 = vmax.xlane.f32.xlu0 %v2713
        %v2715 = vpop.xlane.xlu0 %2714
        %v2716 = vsel %vm580, %v2688, -inf
        %2717 = vmax.xlane.f32.xlu0 %v2716
        %v2718 = vpop.xlane.xlu0 %2717
        %v2719 = vsel %vm580, %v2689, -inf
        %2720 = vmax.xlane.f32.xlu0 %v2719
        %v2721 = vpop.xlane.xlu0 %2720
        %v2722 = vsel %vm580, %v2690, -inf
        %2723 = vmax.xlane.f32.xlu0 %v2722
        %v2724 = vpop.xlane.xlu0 %2723
        %v2725 = vsel %vm580, %v2691, -inf
        %2726 = vmax.xlane.f32.xlu0 %v2725
        %v2727 = vpop.xlane.xlu0 %2726
        %v2728 = vsel %vm580, %v2692, -inf
        %2729 = vmax.xlane.f32.xlu0 %v2728
        %v2730 = vpop.xlane.xlu0 %2729
        %v2731 = vsel %vm580, %v2693, -inf
        %2732 = vmax.xlane.f32.xlu0 %v2731
        %v2733 = vpop.xlane.xlu0 %2732
        %v2734 = vsel %vm580, %v2694, -inf
        %2735 = vmax.xlane.f32.xlu0 %v2734
        %v2736 = vpop.xlane.xlu0 %2735
        %v2737 = vsel %vm580, %v2695, -inf
        %2738 = vmax.xlane.f32.xlu0 %v2737
        %v2739 = vpop.xlane.xlu0 %2738
        %v2740 = vsel %vm580, %v2696, -inf
        %2741 = vmax.xlane.f32.xlu0 %v2740
        %v2742 = vpop.xlane.xlu0 %2741
        %v2743 = vsel %vm580, %v2697, -inf
        %2744 = vmax.xlane.f32.xlu0 %v2743
        %v2745 = vpop.xlane.xlu0 %2744
        %vm2746 = vcmp.eq.f32.partialorder %v2682, %v2700
        %vm2747 = vcmp.eq.f32.partialorder %v2683, %v2703
        %vm2748 = vcmp.eq.f32.partialorder %v2684, %v2706
        %vm2749 = vcmp.eq.f32.partialorder %v2685, %v2709
        %vm2750 = vcmp.eq.f32.partialorder %v2686, %v2712
        %vm2751 = vcmp.eq.f32.partialorder %v2687, %v2715
        %vm2752 = vcmp.eq.f32.partialorder %v2688, %v2718
        %vm2753 = vcmp.eq.f32.partialorder %v2689, %v2721
        %vm2754 = vcmp.eq.f32.partialorder %v2690, %v2724
        %vm2755 = vcmp.eq.f32.partialorder %v2691, %v2727
        %vm2756 = vcmp.eq.f32.partialorder %v2692, %v2730
        %vm2757 = vcmp.eq.f32.partialorder %v2693, %v2733
        %vm2758 = vcmp.eq.f32.partialorder %v2694, %v2736
        %vm2759 = vcmp.eq.f32.partialorder %v2695, %v2739
        %vm2760 = vcmp.eq.f32.partialorder %v2696, %v2742
        %vm2761 = vcmp.eq.f32.partialorder %v2697, %v2745
        %v2762 = vsel %vm2746, %v385, 16
        %v2763 = vsel %vm2747, %v385, 16
        %v2764 = vsel %vm2748, %v385, 16
        %v2765 = vsel %vm2749, %v385, 16
        %v2766 = vsel %vm2750, %v385, 16
        %v2767 = vsel %vm2751, %v385, 16
        %v2768 = vsel %vm2752, %v385, 16
        %v2769 = vsel %vm2753, %v385, 16
        %v2770 = vsel %vm2754, %v385, 16
        %v2771 = vsel %vm2755, %v385, 16
        %v2772 = vsel %vm2756, %v385, 16
        %v2773 = vsel %vm2757, %v385, 16
        %v2774 = vsel %vm2758, %v385, 16
        %v2775 = vsel %vm2759, %v385, 16
        %v2776 = vsel %vm2760, %v385, 16
        %v2777 = vsel %vm2761, %v385, 16
        %v2778 = vsel %vm580, %v2762, 2147483647
        %v2779 = vand.u32 %v2778, 65535
        %v2780 = vshra.s32 %v2778, 16
        %v2781 = vcvt.s32.f32 %v2779
        %v2782 = vcvt.s32.f32 %v2780
        %2783 = vmin.xlane.f32.xlu0 %v2782
        %v2784 = vpop.xlane.xlu0 %2783
        %vm2785 = vcmp.eq.f32.partialorder %v2782, %v2784
        %v2786 = vsel %vm2785, %v2781, inf
        %2787 = vmin.xlane.f32.xlu0 %v2786
        %v2788 = vpop.xlane.xlu0 %2787
        %v2789 = vcvt.f32.s32 %v2788
        %v2790 = vcvt.f32.s32 %v2784
        %v2791 = vshll.u32 %v2790, 16
        %v2792 = vadd.s32 %v2791, %v2789
        %v2793 = vsel %vm580, %v2763, 2147483647
        %v2794 = vand.u32 %v2793, 65535
        %v2795 = vshra.s32 %v2793, 16
        %v2796 = vcvt.s32.f32 %v2794
        %v2797 = vcvt.s32.f32 %v2795
        %2798 = vmin.xlane.f32.xlu0 %v2797
        %v2799 = vpop.xlane.xlu0 %2798
        %vm2800 = vcmp.eq.f32.partialorder %v2797, %v2799
        %v2801 = vsel %vm2800, %v2796, inf
        %2802 = vmin.xlane.f32.xlu0 %v2801
        %v2803 = vpop.xlane.xlu0 %2802
        %v2804 = vcvt.f32.s32 %v2803
        %v2805 = vcvt.f32.s32 %v2799
        %v2806 = vshll.u32 %v2805, 16
        %v2807 = vadd.s32 %v2806, %v2804
        %v2808 = vsel %vm580, %v2764, 2147483647
        %v2809 = vand.u32 %v2808, 65535
        %v2810 = vshra.s32 %v2808, 16
        %v2811 = vcvt.s32.f32 %v2809
        %v2812 = vcvt.s32.f32 %v2810
        %2813 = vmin.xlane.f32.xlu0 %v2812
        %v2814 = vpop.xlane.xlu0 %2813
        %vm2815 = vcmp.eq.f32.partialorder %v2812, %v2814
        %v2816 = vsel %vm2815, %v2811, inf
        %2817 = vmin.xlane.f32.xlu0 %v2816
        %v2818 = vpop.xlane.xlu0 %2817
        %v2819 = vcvt.f32.s32 %v2818
        %v2820 = vcvt.f32.s32 %v2814
        %v2821 = vshll.u32 %v2820, 16
        %v2822 = vadd.s32 %v2821, %v2819
        %v2823 = vsel %vm580, %v2765, 2147483647
        %v2824 = vand.u32 %v2823, 65535
        %v2825 = vshra.s32 %v2823, 16
        %v2826 = vcvt.s32.f32 %v2824
        %v2827 = vcvt.s32.f32 %v2825
        %2828 = vmin.xlane.f32.xlu0 %v2827
        %v2829 = vpop.xlane.xlu0 %2828
        %vm2830 = vcmp.eq.f32.partialorder %v2827, %v2829
        %v2831 = vsel %vm2830, %v2826, inf
        %2832 = vmin.xlane.f32.xlu0 %v2831
        %v2833 = vpop.xlane.xlu0 %2832
        %v2834 = vcvt.f32.s32 %v2833
        %v2835 = vcvt.f32.s32 %v2829
        %v2836 = vshll.u32 %v2835, 16
        %v2837 = vadd.s32 %v2836, %v2834
        %v2838 = vsel %vm580, %v2766, 2147483647
        %v2839 = vand.u32 %v2838, 65535
        %v2840 = vshra.s32 %v2838, 16
        %v2841 = vcvt.s32.f32 %v2839
        %v2842 = vcvt.s32.f32 %v2840
        %2843 = vmin.xlane.f32.xlu0 %v2842
        %v2844 = vpop.xlane.xlu0 %2843
        %vm2845 = vcmp.eq.f32.partialorder %v2842, %v2844
        %v2846 = vsel %vm2845, %v2841, inf
        %2847 = vmin.xlane.f32.xlu0 %v2846
        %v2848 = vpop.xlane.xlu0 %2847
        %v2849 = vcvt.f32.s32 %v2848
        %v2850 = vcvt.f32.s32 %v2844
        %v2851 = vshll.u32 %v2850, 16
        %v2852 = vadd.s32 %v2851, %v2849
        %v2853 = vsel %vm580, %v2767, 2147483647
        %v2854 = vand.u32 %v2853, 65535
        %v2855 = vshra.s32 %v2853, 16
        %v2856 = vcvt.s32.f32 %v2854
        %v2857 = vcvt.s32.f32 %v2855
        %2858 = vmin.xlane.f32.xlu0 %v2857
        %v2859 = vpop.xlane.xlu0 %2858
        %vm2860 = vcmp.eq.f32.partialorder %v2857, %v2859
        %v2861 = vsel %vm2860, %v2856, inf
        %2862 = vmin.xlane.f32.xlu0 %v2861
        %v2863 = vpop.xlane.xlu0 %2862
        %v2864 = vcvt.f32.s32 %v2863
        %v2865 = vcvt.f32.s32 %v2859
        %v2866 = vshll.u32 %v2865, 16
        %v2867 = vadd.s32 %v2866, %v2864
        %v2868 = vsel %vm580, %v2768, 2147483647
        %v2869 = vand.u32 %v2868, 65535
        %v2870 = vshra.s32 %v2868, 16
        %v2871 = vcvt.s32.f32 %v2869
        %v2872 = vcvt.s32.f32 %v2870
        %2873 = vmin.xlane.f32.xlu0 %v2872
        %v2874 = vpop.xlane.xlu0 %2873
        %vm2875 = vcmp.eq.f32.partialorder %v2872, %v2874
        %v2876 = vsel %vm2875, %v2871, inf
        %2877 = vmin.xlane.f32.xlu0 %v2876
        %v2878 = vpop.xlane.xlu0 %2877
        %v2879 = vcvt.f32.s32 %v2878
        %v2880 = vcvt.f32.s32 %v2874
        %v2881 = vshll.u32 %v2880, 16
        %v2882 = vadd.s32 %v2881, %v2879
        %v2883 = vsel %vm580, %v2769, 2147483647
        %v2884 = vand.u32 %v2883, 65535
        %v2885 = vshra.s32 %v2883, 16
        %v2886 = vcvt.s32.f32 %v2884
        %v2887 = vcvt.s32.f32 %v2885
        %2888 = vmin.xlane.f32.xlu0 %v2887
        %v2889 = vpop.xlane.xlu0 %2888
        %vm2890 = vcmp.eq.f32.partialorder %v2887, %v2889
        %v2891 = vsel %vm2890, %v2886, inf
        %2892 = vmin.xlane.f32.xlu0 %v2891
        %v2893 = vpop.xlane.xlu0 %2892
        %v2894 = vcvt.f32.s32 %v2893
        %v2895 = vcvt.f32.s32 %v2889
        %v2896 = vshll.u32 %v2895, 16
        %v2897 = vadd.s32 %v2896, %v2894
        %v2898 = vsel %vm580, %v2770, 2147483647
        %v2899 = vand.u32 %v2898, 65535
        %v2900 = vshra.s32 %v2898, 16
        %v2901 = vcvt.s32.f32 %v2899
        %v2902 = vcvt.s32.f32 %v2900
        %2903 = vmin.xlane.f32.xlu0 %v2902
        %v2904 = vpop.xlane.xlu0 %2903
        %vm2905 = vcmp.eq.f32.partialorder %v2902, %v2904
        %v2906 = vsel %vm2905, %v2901, inf
        %2907 = vmin.xlane.f32.xlu0 %v2906
        %v2908 = vpop.xlane.xlu0 %2907
        %v2909 = vcvt.f32.s32 %v2908
        %v2910 = vcvt.f32.s32 %v2904
        %v2911 = vshll.u32 %v2910, 16
        %v2912 = vadd.s32 %v2911, %v2909
        %v2913 = vsel %vm580, %v2771, 2147483647
        %v2914 = vand.u32 %v2913, 65535
        %v2915 = vshra.s32 %v2913, 16
        %v2916 = vcvt.s32.f32 %v2914
        %v2917 = vcvt.s32.f32 %v2915
        %2918 = vmin.xlane.f32.xlu0 %v2917
        %v2919 = vpop.xlane.xlu0 %2918
        %vm2920 = vcmp.eq.f32.partialorder %v2917, %v2919
        %v2921 = vsel %vm2920, %v2916, inf
        %2922 = vmin.xlane.f32.xlu0 %v2921
        %v2923 = vpop.xlane.xlu0 %2922
        %v2924 = vcvt.f32.s32 %v2923
        %v2925 = vcvt.f32.s32 %v2919
        %v2926 = vshll.u32 %v2925, 16
        %v2927 = vadd.s32 %v2926, %v2924
        %v2928 = vsel %vm580, %v2772, 2147483647
        %v2929 = vand.u32 %v2928, 65535
        %v2930 = vshra.s32 %v2928, 16
        %v2931 = vcvt.s32.f32 %v2929
        %v2932 = vcvt.s32.f32 %v2930
        %2933 = vmin.xlane.f32.xlu0 %v2932
        %v2934 = vpop.xlane.xlu0 %2933
        %vm2935 = vcmp.eq.f32.partialorder %v2932, %v2934
        %v2936 = vsel %vm2935, %v2931, inf
        %2937 = vmin.xlane.f32.xlu0 %v2936
        %v2938 = vpop.xlane.xlu0 %2937
        %v2939 = vcvt.f32.s32 %v2938
        %v2940 = vcvt.f32.s32 %v2934
        %v2941 = vshll.u32 %v2940, 16
        %v2942 = vadd.s32 %v2941, %v2939
        %v2943 = vsel %vm580, %v2773, 2147483647
        %v2944 = vand.u32 %v2943, 65535
        %v2945 = vshra.s32 %v2943, 16
        %v2946 = vcvt.s32.f32 %v2944
        %v2947 = vcvt.s32.f32 %v2945
        %2948 = vmin.xlane.f32.xlu0 %v2947
        %v2949 = vpop.xlane.xlu0 %2948
        %vm2950 = vcmp.eq.f32.partialorder %v2947, %v2949
        %v2951 = vsel %vm2950, %v2946, inf
        %2952 = vmin.xlane.f32.xlu0 %v2951
        %v2953 = vpop.xlane.xlu0 %2952
        %v2954 = vcvt.f32.s32 %v2953
        %v2955 = vcvt.f32.s32 %v2949
        %v2956 = vshll.u32 %v2955, 16
        %v2957 = vadd.s32 %v2956, %v2954
        %v2958 = vsel %vm580, %v2774, 2147483647
        %v2959 = vand.u32 %v2958, 65535
        %v2960 = vshra.s32 %v2958, 16
        %v2961 = vcvt.s32.f32 %v2959
        %v2962 = vcvt.s32.f32 %v2960
        %2963 = vmin.xlane.f32.xlu0 %v2962
        %v2964 = vpop.xlane.xlu0 %2963
        %vm2965 = vcmp.eq.f32.partialorder %v2962, %v2964
        %v2966 = vsel %vm2965, %v2961, inf
        %2967 = vmin.xlane.f32.xlu0 %v2966
        %v2968 = vpop.xlane.xlu0 %2967
        %v2969 = vcvt.f32.s32 %v2968
        %v2970 = vcvt.f32.s32 %v2964
        %v2971 = vshll.u32 %v2970, 16
        %v2972 = vadd.s32 %v2971, %v2969
        %v2973 = vsel %vm580, %v2775, 2147483647
        %v2974 = vand.u32 %v2973, 65535
        %v2975 = vshra.s32 %v2973, 16
        %v2976 = vcvt.s32.f32 %v2974
        %v2977 = vcvt.s32.f32 %v2975
        %2978 = vmin.xlane.f32.xlu0 %v2977
        %v2979 = vpop.xlane.xlu0 %2978
        %vm2980 = vcmp.eq.f32.partialorder %v2977, %v2979
        %v2981 = vsel %vm2980, %v2976, inf
        %2982 = vmin.xlane.f32.xlu0 %v2981
        %v2983 = vpop.xlane.xlu0 %2982
        %v2984 = vcvt.f32.s32 %v2983
        %v2985 = vcvt.f32.s32 %v2979
        %v2986 = vshll.u32 %v2985, 16
        %v2987 = vadd.s32 %v2986, %v2984
        %v2988 = vsel %vm580, %v2776, 2147483647
        %v2989 = vand.u32 %v2988, 65535
        %v2990 = vshra.s32 %v2988, 16
        %v2991 = vcvt.s32.f32 %v2989
        %v2992 = vcvt.s32.f32 %v2990
        %2993 = vmin.xlane.f32.xlu0 %v2992
        %v2994 = vpop.xlane.xlu0 %2993
        %vm2995 = vcmp.eq.f32.partialorder %v2992, %v2994
        %v2996 = vsel %vm2995, %v2991, inf
        %2997 = vmin.xlane.f32.xlu0 %v2996
        %v2998 = vpop.xlane.xlu0 %2997
        %v2999 = vcvt.f32.s32 %v2998
        %v3000 = vcvt.f32.s32 %v2994
        %v3001 = vshll.u32 %v3000, 16
        %v3002 = vadd.s32 %v3001, %v2999
        %v3003 = vsel %vm580, %v2777, 2147483647
        %v3004 = vand.u32 %v3003, 65535
        %v3005 = vshra.s32 %v3003, 16
        %v3006 = vcvt.s32.f32 %v3004
        %v3007 = vcvt.s32.f32 %v3005
        %3008 = vmin.xlane.f32.xlu0 %v3007
        %v3009 = vpop.xlane.xlu0 %3008
        %vm3010 = vcmp.eq.f32.partialorder %v3007, %v3009
        %v3011 = vsel %vm3010, %v3006, inf
        %3012 = vmin.xlane.f32.xlu0 %v3011
        %v3013 = vpop.xlane.xlu0 %3012
        %v3014 = vcvt.f32.s32 %v3013
        %v3015 = vcvt.f32.s32 %v3009
        %v3016 = vshll.u32 %v3015, 16
        %v3017 = vadd.s32 %v3016, %v3014
        %vm3018 = vcmask 48168
        %3019 = vst.msk [vmem:[%s367] sm:$0xff] %vm3018, %v2700
        %3020 = vst.msk [vmem:[%s367 + $0x8] sm:$0xff] %vm3018, %v2703
        %3021 = vst.msk [vmem:[%s367 + $0x10] sm:$0xff] %vm3018, %v2706
        %3022 = vst.msk [vmem:[%s367 + $0x18] sm:$0xff] %vm3018, %v2709
        %3023 = vst.msk [vmem:[%s367 + $0x20] sm:$0xff] %vm3018, %v2712
        %3024 = vst.msk [vmem:[%s367 + $0x28] sm:$0xff] %vm3018, %v2715
        %3025 = vst.msk [vmem:[%s367 + $0x30] sm:$0xff] %vm3018, %v2718
        %3026 = vst.msk [vmem:[%s367 + $0x38] sm:$0xff] %vm3018, %v2721
        %3027 = vst.msk [vmem:[%s367 + $0x40] sm:$0xff] %vm3018, %v2724
        %3028 = vst.msk [vmem:[%s367 + $0x48] sm:$0xff] %vm3018, %v2727
        %3029 = vst.msk [vmem:[%s367 + $0x50] sm:$0xff] %vm3018, %v2730
        %3030 = vst.msk [vmem:[%s367 + $0x58] sm:$0xff] %vm3018, %v2733
        %3031 = vst.msk [vmem:[%s367 + $0x60] sm:$0xff] %vm3018, %v2736
        %3032 = vst.msk [vmem:[%s367 + $0x68] sm:$0xff] %vm3018, %v2739
        %3033 = vst.msk [vmem:[%s367 + $0x70] sm:$0xff] %vm3018, %v2742
        %3034 = vst.msk [vmem:[%s367 + $0x78] sm:$0xff] %vm3018, %v2745
        %3035 = vst.msk [vmem:[%s373] sm:$0xff] %vm3018, %v2792
        %3036 = vst.msk [vmem:[%s373 + $0x8] sm:$0xff] %vm3018, %v2807
        %3037 = vst.msk [vmem:[%s373 + $0x10] sm:$0xff] %vm3018, %v2822
        %3038 = vst.msk [vmem:[%s373 + $0x18] sm:$0xff] %vm3018, %v2837
        %3039 = vst.msk [vmem:[%s373 + $0x20] sm:$0xff] %vm3018, %v2852
        %3040 = vst.msk [vmem:[%s373 + $0x28] sm:$0xff] %vm3018, %v2867
        %3041 = vst.msk [vmem:[%s373 + $0x30] sm:$0xff] %vm3018, %v2882
        %3042 = vst.msk [vmem:[%s373 + $0x38] sm:$0xff] %vm3018, %v2897
        %3043 = vst.msk [vmem:[%s373 + $0x40] sm:$0xff] %vm3018, %v2912
        %3044 = vst.msk [vmem:[%s373 + $0x48] sm:$0xff] %vm3018, %v2927
        %3045 = vst.msk [vmem:[%s373 + $0x50] sm:$0xff] %vm3018, %v2942
        %3046 = vst.msk [vmem:[%s373 + $0x58] sm:$0xff] %vm3018, %v2957
        %3047 = vst.msk [vmem:[%s373 + $0x60] sm:$0xff] %vm3018, %v2972
        %3048 = vst.msk [vmem:[%s373 + $0x68] sm:$0xff] %vm3018, %v2987
        %3049 = vst.msk [vmem:[%s373 + $0x70] sm:$0xff] %vm3018, %v3002
        %3050 = vst.msk [vmem:[%s373 + $0x78] sm:$0xff] %vm3018, %v3017
        %vm3051 = vcmp.eq.s32.totalorder %v385, %v2792
        %vm3052 = vcmp.eq.s32.totalorder %v385, %v2807
        %vm3053 = vcmp.eq.s32.totalorder %v385, %v2822
        %vm3054 = vcmp.eq.s32.totalorder %v385, %v2837
        %vm3055 = vcmp.eq.s32.totalorder %v385, %v2852
        %vm3056 = vcmp.eq.s32.totalorder %v385, %v2867
        %vm3057 = vcmp.eq.s32.totalorder %v385, %v2882
        %vm3058 = vcmp.eq.s32.totalorder %v385, %v2897
        %vm3059 = vcmp.eq.s32.totalorder %v385, %v2912
        %vm3060 = vcmp.eq.s32.totalorder %v385, %v2927
        %vm3061 = vcmp.eq.s32.totalorder %v385, %v2942
        %vm3062 = vcmp.eq.s32.totalorder %v385, %v2957
        %vm3063 = vcmp.eq.s32.totalorder %v385, %v2972
        %vm3064 = vcmp.eq.s32.totalorder %v385, %v2987
        %vm3065 = vcmp.eq.s32.totalorder %v385, %v3002
        %vm3066 = vcmp.eq.s32.totalorder %v385, %v3017
        %v3067 = vsel %vm3051, -inf, %v2682
        %v3068 = vsel %vm3052, -inf, %v2683
        %v3069 = vsel %vm3053, -inf, %v2684
        %v3070 = vsel %vm3054, -inf, %v2685
        %v3071 = vsel %vm3055, -inf, %v2686
        %v3072 = vsel %vm3056, -inf, %v2687
        %v3073 = vsel %vm3057, -inf, %v2688
        %v3074 = vsel %vm3058, -inf, %v2689
        %v3075 = vsel %vm3059, -inf, %v2690
        %v3076 = vsel %vm3060, -inf, %v2691
        %v3077 = vsel %vm3061, -inf, %v2692
        %v3078 = vsel %vm3062, -inf, %v2693
        %v3079 = vsel %vm3063, -inf, %v2694
        %v3080 = vsel %vm3064, -inf, %v2695
        %v3081 = vsel %vm3065, -inf, %v2696
        %v3082 = vsel %vm3066, -inf, %v2697
        %v3083 = vsel %vm580, %v3067, -inf
        %3084 = vmax.xlane.f32.xlu0 %v3083
        %v3085 = vpop.xlane.xlu0 %3084
        %v3086 = vsel %vm580, %v3068, -inf
        %3087 = vmax.xlane.f32.xlu0 %v3086
        %v3088 = vpop.xlane.xlu0 %3087
        %v3089 = vsel %vm580, %v3069, -inf
        %3090 = vmax.xlane.f32.xlu0 %v3089
        %v3091 = vpop.xlane.xlu0 %3090
        %v3092 = vsel %vm580, %v3070, -inf
        %3093 = vmax.xlane.f32.xlu0 %v3092
        %v3094 = vpop.xlane.xlu0 %3093
        %v3095 = vsel %vm580, %v3071, -inf
        %3096 = vmax.xlane.f32.xlu0 %v3095
        %v3097 = vpop.xlane.xlu0 %3096
        %v3098 = vsel %vm580, %v3072, -inf
        %3099 = vmax.xlane.f32.xlu0 %v3098
        %v3100 = vpop.xlane.xlu0 %3099
        %v3101 = vsel %vm580, %v3073, -inf
        %3102 = vmax.xlane.f32.xlu0 %v3101
        %v3103 = vpop.xlane.xlu0 %3102
        %v3104 = vsel %vm580, %v3074, -inf
        %3105 = vmax.xlane.f32.xlu0 %v3104
        %v3106 = vpop.xlane.xlu0 %3105
        %v3107 = vsel %vm580, %v3075, -inf
        %3108 = vmax.xlane.f32.xlu0 %v3107
        %v3109 = vpop.xlane.xlu0 %3108
        %v3110 = vsel %vm580, %v3076, -inf
        %3111 = vmax.xlane.f32.xlu0 %v3110
        %v3112 = vpop.xlane.xlu0 %3111
        %v3113 = vsel %vm580, %v3077, -inf
        %3114 = vmax.xlane.f32.xlu0 %v3113
        %v3115 = vpop.xlane.xlu0 %3114
        %v3116 = vsel %vm580, %v3078, -inf
        %3117 = vmax.xlane.f32.xlu0 %v3116
        %v3118 = vpop.xlane.xlu0 %3117
        %v3119 = vsel %vm580, %v3079, -inf
        %3120 = vmax.xlane.f32.xlu0 %v3119
        %v3121 = vpop.xlane.xlu0 %3120
        %v3122 = vsel %vm580, %v3080, -inf
        %3123 = vmax.xlane.f32.xlu0 %v3122
        %v3124 = vpop.xlane.xlu0 %3123
        %v3125 = vsel %vm580, %v3081, -inf
        %3126 = vmax.xlane.f32.xlu0 %v3125
        %v3127 = vpop.xlane.xlu0 %3126
        %v3128 = vsel %vm580, %v3082, -inf
        %3129 = vmax.xlane.f32.xlu0 %v3128
        %v3130 = vpop.xlane.xlu0 %3129
        %vm3131 = vcmp.eq.f32.partialorder %v3067, %v3085
        %vm3132 = vcmp.eq.f32.partialorder %v3068, %v3088
        %vm3133 = vcmp.eq.f32.partialorder %v3069, %v3091
        %vm3134 = vcmp.eq.f32.partialorder %v3070, %v3094
        %vm3135 = vcmp.eq.f32.partialorder %v3071, %v3097
        %vm3136 = vcmp.eq.f32.partialorder %v3072, %v3100
        %vm3137 = vcmp.eq.f32.partialorder %v3073, %v3103
        %vm3138 = vcmp.eq.f32.partialorder %v3074, %v3106
        %vm3139 = vcmp.eq.f32.partialorder %v3075, %v3109
        %vm3140 = vcmp.eq.f32.partialorder %v3076, %v3112
        %vm3141 = vcmp.eq.f32.partialorder %v3077, %v3115
        %vm3142 = vcmp.eq.f32.partialorder %v3078, %v3118
        %vm3143 = vcmp.eq.f32.partialorder %v3079, %v3121
        %vm3144 = vcmp.eq.f32.partialorder %v3080, %v3124
        %vm3145 = vcmp.eq.f32.partialorder %v3081, %v3127
        %vm3146 = vcmp.eq.f32.partialorder %v3082, %v3130
        %v3147 = vsel %vm3131, %v385, 16
        %v3148 = vsel %vm3132, %v385, 16
        %v3149 = vsel %vm3133, %v385, 16
        %v3150 = vsel %vm3134, %v385, 16
        %v3151 = vsel %vm3135, %v385, 16
        %v3152 = vsel %vm3136, %v385, 16
        %v3153 = vsel %vm3137, %v385, 16
        %v3154 = vsel %vm3138, %v385, 16
        %v3155 = vsel %vm3139, %v385, 16
        %v3156 = vsel %vm3140, %v385, 16
        %v3157 = vsel %vm3141, %v385, 16
        %v3158 = vsel %vm3142, %v385, 16
        %v3159 = vsel %vm3143, %v385, 16
        %v3160 = vsel %vm3144, %v385, 16
        %v3161 = vsel %vm3145, %v385, 16
        %v3162 = vsel %vm3146, %v385, 16
        %v3163 = vsel %vm580, %v3147, 2147483647
        %v3164 = vand.u32 %v3163, 65535
        %v3165 = vshra.s32 %v3163, 16
        %v3166 = vcvt.s32.f32 %v3164
        %v3167 = vcvt.s32.f32 %v3165
        %3168 = vmin.xlane.f32.xlu0 %v3167
        %v3169 = vpop.xlane.xlu0 %3168
        %vm3170 = vcmp.eq.f32.partialorder %v3167, %v3169
        %v3171 = vsel %vm3170, %v3166, inf
        %3172 = vmin.xlane.f32.xlu0 %v3171
        %v3173 = vpop.xlane.xlu0 %3172
        %v3174 = vcvt.f32.s32 %v3173
        %v3175 = vcvt.f32.s32 %v3169
        %v3176 = vshll.u32 %v3175, 16
        %v3177 = vadd.s32 %v3176, %v3174
        %v3178 = vsel %vm580, %v3148, 2147483647
        %v3179 = vand.u32 %v3178, 65535
        %v3180 = vshra.s32 %v3178, 16
        %v3181 = vcvt.s32.f32 %v3179
        %v3182 = vcvt.s32.f32 %v3180
        %3183 = vmin.xlane.f32.xlu0 %v3182
        %v3184 = vpop.xlane.xlu0 %3183
        %vm3185 = vcmp.eq.f32.partialorder %v3182, %v3184
        %v3186 = vsel %vm3185, %v3181, inf
        %3187 = vmin.xlane.f32.xlu0 %v3186
        %v3188 = vpop.xlane.xlu0 %3187
        %v3189 = vcvt.f32.s32 %v3188
        %v3190 = vcvt.f32.s32 %v3184
        %v3191 = vshll.u32 %v3190, 16
        %v3192 = vadd.s32 %v3191, %v3189
        %v3193 = vsel %vm580, %v3149, 2147483647
        %v3194 = vand.u32 %v3193, 65535
        %v3195 = vshra.s32 %v3193, 16
        %v3196 = vcvt.s32.f32 %v3194
        %v3197 = vcvt.s32.f32 %v3195
        %3198 = vmin.xlane.f32.xlu0 %v3197
        %v3199 = vpop.xlane.xlu0 %3198
        %vm3200 = vcmp.eq.f32.partialorder %v3197, %v3199
        %v3201 = vsel %vm3200, %v3196, inf
        %3202 = vmin.xlane.f32.xlu0 %v3201
        %v3203 = vpop.xlane.xlu0 %3202
        %v3204 = vcvt.f32.s32 %v3203
        %v3205 = vcvt.f32.s32 %v3199
        %v3206 = vshll.u32 %v3205, 16
        %v3207 = vadd.s32 %v3206, %v3204
        %v3208 = vsel %vm580, %v3150, 2147483647
        %v3209 = vand.u32 %v3208, 65535
        %v3210 = vshra.s32 %v3208, 16
        %v3211 = vcvt.s32.f32 %v3209
        %v3212 = vcvt.s32.f32 %v3210
        %3213 = vmin.xlane.f32.xlu0 %v3212
        %v3214 = vpop.xlane.xlu0 %3213
        %vm3215 = vcmp.eq.f32.partialorder %v3212, %v3214
        %v3216 = vsel %vm3215, %v3211, inf
        %3217 = vmin.xlane.f32.xlu0 %v3216
        %v3218 = vpop.xlane.xlu0 %3217
        %v3219 = vcvt.f32.s32 %v3218
        %v3220 = vcvt.f32.s32 %v3214
        %v3221 = vshll.u32 %v3220, 16
        %v3222 = vadd.s32 %v3221, %v3219
        %v3223 = vsel %vm580, %v3151, 2147483647
        %v3224 = vand.u32 %v3223, 65535
        %v3225 = vshra.s32 %v3223, 16
        %v3226 = vcvt.s32.f32 %v3224
        %v3227 = vcvt.s32.f32 %v3225
        %3228 = vmin.xlane.f32.xlu0 %v3227
        %v3229 = vpop.xlane.xlu0 %3228
        %vm3230 = vcmp.eq.f32.partialorder %v3227, %v3229
        %v3231 = vsel %vm3230, %v3226, inf
        %3232 = vmin.xlane.f32.xlu0 %v3231
        %v3233 = vpop.xlane.xlu0 %3232
        %v3234 = vcvt.f32.s32 %v3233
        %v3235 = vcvt.f32.s32 %v3229
        %v3236 = vshll.u32 %v3235, 16
        %v3237 = vadd.s32 %v3236, %v3234
        %v3238 = vsel %vm580, %v3152, 2147483647
        %v3239 = vand.u32 %v3238, 65535
        %v3240 = vshra.s32 %v3238, 16
        %v3241 = vcvt.s32.f32 %v3239
        %v3242 = vcvt.s32.f32 %v3240
        %3243 = vmin.xlane.f32.xlu0 %v3242
        %v3244 = vpop.xlane.xlu0 %3243
        %vm3245 = vcmp.eq.f32.partialorder %v3242, %v3244
        %v3246 = vsel %vm3245, %v3241, inf
        %3247 = vmin.xlane.f32.xlu0 %v3246
        %v3248 = vpop.xlane.xlu0 %3247
        %v3249 = vcvt.f32.s32 %v3248
        %v3250 = vcvt.f32.s32 %v3244
        %v3251 = vshll.u32 %v3250, 16
        %v3252 = vadd.s32 %v3251, %v3249
        %v3253 = vsel %vm580, %v3153, 2147483647
        %v3254 = vand.u32 %v3253, 65535
        %v3255 = vshra.s32 %v3253, 16
        %v3256 = vcvt.s32.f32 %v3254
        %v3257 = vcvt.s32.f32 %v3255
        %3258 = vmin.xlane.f32.xlu0 %v3257
        %v3259 = vpop.xlane.xlu0 %3258
        %vm3260 = vcmp.eq.f32.partialorder %v3257, %v3259
        %v3261 = vsel %vm3260, %v3256, inf
        %3262 = vmin.xlane.f32.xlu0 %v3261
        %v3263 = vpop.xlane.xlu0 %3262
        %v3264 = vcvt.f32.s32 %v3263
        %v3265 = vcvt.f32.s32 %v3259
        %v3266 = vshll.u32 %v3265, 16
        %v3267 = vadd.s32 %v3266, %v3264
        %v3268 = vsel %vm580, %v3154, 2147483647
        %v3269 = vand.u32 %v3268, 65535
        %v3270 = vshra.s32 %v3268, 16
        %v3271 = vcvt.s32.f32 %v3269
        %v3272 = vcvt.s32.f32 %v3270
        %3273 = vmin.xlane.f32.xlu0 %v3272
        %v3274 = vpop.xlane.xlu0 %3273
        %vm3275 = vcmp.eq.f32.partialorder %v3272, %v3274
        %v3276 = vsel %vm3275, %v3271, inf
        %3277 = vmin.xlane.f32.xlu0 %v3276
        %v3278 = vpop.xlane.xlu0 %3277
        %v3279 = vcvt.f32.s32 %v3278
        %v3280 = vcvt.f32.s32 %v3274
        %v3281 = vshll.u32 %v3280, 16
        %v3282 = vadd.s32 %v3281, %v3279
        %v3283 = vsel %vm580, %v3155, 2147483647
        %v3284 = vand.u32 %v3283, 65535
        %v3285 = vshra.s32 %v3283, 16
        %v3286 = vcvt.s32.f32 %v3284
        %v3287 = vcvt.s32.f32 %v3285
        %3288 = vmin.xlane.f32.xlu0 %v3287
        %v3289 = vpop.xlane.xlu0 %3288
        %vm3290 = vcmp.eq.f32.partialorder %v3287, %v3289
        %v3291 = vsel %vm3290, %v3286, inf
        %3292 = vmin.xlane.f32.xlu0 %v3291
        %v3293 = vpop.xlane.xlu0 %3292
        %v3294 = vcvt.f32.s32 %v3293
        %v3295 = vcvt.f32.s32 %v3289
        %v3296 = vshll.u32 %v3295, 16
        %v3297 = vadd.s32 %v3296, %v3294
        %v3298 = vsel %vm580, %v3156, 2147483647
        %v3299 = vand.u32 %v3298, 65535
        %v3300 = vshra.s32 %v3298, 16
        %v3301 = vcvt.s32.f32 %v3299
        %v3302 = vcvt.s32.f32 %v3300
        %3303 = vmin.xlane.f32.xlu0 %v3302
        %v3304 = vpop.xlane.xlu0 %3303
        %vm3305 = vcmp.eq.f32.partialorder %v3302, %v3304
        %v3306 = vsel %vm3305, %v3301, inf
        %3307 = vmin.xlane.f32.xlu0 %v3306
        %v3308 = vpop.xlane.xlu0 %3307
        %v3309 = vcvt.f32.s32 %v3308
        %v3310 = vcvt.f32.s32 %v3304
        %v3311 = vshll.u32 %v3310, 16
        %v3312 = vadd.s32 %v3311, %v3309
        %v3313 = vsel %vm580, %v3157, 2147483647
        %v3314 = vand.u32 %v3313, 65535
        %v3315 = vshra.s32 %v3313, 16
        %v3316 = vcvt.s32.f32 %v3314
        %v3317 = vcvt.s32.f32 %v3315
        %3318 = vmin.xlane.f32.xlu0 %v3317
        %v3319 = vpop.xlane.xlu0 %3318
        %vm3320 = vcmp.eq.f32.partialorder %v3317, %v3319
        %v3321 = vsel %vm3320, %v3316, inf
        %3322 = vmin.xlane.f32.xlu0 %v3321
        %v3323 = vpop.xlane.xlu0 %3322
        %v3324 = vcvt.f32.s32 %v3323
        %v3325 = vcvt.f32.s32 %v3319
        %v3326 = vshll.u32 %v3325, 16
        %v3327 = vadd.s32 %v3326, %v3324
        %v3328 = vsel %vm580, %v3158, 2147483647
        %v3329 = vand.u32 %v3328, 65535
        %v3330 = vshra.s32 %v3328, 16
        %v3331 = vcvt.s32.f32 %v3329
        %v3332 = vcvt.s32.f32 %v3330
        %3333 = vmin.xlane.f32.xlu0 %v3332
        %v3334 = vpop.xlane.xlu0 %3333
        %vm3335 = vcmp.eq.f32.partialorder %v3332, %v3334
        %v3336 = vsel %vm3335, %v3331, inf
        %3337 = vmin.xlane.f32.xlu0 %v3336
        %v3338 = vpop.xlane.xlu0 %3337
        %v3339 = vcvt.f32.s32 %v3338
        %v3340 = vcvt.f32.s32 %v3334
        %v3341 = vshll.u32 %v3340, 16
        %v3342 = vadd.s32 %v3341, %v3339
        %v3343 = vsel %vm580, %v3159, 2147483647
        %v3344 = vand.u32 %v3343, 65535
        %v3345 = vshra.s32 %v3343, 16
        %v3346 = vcvt.s32.f32 %v3344
        %v3347 = vcvt.s32.f32 %v3345
        %3348 = vmin.xlane.f32.xlu0 %v3347
        %v3349 = vpop.xlane.xlu0 %3348
        %vm3350 = vcmp.eq.f32.partialorder %v3347, %v3349
        %v3351 = vsel %vm3350, %v3346, inf
        %3352 = vmin.xlane.f32.xlu0 %v3351
        %v3353 = vpop.xlane.xlu0 %3352
        %v3354 = vcvt.f32.s32 %v3353
        %v3355 = vcvt.f32.s32 %v3349
        %v3356 = vshll.u32 %v3355, 16
        %v3357 = vadd.s32 %v3356, %v3354
        %v3358 = vsel %vm580, %v3160, 2147483647
        %v3359 = vand.u32 %v3358, 65535
        %v3360 = vshra.s32 %v3358, 16
        %v3361 = vcvt.s32.f32 %v3359
        %v3362 = vcvt.s32.f32 %v3360
        %3363 = vmin.xlane.f32.xlu0 %v3362
        %v3364 = vpop.xlane.xlu0 %3363
        %vm3365 = vcmp.eq.f32.partialorder %v3362, %v3364
        %v3366 = vsel %vm3365, %v3361, inf
        %3367 = vmin.xlane.f32.xlu0 %v3366
        %v3368 = vpop.xlane.xlu0 %3367
        %v3369 = vcvt.f32.s32 %v3368
        %v3370 = vcvt.f32.s32 %v3364
        %v3371 = vshll.u32 %v3370, 16
        %v3372 = vadd.s32 %v3371, %v3369
        %v3373 = vsel %vm580, %v3161, 2147483647
        %v3374 = vand.u32 %v3373, 65535
        %v3375 = vshra.s32 %v3373, 16
        %v3376 = vcvt.s32.f32 %v3374
        %v3377 = vcvt.s32.f32 %v3375
        %3378 = vmin.xlane.f32.xlu0 %v3377
        %v3379 = vpop.xlane.xlu0 %3378
        %vm3380 = vcmp.eq.f32.partialorder %v3377, %v3379
        %v3381 = vsel %vm3380, %v3376, inf
        %3382 = vmin.xlane.f32.xlu0 %v3381
        %v3383 = vpop.xlane.xlu0 %3382
        %v3384 = vcvt.f32.s32 %v3383
        %v3385 = vcvt.f32.s32 %v3379
        %v3386 = vshll.u32 %v3385, 16
        %v3387 = vadd.s32 %v3386, %v3384
        %v3388 = vsel %vm580, %v3162, 2147483647
        %v3389 = vand.u32 %v3388, 65535
        %v3390 = vshra.s32 %v3388, 16
        %v3391 = vcvt.s32.f32 %v3389
        %v3392 = vcvt.s32.f32 %v3390
        %3393 = vmin.xlane.f32.xlu0 %v3392
        %v3394 = vpop.xlane.xlu0 %3393
        %vm3395 = vcmp.eq.f32.partialorder %v3392, %v3394
        %v3396 = vsel %vm3395, %v3391, inf
        %3397 = vmin.xlane.f32.xlu0 %v3396
        %v3398 = vpop.xlane.xlu0 %3397
        %v3399 = vcvt.f32.s32 %v3398
        %v3400 = vcvt.f32.s32 %v3394
        %v3401 = vshll.u32 %v3400, 16
        %v3402 = vadd.s32 %v3401, %v3399
        %vm3403 = vcmask 56368
        %3404 = vst.msk [vmem:[%s367] sm:$0xff] %vm3403, %v3085
        %3405 = vst.msk [vmem:[%s367 + $0x8] sm:$0xff] %vm3403, %v3088
        %3406 = vst.msk [vmem:[%s367 + $0x10] sm:$0xff] %vm3403, %v3091
        %3407 = vst.msk [vmem:[%s367 + $0x18] sm:$0xff] %vm3403, %v3094
        %3408 = vst.msk [vmem:[%s367 + $0x20] sm:$0xff] %vm3403, %v3097
        %3409 = vst.msk [vmem:[%s367 + $0x28] sm:$0xff] %vm3403, %v3100
        %3410 = vst.msk [vmem:[%s367 + $0x30] sm:$0xff] %vm3403, %v3103
        %3411 = vst.msk [vmem:[%s367 + $0x38] sm:$0xff] %vm3403, %v3106
        %3412 = vst.msk [vmem:[%s367 + $0x40] sm:$0xff] %vm3403, %v3109
        %3413 = vst.msk [vmem:[%s367 + $0x48] sm:$0xff] %vm3403, %v3112
        %3414 = vst.msk [vmem:[%s367 + $0x50] sm:$0xff] %vm3403, %v3115
        %3415 = vst.msk [vmem:[%s367 + $0x58] sm:$0xff] %vm3403, %v3118
        %3416 = vst.msk [vmem:[%s367 + $0x60] sm:$0xff] %vm3403, %v3121
        %3417 = vst.msk [vmem:[%s367 + $0x68] sm:$0xff] %vm3403, %v3124
        %3418 = vst.msk [vmem:[%s367 + $0x70] sm:$0xff] %vm3403, %v3127
        %3419 = vst.msk [vmem:[%s367 + $0x78] sm:$0xff] %vm3403, %v3130
        %3420 = vst.msk [vmem:[%s373] sm:$0xff] %vm3403, %v3177
        %3421 = vst.msk [vmem:[%s373 + $0x8] sm:$0xff] %vm3403, %v3192
        %3422 = vst.msk [vmem:[%s373 + $0x10] sm:$0xff] %vm3403, %v3207
        %3423 = vst.msk [vmem:[%s373 + $0x18] sm:$0xff] %vm3403, %v3222
        %3424 = vst.msk [vmem:[%s373 + $0x20] sm:$0xff] %vm3403, %v3237
        %3425 = vst.msk [vmem:[%s373 + $0x28] sm:$0xff] %vm3403, %v3252
        %3426 = vst.msk [vmem:[%s373 + $0x30] sm:$0xff] %vm3403, %v3267
        %3427 = vst.msk [vmem:[%s373 + $0x38] sm:$0xff] %vm3403, %v3282
        %3428 = vst.msk [vmem:[%s373 + $0x40] sm:$0xff] %vm3403, %v3297
        %3429 = vst.msk [vmem:[%s373 + $0x48] sm:$0xff] %vm3403, %v3312
        %3430 = vst.msk [vmem:[%s373 + $0x50] sm:$0xff] %vm3403, %v3327
        %3431 = vst.msk [vmem:[%s373 + $0x58] sm:$0xff] %vm3403, %v3342
        %3432 = vst.msk [vmem:[%s373 + $0x60] sm:$0xff] %vm3403, %v3357
        %3433 = vst.msk [vmem:[%s373 + $0x68] sm:$0xff] %vm3403, %v3372
        %3434 = vst.msk [vmem:[%s373 + $0x70] sm:$0xff] %vm3403, %v3387
        %3435 = vst.msk [vmem:[%s373 + $0x78] sm:$0xff] %vm3403, %v3402
        %vm3436 = vcmp.eq.s32.totalorder %v385, %v3177
        %vm3437 = vcmp.eq.s32.totalorder %v385, %v3192
        %vm3438 = vcmp.eq.s32.totalorder %v385, %v3207
        %vm3439 = vcmp.eq.s32.totalorder %v385, %v3222
        %vm3440 = vcmp.eq.s32.totalorder %v385, %v3237
        %vm3441 = vcmp.eq.s32.totalorder %v385, %v3252
        %vm3442 = vcmp.eq.s32.totalorder %v385, %v3267
        %vm3443 = vcmp.eq.s32.totalorder %v385, %v3282
        %vm3444 = vcmp.eq.s32.totalorder %v385, %v3297
        %vm3445 = vcmp.eq.s32.totalorder %v385, %v3312
        %vm3446 = vcmp.eq.s32.totalorder %v385, %v3327
        %vm3447 = vcmp.eq.s32.totalorder %v385, %v3342
        %vm3448 = vcmp.eq.s32.totalorder %v385, %v3357
        %vm3449 = vcmp.eq.s32.totalorder %v385, %v3372
        %vm3450 = vcmp.eq.s32.totalorder %v385, %v3387
        %vm3451 = vcmp.eq.s32.totalorder %v385, %v3402
        %v3452 = vsel %vm3436, -inf, %v3067
        %v3453 = vsel %vm3437, -inf, %v3068
        %v3454 = vsel %vm3438, -inf, %v3069
        %v3455 = vsel %vm3439, -inf, %v3070
        %v3456 = vsel %vm3440, -inf, %v3071
        %v3457 = vsel %vm3441, -inf, %v3072
        %v3458 = vsel %vm3442, -inf, %v3073
        %v3459 = vsel %vm3443, -inf, %v3074
        %v3460 = vsel %vm3444, -inf, %v3075
        %v3461 = vsel %vm3445, -inf, %v3076
        %v3462 = vsel %vm3446, -inf, %v3077
        %v3463 = vsel %vm3447, -inf, %v3078
        %v3464 = vsel %vm3448, -inf, %v3079
        %v3465 = vsel %vm3449, -inf, %v3080
        %v3466 = vsel %vm3450, -inf, %v3081
        %v3467 = vsel %vm3451, -inf, %v3082
        %v3468 = vsel %vm580, %v3452, -inf
        %3469 = vmax.xlane.f32.xlu0 %v3468
        %v3470 = vpop.xlane.xlu0 %3469
        %v3471 = vsel %vm580, %v3453, -inf
        %3472 = vmax.xlane.f32.xlu0 %v3471
        %v3473 = vpop.xlane.xlu0 %3472
        %v3474 = vsel %vm580, %v3454, -inf
        %3475 = vmax.xlane.f32.xlu0 %v3474
        %v3476 = vpop.xlane.xlu0 %3475
        %v3477 = vsel %vm580, %v3455, -inf
        %3478 = vmax.xlane.f32.xlu0 %v3477
        %v3479 = vpop.xlane.xlu0 %3478
        %v3480 = vsel %vm580, %v3456, -inf
        %3481 = vmax.xlane.f32.xlu0 %v3480
        %v3482 = vpop.xlane.xlu0 %3481
        %v3483 = vsel %vm580, %v3457, -inf
        %3484 = vmax.xlane.f32.xlu0 %v3483
        %v3485 = vpop.xlane.xlu0 %3484
        %v3486 = vsel %vm580, %v3458, -inf
        %3487 = vmax.xlane.f32.xlu0 %v3486
        %v3488 = vpop.xlane.xlu0 %3487
        %v3489 = vsel %vm580, %v3459, -inf
        %3490 = vmax.xlane.f32.xlu0 %v3489
        %v3491 = vpop.xlane.xlu0 %3490
        %v3492 = vsel %vm580, %v3460, -inf
        %3493 = vmax.xlane.f32.xlu0 %v3492
        %v3494 = vpop.xlane.xlu0 %3493
        %v3495 = vsel %vm580, %v3461, -inf
        %3496 = vmax.xlane.f32.xlu0 %v3495
        %v3497 = vpop.xlane.xlu0 %3496
        %v3498 = vsel %vm580, %v3462, -inf
        %3499 = vmax.xlane.f32.xlu0 %v3498
        %v3500 = vpop.xlane.xlu0 %3499
        %v3501 = vsel %vm580, %v3463, -inf
        %3502 = vmax.xlane.f32.xlu0 %v3501
        %v3503 = vpop.xlane.xlu0 %3502
        %v3504 = vsel %vm580, %v3464, -inf
        %3505 = vmax.xlane.f32.xlu0 %v3504
        %v3506 = vpop.xlane.xlu0 %3505
        %v3507 = vsel %vm580, %v3465, -inf
        %3508 = vmax.xlane.f32.xlu0 %v3507
        %v3509 = vpop.xlane.xlu0 %3508
        %v3510 = vsel %vm580, %v3466, -inf
        %3511 = vmax.xlane.f32.xlu0 %v3510
        %v3512 = vpop.xlane.xlu0 %3511
        %v3513 = vsel %vm580, %v3467, -inf
        %3514 = vmax.xlane.f32.xlu0 %v3513
        %v3515 = vpop.xlane.xlu0 %3514
        %vm3516 = vcmp.eq.f32.partialorder %v3452, %v3470
        %vm3517 = vcmp.eq.f32.partialorder %v3453, %v3473
        %vm3518 = vcmp.eq.f32.partialorder %v3454, %v3476
        %vm3519 = vcmp.eq.f32.partialorder %v3455, %v3479
        %vm3520 = vcmp.eq.f32.partialorder %v3456, %v3482
        %vm3521 = vcmp.eq.f32.partialorder %v3457, %v3485
        %vm3522 = vcmp.eq.f32.partialorder %v3458, %v3488
        %vm3523 = vcmp.eq.f32.partialorder %v3459, %v3491
        %vm3524 = vcmp.eq.f32.partialorder %v3460, %v3494
        %vm3525 = vcmp.eq.f32.partialorder %v3461, %v3497
        %vm3526 = vcmp.eq.f32.partialorder %v3462, %v3500
        %vm3527 = vcmp.eq.f32.partialorder %v3463, %v3503
        %vm3528 = vcmp.eq.f32.partialorder %v3464, %v3506
        %vm3529 = vcmp.eq.f32.partialorder %v3465, %v3509
        %vm3530 = vcmp.eq.f32.partialorder %v3466, %v3512
        %vm3531 = vcmp.eq.f32.partialorder %v3467, %v3515
        %v3532 = vsel %vm3516, %v385, 16
        %v3533 = vsel %vm3517, %v385, 16
        %v3534 = vsel %vm3518, %v385, 16
        %v3535 = vsel %vm3519, %v385, 16
        %v3536 = vsel %vm3520, %v385, 16
        %v3537 = vsel %vm3521, %v385, 16
        %v3538 = vsel %vm3522, %v385, 16
        %v3539 = vsel %vm3523, %v385, 16
        %v3540 = vsel %vm3524, %v385, 16
        %v3541 = vsel %vm3525, %v385, 16
        %v3542 = vsel %vm3526, %v385, 16
        %v3543 = vsel %vm3527, %v385, 16
        %v3544 = vsel %vm3528, %v385, 16
        %v3545 = vsel %vm3529, %v385, 16
        %v3546 = vsel %vm3530, %v385, 16
        %v3547 = vsel %vm3531, %v385, 16
        %v3548 = vsel %vm580, %v3532, 2147483647
        %v3549 = vand.u32 %v3548, 65535
        %v3550 = vshra.s32 %v3548, 16
        %v3551 = vcvt.s32.f32 %v3549
        %v3552 = vcvt.s32.f32 %v3550
        %3553 = vmin.xlane.f32.xlu0 %v3552
        %v3554 = vpop.xlane.xlu0 %3553
        %vm3555 = vcmp.eq.f32.partialorder %v3552, %v3554
        %v3556 = vsel %vm3555, %v3551, inf
        %3557 = vmin.xlane.f32.xlu0 %v3556
        %v3558 = vpop.xlane.xlu0 %3557
        %v3559 = vcvt.f32.s32 %v3558
        %v3560 = vcvt.f32.s32 %v3554
        %v3561 = vshll.u32 %v3560, 16
        %v3562 = vadd.s32 %v3561, %v3559
        %v3563 = vsel %vm580, %v3533, 2147483647
        %v3564 = vand.u32 %v3563, 65535
        %v3565 = vshra.s32 %v3563, 16
        %v3566 = vcvt.s32.f32 %v3564
        %v3567 = vcvt.s32.f32 %v3565
        %3568 = vmin.xlane.f32.xlu0 %v3567
        %v3569 = vpop.xlane.xlu0 %3568
        %vm3570 = vcmp.eq.f32.partialorder %v3567, %v3569
        %v3571 = vsel %vm3570, %v3566, inf
        %3572 = vmin.xlane.f32.xlu0 %v3571
        %v3573 = vpop.xlane.xlu0 %3572
        %v3574 = vcvt.f32.s32 %v3573
        %v3575 = vcvt.f32.s32 %v3569
        %v3576 = vshll.u32 %v3575, 16
        %v3577 = vadd.s32 %v3576, %v3574
        %v3578 = vsel %vm580, %v3534, 2147483647
        %v3579 = vand.u32 %v3578, 65535
        %v3580 = vshra.s32 %v3578, 16
        %v3581 = vcvt.s32.f32 %v3579
        %v3582 = vcvt.s32.f32 %v3580
        %3583 = vmin.xlane.f32.xlu0 %v3582
        %v3584 = vpop.xlane.xlu0 %3583
        %vm3585 = vcmp.eq.f32.partialorder %v3582, %v3584
        %v3586 = vsel %vm3585, %v3581, inf
        %3587 = vmin.xlane.f32.xlu0 %v3586
        %v3588 = vpop.xlane.xlu0 %3587
        %v3589 = vcvt.f32.s32 %v3588
        %v3590 = vcvt.f32.s32 %v3584
        %v3591 = vshll.u32 %v3590, 16
        %v3592 = vadd.s32 %v3591, %v3589
        %v3593 = vsel %vm580, %v3535, 2147483647
        %v3594 = vand.u32 %v3593, 65535
        %v3595 = vshra.s32 %v3593, 16
        %v3596 = vcvt.s32.f32 %v3594
        %v3597 = vcvt.s32.f32 %v3595
        %3598 = vmin.xlane.f32.xlu0 %v3597
        %v3599 = vpop.xlane.xlu0 %3598
        %vm3600 = vcmp.eq.f32.partialorder %v3597, %v3599
        %v3601 = vsel %vm3600, %v3596, inf
        %3602 = vmin.xlane.f32.xlu0 %v3601
        %v3603 = vpop.xlane.xlu0 %3602
        %v3604 = vcvt.f32.s32 %v3603
        %v3605 = vcvt.f32.s32 %v3599
        %v3606 = vshll.u32 %v3605, 16
        %v3607 = vadd.s32 %v3606, %v3604
        %v3608 = vsel %vm580, %v3536, 2147483647
        %v3609 = vand.u32 %v3608, 65535
        %v3610 = vshra.s32 %v3608, 16
        %v3611 = vcvt.s32.f32 %v3609
        %v3612 = vcvt.s32.f32 %v3610
        %3613 = vmin.xlane.f32.xlu0 %v3612
        %v3614 = vpop.xlane.xlu0 %3613
        %vm3615 = vcmp.eq.f32.partialorder %v3612, %v3614
        %v3616 = vsel %vm3615, %v3611, inf
        %3617 = vmin.xlane.f32.xlu0 %v3616
        %v3618 = vpop.xlane.xlu0 %3617
        %v3619 = vcvt.f32.s32 %v3618
        %v3620 = vcvt.f32.s32 %v3614
        %v3621 = vshll.u32 %v3620, 16
        %v3622 = vadd.s32 %v3621, %v3619
        %v3623 = vsel %vm580, %v3537, 2147483647
        %v3624 = vand.u32 %v3623, 65535
        %v3625 = vshra.s32 %v3623, 16
        %v3626 = vcvt.s32.f32 %v3624
        %v3627 = vcvt.s32.f32 %v3625
        %3628 = vmin.xlane.f32.xlu0 %v3627
        %v3629 = vpop.xlane.xlu0 %3628
        %vm3630 = vcmp.eq.f32.partialorder %v3627, %v3629
        %v3631 = vsel %vm3630, %v3626, inf
        %3632 = vmin.xlane.f32.xlu0 %v3631
        %v3633 = vpop.xlane.xlu0 %3632
        %v3634 = vcvt.f32.s32 %v3633
        %v3635 = vcvt.f32.s32 %v3629
        %v3636 = vshll.u32 %v3635, 16
        %v3637 = vadd.s32 %v3636, %v3634
        %v3638 = vsel %vm580, %v3538, 2147483647
        %v3639 = vand.u32 %v3638, 65535
        %v3640 = vshra.s32 %v3638, 16
        %v3641 = vcvt.s32.f32 %v3639
        %v3642 = vcvt.s32.f32 %v3640
        %3643 = vmin.xlane.f32.xlu0 %v3642
        %v3644 = vpop.xlane.xlu0 %3643
        %vm3645 = vcmp.eq.f32.partialorder %v3642, %v3644
        %v3646 = vsel %vm3645, %v3641, inf
        %3647 = vmin.xlane.f32.xlu0 %v3646
        %v3648 = vpop.xlane.xlu0 %3647
        %v3649 = vcvt.f32.s32 %v3648
        %v3650 = vcvt.f32.s32 %v3644
        %v3651 = vshll.u32 %v3650, 16
        %v3652 = vadd.s32 %v3651, %v3649
        %v3653 = vsel %vm580, %v3539, 2147483647
        %v3654 = vand.u32 %v3653, 65535
        %v3655 = vshra.s32 %v3653, 16
        %v3656 = vcvt.s32.f32 %v3654
        %v3657 = vcvt.s32.f32 %v3655
        %3658 = vmin.xlane.f32.xlu0 %v3657
        %v3659 = vpop.xlane.xlu0 %3658
        %vm3660 = vcmp.eq.f32.partialorder %v3657, %v3659
        %v3661 = vsel %vm3660, %v3656, inf
        %3662 = vmin.xlane.f32.xlu0 %v3661
        %v3663 = vpop.xlane.xlu0 %3662
        %v3664 = vcvt.f32.s32 %v3663
        %v3665 = vcvt.f32.s32 %v3659
        %v3666 = vshll.u32 %v3665, 16
        %v3667 = vadd.s32 %v3666, %v3664
        %v3668 = vsel %vm580, %v3540, 2147483647
        %v3669 = vand.u32 %v3668, 65535
        %v3670 = vshra.s32 %v3668, 16
        %v3671 = vcvt.s32.f32 %v3669
        %v3672 = vcvt.s32.f32 %v3670
        %3673 = vmin.xlane.f32.xlu0 %v3672
        %v3674 = vpop.xlane.xlu0 %3673
        %vm3675 = vcmp.eq.f32.partialorder %v3672, %v3674
        %v3676 = vsel %vm3675, %v3671, inf
        %3677 = vmin.xlane.f32.xlu0 %v3676
        %v3678 = vpop.xlane.xlu0 %3677
        %v3679 = vcvt.f32.s32 %v3678
        %v3680 = vcvt.f32.s32 %v3674
        %v3681 = vshll.u32 %v3680, 16
        %v3682 = vadd.s32 %v3681, %v3679
        %v3683 = vsel %vm580, %v3541, 2147483647
        %v3684 = vand.u32 %v3683, 65535
        %v3685 = vshra.s32 %v3683, 16
        %v3686 = vcvt.s32.f32 %v3684
        %v3687 = vcvt.s32.f32 %v3685
        %3688 = vmin.xlane.f32.xlu0 %v3687
        %v3689 = vpop.xlane.xlu0 %3688
        %vm3690 = vcmp.eq.f32.partialorder %v3687, %v3689
        %v3691 = vsel %vm3690, %v3686, inf
        %3692 = vmin.xlane.f32.xlu0 %v3691
        %v3693 = vpop.xlane.xlu0 %3692
        %v3694 = vcvt.f32.s32 %v3693
        %v3695 = vcvt.f32.s32 %v3689
        %v3696 = vshll.u32 %v3695, 16
        %v3697 = vadd.s32 %v3696, %v3694
        %v3698 = vsel %vm580, %v3542, 2147483647
        %v3699 = vand.u32 %v3698, 65535
        %v3700 = vshra.s32 %v3698, 16
        %v3701 = vcvt.s32.f32 %v3699
        %v3702 = vcvt.s32.f32 %v3700
        %3703 = vmin.xlane.f32.xlu0 %v3702
        %v3704 = vpop.xlane.xlu0 %3703
        %vm3705 = vcmp.eq.f32.partialorder %v3702, %v3704
        %v3706 = vsel %vm3705, %v3701, inf
        %3707 = vmin.xlane.f32.xlu0 %v3706
        %v3708 = vpop.xlane.xlu0 %3707
        %v3709 = vcvt.f32.s32 %v3708
        %v3710 = vcvt.f32.s32 %v3704
        %v3711 = vshll.u32 %v3710, 16
        %v3712 = vadd.s32 %v3711, %v3709
        %v3713 = vsel %vm580, %v3543, 2147483647
        %v3714 = vand.u32 %v3713, 65535
        %v3715 = vshra.s32 %v3713, 16
        %v3716 = vcvt.s32.f32 %v3714
        %v3717 = vcvt.s32.f32 %v3715
        %3718 = vmin.xlane.f32.xlu0 %v3717
        %v3719 = vpop.xlane.xlu0 %3718
        %vm3720 = vcmp.eq.f32.partialorder %v3717, %v3719
        %v3721 = vsel %vm3720, %v3716, inf
        %3722 = vmin.xlane.f32.xlu0 %v3721
        %v3723 = vpop.xlane.xlu0 %3722
        %v3724 = vcvt.f32.s32 %v3723
        %v3725 = vcvt.f32.s32 %v3719
        %v3726 = vshll.u32 %v3725, 16
        %v3727 = vadd.s32 %v3726, %v3724
        %v3728 = vsel %vm580, %v3544, 2147483647
        %v3729 = vand.u32 %v3728, 65535
        %v3730 = vshra.s32 %v3728, 16
        %v3731 = vcvt.s32.f32 %v3729
        %v3732 = vcvt.s32.f32 %v3730
        %3733 = vmin.xlane.f32.xlu0 %v3732
        %v3734 = vpop.xlane.xlu0 %3733
        %vm3735 = vcmp.eq.f32.partialorder %v3732, %v3734
        %v3736 = vsel %vm3735, %v3731, inf
        %3737 = vmin.xlane.f32.xlu0 %v3736
        %v3738 = vpop.xlane.xlu0 %3737
        %v3739 = vcvt.f32.s32 %v3738
        %v3740 = vcvt.f32.s32 %v3734
        %v3741 = vshll.u32 %v3740, 16
        %v3742 = vadd.s32 %v3741, %v3739
        %v3743 = vsel %vm580, %v3545, 2147483647
        %v3744 = vand.u32 %v3743, 65535
        %v3745 = vshra.s32 %v3743, 16
        %v3746 = vcvt.s32.f32 %v3744
        %v3747 = vcvt.s32.f32 %v3745
        %3748 = vmin.xlane.f32.xlu0 %v3747
        %v3749 = vpop.xlane.xlu0 %3748
        %vm3750 = vcmp.eq.f32.partialorder %v3747, %v3749
        %v3751 = vsel %vm3750, %v3746, inf
        %3752 = vmin.xlane.f32.xlu0 %v3751
        %v3753 = vpop.xlane.xlu0 %3752
        %v3754 = vcvt.f32.s32 %v3753
        %v3755 = vcvt.f32.s32 %v3749
        %v3756 = vshll.u32 %v3755, 16
        %v3757 = vadd.s32 %v3756, %v3754
        %v3758 = vsel %vm580, %v3546, 2147483647
        %v3759 = vand.u32 %v3758, 65535
        %v3760 = vshra.s32 %v3758, 16
        %v3761 = vcvt.s32.f32 %v3759
        %v3762 = vcvt.s32.f32 %v3760
        %3763 = vmin.xlane.f32.xlu0 %v3762
        %v3764 = vpop.xlane.xlu0 %3763
        %vm3765 = vcmp.eq.f32.partialorder %v3762, %v3764
        %v3766 = vsel %vm3765, %v3761, inf
        %3767 = vmin.xlane.f32.xlu0 %v3766
        %v3768 = vpop.xlane.xlu0 %3767
        %v3769 = vcvt.f32.s32 %v3768
        %v3770 = vcvt.f32.s32 %v3764
        %v3771 = vshll.u32 %v3770, 16
        %v3772 = vadd.s32 %v3771, %v3769
        %v3773 = vsel %vm580, %v3547, 2147483647
        %v3774 = vand.u32 %v3773, 65535
        %v3775 = vshra.s32 %v3773, 16
        %v3776 = vcvt.s32.f32 %v3774
        %v3777 = vcvt.s32.f32 %v3775
        %3778 = vmin.xlane.f32.xlu0 %v3777
        %v3779 = vpop.xlane.xlu0 %3778
        %vm3780 = vcmp.eq.f32.partialorder %v3777, %v3779
        %v3781 = vsel %vm3780, %v3776, inf
        %3782 = vmin.xlane.f32.xlu0 %v3781
        %v3783 = vpop.xlane.xlu0 %3782
        %v3784 = vcvt.f32.s32 %v3783
        %v3785 = vcvt.f32.s32 %v3779
        %v3786 = vshll.u32 %v3785, 16
        %v3787 = vadd.s32 %v3786, %v3784
        %vm3788 = vcmask 64568
        %3789 = vst.msk [vmem:[%s367] sm:$0xff] %vm3788, %v3470
        %3790 = vst.msk [vmem:[%s367 + $0x8] sm:$0xff] %vm3788, %v3473
        %3791 = vst.msk [vmem:[%s367 + $0x10] sm:$0xff] %vm3788, %v3476
        %3792 = vst.msk [vmem:[%s367 + $0x18] sm:$0xff] %vm3788, %v3479
        %3793 = vst.msk [vmem:[%s367 + $0x20] sm:$0xff] %vm3788, %v3482
        %3794 = vst.msk [vmem:[%s367 + $0x28] sm:$0xff] %vm3788, %v3485
        %3795 = vst.msk [vmem:[%s367 + $0x30] sm:$0xff] %vm3788, %v3488
        %3796 = vst.msk [vmem:[%s367 + $0x38] sm:$0xff] %vm3788, %v3491
        %3797 = vst.msk [vmem:[%s367 + $0x40] sm:$0xff] %vm3788, %v3494
        %3798 = vst.msk [vmem:[%s367 + $0x48] sm:$0xff] %vm3788, %v3497
        %3799 = vst.msk [vmem:[%s367 + $0x50] sm:$0xff] %vm3788, %v3500
        %3800 = vst.msk [vmem:[%s367 + $0x58] sm:$0xff] %vm3788, %v3503
        %3801 = vst.msk [vmem:[%s367 + $0x60] sm:$0xff] %vm3788, %v3506
        %3802 = vst.msk [vmem:[%s367 + $0x68] sm:$0xff] %vm3788, %v3509
        %3803 = vst.msk [vmem:[%s367 + $0x70] sm:$0xff] %vm3788, %v3512
        %3804 = vst.msk [vmem:[%s367 + $0x78] sm:$0xff] %vm3788, %v3515
        %3805 = vst.msk [vmem:[%s373] sm:$0xff] %vm3788, %v3562
        %3806 = vst.msk [vmem:[%s373 + $0x8] sm:$0xff] %vm3788, %v3577
        %3807 = vst.msk [vmem:[%s373 + $0x10] sm:$0xff] %vm3788, %v3592
        %3808 = vst.msk [vmem:[%s373 + $0x18] sm:$0xff] %vm3788, %v3607
        %3809 = vst.msk [vmem:[%s373 + $0x20] sm:$0xff] %vm3788, %v3622
        %3810 = vst.msk [vmem:[%s373 + $0x28] sm:$0xff] %vm3788, %v3637
        %3811 = vst.msk [vmem:[%s373 + $0x30] sm:$0xff] %vm3788, %v3652
        %3812 = vst.msk [vmem:[%s373 + $0x38] sm:$0xff] %vm3788, %v3667
        %3813 = vst.msk [vmem:[%s373 + $0x40] sm:$0xff] %vm3788, %v3682
        %3814 = vst.msk [vmem:[%s373 + $0x48] sm:$0xff] %vm3788, %v3697
        %3815 = vst.msk [vmem:[%s373 + $0x50] sm:$0xff] %vm3788, %v3712
        %3816 = vst.msk [vmem:[%s373 + $0x58] sm:$0xff] %vm3788, %v3727
        %3817 = vst.msk [vmem:[%s373 + $0x60] sm:$0xff] %vm3788, %v3742
        %3818 = vst.msk [vmem:[%s373 + $0x68] sm:$0xff] %vm3788, %v3757
        %3819 = vst.msk [vmem:[%s373 + $0x70] sm:$0xff] %vm3788, %v3772
        %3820 = vst.msk [vmem:[%s373 + $0x78] sm:$0xff] %vm3788, %v3787
        %s3821 = scalar_lea.vmem %s343, 64 [#allocation2]
        %v3822 = vld [vmem:[%s3821] sm:$0xf]
        %v3823 = vld [vmem:[%s3821 + $0x4] sm:$0xf]
        %v3824 = vld [vmem:[%s3821 + $0x8] sm:$0xf]
        %v3825 = vld [vmem:[%s3821 + $0xc] sm:$0xf]
        %v3826 = vld [vmem:[%s3821 + $0x10] sm:$0xf]
        %v3827 = vld [vmem:[%s3821 + $0x14] sm:$0xf]
        %v3828 = vld [vmem:[%s3821 + $0x18] sm:$0xf]
        %v3829 = vld [vmem:[%s3821 + $0x1c] sm:$0xf]
        %v3830 = vld [vmem:[%s3821 + $0x20] sm:$0xf]
        %v3831 = vld [vmem:[%s3821 + $0x24] sm:$0xf]
        %v3832 = vld [vmem:[%s3821 + $0x28] sm:$0xf]
        %v3833 = vld [vmem:[%s3821 + $0x2c] sm:$0xf]
        %v3834 = vld [vmem:[%s3821 + $0x30] sm:$0xf]
        %v3835 = vld [vmem:[%s3821 + $0x34] sm:$0xf]
        %v3836 = vld [vmem:[%s3821 + $0x38] sm:$0xf]
        %v3837 = vld [vmem:[%s3821 + $0x3c] sm:$0xf]
        %s3838 = scalar_lea.vmem %s1, 16
        %v3839 = vld [vmem:[%s3838] sm:$0xf]
        %v3840 = vld [vmem:[%s3838 + $0x4] sm:$0xf]
        %v3841 = vld [vmem:[%s3838 + $0x8] sm:$0xf]
        %v3842 = vld [vmem:[%s3838 + $0xc] sm:$0xf]
        %v3859 = vunpack.c.l.b16 %v3822
        %v3860 = vunpack.c.l.b16 %v3823
        %v3861 = vunpack.c.l.b16 %v3824
        %v3862 = vunpack.c.l.b16 %v3825
        %v3863 = vunpack.c.l.b16 %v3826
        %v3864 = vunpack.c.l.b16 %v3827
        %v3865 = vunpack.c.l.b16 %v3828
        %v3866 = vunpack.c.l.b16 %v3829
        %v3867 = vunpack.c.l.b16 %v3830
        %v3868 = vunpack.c.l.b16 %v3831
        %v3869 = vunpack.c.l.b16 %v3832
        %v3870 = vunpack.c.l.b16 %v3833
        %v3871 = vunpack.c.l.b16 %v3834
        %v3872 = vunpack.c.l.b16 %v3835
        %v3873 = vunpack.c.l.b16 %v3836
        %v3874 = vunpack.c.l.b16 %v3837
        %v3875 = vpack.c.b16 %v3860, %v3859
        %v3876 = vpack.c.b16 %v3862, %v3861
        %v3877 = vpack.c.b16 %v3864, %v3863
        %v3878 = vpack.c.b16 %v3866, %v3865
        %v3879 = vpack.c.b16 %v3868, %v3867
        %v3880 = vpack.c.b16 %v3870, %v3869
        %v3881 = vpack.c.b16 %v3872, %v3871
        %v3882 = vpack.c.b16 %v3874, %v3873
        %v3887 = vunpack.c.l.b16 %v3839
        %v3888 = vunpack.c.l.b16 %v3840
        %v3889 = vunpack.c.l.b16 %v3841
        %v3890 = vunpack.c.l.b16 %v3842
        %v3891 = vpack.c.b16 %v3888, %v3887
        %v3892 = vpack.c.b16 %v3890, %v3889
        %v3896 = vsel %vm458, %v3875, 0
        %v3899 = vsel %vm458, %v3876, 0
        %v3902 = vsel %vm458, %v3877, 0
        %v3905 = vsel %vm458, %v3878, 0
        %v3908 = vsel %vm458, %v3879, 0
        %v3911 = vsel %vm458, %v3880, 0
        %v3914 = vsel %vm458, %v3881, 0
        %v3917 = vsel %vm458, %v3882, 0
        %3919 = vmatprep.subr.bf16.mxu0 0
        %3920 = vmatpush1.bf16.msra.mxu0 0
        %3921 = vmatprep.subr.bf16.mxu0 0
        %3922 = vmatpush1.bf16.msra.mxu0 0
        %3923 = vmatprep.subr.bf16.mxu0 0
        %3924 = vmatpush1.bf16.msra.mxu0 0
        %3925 = vmatprep.subr.bf16.mxu0 0
        %3926 = vmatpush1.bf16.msra.mxu0 0
        %3927 = vmatprep.subr.bf16.mxu0 0
        %3928 = vmatpush1.bf16.msra.mxu0 0
        %3929 = vmatprep.subr.bf16.mxu0 0
        %3930 = vmatpush1.bf16.msra.mxu0 0
        %3931 = vmatprep.subr.bf16.mxu0 0
        %3932 = vmatpush1.bf16.msra.mxu0 %v3892
        %3933 = vmatprep.subr.bf16.mxu0 0
        %3934 = vmatpush1.bf16.msra.mxu0 %v3891
        %3935 = vmatprep.subr.bf16.mxu0 0
        %3936 = vmatpush2.bf16.msra.mxu0 0
        %3937 = vmatprep.subr.bf16.mxu0 0
        %3938 = vmatpush2.bf16.msra.mxu0 0
        %3939 = vmatprep.subr.bf16.mxu0 0
        %3940 = vmatpush2.bf16.msra.mxu0 0
        %3941 = vmatprep.subr.bf16.mxu0 0
        %3942 = vmatpush2.bf16.msra.mxu0 0
        %3943 = vmatprep.subr.bf16.mxu0 0
        %3944 = vmatpush2.bf16.msra.mxu0 0
        %3945 = vmatprep.subr.bf16.mxu0 0
        %3946 = vmatpush2.bf16.msra.mxu0 0
        %3947 = vmatprep.subr.bf16.mxu0 0
        %3948 = vmatpush2.bf16.msra.mxu0 0
        %3949 = vmatprep.subr.bf16.mxu0 0
        %3950 = vmatpush2.bf16.msra.mxu0 0
        %3951 = vmatprep.mubr.bf16.mxu0 0
        %3952 = vmatmul.mubr.bf16.gmra.mxu0 %v3896
        %v3953 = vpop.f32.mrf.mxu0
        %v3954 = vadd.f32 0.0, %v3953
        %v3955 = vpop.f32.mrf.mxu0
        %v3956 = vpop.f32.mrf.mxu0
        %v3957 = vadd.f32 0.0, %v3956
        %v3958 = vpop.f32.mrf.mxu0
        %3959 = vmatprep.mubr.bf16.mxu0 0
        %3960 = vmatmul.mubr.bf16.gmra.mxu0 %v3899
        %v3961 = vpop.f32.mrf.mxu0
        %v3962 = vadd.f32 0.0, %v3961
        %v3963 = vpop.f32.mrf.mxu0
        %v3964 = vpop.f32.mrf.mxu0
        %v3965 = vadd.f32 0.0, %v3964
        %v3966 = vpop.f32.mrf.mxu0
        %3967 = vmatprep.mubr.bf16.mxu0 0
        %3968 = vmatmul.mubr.bf16.gmra.mxu0 %v3902
        %v3969 = vpop.f32.mrf.mxu0
        %v3970 = vadd.f32 0.0, %v3969
        %v3971 = vpop.f32.mrf.mxu0
        %v3972 = vpop.f32.mrf.mxu0
        %v3973 = vadd.f32 0.0, %v3972
        %v3974 = vpop.f32.mrf.mxu0
        %3975 = vmatprep.mubr.bf16.mxu0 0
        %3976 = vmatmul.mubr.bf16.gmra.mxu0 %v3905
        %v3977 = vpop.f32.mrf.mxu0
        %v3978 = vadd.f32 0.0, %v3977
        %v3979 = vpop.f32.mrf.mxu0
        %v3980 = vpop.f32.mrf.mxu0
        %v3981 = vadd.f32 0.0, %v3980
        %v3982 = vpop.f32.mrf.mxu0
        %3983 = vmatprep.mubr.bf16.mxu0 0
        %3984 = vmatmul.mubr.bf16.gmra.mxu0 %v3908
        %v3985 = vpop.f32.mrf.mxu0
        %v3986 = vadd.f32 0.0, %v3985
        %v3987 = vpop.f32.mrf.mxu0
        %v3988 = vpop.f32.mrf.mxu0
        %v3989 = vadd.f32 0.0, %v3988
        %v3990 = vpop.f32.mrf.mxu0
        %3991 = vmatprep.mubr.bf16.mxu0 0
        %3992 = vmatmul.mubr.bf16.gmra.mxu0 %v3911
        %v3993 = vpop.f32.mrf.mxu0
        %v3994 = vadd.f32 0.0, %v3993
        %v3995 = vpop.f32.mrf.mxu0
        %v3996 = vpop.f32.mrf.mxu0
        %v3997 = vadd.f32 0.0, %v3996
        %v3998 = vpop.f32.mrf.mxu0
        %3999 = vmatprep.mubr.bf16.mxu0 0
        %4000 = vmatmul.mubr.bf16.gmra.mxu0 %v3914
        %v4001 = vpop.f32.mrf.mxu0
        %v4002 = vadd.f32 0.0, %v4001
        %v4003 = vpop.f32.mrf.mxu0
        %v4004 = vpop.f32.mrf.mxu0
        %v4005 = vadd.f32 0.0, %v4004
        %v4006 = vpop.f32.mrf.mxu0
        %4007 = vmatprep.mubr.bf16.mxu0 0
        %4008 = vmatmul.mubr.bf16.gmra.mxu0 %v3917
        %v4009 = vpop.f32.mrf.mxu0
        %v4010 = vadd.f32 0.0, %v4009
        %v4011 = vpop.f32.mrf.mxu0
        %v4012 = vpop.f32.mrf.mxu0
        %v4013 = vadd.f32 0.0, %v4012
        %v4014 = vpop.f32.mrf.mxu0
        %4015 = vdwg.mxu0
        %v4016 = vsel %vm580, %v3954, -inf
        %4017 = vmax.xlane.f32.xlu0 %v4016
        %v4018 = vpop.xlane.xlu0 %4017
        %v4019 = vsel %vm580, %v3957, -inf
        %4020 = vmax.xlane.f32.xlu0 %v4019
        %v4021 = vpop.xlane.xlu0 %4020
        %v4022 = vsel %vm580, %v3962, -inf
        %4023 = vmax.xlane.f32.xlu0 %v4022
        %v4024 = vpop.xlane.xlu0 %4023
        %v4025 = vsel %vm580, %v3965, -inf
        %4026 = vmax.xlane.f32.xlu0 %v4025
        %v4027 = vpop.xlane.xlu0 %4026
        %v4028 = vsel %vm580, %v3970, -inf
        %4029 = vmax.xlane.f32.xlu0 %v4028
        %v4030 = vpop.xlane.xlu0 %4029
        %v4031 = vsel %vm580, %v3973, -inf
        %4032 = vmax.xlane.f32.xlu0 %v4031
        %v4033 = vpop.xlane.xlu0 %4032
        %v4034 = vsel %vm580, %v3978, -inf
        %4035 = vmax.xlane.f32.xlu0 %v4034
        %v4036 = vpop.xlane.xlu0 %4035
        %v4037 = vsel %vm580, %v3981, -inf
        %4038 = vmax.xlane.f32.xlu0 %v4037
        %v4039 = vpop.xlane.xlu0 %4038
        %v4040 = vsel %vm580, %v3986, -inf
        %4041 = vmax.xlane.f32.xlu0 %v4040
        %v4042 = vpop.xlane.xlu0 %4041
        %v4043 = vsel %vm580, %v3989, -inf
        %4044 = vmax.xlane.f32.xlu0 %v4043
        %v4045 = vpop.xlane.xlu0 %4044
        %v4046 = vsel %vm580, %v3994, -inf
        %4047 = vmax.xlane.f32.xlu0 %v4046
        %v4048 = vpop.xlane.xlu0 %4047
        %v4049 = vsel %vm580, %v3997, -inf
        %4050 = vmax.xlane.f32.xlu0 %v4049
        %v4051 = vpop.xlane.xlu0 %4050
        %v4052 = vsel %vm580, %v4002, -inf
        %4053 = vmax.xlane.f32.xlu0 %v4052
        %v4054 = vpop.xlane.xlu0 %4053
        %v4055 = vsel %vm580, %v4005, -inf
        %4056 = vmax.xlane.f32.xlu0 %v4055
        %v4057 = vpop.xlane.xlu0 %4056
        %v4058 = vsel %vm580, %v4010, -inf
        %4059 = vmax.xlane.f32.xlu0 %v4058
        %v4060 = vpop.xlane.xlu0 %4059
        %v4061 = vsel %vm580, %v4013, -inf
        %4062 = vmax.xlane.f32.xlu0 %v4061
        %v4063 = vpop.xlane.xlu0 %4062
        %v4064 = vsub.f32 %v3954, %v4018
        %v4065 = vsub.f32 %v3957, %v4021
        %v4066 = vsub.f32 %v3962, %v4024
        %v4067 = vsub.f32 %v3965, %v4027
        %v4068 = vsub.f32 %v3970, %v4030
        %v4069 = vsub.f32 %v3973, %v4033
        %v4070 = vsub.f32 %v3978, %v4036
        %v4071 = vsub.f32 %v3981, %v4039
        %v4072 = vsub.f32 %v3986, %v4042
        %v4073 = vsub.f32 %v3989, %v4045
        %v4074 = vsub.f32 %v3994, %v4048
        %v4075 = vsub.f32 %v3997, %v4051
        %v4076 = vsub.f32 %v4002, %v4054
        %v4077 = vsub.f32 %v4005, %v4057
        %v4078 = vsub.f32 %v4010, %v4060
        %v4079 = vsub.f32 %v4013, %v4063
        %v4080 = vmul.f32 %v4064, 1.442695
        %v4081 = vpow.pop %v4080
        %v4082 = vmul.f32 %v4065, 1.442695
        %v4083 = vpow.pop %v4082
        %v4084 = vmul.f32 %v4066, 1.442695
        %v4085 = vpow.pop %v4084
        %v4086 = vmul.f32 %v4067, 1.442695
        %v4087 = vpow.pop %v4086
        %v4088 = vmul.f32 %v4068, 1.442695
        %v4089 = vpow.pop %v4088
        %v4090 = vmul.f32 %v4069, 1.442695
        %v4091 = vpow.pop %v4090
        %v4092 = vmul.f32 %v4070, 1.442695
        %v4093 = vpow.pop %v4092
        %v4094 = vmul.f32 %v4071, 1.442695
        %v4095 = vpow.pop %v4094
        %v4096 = vmul.f32 %v4072, 1.442695
        %v4097 = vpow.pop %v4096
        %v4098 = vmul.f32 %v4073, 1.442695
        %v4099 = vpow.pop %v4098
        %v4100 = vmul.f32 %v4074, 1.442695
        %v4101 = vpow.pop %v4100
        %v4102 = vmul.f32 %v4075, 1.442695
        %v4103 = vpow.pop %v4102
        %v4104 = vmul.f32 %v4076, 1.442695
        %v4105 = vpow.pop %v4104
        %v4106 = vmul.f32 %v4077, 1.442695
        %v4107 = vpow.pop %v4106
        %v4108 = vmul.f32 %v4078, 1.442695
        %v4109 = vpow.pop %v4108
        %v4110 = vmul.f32 %v4079, 1.442695
        %v4111 = vpow.pop %v4110
        %v4112 = vsel %vm580, %v4081, 0.0
        %4113 = vadd.xlane.f32.xlu0 %v4112
        %v4114 = vpop.xlane.xlu0 %4113
        %v4115 = vsel %vm580, %v4083, 0.0
        %4116 = vadd.xlane.f32.xlu0 %v4115
        %v4117 = vpop.xlane.xlu0 %4116
        %v4118 = vsel %vm580, %v4085, 0.0
        %4119 = vadd.xlane.f32.xlu0 %v4118
        %v4120 = vpop.xlane.xlu0 %4119
        %v4121 = vsel %vm580, %v4087, 0.0
        %4122 = vadd.xlane.f32.xlu0 %v4121
        %v4123 = vpop.xlane.xlu0 %4122
        %v4124 = vsel %vm580, %v4089, 0.0
        %4125 = vadd.xlane.f32.xlu0 %v4124
        %v4126 = vpop.xlane.xlu0 %4125
        %v4127 = vsel %vm580, %v4091, 0.0
        %4128 = vadd.xlane.f32.xlu0 %v4127
        %v4129 = vpop.xlane.xlu0 %4128
        %v4130 = vsel %vm580, %v4093, 0.0
        %4131 = vadd.xlane.f32.xlu0 %v4130
        %v4132 = vpop.xlane.xlu0 %4131
        %v4133 = vsel %vm580, %v4095, 0.0
        %4134 = vadd.xlane.f32.xlu0 %v4133
        %v4135 = vpop.xlane.xlu0 %4134
        %v4136 = vsel %vm580, %v4097, 0.0
        %4137 = vadd.xlane.f32.xlu0 %v4136
        %v4138 = vpop.xlane.xlu0 %4137
        %v4139 = vsel %vm580, %v4099, 0.0
        %4140 = vadd.xlane.f32.xlu0 %v4139
        %v4141 = vpop.xlane.xlu0 %4140
        %v4142 = vsel %vm580, %v4101, 0.0
        %4143 = vadd.xlane.f32.xlu0 %v4142
        %v4144 = vpop.xlane.xlu0 %4143
        %v4145 = vsel %vm580, %v4103, 0.0
        %4146 = vadd.xlane.f32.xlu0 %v4145
        %v4147 = vpop.xlane.xlu0 %4146
        %v4148 = vsel %vm580, %v4105, 0.0
        %4149 = vadd.xlane.f32.xlu0 %v4148
        %v4150 = vpop.xlane.xlu0 %4149
        %v4151 = vsel %vm580, %v4107, 0.0
        %4152 = vadd.xlane.f32.xlu0 %v4151
        %v4153 = vpop.xlane.xlu0 %4152
        %v4154 = vsel %vm580, %v4109, 0.0
        %4155 = vadd.xlane.f32.xlu0 %v4154
        %v4156 = vpop.xlane.xlu0 %4155
        %v4157 = vsel %vm580, %v4111, 0.0
        %4158 = vadd.xlane.f32.xlu0 %v4157
        %v4159 = vpop.xlane.xlu0 %4158
        %v4160 = vrcp.pop %v4114
        %v4161 = vrcp.pop %v4117
        %v4162 = vrcp.pop %v4120
        %v4163 = vrcp.pop %v4123
        %v4164 = vrcp.pop %v4126
        %v4165 = vrcp.pop %v4129
        %v4166 = vrcp.pop %v4132
        %v4167 = vrcp.pop %v4135
        %v4168 = vrcp.pop %v4138
        %v4169 = vrcp.pop %v4141
        %v4170 = vrcp.pop %v4144
        %v4171 = vrcp.pop %v4147
        %v4172 = vrcp.pop %v4150
        %v4173 = vrcp.pop %v4153
        %v4174 = vrcp.pop %v4156
        %v4175 = vrcp.pop %v4159
        %v4176 = vmul.f32 %v4081, %v4160
        %v4177 = vmul.f32 %v4083, %v4161
        %v4178 = vmul.f32 %v4085, %v4162
        %v4179 = vmul.f32 %v4087, %v4163
        %v4180 = vmul.f32 %v4089, %v4164
        %v4181 = vmul.f32 %v4091, %v4165
        %v4182 = vmul.f32 %v4093, %v4166
        %v4183 = vmul.f32 %v4095, %v4167
        %v4184 = vmul.f32 %v4097, %v4168
        %v4185 = vmul.f32 %v4099, %v4169
        %v4186 = vmul.f32 %v4101, %v4170
        %v4187 = vmul.f32 %v4103, %v4171
        %v4188 = vmul.f32 %v4105, %v4172
        %v4189 = vmul.f32 %v4107, %v4173
        %v4190 = vmul.f32 %v4109, %v4174
        %v4191 = vmul.f32 %v4111, %v4175
        %4208 = vrot.lane.b32.xlu0 %v4176, 16
        %v4209 = vpop.permute.xlu0 %4208
        %4210 = vrot.lane.b32.xlu0 %v4177, 16
        %v4211 = vpop.permute.xlu0 %4210
        %4212 = vrot.lane.b32.xlu0 %v4178, 16
        %v4213 = vpop.permute.xlu0 %4212
        %4214 = vrot.lane.b32.xlu0 %v4179, 16
        %v4215 = vpop.permute.xlu0 %4214
        %4216 = vrot.lane.b32.xlu0 %v4180, 16
        %v4217 = vpop.permute.xlu0 %4216
        %4218 = vrot.lane.b32.xlu0 %v4181, 16
        %v4219 = vpop.permute.xlu0 %4218
        %4220 = vrot.lane.b32.xlu0 %v4182, 16
        %v4221 = vpop.permute.xlu0 %4220
        %4222 = vrot.lane.b32.xlu0 %v4183, 16
        %v4223 = vpop.permute.xlu0 %4222
        %4224 = vrot.lane.b32.xlu0 %v4184, 16
        %v4225 = vpop.permute.xlu0 %4224
        %4226 = vrot.lane.b32.xlu0 %v4185, 16
        %v4227 = vpop.permute.xlu0 %4226
        %4228 = vrot.lane.b32.xlu0 %v4186, 16
        %v4229 = vpop.permute.xlu0 %4228
        %4230 = vrot.lane.b32.xlu0 %v4187, 16
        %v4231 = vpop.permute.xlu0 %4230
        %4232 = vrot.lane.b32.xlu0 %v4188, 16
        %v4233 = vpop.permute.xlu0 %4232
        %4234 = vrot.lane.b32.xlu0 %v4189, 16
        %v4235 = vpop.permute.xlu0 %4234
        %4236 = vrot.lane.b32.xlu0 %v4190, 16
        %v4237 = vpop.permute.xlu0 %4236
        %4238 = vrot.lane.b32.xlu0 %v4191, 16
        %v4239 = vpop.permute.xlu0 %4238
        %vm4256 = vcmask 261248
        %4257 = vst.msk [vmem:[%s379] sm:$0xff] %vm4256, %v4209
        %4258 = vst.msk [vmem:[%s379 + $0x8] sm:$0xff] %vm4256, %v4211
        %4259 = vst.msk [vmem:[%s379 + $0x10] sm:$0xff] %vm4256, %v4213
        %4260 = vst.msk [vmem:[%s379 + $0x18] sm:$0xff] %vm4256, %v4215
        %4261 = vst.msk [vmem:[%s379 + $0x20] sm:$0xff] %vm4256, %v4217
        %4262 = vst.msk [vmem:[%s379 + $0x28] sm:$0xff] %vm4256, %v4219
        %4263 = vst.msk [vmem:[%s379 + $0x30] sm:$0xff] %vm4256, %v4221
        %4264 = vst.msk [vmem:[%s379 + $0x38] sm:$0xff] %vm4256, %v4223
        %4265 = vst.msk [vmem:[%s379 + $0x40] sm:$0xff] %vm4256, %v4225
        %4266 = vst.msk [vmem:[%s379 + $0x48] sm:$0xff] %vm4256, %v4227
        %4267 = vst.msk [vmem:[%s379 + $0x50] sm:$0xff] %vm4256, %v4229
        %4268 = vst.msk [vmem:[%s379 + $0x58] sm:$0xff] %vm4256, %v4231
        %4269 = vst.msk [vmem:[%s379 + $0x60] sm:$0xff] %vm4256, %v4233
        %4270 = vst.msk [vmem:[%s379 + $0x68] sm:$0xff] %vm4256, %v4235
        %4271 = vst.msk [vmem:[%s379 + $0x70] sm:$0xff] %vm4256, %v4237
        %4272 = vst.msk [vmem:[%s379 + $0x78] sm:$0xff] %vm4256, %v4239
        %v4273 = vsel %vm580, %v4176, -inf
        %4274 = vmax.xlane.f32.xlu0 %v4273
        %v4275 = vpop.xlane.xlu0 %4274
        %v4276 = vsel %vm580, %v4177, -inf
        %4277 = vmax.xlane.f32.xlu0 %v4276
        %v4278 = vpop.xlane.xlu0 %4277
        %v4279 = vsel %vm580, %v4178, -inf
        %4280 = vmax.xlane.f32.xlu0 %v4279
        %v4281 = vpop.xlane.xlu0 %4280
        %v4282 = vsel %vm580, %v4179, -inf
        %4283 = vmax.xlane.f32.xlu0 %v4282
        %v4284 = vpop.xlane.xlu0 %4283
        %v4285 = vsel %vm580, %v4180, -inf
        %4286 = vmax.xlane.f32.xlu0 %v4285
        %v4287 = vpop.xlane.xlu0 %4286
        %v4288 = vsel %vm580, %v4181, -inf
        %4289 = vmax.xlane.f32.xlu0 %v4288
        %v4290 = vpop.xlane.xlu0 %4289
        %v4291 = vsel %vm580, %v4182, -inf
        %4292 = vmax.xlane.f32.xlu0 %v4291
        %v4293 = vpop.xlane.xlu0 %4292
        %v4294 = vsel %vm580, %v4183, -inf
        %4295 = vmax.xlane.f32.xlu0 %v4294
        %v4296 = vpop.xlane.xlu0 %4295
        %v4297 = vsel %vm580, %v4184, -inf
        %4298 = vmax.xlane.f32.xlu0 %v4297
        %v4299 = vpop.xlane.xlu0 %4298
        %v4300 = vsel %vm580, %v4185, -inf
        %4301 = vmax.xlane.f32.xlu0 %v4300
        %v4302 = vpop.xlane.xlu0 %4301
        %v4303 = vsel %vm580, %v4186, -inf
        %4304 = vmax.xlane.f32.xlu0 %v4303
        %v4305 = vpop.xlane.xlu0 %4304
        %v4306 = vsel %vm580, %v4187, -inf
        %4307 = vmax.xlane.f32.xlu0 %v4306
        %v4308 = vpop.xlane.xlu0 %4307
        %v4309 = vsel %vm580, %v4188, -inf
        %4310 = vmax.xlane.f32.xlu0 %v4309
        %v4311 = vpop.xlane.xlu0 %4310
        %v4312 = vsel %vm580, %v4189, -inf
        %4313 = vmax.xlane.f32.xlu0 %v4312
        %v4314 = vpop.xlane.xlu0 %4313
        %v4315 = vsel %vm580, %v4190, -inf
        %4316 = vmax.xlane.f32.xlu0 %v4315
        %v4317 = vpop.xlane.xlu0 %4316
        %v4318 = vsel %vm580, %v4191, -inf
        %4319 = vmax.xlane.f32.xlu0 %v4318
        %v4320 = vpop.xlane.xlu0 %4319
        %vm4321 = vcmp.eq.f32.partialorder %v4176, %v4275
        %vm4322 = vcmp.eq.f32.partialorder %v4177, %v4278
        %vm4323 = vcmp.eq.f32.partialorder %v4178, %v4281
        %vm4324 = vcmp.eq.f32.partialorder %v4179, %v4284
        %vm4325 = vcmp.eq.f32.partialorder %v4180, %v4287
        %vm4326 = vcmp.eq.f32.partialorder %v4181, %v4290
        %vm4327 = vcmp.eq.f32.partialorder %v4182, %v4293
        %vm4328 = vcmp.eq.f32.partialorder %v4183, %v4296
        %vm4329 = vcmp.eq.f32.partialorder %v4184, %v4299
        %vm4330 = vcmp.eq.f32.partialorder %v4185, %v4302
        %vm4331 = vcmp.eq.f32.partialorder %v4186, %v4305
        %vm4332 = vcmp.eq.f32.partialorder %v4187, %v4308
        %vm4333 = vcmp.eq.f32.partialorder %v4188, %v4311
        %vm4334 = vcmp.eq.f32.partialorder %v4189, %v4314
        %vm4335 = vcmp.eq.f32.partialorder %v4190, %v4317
        %vm4336 = vcmp.eq.f32.partialorder %v4191, %v4320
        %v4337 = vsel %vm4321, %v385, 16
        %v4338 = vsel %vm4322, %v385, 16
        %v4339 = vsel %vm4323, %v385, 16
        %v4340 = vsel %vm4324, %v385, 16
        %v4341 = vsel %vm4325, %v385, 16
        %v4342 = vsel %vm4326, %v385, 16
        %v4343 = vsel %vm4327, %v385, 16
        %v4344 = vsel %vm4328, %v385, 16
        %v4345 = vsel %vm4329, %v385, 16
        %v4346 = vsel %vm4330, %v385, 16
        %v4347 = vsel %vm4331, %v385, 16
        %v4348 = vsel %vm4332, %v385, 16
        %v4349 = vsel %vm4333, %v385, 16
        %v4350 = vsel %vm4334, %v385, 16
        %v4351 = vsel %vm4335, %v385, 16
        %v4352 = vsel %vm4336, %v385, 16
        %v4353 = vsel %vm580, %v4337, 2147483647
        %v4354 = vand.u32 %v4353, 65535
        %v4355 = vshra.s32 %v4353, 16
        %v4356 = vcvt.s32.f32 %v4354
        %v4357 = vcvt.s32.f32 %v4355
        %4358 = vmin.xlane.f32.xlu0 %v4357
        %v4359 = vpop.xlane.xlu0 %4358
        %vm4360 = vcmp.eq.f32.partialorder %v4357, %v4359
        %v4361 = vsel %vm4360, %v4356, inf
        %4362 = vmin.xlane.f32.xlu0 %v4361
        %v4363 = vpop.xlane.xlu0 %4362
        %v4364 = vcvt.f32.s32 %v4363
        %v4365 = vcvt.f32.s32 %v4359
        %v4366 = vshll.u32 %v4365, 16
        %v4367 = vadd.s32 %v4366, %v4364
        %v4368 = vsel %vm580, %v4338, 2147483647
        %v4369 = vand.u32 %v4368, 65535
        %v4370 = vshra.s32 %v4368, 16
        %v4371 = vcvt.s32.f32 %v4369
        %v4372 = vcvt.s32.f32 %v4370
        %4373 = vmin.xlane.f32.xlu0 %v4372
        %v4374 = vpop.xlane.xlu0 %4373
        %vm4375 = vcmp.eq.f32.partialorder %v4372, %v4374
        %v4376 = vsel %vm4375, %v4371, inf
        %4377 = vmin.xlane.f32.xlu0 %v4376
        %v4378 = vpop.xlane.xlu0 %4377
        %v4379 = vcvt.f32.s32 %v4378
        %v4380 = vcvt.f32.s32 %v4374
        %v4381 = vshll.u32 %v4380, 16
        %v4382 = vadd.s32 %v4381, %v4379
        %v4383 = vsel %vm580, %v4339, 2147483647
        %v4384 = vand.u32 %v4383, 65535
        %v4385 = vshra.s32 %v4383, 16
        %v4386 = vcvt.s32.f32 %v4384
        %v4387 = vcvt.s32.f32 %v4385
        %4388 = vmin.xlane.f32.xlu0 %v4387
        %v4389 = vpop.xlane.xlu0 %4388
        %vm4390 = vcmp.eq.f32.partialorder %v4387, %v4389
        %v4391 = vsel %vm4390, %v4386, inf
        %4392 = vmin.xlane.f32.xlu0 %v4391
        %v4393 = vpop.xlane.xlu0 %4392
        %v4394 = vcvt.f32.s32 %v4393
        %v4395 = vcvt.f32.s32 %v4389
        %v4396 = vshll.u32 %v4395, 16
        %v4397 = vadd.s32 %v4396, %v4394
        %v4398 = vsel %vm580, %v4340, 2147483647
        %v4399 = vand.u32 %v4398, 65535
        %v4400 = vshra.s32 %v4398, 16
        %v4401 = vcvt.s32.f32 %v4399
        %v4402 = vcvt.s32.f32 %v4400
        %4403 = vmin.xlane.f32.xlu0 %v4402
        %v4404 = vpop.xlane.xlu0 %4403
        %vm4405 = vcmp.eq.f32.partialorder %v4402, %v4404
        %v4406 = vsel %vm4405, %v4401, inf
        %4407 = vmin.xlane.f32.xlu0 %v4406
        %v4408 = vpop.xlane.xlu0 %4407
        %v4409 = vcvt.f32.s32 %v4408
        %v4410 = vcvt.f32.s32 %v4404
        %v4411 = vshll.u32 %v4410, 16
        %v4412 = vadd.s32 %v4411, %v4409
        %v4413 = vsel %vm580, %v4341, 2147483647
        %v4414 = vand.u32 %v4413, 65535
        %v4415 = vshra.s32 %v4413, 16
        %v4416 = vcvt.s32.f32 %v4414
        %v4417 = vcvt.s32.f32 %v4415
        %4418 = vmin.xlane.f32.xlu0 %v4417
        %v4419 = vpop.xlane.xlu0 %4418
        %vm4420 = vcmp.eq.f32.partialorder %v4417, %v4419
        %v4421 = vsel %vm4420, %v4416, inf
        %4422 = vmin.xlane.f32.xlu0 %v4421
        %v4423 = vpop.xlane.xlu0 %4422
        %v4424 = vcvt.f32.s32 %v4423
        %v4425 = vcvt.f32.s32 %v4419
        %v4426 = vshll.u32 %v4425, 16
        %v4427 = vadd.s32 %v4426, %v4424
        %v4428 = vsel %vm580, %v4342, 2147483647
        %v4429 = vand.u32 %v4428, 65535
        %v4430 = vshra.s32 %v4428, 16
        %v4431 = vcvt.s32.f32 %v4429
        %v4432 = vcvt.s32.f32 %v4430
        %4433 = vmin.xlane.f32.xlu0 %v4432
        %v4434 = vpop.xlane.xlu0 %4433
        %vm4435 = vcmp.eq.f32.partialorder %v4432, %v4434
        %v4436 = vsel %vm4435, %v4431, inf
        %4437 = vmin.xlane.f32.xlu0 %v4436
        %v4438 = vpop.xlane.xlu0 %4437
        %v4439 = vcvt.f32.s32 %v4438
        %v4440 = vcvt.f32.s32 %v4434
        %v4441 = vshll.u32 %v4440, 16
        %v4442 = vadd.s32 %v4441, %v4439
        %v4443 = vsel %vm580, %v4343, 2147483647
        %v4444 = vand.u32 %v4443, 65535
        %v4445 = vshra.s32 %v4443, 16
        %v4446 = vcvt.s32.f32 %v4444
        %v4447 = vcvt.s32.f32 %v4445
        %4448 = vmin.xlane.f32.xlu0 %v4447
        %v4449 = vpop.xlane.xlu0 %4448
        %vm4450 = vcmp.eq.f32.partialorder %v4447, %v4449
        %v4451 = vsel %vm4450, %v4446, inf
        %4452 = vmin.xlane.f32.xlu0 %v4451
        %v4453 = vpop.xlane.xlu0 %4452
        %v4454 = vcvt.f32.s32 %v4453
        %v4455 = vcvt.f32.s32 %v4449
        %v4456 = vshll.u32 %v4455, 16
        %v4457 = vadd.s32 %v4456, %v4454
        %v4458 = vsel %vm580, %v4344, 2147483647
        %v4459 = vand.u32 %v4458, 65535
        %v4460 = vshra.s32 %v4458, 16
        %v4461 = vcvt.s32.f32 %v4459
        %v4462 = vcvt.s32.f32 %v4460
        %4463 = vmin.xlane.f32.xlu0 %v4462
        %v4464 = vpop.xlane.xlu0 %4463
        %vm4465 = vcmp.eq.f32.partialorder %v4462, %v4464
        %v4466 = vsel %vm4465, %v4461, inf
        %4467 = vmin.xlane.f32.xlu0 %v4466
        %v4468 = vpop.xlane.xlu0 %4467
        %v4469 = vcvt.f32.s32 %v4468
        %v4470 = vcvt.f32.s32 %v4464
        %v4471 = vshll.u32 %v4470, 16
        %v4472 = vadd.s32 %v4471, %v4469
        %v4473 = vsel %vm580, %v4345, 2147483647
        %v4474 = vand.u32 %v4473, 65535
        %v4475 = vshra.s32 %v4473, 16
        %v4476 = vcvt.s32.f32 %v4474
        %v4477 = vcvt.s32.f32 %v4475
        %4478 = vmin.xlane.f32.xlu0 %v4477
        %v4479 = vpop.xlane.xlu0 %4478
        %vm4480 = vcmp.eq.f32.partialorder %v4477, %v4479
        %v4481 = vsel %vm4480, %v4476, inf
        %4482 = vmin.xlane.f32.xlu0 %v4481
        %v4483 = vpop.xlane.xlu0 %4482
        %v4484 = vcvt.f32.s32 %v4483
        %v4485 = vcvt.f32.s32 %v4479
        %v4486 = vshll.u32 %v4485, 16
        %v4487 = vadd.s32 %v4486, %v4484
        %v4488 = vsel %vm580, %v4346, 2147483647
        %v4489 = vand.u32 %v4488, 65535
        %v4490 = vshra.s32 %v4488, 16
        %v4491 = vcvt.s32.f32 %v4489
        %v4492 = vcvt.s32.f32 %v4490
        %4493 = vmin.xlane.f32.xlu0 %v4492
        %v4494 = vpop.xlane.xlu0 %4493
        %vm4495 = vcmp.eq.f32.partialorder %v4492, %v4494
        %v4496 = vsel %vm4495, %v4491, inf
        %4497 = vmin.xlane.f32.xlu0 %v4496
        %v4498 = vpop.xlane.xlu0 %4497
        %v4499 = vcvt.f32.s32 %v4498
        %v4500 = vcvt.f32.s32 %v4494
        %v4501 = vshll.u32 %v4500, 16
        %v4502 = vadd.s32 %v4501, %v4499
        %v4503 = vsel %vm580, %v4347, 2147483647
        %v4504 = vand.u32 %v4503, 65535
        %v4505 = vshra.s32 %v4503, 16
        %v4506 = vcvt.s32.f32 %v4504
        %v4507 = vcvt.s32.f32 %v4505
        %4508 = vmin.xlane.f32.xlu0 %v4507
        %v4509 = vpop.xlane.xlu0 %4508
        %vm4510 = vcmp.eq.f32.partialorder %v4507, %v4509
        %v4511 = vsel %vm4510, %v4506, inf
        %4512 = vmin.xlane.f32.xlu0 %v4511
        %v4513 = vpop.xlane.xlu0 %4512
        %v4514 = vcvt.f32.s32 %v4513
        %v4515 = vcvt.f32.s32 %v4509
        %v4516 = vshll.u32 %v4515, 16
        %v4517 = vadd.s32 %v4516, %v4514
        %v4518 = vsel %vm580, %v4348, 2147483647
        %v4519 = vand.u32 %v4518, 65535
        %v4520 = vshra.s32 %v4518, 16
        %v4521 = vcvt.s32.f32 %v4519
        %v4522 = vcvt.s32.f32 %v4520
        %4523 = vmin.xlane.f32.xlu0 %v4522
        %v4524 = vpop.xlane.xlu0 %4523
        %vm4525 = vcmp.eq.f32.partialorder %v4522, %v4524
        %v4526 = vsel %vm4525, %v4521, inf
        %4527 = vmin.xlane.f32.xlu0 %v4526
        %v4528 = vpop.xlane.xlu0 %4527
        %v4529 = vcvt.f32.s32 %v4528
        %v4530 = vcvt.f32.s32 %v4524
        %v4531 = vshll.u32 %v4530, 16
        %v4532 = vadd.s32 %v4531, %v4529
        %v4533 = vsel %vm580, %v4349, 2147483647
        %v4534 = vand.u32 %v4533, 65535
        %v4535 = vshra.s32 %v4533, 16
        %v4536 = vcvt.s32.f32 %v4534
        %v4537 = vcvt.s32.f32 %v4535
        %4538 = vmin.xlane.f32.xlu0 %v4537
        %v4539 = vpop.xlane.xlu0 %4538
        %vm4540 = vcmp.eq.f32.partialorder %v4537, %v4539
        %v4541 = vsel %vm4540, %v4536, inf
        %4542 = vmin.xlane.f32.xlu0 %v4541
        %v4543 = vpop.xlane.xlu0 %4542
        %v4544 = vcvt.f32.s32 %v4543
        %v4545 = vcvt.f32.s32 %v4539
        %v4546 = vshll.u32 %v4545, 16
        %v4547 = vadd.s32 %v4546, %v4544
        %v4548 = vsel %vm580, %v4350, 2147483647
        %v4549 = vand.u32 %v4548, 65535
        %v4550 = vshra.s32 %v4548, 16
        %v4551 = vcvt.s32.f32 %v4549
        %v4552 = vcvt.s32.f32 %v4550
        %4553 = vmin.xlane.f32.xlu0 %v4552
        %v4554 = vpop.xlane.xlu0 %4553
        %vm4555 = vcmp.eq.f32.partialorder %v4552, %v4554
        %v4556 = vsel %vm4555, %v4551, inf
        %4557 = vmin.xlane.f32.xlu0 %v4556
        %v4558 = vpop.xlane.xlu0 %4557
        %v4559 = vcvt.f32.s32 %v4558
        %v4560 = vcvt.f32.s32 %v4554
        %v4561 = vshll.u32 %v4560, 16
        %v4562 = vadd.s32 %v4561, %v4559
        %v4563 = vsel %vm580, %v4351, 2147483647
        %v4564 = vand.u32 %v4563, 65535
        %v4565 = vshra.s32 %v4563, 16
        %v4566 = vcvt.s32.f32 %v4564
        %v4567 = vcvt.s32.f32 %v4565
        %4568 = vmin.xlane.f32.xlu0 %v4567
        %v4569 = vpop.xlane.xlu0 %4568
        %vm4570 = vcmp.eq.f32.partialorder %v4567, %v4569
        %v4571 = vsel %vm4570, %v4566, inf
        %4572 = vmin.xlane.f32.xlu0 %v4571
        %v4573 = vpop.xlane.xlu0 %4572
        %v4574 = vcvt.f32.s32 %v4573
        %v4575 = vcvt.f32.s32 %v4569
        %v4576 = vshll.u32 %v4575, 16
        %v4577 = vadd.s32 %v4576, %v4574
        %v4578 = vsel %vm580, %v4352, 2147483647
        %v4579 = vand.u32 %v4578, 65535
        %v4580 = vshra.s32 %v4578, 16
        %v4581 = vcvt.s32.f32 %v4579
        %v4582 = vcvt.s32.f32 %v4580
        %4583 = vmin.xlane.f32.xlu0 %v4582
        %v4584 = vpop.xlane.xlu0 %4583
        %vm4585 = vcmp.eq.f32.partialorder %v4582, %v4584
        %v4586 = vsel %vm4585, %v4581, inf
        %4587 = vmin.xlane.f32.xlu0 %v4586
        %v4588 = vpop.xlane.xlu0 %4587
        %v4589 = vcvt.f32.s32 %v4588
        %v4590 = vcvt.f32.s32 %v4584
        %v4591 = vshll.u32 %v4590, 16
        %v4592 = vadd.s32 %v4591, %v4589
        %s4593 = scalar_lea.vmem %s367, 128 [#allocation3]
        %4594 = vst.msk [vmem:[%s4593] sm:$0xff] %vm1093, %v4275
        %4595 = vst.msk [vmem:[%s4593 + $0x8] sm:$0xff] %vm1093, %v4278
        %4596 = vst.msk [vmem:[%s4593 + $0x10] sm:$0xff] %vm1093, %v4281
        %4597 = vst.msk [vmem:[%s4593 + $0x18] sm:$0xff] %vm1093, %v4284
        %4598 = vst.msk [vmem:[%s4593 + $0x20] sm:$0xff] %vm1093, %v4287
        %4599 = vst.msk [vmem:[%s4593 + $0x28] sm:$0xff] %vm1093, %v4290
        %4600 = vst.msk [vmem:[%s4593 + $0x30] sm:$0xff] %vm1093, %v4293
        %4601 = vst.msk [vmem:[%s4593 + $0x38] sm:$0xff] %vm1093, %v4296
        %4602 = vst.msk [vmem:[%s4593 + $0x40] sm:$0xff] %vm1093, %v4299
        %4603 = vst.msk [vmem:[%s4593 + $0x48] sm:$0xff] %vm1093, %v4302
        %4604 = vst.msk [vmem:[%s4593 + $0x50] sm:$0xff] %vm1093, %v4305
        %4605 = vst.msk [vmem:[%s4593 + $0x58] sm:$0xff] %vm1093, %v4308
        %4606 = vst.msk [vmem:[%s4593 + $0x60] sm:$0xff] %vm1093, %v4311
        %4607 = vst.msk [vmem:[%s4593 + $0x68] sm:$0xff] %vm1093, %v4314
        %4608 = vst.msk [vmem:[%s4593 + $0x70] sm:$0xff] %vm1093, %v4317
        %4609 = vst.msk [vmem:[%s4593 + $0x78] sm:$0xff] %vm1093, %v4320
        %s4610 = scalar_lea.vmem %s373, 128 [#allocation4]
        %4611 = vst.msk [vmem:[%s4610] sm:$0xff] %vm1093, %v4367
        %4612 = vst.msk [vmem:[%s4610 + $0x8] sm:$0xff] %vm1093, %v4382
        %4613 = vst.msk [vmem:[%s4610 + $0x10] sm:$0xff] %vm1093, %v4397
        %4614 = vst.msk [vmem:[%s4610 + $0x18] sm:$0xff] %vm1093, %v4412
        %4615 = vst.msk [vmem:[%s4610 + $0x20] sm:$0xff] %vm1093, %v4427
        %4616 = vst.msk [vmem:[%s4610 + $0x28] sm:$0xff] %vm1093, %v4442
        %4617 = vst.msk [vmem:[%s4610 + $0x30] sm:$0xff] %vm1093, %v4457
        %4618 = vst.msk [vmem:[%s4610 + $0x38] sm:$0xff] %vm1093, %v4472
        %4619 = vst.msk [vmem:[%s4610 + $0x40] sm:$0xff] %vm1093, %v4487
        %4620 = vst.msk [vmem:[%s4610 + $0x48] sm:$0xff] %vm1093, %v4502
        %4621 = vst.msk [vmem:[%s4610 + $0x50] sm:$0xff] %vm1093, %v4517
        %4622 = vst.msk [vmem:[%s4610 + $0x58] sm:$0xff] %vm1093, %v4532
        %4623 = vst.msk [vmem:[%s4610 + $0x60] sm:$0xff] %vm1093, %v4547
        %4624 = vst.msk [vmem:[%s4610 + $0x68] sm:$0xff] %vm1093, %v4562
        %4625 = vst.msk [vmem:[%s4610 + $0x70] sm:$0xff] %vm1093, %v4577
        %4626 = vst.msk [vmem:[%s4610 + $0x78] sm:$0xff] %vm1093, %v4592
        %vm4627 = vcmp.eq.s32.totalorder %v385, %v4367
        %vm4628 = vcmp.eq.s32.totalorder %v385, %v4382
        %vm4629 = vcmp.eq.s32.totalorder %v385, %v4397
        %vm4630 = vcmp.eq.s32.totalorder %v385, %v4412
        %vm4631 = vcmp.eq.s32.totalorder %v385, %v4427
        %vm4632 = vcmp.eq.s32.totalorder %v385, %v4442
        %vm4633 = vcmp.eq.s32.totalorder %v385, %v4457
        %vm4634 = vcmp.eq.s32.totalorder %v385, %v4472
        %vm4635 = vcmp.eq.s32.totalorder %v385, %v4487
        %vm4636 = vcmp.eq.s32.totalorder %v385, %v4502
        %vm4637 = vcmp.eq.s32.totalorder %v385, %v4517
        %vm4638 = vcmp.eq.s32.totalorder %v385, %v4532
        %vm4639 = vcmp.eq.s32.totalorder %v385, %v4547
        %vm4640 = vcmp.eq.s32.totalorder %v385, %v4562
        %vm4641 = vcmp.eq.s32.totalorder %v385, %v4577
        %vm4642 = vcmp.eq.s32.totalorder %v385, %v4592
        %v4643 = vsel %vm4627, -inf, %v4176
        %v4644 = vsel %vm4628, -inf, %v4177
        %v4645 = vsel %vm4629, -inf, %v4178
        %v4646 = vsel %vm4630, -inf, %v4179
        %v4647 = vsel %vm4631, -inf, %v4180
        %v4648 = vsel %vm4632, -inf, %v4181
        %v4649 = vsel %vm4633, -inf, %v4182
        %v4650 = vsel %vm4634, -inf, %v4183
        %v4651 = vsel %vm4635, -inf, %v4184
        %v4652 = vsel %vm4636, -inf, %v4185
        %v4653 = vsel %vm4637, -inf, %v4186
        %v4654 = vsel %vm4638, -inf, %v4187
        %v4655 = vsel %vm4639, -inf, %v4188
        %v4656 = vsel %vm4640, -inf, %v4189
        %v4657 = vsel %vm4641, -inf, %v4190
        %v4658 = vsel %vm4642, -inf, %v4191
        %v4659 = vsel %vm580, %v4643, -inf
        %4660 = vmax.xlane.f32.xlu0 %v4659
        %v4661 = vpop.xlane.xlu0 %4660
        %v4662 = vsel %vm580, %v4644, -inf
        %4663 = vmax.xlane.f32.xlu0 %v4662
        %v4664 = vpop.xlane.xlu0 %4663
        %v4665 = vsel %vm580, %v4645, -inf
        %4666 = vmax.xlane.f32.xlu0 %v4665
        %v4667 = vpop.xlane.xlu0 %4666
        %v4668 = vsel %vm580, %v4646, -inf
        %4669 = vmax.xlane.f32.xlu0 %v4668
        %v4670 = vpop.xlane.xlu0 %4669
        %v4671 = vsel %vm580, %v4647, -inf
        %4672 = vmax.xlane.f32.xlu0 %v4671
        %v4673 = vpop.xlane.xlu0 %4672
        %v4674 = vsel %vm580, %v4648, -inf
        %4675 = vmax.xlane.f32.xlu0 %v4674
        %v4676 = vpop.xlane.xlu0 %4675
        %v4677 = vsel %vm580, %v4649, -inf
        %4678 = vmax.xlane.f32.xlu0 %v4677
        %v4679 = vpop.xlane.xlu0 %4678
        %v4680 = vsel %vm580, %v4650, -inf
        %4681 = vmax.xlane.f32.xlu0 %v4680
        %v4682 = vpop.xlane.xlu0 %4681
        %v4683 = vsel %vm580, %v4651, -inf
        %4684 = vmax.xlane.f32.xlu0 %v4683
        %v4685 = vpop.xlane.xlu0 %4684
        %v4686 = vsel %vm580, %v4652, -inf
        %4687 = vmax.xlane.f32.xlu0 %v4686
        %v4688 = vpop.xlane.xlu0 %4687
        %v4689 = vsel %vm580, %v4653, -inf
        %4690 = vmax.xlane.f32.xlu0 %v4689
        %v4691 = vpop.xlane.xlu0 %4690
        %v4692 = vsel %vm580, %v4654, -inf
        %4693 = vmax.xlane.f32.xlu0 %v4692
        %v4694 = vpop.xlane.xlu0 %4693
        %v4695 = vsel %vm580, %v4655, -inf
        %4696 = vmax.xlane.f32.xlu0 %v4695
        %v4697 = vpop.xlane.xlu0 %4696
        %v4698 = vsel %vm580, %v4656, -inf
        %4699 = vmax.xlane.f32.xlu0 %v4698
        %v4700 = vpop.xlane.xlu0 %4699
        %v4701 = vsel %vm580, %v4657, -inf
        %4702 = vmax.xlane.f32.xlu0 %v4701
        %v4703 = vpop.xlane.xlu0 %4702
        %v4704 = vsel %vm580, %v4658, -inf
        %4705 = vmax.xlane.f32.xlu0 %v4704
        %v4706 = vpop.xlane.xlu0 %4705
        %vm4707 = vcmp.eq.f32.partialorder %v4643, %v4661
        %vm4708 = vcmp.eq.f32.partialorder %v4644, %v4664
        %vm4709 = vcmp.eq.f32.partialorder %v4645, %v4667
        %vm4710 = vcmp.eq.f32.partialorder %v4646, %v4670
        %vm4711 = vcmp.eq.f32.partialorder %v4647, %v4673
        %vm4712 = vcmp.eq.f32.partialorder %v4648, %v4676
        %vm4713 = vcmp.eq.f32.partialorder %v4649, %v4679
        %vm4714 = vcmp.eq.f32.partialorder %v4650, %v4682
        %vm4715 = vcmp.eq.f32.partialorder %v4651, %v4685
        %vm4716 = vcmp.eq.f32.partialorder %v4652, %v4688
        %vm4717 = vcmp.eq.f32.partialorder %v4653, %v4691
        %vm4718 = vcmp.eq.f32.partialorder %v4654, %v4694
        %vm4719 = vcmp.eq.f32.partialorder %v4655, %v4697
        %vm4720 = vcmp.eq.f32.partialorder %v4656, %v4700
        %vm4721 = vcmp.eq.f32.partialorder %v4657, %v4703
        %vm4722 = vcmp.eq.f32.partialorder %v4658, %v4706
        %v4723 = vsel %vm4707, %v385, 16
        %v4724 = vsel %vm4708, %v385, 16
        %v4725 = vsel %vm4709, %v385, 16
        %v4726 = vsel %vm4710, %v385, 16
        %v4727 = vsel %vm4711, %v385, 16
        %v4728 = vsel %vm4712, %v385, 16
        %v4729 = vsel %vm4713, %v385, 16
        %v4730 = vsel %vm4714, %v385, 16
        %v4731 = vsel %vm4715, %v385, 16
        %v4732 = vsel %vm4716, %v385, 16
        %v4733 = vsel %vm4717, %v385, 16
        %v4734 = vsel %vm4718, %v385, 16
        %v4735 = vsel %vm4719, %v385, 16
        %v4736 = vsel %vm4720, %v385, 16
        %v4737 = vsel %vm4721, %v385, 16
        %v4738 = vsel %vm4722, %v385, 16
        %v4739 = vsel %vm580, %v4723, 2147483647
        %v4740 = vand.u32 %v4739, 65535
        %v4741 = vshra.s32 %v4739, 16
        %v4742 = vcvt.s32.f32 %v4740
        %v4743 = vcvt.s32.f32 %v4741
        %4744 = vmin.xlane.f32.xlu0 %v4743
        %v4745 = vpop.xlane.xlu0 %4744
        %vm4746 = vcmp.eq.f32.partialorder %v4743, %v4745
        %v4747 = vsel %vm4746, %v4742, inf
        %4748 = vmin.xlane.f32.xlu0 %v4747
        %v4749 = vpop.xlane.xlu0 %4748
        %v4750 = vcvt.f32.s32 %v4749
        %v4751 = vcvt.f32.s32 %v4745
        %v4752 = vshll.u32 %v4751, 16
        %v4753 = vadd.s32 %v4752, %v4750
        %v4754 = vsel %vm580, %v4724, 2147483647
        %v4755 = vand.u32 %v4754, 65535
        %v4756 = vshra.s32 %v4754, 16
        %v4757 = vcvt.s32.f32 %v4755
        %v4758 = vcvt.s32.f32 %v4756
        %4759 = vmin.xlane.f32.xlu0 %v4758
        %v4760 = vpop.xlane.xlu0 %4759
        %vm4761 = vcmp.eq.f32.partialorder %v4758, %v4760
        %v4762 = vsel %vm4761, %v4757, inf
        %4763 = vmin.xlane.f32.xlu0 %v4762
        %v4764 = vpop.xlane.xlu0 %4763
        %v4765 = vcvt.f32.s32 %v4764
        %v4766 = vcvt.f32.s32 %v4760
        %v4767 = vshll.u32 %v4766, 16
        %v4768 = vadd.s32 %v4767, %v4765
        %v4769 = vsel %vm580, %v4725, 2147483647
        %v4770 = vand.u32 %v4769, 65535
        %v4771 = vshra.s32 %v4769, 16
        %v4772 = vcvt.s32.f32 %v4770
        %v4773 = vcvt.s32.f32 %v4771
        %4774 = vmin.xlane.f32.xlu0 %v4773
        %v4775 = vpop.xlane.xlu0 %4774
        %vm4776 = vcmp.eq.f32.partialorder %v4773, %v4775
        %v4777 = vsel %vm4776, %v4772, inf
        %4778 = vmin.xlane.f32.xlu0 %v4777
        %v4779 = vpop.xlane.xlu0 %4778
        %v4780 = vcvt.f32.s32 %v4779
        %v4781 = vcvt.f32.s32 %v4775
        %v4782 = vshll.u32 %v4781, 16
        %v4783 = vadd.s32 %v4782, %v4780
        %v4784 = vsel %vm580, %v4726, 2147483647
        %v4785 = vand.u32 %v4784, 65535
        %v4786 = vshra.s32 %v4784, 16
        %v4787 = vcvt.s32.f32 %v4785
        %v4788 = vcvt.s32.f32 %v4786
        %4789 = vmin.xlane.f32.xlu0 %v4788
        %v4790 = vpop.xlane.xlu0 %4789
        %vm4791 = vcmp.eq.f32.partialorder %v4788, %v4790
        %v4792 = vsel %vm4791, %v4787, inf
        %4793 = vmin.xlane.f32.xlu0 %v4792
        %v4794 = vpop.xlane.xlu0 %4793
        %v4795 = vcvt.f32.s32 %v4794
        %v4796 = vcvt.f32.s32 %v4790
        %v4797 = vshll.u32 %v4796, 16
        %v4798 = vadd.s32 %v4797, %v4795
        %v4799 = vsel %vm580, %v4727, 2147483647
        %v4800 = vand.u32 %v4799, 65535
        %v4801 = vshra.s32 %v4799, 16
        %v4802 = vcvt.s32.f32 %v4800
        %v4803 = vcvt.s32.f32 %v4801
        %4804 = vmin.xlane.f32.xlu0 %v4803
        %v4805 = vpop.xlane.xlu0 %4804
        %vm4806 = vcmp.eq.f32.partialorder %v4803, %v4805
        %v4807 = vsel %vm4806, %v4802, inf
        %4808 = vmin.xlane.f32.xlu0 %v4807
        %v4809 = vpop.xlane.xlu0 %4808
        %v4810 = vcvt.f32.s32 %v4809
        %v4811 = vcvt.f32.s32 %v4805
        %v4812 = vshll.u32 %v4811, 16
        %v4813 = vadd.s32 %v4812, %v4810
        %v4814 = vsel %vm580, %v4728, 2147483647
        %v4815 = vand.u32 %v4814, 65535
        %v4816 = vshra.s32 %v4814, 16
        %v4817 = vcvt.s32.f32 %v4815
        %v4818 = vcvt.s32.f32 %v4816
        %4819 = vmin.xlane.f32.xlu0 %v4818
        %v4820 = vpop.xlane.xlu0 %4819
        %vm4821 = vcmp.eq.f32.partialorder %v4818, %v4820
        %v4822 = vsel %vm4821, %v4817, inf
        %4823 = vmin.xlane.f32.xlu0 %v4822
        %v4824 = vpop.xlane.xlu0 %4823
        %v4825 = vcvt.f32.s32 %v4824
        %v4826 = vcvt.f32.s32 %v4820
        %v4827 = vshll.u32 %v4826, 16
        %v4828 = vadd.s32 %v4827, %v4825
        %v4829 = vsel %vm580, %v4729, 2147483647
        %v4830 = vand.u32 %v4829, 65535
        %v4831 = vshra.s32 %v4829, 16
        %v4832 = vcvt.s32.f32 %v4830
        %v4833 = vcvt.s32.f32 %v4831
        %4834 = vmin.xlane.f32.xlu0 %v4833
        %v4835 = vpop.xlane.xlu0 %4834
        %vm4836 = vcmp.eq.f32.partialorder %v4833, %v4835
        %v4837 = vsel %vm4836, %v4832, inf
        %4838 = vmin.xlane.f32.xlu0 %v4837
        %v4839 = vpop.xlane.xlu0 %4838
        %v4840 = vcvt.f32.s32 %v4839
        %v4841 = vcvt.f32.s32 %v4835
        %v4842 = vshll.u32 %v4841, 16
        %v4843 = vadd.s32 %v4842, %v4840
        %v4844 = vsel %vm580, %v4730, 2147483647
        %v4845 = vand.u32 %v4844, 65535
        %v4846 = vshra.s32 %v4844, 16
        %v4847 = vcvt.s32.f32 %v4845
        %v4848 = vcvt.s32.f32 %v4846
        %4849 = vmin.xlane.f32.xlu0 %v4848
        %v4850 = vpop.xlane.xlu0 %4849
        %vm4851 = vcmp.eq.f32.partialorder %v4848, %v4850
        %v4852 = vsel %vm4851, %v4847, inf
        %4853 = vmin.xlane.f32.xlu0 %v4852
        %v4854 = vpop.xlane.xlu0 %4853
        %v4855 = vcvt.f32.s32 %v4854
        %v4856 = vcvt.f32.s32 %v4850
        %v4857 = vshll.u32 %v4856, 16
        %v4858 = vadd.s32 %v4857, %v4855
        %v4859 = vsel %vm580, %v4731, 2147483647
        %v4860 = vand.u32 %v4859, 65535
        %v4861 = vshra.s32 %v4859, 16
        %v4862 = vcvt.s32.f32 %v4860
        %v4863 = vcvt.s32.f32 %v4861
        %4864 = vmin.xlane.f32.xlu0 %v4863
        %v4865 = vpop.xlane.xlu0 %4864
        %vm4866 = vcmp.eq.f32.partialorder %v4863, %v4865
        %v4867 = vsel %vm4866, %v4862, inf
        %4868 = vmin.xlane.f32.xlu0 %v4867
        %v4869 = vpop.xlane.xlu0 %4868
        %v4870 = vcvt.f32.s32 %v4869
        %v4871 = vcvt.f32.s32 %v4865
        %v4872 = vshll.u32 %v4871, 16
        %v4873 = vadd.s32 %v4872, %v4870
        %v4874 = vsel %vm580, %v4732, 2147483647
        %v4875 = vand.u32 %v4874, 65535
        %v4876 = vshra.s32 %v4874, 16
        %v4877 = vcvt.s32.f32 %v4875
        %v4878 = vcvt.s32.f32 %v4876
        %4879 = vmin.xlane.f32.xlu0 %v4878
        %v4880 = vpop.xlane.xlu0 %4879
        %vm4881 = vcmp.eq.f32.partialorder %v4878, %v4880
        %v4882 = vsel %vm4881, %v4877, inf
        %4883 = vmin.xlane.f32.xlu0 %v4882
        %v4884 = vpop.xlane.xlu0 %4883
        %v4885 = vcvt.f32.s32 %v4884
        %v4886 = vcvt.f32.s32 %v4880
        %v4887 = vshll.u32 %v4886, 16
        %v4888 = vadd.s32 %v4887, %v4885
        %v4889 = vsel %vm580, %v4733, 2147483647
        %v4890 = vand.u32 %v4889, 65535
        %v4891 = vshra.s32 %v4889, 16
        %v4892 = vcvt.s32.f32 %v4890
        %v4893 = vcvt.s32.f32 %v4891
        %4894 = vmin.xlane.f32.xlu0 %v4893
        %v4895 = vpop.xlane.xlu0 %4894
        %vm4896 = vcmp.eq.f32.partialorder %v4893, %v4895
        %v4897 = vsel %vm4896, %v4892, inf
        %4898 = vmin.xlane.f32.xlu0 %v4897
        %v4899 = vpop.xlane.xlu0 %4898
        %v4900 = vcvt.f32.s32 %v4899
        %v4901 = vcvt.f32.s32 %v4895
        %v4902 = vshll.u32 %v4901, 16
        %v4903 = vadd.s32 %v4902, %v4900
        %v4904 = vsel %vm580, %v4734, 2147483647
        %v4905 = vand.u32 %v4904, 65535
        %v4906 = vshra.s32 %v4904, 16
        %v4907 = vcvt.s32.f32 %v4905
        %v4908 = vcvt.s32.f32 %v4906
        %4909 = vmin.xlane.f32.xlu0 %v4908
        %v4910 = vpop.xlane.xlu0 %4909
        %vm4911 = vcmp.eq.f32.partialorder %v4908, %v4910
        %v4912 = vsel %vm4911, %v4907, inf
        %4913 = vmin.xlane.f32.xlu0 %v4912
        %v4914 = vpop.xlane.xlu0 %4913
        %v4915 = vcvt.f32.s32 %v4914
        %v4916 = vcvt.f32.s32 %v4910
        %v4917 = vshll.u32 %v4916, 16
        %v4918 = vadd.s32 %v4917, %v4915
        %v4919 = vsel %vm580, %v4735, 2147483647
        %v4920 = vand.u32 %v4919, 65535
        %v4921 = vshra.s32 %v4919, 16
        %v4922 = vcvt.s32.f32 %v4920
        %v4923 = vcvt.s32.f32 %v4921
        %4924 = vmin.xlane.f32.xlu0 %v4923
        %v4925 = vpop.xlane.xlu0 %4924
        %vm4926 = vcmp.eq.f32.partialorder %v4923, %v4925
        %v4927 = vsel %vm4926, %v4922, inf
        %4928 = vmin.xlane.f32.xlu0 %v4927
        %v4929 = vpop.xlane.xlu0 %4928
        %v4930 = vcvt.f32.s32 %v4929
        %v4931 = vcvt.f32.s32 %v4925
        %v4932 = vshll.u32 %v4931, 16
        %v4933 = vadd.s32 %v4932, %v4930
        %v4934 = vsel %vm580, %v4736, 2147483647
        %v4935 = vand.u32 %v4934, 65535
        %v4936 = vshra.s32 %v4934, 16
        %v4937 = vcvt.s32.f32 %v4935
        %v4938 = vcvt.s32.f32 %v4936
        %4939 = vmin.xlane.f32.xlu0 %v4938
        %v4940 = vpop.xlane.xlu0 %4939
        %vm4941 = vcmp.eq.f32.partialorder %v4938, %v4940
        %v4942 = vsel %vm4941, %v4937, inf
        %4943 = vmin.xlane.f32.xlu0 %v4942
        %v4944 = vpop.xlane.xlu0 %4943
        %v4945 = vcvt.f32.s32 %v4944
        %v4946 = vcvt.f32.s32 %v4940
        %v4947 = vshll.u32 %v4946, 16
        %v4948 = vadd.s32 %v4947, %v4945
        %v4949 = vsel %vm580, %v4737, 2147483647
        %v4950 = vand.u32 %v4949, 65535
        %v4951 = vshra.s32 %v4949, 16
        %v4952 = vcvt.s32.f32 %v4950
        %v4953 = vcvt.s32.f32 %v4951
        %4954 = vmin.xlane.f32.xlu0 %v4953
        %v4955 = vpop.xlane.xlu0 %4954
        %vm4956 = vcmp.eq.f32.partialorder %v4953, %v4955
        %v4957 = vsel %vm4956, %v4952, inf
        %4958 = vmin.xlane.f32.xlu0 %v4957
        %v4959 = vpop.xlane.xlu0 %4958
        %v4960 = vcvt.f32.s32 %v4959
        %v4961 = vcvt.f32.s32 %v4955
        %v4962 = vshll.u32 %v4961, 16
        %v4963 = vadd.s32 %v4962, %v4960
        %v4964 = vsel %vm580, %v4738, 2147483647
        %v4965 = vand.u32 %v4964, 65535
        %v4966 = vshra.s32 %v4964, 16
        %v4967 = vcvt.s32.f32 %v4965
        %v4968 = vcvt.s32.f32 %v4966
        %4969 = vmin.xlane.f32.xlu0 %v4968
        %v4970 = vpop.xlane.xlu0 %4969
        %vm4971 = vcmp.eq.f32.partialorder %v4968, %v4970
        %v4972 = vsel %vm4971, %v4967, inf
        %4973 = vmin.xlane.f32.xlu0 %v4972
        %v4974 = vpop.xlane.xlu0 %4973
        %v4975 = vcvt.f32.s32 %v4974
        %v4976 = vcvt.f32.s32 %v4970
        %v4977 = vshll.u32 %v4976, 16
        %v4978 = vadd.s32 %v4977, %v4975
        %4979 = vst.msk [vmem:[%s4593] sm:$0xff] %vm1478, %v4661
        %4980 = vst.msk [vmem:[%s4593 + $0x8] sm:$0xff] %vm1478, %v4664
        %4981 = vst.msk [vmem:[%s4593 + $0x10] sm:$0xff] %vm1478, %v4667
        %4982 = vst.msk [vmem:[%s4593 + $0x18] sm:$0xff] %vm1478, %v4670
        %4983 = vst.msk [vmem:[%s4593 + $0x20] sm:$0xff] %vm1478, %v4673
        %4984 = vst.msk [vmem:[%s4593 + $0x28] sm:$0xff] %vm1478, %v4676
        %4985 = vst.msk [vmem:[%s4593 + $0x30] sm:$0xff] %vm1478, %v4679
        %4986 = vst.msk [vmem:[%s4593 + $0x38] sm:$0xff] %vm1478, %v4682
        %4987 = vst.msk [vmem:[%s4593 + $0x40] sm:$0xff] %vm1478, %v4685
        %4988 = vst.msk [vmem:[%s4593 + $0x48] sm:$0xff] %vm1478, %v4688
        %4989 = vst.msk [vmem:[%s4593 + $0x50] sm:$0xff] %vm1478, %v4691
        %4990 = vst.msk [vmem:[%s4593 + $0x58] sm:$0xff] %vm1478, %v4694
        %4991 = vst.msk [vmem:[%s4593 + $0x60] sm:$0xff] %vm1478, %v4697
        %4992 = vst.msk [vmem:[%s4593 + $0x68] sm:$0xff] %vm1478, %v4700
        %4993 = vst.msk [vmem:[%s4593 + $0x70] sm:$0xff] %vm1478, %v4703
        %4994 = vst.msk [vmem:[%s4593 + $0x78] sm:$0xff] %vm1478, %v4706
        %4995 = vst.msk [vmem:[%s4610] sm:$0xff] %vm1478, %v4753
        %4996 = vst.msk [vmem:[%s4610 + $0x8] sm:$0xff] %vm1478, %v4768
        %4997 = vst.msk [vmem:[%s4610 + $0x10] sm:$0xff] %vm1478, %v4783
        %4998 = vst.msk [vmem:[%s4610 + $0x18] sm:$0xff] %vm1478, %v4798
        %4999 = vst.msk [vmem:[%s4610 + $0x20] sm:$0xff] %vm1478, %v4813
        %5000 = vst.msk [vmem:[%s4610 + $0x28] sm:$0xff] %vm1478, %v4828
        %5001 = vst.msk [vmem:[%s4610 + $0x30] sm:$0xff] %vm1478, %v4843
        %5002 = vst.msk [vmem:[%s4610 + $0x38] sm:$0xff] %vm1478, %v4858
        %5003 = vst.msk [vmem:[%s4610 + $0x40] sm:$0xff] %vm1478, %v4873
        %5004 = vst.msk [vmem:[%s4610 + $0x48] sm:$0xff] %vm1478, %v4888
        %5005 = vst.msk [vmem:[%s4610 + $0x50] sm:$0xff] %vm1478, %v4903
        %5006 = vst.msk [vmem:[%s4610 + $0x58] sm:$0xff] %vm1478, %v4918
        %5007 = vst.msk [vmem:[%s4610 + $0x60] sm:$0xff] %vm1478, %v4933
        %5008 = vst.msk [vmem:[%s4610 + $0x68] sm:$0xff] %vm1478, %v4948
        %5009 = vst.msk [vmem:[%s4610 + $0x70] sm:$0xff] %vm1478, %v4963
        %5010 = vst.msk [vmem:[%s4610 + $0x78] sm:$0xff] %vm1478, %v4978
        %vm5011 = vcmp.eq.s32.totalorder %v385, %v4753
        %vm5012 = vcmp.eq.s32.totalorder %v385, %v4768
        %vm5013 = vcmp.eq.s32.totalorder %v385, %v4783
        %vm5014 = vcmp.eq.s32.totalorder %v385, %v4798
        %vm5015 = vcmp.eq.s32.totalorder %v385, %v4813
        %vm5016 = vcmp.eq.s32.totalorder %v385, %v4828
        %vm5017 = vcmp.eq.s32.totalorder %v385, %v4843
        %vm5018 = vcmp.eq.s32.totalorder %v385, %v4858
        %vm5019 = vcmp.eq.s32.totalorder %v385, %v4873
        %vm5020 = vcmp.eq.s32.totalorder %v385, %v4888
        %vm5021 = vcmp.eq.s32.totalorder %v385, %v4903
        %vm5022 = vcmp.eq.s32.totalorder %v385, %v4918
        %vm5023 = vcmp.eq.s32.totalorder %v385, %v4933
        %vm5024 = vcmp.eq.s32.totalorder %v385, %v4948
        %vm5025 = vcmp.eq.s32.totalorder %v385, %v4963
        %vm5026 = vcmp.eq.s32.totalorder %v385, %v4978
        %v5027 = vsel %vm5011, -inf, %v4643
        %v5028 = vsel %vm5012, -inf, %v4644
        %v5029 = vsel %vm5013, -inf, %v4645
        %v5030 = vsel %vm5014, -inf, %v4646
        %v5031 = vsel %vm5015, -inf, %v4647
        %v5032 = vsel %vm5016, -inf, %v4648
        %v5033 = vsel %vm5017, -inf, %v4649
        %v5034 = vsel %vm5018, -inf, %v4650
        %v5035 = vsel %vm5019, -inf, %v4651
        %v5036 = vsel %vm5020, -inf, %v4652
        %v5037 = vsel %vm5021, -inf, %v4653
        %v5038 = vsel %vm5022, -inf, %v4654
        %v5039 = vsel %vm5023, -inf, %v4655
        %v5040 = vsel %vm5024, -inf, %v4656
        %v5041 = vsel %vm5025, -inf, %v4657
        %v5042 = vsel %vm5026, -inf, %v4658
        %v5043 = vsel %vm580, %v5027, -inf
        %5044 = vmax.xlane.f32.xlu0 %v5043
        %v5045 = vpop.xlane.xlu0 %5044
        %v5046 = vsel %vm580, %v5028, -inf
        %5047 = vmax.xlane.f32.xlu0 %v5046
        %v5048 = vpop.xlane.xlu0 %5047
        %v5049 = vsel %vm580, %v5029, -inf
        %5050 = vmax.xlane.f32.xlu0 %v5049
        %v5051 = vpop.xlane.xlu0 %5050
        %v5052 = vsel %vm580, %v5030, -inf
        %5053 = vmax.xlane.f32.xlu0 %v5052
        %v5054 = vpop.xlane.xlu0 %5053
        %v5055 = vsel %vm580, %v5031, -inf
        %5056 = vmax.xlane.f32.xlu0 %v5055
        %v5057 = vpop.xlane.xlu0 %5056
        %v5058 = vsel %vm580, %v5032, -inf
        %5059 = vmax.xlane.f32.xlu0 %v5058
        %v5060 = vpop.xlane.xlu0 %5059
        %v5061 = vsel %vm580, %v5033, -inf
        %5062 = vmax.xlane.f32.xlu0 %v5061
        %v5063 = vpop.xlane.xlu0 %5062
        %v5064 = vsel %vm580, %v5034, -inf
        %5065 = vmax.xlane.f32.xlu0 %v5064
        %v5066 = vpop.xlane.xlu0 %5065
        %v5067 = vsel %vm580, %v5035, -inf
        %5068 = vmax.xlane.f32.xlu0 %v5067
        %v5069 = vpop.xlane.xlu0 %5068
        %v5070 = vsel %vm580, %v5036, -inf
        %5071 = vmax.xlane.f32.xlu0 %v5070
        %v5072 = vpop.xlane.xlu0 %5071
        %v5073 = vsel %vm580, %v5037, -inf
        %5074 = vmax.xlane.f32.xlu0 %v5073
        %v5075 = vpop.xlane.xlu0 %5074
        %v5076 = vsel %vm580, %v5038, -inf
        %5077 = vmax.xlane.f32.xlu0 %v5076
        %v5078 = vpop.xlane.xlu0 %5077
        %v5079 = vsel %vm580, %v5039, -inf
        %5080 = vmax.xlane.f32.xlu0 %v5079
        %v5081 = vpop.xlane.xlu0 %5080
        %v5082 = vsel %vm580, %v5040, -inf
        %5083 = vmax.xlane.f32.xlu0 %v5082
        %v5084 = vpop.xlane.xlu0 %5083
        %v5085 = vsel %vm580, %v5041, -inf
        %5086 = vmax.xlane.f32.xlu0 %v5085
        %v5087 = vpop.xlane.xlu0 %5086
        %v5088 = vsel %vm580, %v5042, -inf
        %5089 = vmax.xlane.f32.xlu0 %v5088
        %v5090 = vpop.xlane.xlu0 %5089
        %vm5091 = vcmp.eq.f32.partialorder %v5027, %v5045
        %vm5092 = vcmp.eq.f32.partialorder %v5028, %v5048
        %vm5093 = vcmp.eq.f32.partialorder %v5029, %v5051
        %vm5094 = vcmp.eq.f32.partialorder %v5030, %v5054
        %vm5095 = vcmp.eq.f32.partialorder %v5031, %v5057
        %vm5096 = vcmp.eq.f32.partialorder %v5032, %v5060
        %vm5097 = vcmp.eq.f32.partialorder %v5033, %v5063
        %vm5098 = vcmp.eq.f32.partialorder %v5034, %v5066
        %vm5099 = vcmp.eq.f32.partialorder %v5035, %v5069
        %vm5100 = vcmp.eq.f32.partialorder %v5036, %v5072
        %vm5101 = vcmp.eq.f32.partialorder %v5037, %v5075
        %vm5102 = vcmp.eq.f32.partialorder %v5038, %v5078
        %vm5103 = vcmp.eq.f32.partialorder %v5039, %v5081
        %vm5104 = vcmp.eq.f32.partialorder %v5040, %v5084
        %vm5105 = vcmp.eq.f32.partialorder %v5041, %v5087
        %vm5106 = vcmp.eq.f32.partialorder %v5042, %v5090
        %v5107 = vsel %vm5091, %v385, 16
        %v5108 = vsel %vm5092, %v385, 16
        %v5109 = vsel %vm5093, %v385, 16
        %v5110 = vsel %vm5094, %v385, 16
        %v5111 = vsel %vm5095, %v385, 16
        %v5112 = vsel %vm5096, %v385, 16
        %v5113 = vsel %vm5097, %v385, 16
        %v5114 = vsel %vm5098, %v385, 16
        %v5115 = vsel %vm5099, %v385, 16
        %v5116 = vsel %vm5100, %v385, 16
        %v5117 = vsel %vm5101, %v385, 16
        %v5118 = vsel %vm5102, %v385, 16
        %v5119 = vsel %vm5103, %v385, 16
        %v5120 = vsel %vm5104, %v385, 16
        %v5121 = vsel %vm5105, %v385, 16
        %v5122 = vsel %vm5106, %v385, 16
        %v5123 = vsel %vm580, %v5107, 2147483647
        %v5124 = vand.u32 %v5123, 65535
        %v5125 = vshra.s32 %v5123, 16
        %v5126 = vcvt.s32.f32 %v5124
        %v5127 = vcvt.s32.f32 %v5125
        %5128 = vmin.xlane.f32.xlu0 %v5127
        %v5129 = vpop.xlane.xlu0 %5128
        %vm5130 = vcmp.eq.f32.partialorder %v5127, %v5129
        %v5131 = vsel %vm5130, %v5126, inf
        %5132 = vmin.xlane.f32.xlu0 %v5131
        %v5133 = vpop.xlane.xlu0 %5132
        %v5134 = vcvt.f32.s32 %v5133
        %v5135 = vcvt.f32.s32 %v5129
        %v5136 = vshll.u32 %v5135, 16
        %v5137 = vadd.s32 %v5136, %v5134
        %v5138 = vsel %vm580, %v5108, 2147483647
        %v5139 = vand.u32 %v5138, 65535
        %v5140 = vshra.s32 %v5138, 16
        %v5141 = vcvt.s32.f32 %v5139
        %v5142 = vcvt.s32.f32 %v5140
        %5143 = vmin.xlane.f32.xlu0 %v5142
        %v5144 = vpop.xlane.xlu0 %5143
        %vm5145 = vcmp.eq.f32.partialorder %v5142, %v5144
        %v5146 = vsel %vm5145, %v5141, inf
        %5147 = vmin.xlane.f32.xlu0 %v5146
        %v5148 = vpop.xlane.xlu0 %5147
        %v5149 = vcvt.f32.s32 %v5148
        %v5150 = vcvt.f32.s32 %v5144
        %v5151 = vshll.u32 %v5150, 16
        %v5152 = vadd.s32 %v5151, %v5149
        %v5153 = vsel %vm580, %v5109, 2147483647
        %v5154 = vand.u32 %v5153, 65535
        %v5155 = vshra.s32 %v5153, 16
        %v5156 = vcvt.s32.f32 %v5154
        %v5157 = vcvt.s32.f32 %v5155
        %5158 = vmin.xlane.f32.xlu0 %v5157
        %v5159 = vpop.xlane.xlu0 %5158
        %vm5160 = vcmp.eq.f32.partialorder %v5157, %v5159
        %v5161 = vsel %vm5160, %v5156, inf
        %5162 = vmin.xlane.f32.xlu0 %v5161
        %v5163 = vpop.xlane.xlu0 %5162
        %v5164 = vcvt.f32.s32 %v5163
        %v5165 = vcvt.f32.s32 %v5159
        %v5166 = vshll.u32 %v5165, 16
        %v5167 = vadd.s32 %v5166, %v5164
        %v5168 = vsel %vm580, %v5110, 2147483647
        %v5169 = vand.u32 %v5168, 65535
        %v5170 = vshra.s32 %v5168, 16
        %v5171 = vcvt.s32.f32 %v5169
        %v5172 = vcvt.s32.f32 %v5170
        %5173 = vmin.xlane.f32.xlu0 %v5172
        %v5174 = vpop.xlane.xlu0 %5173
        %vm5175 = vcmp.eq.f32.partialorder %v5172, %v5174
        %v5176 = vsel %vm5175, %v5171, inf
        %5177 = vmin.xlane.f32.xlu0 %v5176
        %v5178 = vpop.xlane.xlu0 %5177
        %v5179 = vcvt.f32.s32 %v5178
        %v5180 = vcvt.f32.s32 %v5174
        %v5181 = vshll.u32 %v5180, 16
        %v5182 = vadd.s32 %v5181, %v5179
        %v5183 = vsel %vm580, %v5111, 2147483647
        %v5184 = vand.u32 %v5183, 65535
        %v5185 = vshra.s32 %v5183, 16
        %v5186 = vcvt.s32.f32 %v5184
        %v5187 = vcvt.s32.f32 %v5185
        %5188 = vmin.xlane.f32.xlu0 %v5187
        %v5189 = vpop.xlane.xlu0 %5188
        %vm5190 = vcmp.eq.f32.partialorder %v5187, %v5189
        %v5191 = vsel %vm5190, %v5186, inf
        %5192 = vmin.xlane.f32.xlu0 %v5191
        %v5193 = vpop.xlane.xlu0 %5192
        %v5194 = vcvt.f32.s32 %v5193
        %v5195 = vcvt.f32.s32 %v5189
        %v5196 = vshll.u32 %v5195, 16
        %v5197 = vadd.s32 %v5196, %v5194
        %v5198 = vsel %vm580, %v5112, 2147483647
        %v5199 = vand.u32 %v5198, 65535
        %v5200 = vshra.s32 %v5198, 16
        %v5201 = vcvt.s32.f32 %v5199
        %v5202 = vcvt.s32.f32 %v5200
        %5203 = vmin.xlane.f32.xlu0 %v5202
        %v5204 = vpop.xlane.xlu0 %5203
        %vm5205 = vcmp.eq.f32.partialorder %v5202, %v5204
        %v5206 = vsel %vm5205, %v5201, inf
        %5207 = vmin.xlane.f32.xlu0 %v5206
        %v5208 = vpop.xlane.xlu0 %5207
        %v5209 = vcvt.f32.s32 %v5208
        %v5210 = vcvt.f32.s32 %v5204
        %v5211 = vshll.u32 %v5210, 16
        %v5212 = vadd.s32 %v5211, %v5209
        %v5213 = vsel %vm580, %v5113, 2147483647
        %v5214 = vand.u32 %v5213, 65535
        %v5215 = vshra.s32 %v5213, 16
        %v5216 = vcvt.s32.f32 %v5214
        %v5217 = vcvt.s32.f32 %v5215
        %5218 = vmin.xlane.f32.xlu0 %v5217
        %v5219 = vpop.xlane.xlu0 %5218
        %vm5220 = vcmp.eq.f32.partialorder %v5217, %v5219
        %v5221 = vsel %vm5220, %v5216, inf
        %5222 = vmin.xlane.f32.xlu0 %v5221
        %v5223 = vpop.xlane.xlu0 %5222
        %v5224 = vcvt.f32.s32 %v5223
        %v5225 = vcvt.f32.s32 %v5219
        %v5226 = vshll.u32 %v5225, 16
        %v5227 = vadd.s32 %v5226, %v5224
        %v5228 = vsel %vm580, %v5114, 2147483647
        %v5229 = vand.u32 %v5228, 65535
        %v5230 = vshra.s32 %v5228, 16
        %v5231 = vcvt.s32.f32 %v5229
        %v5232 = vcvt.s32.f32 %v5230
        %5233 = vmin.xlane.f32.xlu0 %v5232
        %v5234 = vpop.xlane.xlu0 %5233
        %vm5235 = vcmp.eq.f32.partialorder %v5232, %v5234
        %v5236 = vsel %vm5235, %v5231, inf
        %5237 = vmin.xlane.f32.xlu0 %v5236
        %v5238 = vpop.xlane.xlu0 %5237
        %v5239 = vcvt.f32.s32 %v5238
        %v5240 = vcvt.f32.s32 %v5234
        %v5241 = vshll.u32 %v5240, 16
        %v5242 = vadd.s32 %v5241, %v5239
        %v5243 = vsel %vm580, %v5115, 2147483647
        %v5244 = vand.u32 %v5243, 65535
        %v5245 = vshra.s32 %v5243, 16
        %v5246 = vcvt.s32.f32 %v5244
        %v5247 = vcvt.s32.f32 %v5245
        %5248 = vmin.xlane.f32.xlu0 %v5247
        %v5249 = vpop.xlane.xlu0 %5248
        %vm5250 = vcmp.eq.f32.partialorder %v5247, %v5249
        %v5251 = vsel %vm5250, %v5246, inf
        %5252 = vmin.xlane.f32.xlu0 %v5251
        %v5253 = vpop.xlane.xlu0 %5252
        %v5254 = vcvt.f32.s32 %v5253
        %v5255 = vcvt.f32.s32 %v5249
        %v5256 = vshll.u32 %v5255, 16
        %v5257 = vadd.s32 %v5256, %v5254
        %v5258 = vsel %vm580, %v5116, 2147483647
        %v5259 = vand.u32 %v5258, 65535
        %v5260 = vshra.s32 %v5258, 16
        %v5261 = vcvt.s32.f32 %v5259
        %v5262 = vcvt.s32.f32 %v5260
        %5263 = vmin.xlane.f32.xlu0 %v5262
        %v5264 = vpop.xlane.xlu0 %5263
        %vm5265 = vcmp.eq.f32.partialorder %v5262, %v5264
        %v5266 = vsel %vm5265, %v5261, inf
        %5267 = vmin.xlane.f32.xlu0 %v5266
        %v5268 = vpop.xlane.xlu0 %5267
        %v5269 = vcvt.f32.s32 %v5268
        %v5270 = vcvt.f32.s32 %v5264
        %v5271 = vshll.u32 %v5270, 16
        %v5272 = vadd.s32 %v5271, %v5269
        %v5273 = vsel %vm580, %v5117, 2147483647
        %v5274 = vand.u32 %v5273, 65535
        %v5275 = vshra.s32 %v5273, 16
        %v5276 = vcvt.s32.f32 %v5274
        %v5277 = vcvt.s32.f32 %v5275
        %5278 = vmin.xlane.f32.xlu0 %v5277
        %v5279 = vpop.xlane.xlu0 %5278
        %vm5280 = vcmp.eq.f32.partialorder %v5277, %v5279
        %v5281 = vsel %vm5280, %v5276, inf
        %5282 = vmin.xlane.f32.xlu0 %v5281
        %v5283 = vpop.xlane.xlu0 %5282
        %v5284 = vcvt.f32.s32 %v5283
        %v5285 = vcvt.f32.s32 %v5279
        %v5286 = vshll.u32 %v5285, 16
        %v5287 = vadd.s32 %v5286, %v5284
        %v5288 = vsel %vm580, %v5118, 2147483647
        %v5289 = vand.u32 %v5288, 65535
        %v5290 = vshra.s32 %v5288, 16
        %v5291 = vcvt.s32.f32 %v5289
        %v5292 = vcvt.s32.f32 %v5290
        %5293 = vmin.xlane.f32.xlu0 %v5292
        %v5294 = vpop.xlane.xlu0 %5293
        %vm5295 = vcmp.eq.f32.partialorder %v5292, %v5294
        %v5296 = vsel %vm5295, %v5291, inf
        %5297 = vmin.xlane.f32.xlu0 %v5296
        %v5298 = vpop.xlane.xlu0 %5297
        %v5299 = vcvt.f32.s32 %v5298
        %v5300 = vcvt.f32.s32 %v5294
        %v5301 = vshll.u32 %v5300, 16
        %v5302 = vadd.s32 %v5301, %v5299
        %v5303 = vsel %vm580, %v5119, 2147483647
        %v5304 = vand.u32 %v5303, 65535
        %v5305 = vshra.s32 %v5303, 16
        %v5306 = vcvt.s32.f32 %v5304
        %v5307 = vcvt.s32.f32 %v5305
        %5308 = vmin.xlane.f32.xlu0 %v5307
        %v5309 = vpop.xlane.xlu0 %5308
        %vm5310 = vcmp.eq.f32.partialorder %v5307, %v5309
        %v5311 = vsel %vm5310, %v5306, inf
        %5312 = vmin.xlane.f32.xlu0 %v5311
        %v5313 = vpop.xlane.xlu0 %5312
        %v5314 = vcvt.f32.s32 %v5313
        %v5315 = vcvt.f32.s32 %v5309
        %v5316 = vshll.u32 %v5315, 16
        %v5317 = vadd.s32 %v5316, %v5314
        %v5318 = vsel %vm580, %v5120, 2147483647
        %v5319 = vand.u32 %v5318, 65535
        %v5320 = vshra.s32 %v5318, 16
        %v5321 = vcvt.s32.f32 %v5319
        %v5322 = vcvt.s32.f32 %v5320
        %5323 = vmin.xlane.f32.xlu0 %v5322
        %v5324 = vpop.xlane.xlu0 %5323
        %vm5325 = vcmp.eq.f32.partialorder %v5322, %v5324
        %v5326 = vsel %vm5325, %v5321, inf
        %5327 = vmin.xlane.f32.xlu0 %v5326
        %v5328 = vpop.xlane.xlu0 %5327
        %v5329 = vcvt.f32.s32 %v5328
        %v5330 = vcvt.f32.s32 %v5324
        %v5331 = vshll.u32 %v5330, 16
        %v5332 = vadd.s32 %v5331, %v5329
        %v5333 = vsel %vm580, %v5121, 2147483647
        %v5334 = vand.u32 %v5333, 65535
        %v5335 = vshra.s32 %v5333, 16
        %v5336 = vcvt.s32.f32 %v5334
        %v5337 = vcvt.s32.f32 %v5335
        %5338 = vmin.xlane.f32.xlu0 %v5337
        %v5339 = vpop.xlane.xlu0 %5338
        %vm5340 = vcmp.eq.f32.partialorder %v5337, %v5339
        %v5341 = vsel %vm5340, %v5336, inf
        %5342 = vmin.xlane.f32.xlu0 %v5341
        %v5343 = vpop.xlane.xlu0 %5342
        %v5344 = vcvt.f32.s32 %v5343
        %v5345 = vcvt.f32.s32 %v5339
        %v5346 = vshll.u32 %v5345, 16
        %v5347 = vadd.s32 %v5346, %v5344
        %v5348 = vsel %vm580, %v5122, 2147483647
        %v5349 = vand.u32 %v5348, 65535
        %v5350 = vshra.s32 %v5348, 16
        %v5351 = vcvt.s32.f32 %v5349
        %v5352 = vcvt.s32.f32 %v5350
        %5353 = vmin.xlane.f32.xlu0 %v5352
        %v5354 = vpop.xlane.xlu0 %5353
        %vm5355 = vcmp.eq.f32.partialorder %v5352, %v5354
        %v5356 = vsel %vm5355, %v5351, inf
        %5357 = vmin.xlane.f32.xlu0 %v5356
        %v5358 = vpop.xlane.xlu0 %5357
        %v5359 = vcvt.f32.s32 %v5358
        %v5360 = vcvt.f32.s32 %v5354
        %v5361 = vshll.u32 %v5360, 16
        %v5362 = vadd.s32 %v5361, %v5359
        %5363 = vst.msk [vmem:[%s4593] sm:$0xff] %vm1863, %v5045
        %5364 = vst.msk [vmem:[%s4593 + $0x8] sm:$0xff] %vm1863, %v5048
        %5365 = vst.msk [vmem:[%s4593 + $0x10] sm:$0xff] %vm1863, %v5051
        %5366 = vst.msk [vmem:[%s4593 + $0x18] sm:$0xff] %vm1863, %v5054
        %5367 = vst.msk [vmem:[%s4593 + $0x20] sm:$0xff] %vm1863, %v5057
        %5368 = vst.msk [vmem:[%s4593 + $0x28] sm:$0xff] %vm1863, %v5060
        %5369 = vst.msk [vmem:[%s4593 + $0x30] sm:$0xff] %vm1863, %v5063
        %5370 = vst.msk [vmem:[%s4593 + $0x38] sm:$0xff] %vm1863, %v5066
        %5371 = vst.msk [vmem:[%s4593 + $0x40] sm:$0xff] %vm1863, %v5069
        %5372 = vst.msk [vmem:[%s4593 + $0x48] sm:$0xff] %vm1863, %v5072
        %5373 = vst.msk [vmem:[%s4593 + $0x50] sm:$0xff] %vm1863, %v5075
        %5374 = vst.msk [vmem:[%s4593 + $0x58] sm:$0xff] %vm1863, %v5078
        %5375 = vst.msk [vmem:[%s4593 + $0x60] sm:$0xff] %vm1863, %v5081
        %5376 = vst.msk [vmem:[%s4593 + $0x68] sm:$0xff] %vm1863, %v5084
        %5377 = vst.msk [vmem:[%s4593 + $0x70] sm:$0xff] %vm1863, %v5087
        %5378 = vst.msk [vmem:[%s4593 + $0x78] sm:$0xff] %vm1863, %v5090
        %5379 = vst.msk [vmem:[%s4610] sm:$0xff] %vm1863, %v5137
        %5380 = vst.msk [vmem:[%s4610 + $0x8] sm:$0xff] %vm1863, %v5152
        %5381 = vst.msk [vmem:[%s4610 + $0x10] sm:$0xff] %vm1863, %v5167
        %5382 = vst.msk [vmem:[%s4610 + $0x18] sm:$0xff] %vm1863, %v5182
        %5383 = vst.msk [vmem:[%s4610 + $0x20] sm:$0xff] %vm1863, %v5197
        %5384 = vst.msk [vmem:[%s4610 + $0x28] sm:$0xff] %vm1863, %v5212
        %5385 = vst.msk [vmem:[%s4610 + $0x30] sm:$0xff] %vm1863, %v5227
        %5386 = vst.msk [vmem:[%s4610 + $0x38] sm:$0xff] %vm1863, %v5242
        %5387 = vst.msk [vmem:[%s4610 + $0x40] sm:$0xff] %vm1863, %v5257
        %5388 = vst.msk [vmem:[%s4610 + $0x48] sm:$0xff] %vm1863, %v5272
        %5389 = vst.msk [vmem:[%s4610 + $0x50] sm:$0xff] %vm1863, %v5287
        %5390 = vst.msk [vmem:[%s4610 + $0x58] sm:$0xff] %vm1863, %v5302
        %5391 = vst.msk [vmem:[%s4610 + $0x60] sm:$0xff] %vm1863, %v5317
        %5392 = vst.msk [vmem:[%s4610 + $0x68] sm:$0xff] %vm1863, %v5332
        %5393 = vst.msk [vmem:[%s4610 + $0x70] sm:$0xff] %vm1863, %v5347
        %5394 = vst.msk [vmem:[%s4610 + $0x78] sm:$0xff] %vm1863, %v5362
        %vm5395 = vcmp.eq.s32.totalorder %v385, %v5137
        %vm5396 = vcmp.eq.s32.totalorder %v385, %v5152
        %vm5397 = vcmp.eq.s32.totalorder %v385, %v5167
        %vm5398 = vcmp.eq.s32.totalorder %v385, %v5182
        %vm5399 = vcmp.eq.s32.totalorder %v385, %v5197
        %vm5400 = vcmp.eq.s32.totalorder %v385, %v5212
        %vm5401 = vcmp.eq.s32.totalorder %v385, %v5227
        %vm5402 = vcmp.eq.s32.totalorder %v385, %v5242
        %vm5403 = vcmp.eq.s32.totalorder %v385, %v5257
        %vm5404 = vcmp.eq.s32.totalorder %v385, %v5272
        %vm5405 = vcmp.eq.s32.totalorder %v385, %v5287
        %vm5406 = vcmp.eq.s32.totalorder %v385, %v5302
        %vm5407 = vcmp.eq.s32.totalorder %v385, %v5317
        %vm5408 = vcmp.eq.s32.totalorder %v385, %v5332
        %vm5409 = vcmp.eq.s32.totalorder %v385, %v5347
        %vm5410 = vcmp.eq.s32.totalorder %v385, %v5362
        %v5411 = vsel %vm5395, -inf, %v5027
        %v5412 = vsel %vm5396, -inf, %v5028
        %v5413 = vsel %vm5397, -inf, %v5029
        %v5414 = vsel %vm5398, -inf, %v5030
        %v5415 = vsel %vm5399, -inf, %v5031
        %v5416 = vsel %vm5400, -inf, %v5032
        %v5417 = vsel %vm5401, -inf, %v5033
        %v5418 = vsel %vm5402, -inf, %v5034
        %v5419 = vsel %vm5403, -inf, %v5035
        %v5420 = vsel %vm5404, -inf, %v5036
        %v5421 = vsel %vm5405, -inf, %v5037
        %v5422 = vsel %vm5406, -inf, %v5038
        %v5423 = vsel %vm5407, -inf, %v5039
        %v5424 = vsel %vm5408, -inf, %v5040
        %v5425 = vsel %vm5409, -inf, %v5041
        %v5426 = vsel %vm5410, -inf, %v5042
        %v5427 = vsel %vm580, %v5411, -inf
        %5428 = vmax.xlane.f32.xlu0 %v5427
        %v5429 = vpop.xlane.xlu0 %5428
        %v5430 = vsel %vm580, %v5412, -inf
        %5431 = vmax.xlane.f32.xlu0 %v5430
        %v5432 = vpop.xlane.xlu0 %5431
        %v5433 = vsel %vm580, %v5413, -inf
        %5434 = vmax.xlane.f32.xlu0 %v5433
        %v5435 = vpop.xlane.xlu0 %5434
        %v5436 = vsel %vm580, %v5414, -inf
        %5437 = vmax.xlane.f32.xlu0 %v5436
        %v5438 = vpop.xlane.xlu0 %5437
        %v5439 = vsel %vm580, %v5415, -inf
        %5440 = vmax.xlane.f32.xlu0 %v5439
        %v5441 = vpop.xlane.xlu0 %5440
        %v5442 = vsel %vm580, %v5416, -inf
        %5443 = vmax.xlane.f32.xlu0 %v5442
        %v5444 = vpop.xlane.xlu0 %5443
        %v5445 = vsel %vm580, %v5417, -inf
        %5446 = vmax.xlane.f32.xlu0 %v5445
        %v5447 = vpop.xlane.xlu0 %5446
        %v5448 = vsel %vm580, %v5418, -inf
        %5449 = vmax.xlane.f32.xlu0 %v5448
        %v5450 = vpop.xlane.xlu0 %5449
        %v5451 = vsel %vm580, %v5419, -inf
        %5452 = vmax.xlane.f32.xlu0 %v5451
        %v5453 = vpop.xlane.xlu0 %5452
        %v5454 = vsel %vm580, %v5420, -inf
        %5455 = vmax.xlane.f32.xlu0 %v5454
        %v5456 = vpop.xlane.xlu0 %5455
        %v5457 = vsel %vm580, %v5421, -inf
        %5458 = vmax.xlane.f32.xlu0 %v5457
        %v5459 = vpop.xlane.xlu0 %5458
        %v5460 = vsel %vm580, %v5422, -inf
        %5461 = vmax.xlane.f32.xlu0 %v5460
        %v5462 = vpop.xlane.xlu0 %5461
        %v5463 = vsel %vm580, %v5423, -inf
        %5464 = vmax.xlane.f32.xlu0 %v5463
        %v5465 = vpop.xlane.xlu0 %5464
        %v5466 = vsel %vm580, %v5424, -inf
        %5467 = vmax.xlane.f32.xlu0 %v5466
        %v5468 = vpop.xlane.xlu0 %5467
        %v5469 = vsel %vm580, %v5425, -inf
        %5470 = vmax.xlane.f32.xlu0 %v5469
        %v5471 = vpop.xlane.xlu0 %5470
        %v5472 = vsel %vm580, %v5426, -inf
        %5473 = vmax.xlane.f32.xlu0 %v5472
        %v5474 = vpop.xlane.xlu0 %5473
        %vm5475 = vcmp.eq.f32.partialorder %v5411, %v5429
        %vm5476 = vcmp.eq.f32.partialorder %v5412, %v5432
        %vm5477 = vcmp.eq.f32.partialorder %v5413, %v5435
        %vm5478 = vcmp.eq.f32.partialorder %v5414, %v5438
        %vm5479 = vcmp.eq.f32.partialorder %v5415, %v5441
        %vm5480 = vcmp.eq.f32.partialorder %v5416, %v5444
        %vm5481 = vcmp.eq.f32.partialorder %v5417, %v5447
        %vm5482 = vcmp.eq.f32.partialorder %v5418, %v5450
        %vm5483 = vcmp.eq.f32.partialorder %v5419, %v5453
        %vm5484 = vcmp.eq.f32.partialorder %v5420, %v5456
        %vm5485 = vcmp.eq.f32.partialorder %v5421, %v5459
        %vm5486 = vcmp.eq.f32.partialorder %v5422, %v5462
        %vm5487 = vcmp.eq.f32.partialorder %v5423, %v5465
        %vm5488 = vcmp.eq.f32.partialorder %v5424, %v5468
        %vm5489 = vcmp.eq.f32.partialorder %v5425, %v5471
        %vm5490 = vcmp.eq.f32.partialorder %v5426, %v5474
        %v5491 = vsel %vm5475, %v385, 16
        %v5492 = vsel %vm5476, %v385, 16
        %v5493 = vsel %vm5477, %v385, 16
        %v5494 = vsel %vm5478, %v385, 16
        %v5495 = vsel %vm5479, %v385, 16
        %v5496 = vsel %vm5480, %v385, 16
        %v5497 = vsel %vm5481, %v385, 16
        %v5498 = vsel %vm5482, %v385, 16
        %v5499 = vsel %vm5483, %v385, 16
        %v5500 = vsel %vm5484, %v385, 16
        %v5501 = vsel %vm5485, %v385, 16
        %v5502 = vsel %vm5486, %v385, 16
        %v5503 = vsel %vm5487, %v385, 16
        %v5504 = vsel %vm5488, %v385, 16
        %v5505 = vsel %vm5489, %v385, 16
        %v5506 = vsel %vm5490, %v385, 16
        %v5507 = vsel %vm580, %v5491, 2147483647
        %v5508 = vand.u32 %v5507, 65535
        %v5509 = vshra.s32 %v5507, 16
        %v5510 = vcvt.s32.f32 %v5508
        %v5511 = vcvt.s32.f32 %v5509
        %5512 = vmin.xlane.f32.xlu0 %v5511
        %v5513 = vpop.xlane.xlu0 %5512
        %vm5514 = vcmp.eq.f32.partialorder %v5511, %v5513
        %v5515 = vsel %vm5514, %v5510, inf
        %5516 = vmin.xlane.f32.xlu0 %v5515
        %v5517 = vpop.xlane.xlu0 %5516
        %v5518 = vcvt.f32.s32 %v5517
        %v5519 = vcvt.f32.s32 %v5513
        %v5520 = vshll.u32 %v5519, 16
        %v5521 = vadd.s32 %v5520, %v5518
        %v5522 = vsel %vm580, %v5492, 2147483647
        %v5523 = vand.u32 %v5522, 65535
        %v5524 = vshra.s32 %v5522, 16
        %v5525 = vcvt.s32.f32 %v5523
        %v5526 = vcvt.s32.f32 %v5524
        %5527 = vmin.xlane.f32.xlu0 %v5526
        %v5528 = vpop.xlane.xlu0 %5527
        %vm5529 = vcmp.eq.f32.partialorder %v5526, %v5528
        %v5530 = vsel %vm5529, %v5525, inf
        %5531 = vmin.xlane.f32.xlu0 %v5530
        %v5532 = vpop.xlane.xlu0 %5531
        %v5533 = vcvt.f32.s32 %v5532
        %v5534 = vcvt.f32.s32 %v5528
        %v5535 = vshll.u32 %v5534, 16
        %v5536 = vadd.s32 %v5535, %v5533
        %v5537 = vsel %vm580, %v5493, 2147483647
        %v5538 = vand.u32 %v5537, 65535
        %v5539 = vshra.s32 %v5537, 16
        %v5540 = vcvt.s32.f32 %v5538
        %v5541 = vcvt.s32.f32 %v5539
        %5542 = vmin.xlane.f32.xlu0 %v5541
        %v5543 = vpop.xlane.xlu0 %5542
        %vm5544 = vcmp.eq.f32.partialorder %v5541, %v5543
        %v5545 = vsel %vm5544, %v5540, inf
        %5546 = vmin.xlane.f32.xlu0 %v5545
        %v5547 = vpop.xlane.xlu0 %5546
        %v5548 = vcvt.f32.s32 %v5547
        %v5549 = vcvt.f32.s32 %v5543
        %v5550 = vshll.u32 %v5549, 16
        %v5551 = vadd.s32 %v5550, %v5548
        %v5552 = vsel %vm580, %v5494, 2147483647
        %v5553 = vand.u32 %v5552, 65535
        %v5554 = vshra.s32 %v5552, 16
        %v5555 = vcvt.s32.f32 %v5553
        %v5556 = vcvt.s32.f32 %v5554
        %5557 = vmin.xlane.f32.xlu0 %v5556
        %v5558 = vpop.xlane.xlu0 %5557
        %vm5559 = vcmp.eq.f32.partialorder %v5556, %v5558
        %v5560 = vsel %vm5559, %v5555, inf
        %5561 = vmin.xlane.f32.xlu0 %v5560
        %v5562 = vpop.xlane.xlu0 %5561
        %v5563 = vcvt.f32.s32 %v5562
        %v5564 = vcvt.f32.s32 %v5558
        %v5565 = vshll.u32 %v5564, 16
        %v5566 = vadd.s32 %v5565, %v5563
        %v5567 = vsel %vm580, %v5495, 2147483647
        %v5568 = vand.u32 %v5567, 65535
        %v5569 = vshra.s32 %v5567, 16
        %v5570 = vcvt.s32.f32 %v5568
        %v5571 = vcvt.s32.f32 %v5569
        %5572 = vmin.xlane.f32.xlu0 %v5571
        %v5573 = vpop.xlane.xlu0 %5572
        %vm5574 = vcmp.eq.f32.partialorder %v5571, %v5573
        %v5575 = vsel %vm5574, %v5570, inf
        %5576 = vmin.xlane.f32.xlu0 %v5575
        %v5577 = vpop.xlane.xlu0 %5576
        %v5578 = vcvt.f32.s32 %v5577
        %v5579 = vcvt.f32.s32 %v5573
        %v5580 = vshll.u32 %v5579, 16
        %v5581 = vadd.s32 %v5580, %v5578
        %v5582 = vsel %vm580, %v5496, 2147483647
        %v5583 = vand.u32 %v5582, 65535
        %v5584 = vshra.s32 %v5582, 16
        %v5585 = vcvt.s32.f32 %v5583
        %v5586 = vcvt.s32.f32 %v5584
        %5587 = vmin.xlane.f32.xlu0 %v5586
        %v5588 = vpop.xlane.xlu0 %5587
        %vm5589 = vcmp.eq.f32.partialorder %v5586, %v5588
        %v5590 = vsel %vm5589, %v5585, inf
        %5591 = vmin.xlane.f32.xlu0 %v5590
        %v5592 = vpop.xlane.xlu0 %5591
        %v5593 = vcvt.f32.s32 %v5592
        %v5594 = vcvt.f32.s32 %v5588
        %v5595 = vshll.u32 %v5594, 16
        %v5596 = vadd.s32 %v5595, %v5593
        %v5597 = vsel %vm580, %v5497, 2147483647
        %v5598 = vand.u32 %v5597, 65535
        %v5599 = vshra.s32 %v5597, 16
        %v5600 = vcvt.s32.f32 %v5598
        %v5601 = vcvt.s32.f32 %v5599
        %5602 = vmin.xlane.f32.xlu0 %v5601
        %v5603 = vpop.xlane.xlu0 %5602
        %vm5604 = vcmp.eq.f32.partialorder %v5601, %v5603
        %v5605 = vsel %vm5604, %v5600, inf
        %5606 = vmin.xlane.f32.xlu0 %v5605
        %v5607 = vpop.xlane.xlu0 %5606
        %v5608 = vcvt.f32.s32 %v5607
        %v5609 = vcvt.f32.s32 %v5603
        %v5610 = vshll.u32 %v5609, 16
        %v5611 = vadd.s32 %v5610, %v5608
        %v5612 = vsel %vm580, %v5498, 2147483647
        %v5613 = vand.u32 %v5612, 65535
        %v5614 = vshra.s32 %v5612, 16
        %v5615 = vcvt.s32.f32 %v5613
        %v5616 = vcvt.s32.f32 %v5614
        %5617 = vmin.xlane.f32.xlu0 %v5616
        %v5618 = vpop.xlane.xlu0 %5617
        %vm5619 = vcmp.eq.f32.partialorder %v5616, %v5618
        %v5620 = vsel %vm5619, %v5615, inf
        %5621 = vmin.xlane.f32.xlu0 %v5620
        %v5622 = vpop.xlane.xlu0 %5621
        %v5623 = vcvt.f32.s32 %v5622
        %v5624 = vcvt.f32.s32 %v5618
        %v5625 = vshll.u32 %v5624, 16
        %v5626 = vadd.s32 %v5625, %v5623
        %v5627 = vsel %vm580, %v5499, 2147483647
        %v5628 = vand.u32 %v5627, 65535
        %v5629 = vshra.s32 %v5627, 16
        %v5630 = vcvt.s32.f32 %v5628
        %v5631 = vcvt.s32.f32 %v5629
        %5632 = vmin.xlane.f32.xlu0 %v5631
        %v5633 = vpop.xlane.xlu0 %5632
        %vm5634 = vcmp.eq.f32.partialorder %v5631, %v5633
        %v5635 = vsel %vm5634, %v5630, inf
        %5636 = vmin.xlane.f32.xlu0 %v5635
        %v5637 = vpop.xlane.xlu0 %5636
        %v5638 = vcvt.f32.s32 %v5637
        %v5639 = vcvt.f32.s32 %v5633
        %v5640 = vshll.u32 %v5639, 16
        %v5641 = vadd.s32 %v5640, %v5638
        %v5642 = vsel %vm580, %v5500, 2147483647
        %v5643 = vand.u32 %v5642, 65535
        %v5644 = vshra.s32 %v5642, 16
        %v5645 = vcvt.s32.f32 %v5643
        %v5646 = vcvt.s32.f32 %v5644
        %5647 = vmin.xlane.f32.xlu0 %v5646
        %v5648 = vpop.xlane.xlu0 %5647
        %vm5649 = vcmp.eq.f32.partialorder %v5646, %v5648
        %v5650 = vsel %vm5649, %v5645, inf
        %5651 = vmin.xlane.f32.xlu0 %v5650
        %v5652 = vpop.xlane.xlu0 %5651
        %v5653 = vcvt.f32.s32 %v5652
        %v5654 = vcvt.f32.s32 %v5648
        %v5655 = vshll.u32 %v5654, 16
        %v5656 = vadd.s32 %v5655, %v5653
        %v5657 = vsel %vm580, %v5501, 2147483647
        %v5658 = vand.u32 %v5657, 65535
        %v5659 = vshra.s32 %v5657, 16
        %v5660 = vcvt.s32.f32 %v5658
        %v5661 = vcvt.s32.f32 %v5659
        %5662 = vmin.xlane.f32.xlu0 %v5661
        %v5663 = vpop.xlane.xlu0 %5662
        %vm5664 = vcmp.eq.f32.partialorder %v5661, %v5663
        %v5665 = vsel %vm5664, %v5660, inf
        %5666 = vmin.xlane.f32.xlu0 %v5665
        %v5667 = vpop.xlane.xlu0 %5666
        %v5668 = vcvt.f32.s32 %v5667
        %v5669 = vcvt.f32.s32 %v5663
        %v5670 = vshll.u32 %v5669, 16
        %v5671 = vadd.s32 %v5670, %v5668
        %v5672 = vsel %vm580, %v5502, 2147483647
        %v5673 = vand.u32 %v5672, 65535
        %v5674 = vshra.s32 %v5672, 16
        %v5675 = vcvt.s32.f32 %v5673
        %v5676 = vcvt.s32.f32 %v5674
        %5677 = vmin.xlane.f32.xlu0 %v5676
        %v5678 = vpop.xlane.xlu0 %5677
        %vm5679 = vcmp.eq.f32.partialorder %v5676, %v5678
        %v5680 = vsel %vm5679, %v5675, inf
        %5681 = vmin.xlane.f32.xlu0 %v5680
        %v5682 = vpop.xlane.xlu0 %5681
        %v5683 = vcvt.f32.s32 %v5682
        %v5684 = vcvt.f32.s32 %v5678
        %v5685 = vshll.u32 %v5684, 16
        %v5686 = vadd.s32 %v5685, %v5683
        %v5687 = vsel %vm580, %v5503, 2147483647
        %v5688 = vand.u32 %v5687, 65535
        %v5689 = vshra.s32 %v5687, 16
        %v5690 = vcvt.s32.f32 %v5688
        %v5691 = vcvt.s32.f32 %v5689
        %5692 = vmin.xlane.f32.xlu0 %v5691
        %v5693 = vpop.xlane.xlu0 %5692
        %vm5694 = vcmp.eq.f32.partialorder %v5691, %v5693
        %v5695 = vsel %vm5694, %v5690, inf
        %5696 = vmin.xlane.f32.xlu0 %v5695
        %v5697 = vpop.xlane.xlu0 %5696
        %v5698 = vcvt.f32.s32 %v5697
        %v5699 = vcvt.f32.s32 %v5693
        %v5700 = vshll.u32 %v5699, 16
        %v5701 = vadd.s32 %v5700, %v5698
        %v5702 = vsel %vm580, %v5504, 2147483647
        %v5703 = vand.u32 %v5702, 65535
        %v5704 = vshra.s32 %v5702, 16
        %v5705 = vcvt.s32.f32 %v5703
        %v5706 = vcvt.s32.f32 %v5704
        %5707 = vmin.xlane.f32.xlu0 %v5706
        %v5708 = vpop.xlane.xlu0 %5707
        %vm5709 = vcmp.eq.f32.partialorder %v5706, %v5708
        %v5710 = vsel %vm5709, %v5705, inf
        %5711 = vmin.xlane.f32.xlu0 %v5710
        %v5712 = vpop.xlane.xlu0 %5711
        %v5713 = vcvt.f32.s32 %v5712
        %v5714 = vcvt.f32.s32 %v5708
        %v5715 = vshll.u32 %v5714, 16
        %v5716 = vadd.s32 %v5715, %v5713
        %v5717 = vsel %vm580, %v5505, 2147483647
        %v5718 = vand.u32 %v5717, 65535
        %v5719 = vshra.s32 %v5717, 16
        %v5720 = vcvt.s32.f32 %v5718
        %v5721 = vcvt.s32.f32 %v5719
        %5722 = vmin.xlane.f32.xlu0 %v5721
        %v5723 = vpop.xlane.xlu0 %5722
        %vm5724 = vcmp.eq.f32.partialorder %v5721, %v5723
        %v5725 = vsel %vm5724, %v5720, inf
        %5726 = vmin.xlane.f32.xlu0 %v5725
        %v5727 = vpop.xlane.xlu0 %5726
        %v5728 = vcvt.f32.s32 %v5727
        %v5729 = vcvt.f32.s32 %v5723
        %v5730 = vshll.u32 %v5729, 16
        %v5731 = vadd.s32 %v5730, %v5728
        %v5732 = vsel %vm580, %v5506, 2147483647
        %v5733 = vand.u32 %v5732, 65535
        %v5734 = vshra.s32 %v5732, 16
        %v5735 = vcvt.s32.f32 %v5733
        %v5736 = vcvt.s32.f32 %v5734
        %5737 = vmin.xlane.f32.xlu0 %v5736
        %v5738 = vpop.xlane.xlu0 %5737
        %vm5739 = vcmp.eq.f32.partialorder %v5736, %v5738
        %v5740 = vsel %vm5739, %v5735, inf
        %5741 = vmin.xlane.f32.xlu0 %v5740
        %v5742 = vpop.xlane.xlu0 %5741
        %v5743 = vcvt.f32.s32 %v5742
        %v5744 = vcvt.f32.s32 %v5738
        %v5745 = vshll.u32 %v5744, 16
        %v5746 = vadd.s32 %v5745, %v5743
        %5747 = vst.msk [vmem:[%s4593] sm:$0xff] %vm2248, %v5429
        %5748 = vst.msk [vmem:[%s4593 + $0x8] sm:$0xff] %vm2248, %v5432
        %5749 = vst.msk [vmem:[%s4593 + $0x10] sm:$0xff] %vm2248, %v5435
        %5750 = vst.msk [vmem:[%s4593 + $0x18] sm:$0xff] %vm2248, %v5438
        %5751 = vst.msk [vmem:[%s4593 + $0x20] sm:$0xff] %vm2248, %v5441
        %5752 = vst.msk [vmem:[%s4593 + $0x28] sm:$0xff] %vm2248, %v5444
        %5753 = vst.msk [vmem:[%s4593 + $0x30] sm:$0xff] %vm2248, %v5447
        %5754 = vst.msk [vmem:[%s4593 + $0x38] sm:$0xff] %vm2248, %v5450
        %5755 = vst.msk [vmem:[%s4593 + $0x40] sm:$0xff] %vm2248, %v5453
        %5756 = vst.msk [vmem:[%s4593 + $0x48] sm:$0xff] %vm2248, %v5456
        %5757 = vst.msk [vmem:[%s4593 + $0x50] sm:$0xff] %vm2248, %v5459
        %5758 = vst.msk [vmem:[%s4593 + $0x58] sm:$0xff] %vm2248, %v5462
        %5759 = vst.msk [vmem:[%s4593 + $0x60] sm:$0xff] %vm2248, %v5465
        %5760 = vst.msk [vmem:[%s4593 + $0x68] sm:$0xff] %vm2248, %v5468
        %5761 = vst.msk [vmem:[%s4593 + $0x70] sm:$0xff] %vm2248, %v5471
        %5762 = vst.msk [vmem:[%s4593 + $0x78] sm:$0xff] %vm2248, %v5474
        %5763 = vst.msk [vmem:[%s4610] sm:$0xff] %vm2248, %v5521
        %5764 = vst.msk [vmem:[%s4610 + $0x8] sm:$0xff] %vm2248, %v5536
        %5765 = vst.msk [vmem:[%s4610 + $0x10] sm:$0xff] %vm2248, %v5551
        %5766 = vst.msk [vmem:[%s4610 + $0x18] sm:$0xff] %vm2248, %v5566
        %5767 = vst.msk [vmem:[%s4610 + $0x20] sm:$0xff] %vm2248, %v5581
        %5768 = vst.msk [vmem:[%s4610 + $0x28] sm:$0xff] %vm2248, %v5596
        %5769 = vst.msk [vmem:[%s4610 + $0x30] sm:$0xff] %vm2248, %v5611
        %5770 = vst.msk [vmem:[%s4610 + $0x38] sm:$0xff] %vm2248, %v5626
        %5771 = vst.msk [vmem:[%s4610 + $0x40] sm:$0xff] %vm2248, %v5641
        %5772 = vst.msk [vmem:[%s4610 + $0x48] sm:$0xff] %vm2248, %v5656
        %5773 = vst.msk [vmem:[%s4610 + $0x50] sm:$0xff] %vm2248, %v5671
        %5774 = vst.msk [vmem:[%s4610 + $0x58] sm:$0xff] %vm2248, %v5686
        %5775 = vst.msk [vmem:[%s4610 + $0x60] sm:$0xff] %vm2248, %v5701
        %5776 = vst.msk [vmem:[%s4610 + $0x68] sm:$0xff] %vm2248, %v5716
        %5777 = vst.msk [vmem:[%s4610 + $0x70] sm:$0xff] %vm2248, %v5731
        %5778 = vst.msk [vmem:[%s4610 + $0x78] sm:$0xff] %vm2248, %v5746
        %vm5779 = vcmp.eq.s32.totalorder %v385, %v5521
        %vm5780 = vcmp.eq.s32.totalorder %v385, %v5536
        %vm5781 = vcmp.eq.s32.totalorder %v385, %v5551
        %vm5782 = vcmp.eq.s32.totalorder %v385, %v5566
        %vm5783 = vcmp.eq.s32.totalorder %v385, %v5581
        %vm5784 = vcmp.eq.s32.totalorder %v385, %v5596
        %vm5785 = vcmp.eq.s32.totalorder %v385, %v5611
        %vm5786 = vcmp.eq.s32.totalorder %v385, %v5626
        %vm5787 = vcmp.eq.s32.totalorder %v385, %v5641
        %vm5788 = vcmp.eq.s32.totalorder %v385, %v5656
        %vm5789 = vcmp.eq.s32.totalorder %v385, %v5671
        %vm5790 = vcmp.eq.s32.totalorder %v385, %v5686
        %vm5791 = vcmp.eq.s32.totalorder %v385, %v5701
        %vm5792 = vcmp.eq.s32.totalorder %v385, %v5716
        %vm5793 = vcmp.eq.s32.totalorder %v385, %v5731
        %vm5794 = vcmp.eq.s32.totalorder %v385, %v5746
        %v5795 = vsel %vm5779, -inf, %v5411
        %v5796 = vsel %vm5780, -inf, %v5412
        %v5797 = vsel %vm5781, -inf, %v5413
        %v5798 = vsel %vm5782, -inf, %v5414
        %v5799 = vsel %vm5783, -inf, %v5415
        %v5800 = vsel %vm5784, -inf, %v5416
        %v5801 = vsel %vm5785, -inf, %v5417
        %v5802 = vsel %vm5786, -inf, %v5418
        %v5803 = vsel %vm5787, -inf, %v5419
        %v5804 = vsel %vm5788, -inf, %v5420
        %v5805 = vsel %vm5789, -inf, %v5421
        %v5806 = vsel %vm5790, -inf, %v5422
        %v5807 = vsel %vm5791, -inf, %v5423
        %v5808 = vsel %vm5792, -inf, %v5424
        %v5809 = vsel %vm5793, -inf, %v5425
        %v5810 = vsel %vm5794, -inf, %v5426
        %v5811 = vsel %vm580, %v5795, -inf
        %5812 = vmax.xlane.f32.xlu0 %v5811
        %v5813 = vpop.xlane.xlu0 %5812
        %v5814 = vsel %vm580, %v5796, -inf
        %5815 = vmax.xlane.f32.xlu0 %v5814
        %v5816 = vpop.xlane.xlu0 %5815
        %v5817 = vsel %vm580, %v5797, -inf
        %5818 = vmax.xlane.f32.xlu0 %v5817
        %v5819 = vpop.xlane.xlu0 %5818
        %v5820 = vsel %vm580, %v5798, -inf
        %5821 = vmax.xlane.f32.xlu0 %v5820
        %v5822 = vpop.xlane.xlu0 %5821
        %v5823 = vsel %vm580, %v5799, -inf
        %5824 = vmax.xlane.f32.xlu0 %v5823
        %v5825 = vpop.xlane.xlu0 %5824
        %v5826 = vsel %vm580, %v5800, -inf
        %5827 = vmax.xlane.f32.xlu0 %v5826
        %v5828 = vpop.xlane.xlu0 %5827
        %v5829 = vsel %vm580, %v5801, -inf
        %5830 = vmax.xlane.f32.xlu0 %v5829
        %v5831 = vpop.xlane.xlu0 %5830
        %v5832 = vsel %vm580, %v5802, -inf
        %5833 = vmax.xlane.f32.xlu0 %v5832
        %v5834 = vpop.xlane.xlu0 %5833
        %v5835 = vsel %vm580, %v5803, -inf
        %5836 = vmax.xlane.f32.xlu0 %v5835
        %v5837 = vpop.xlane.xlu0 %5836
        %v5838 = vsel %vm580, %v5804, -inf
        %5839 = vmax.xlane.f32.xlu0 %v5838
        %v5840 = vpop.xlane.xlu0 %5839
        %v5841 = vsel %vm580, %v5805, -inf
        %5842 = vmax.xlane.f32.xlu0 %v5841
        %v5843 = vpop.xlane.xlu0 %5842
        %v5844 = vsel %vm580, %v5806, -inf
        %5845 = vmax.xlane.f32.xlu0 %v5844
        %v5846 = vpop.xlane.xlu0 %5845
        %v5847 = vsel %vm580, %v5807, -inf
        %5848 = vmax.xlane.f32.xlu0 %v5847
        %v5849 = vpop.xlane.xlu0 %5848
        %v5850 = vsel %vm580, %v5808, -inf
        %5851 = vmax.xlane.f32.xlu0 %v5850
        %v5852 = vpop.xlane.xlu0 %5851
        %v5853 = vsel %vm580, %v5809, -inf
        %5854 = vmax.xlane.f32.xlu0 %v5853
        %v5855 = vpop.xlane.xlu0 %5854
        %v5856 = vsel %vm580, %v5810, -inf
        %5857 = vmax.xlane.f32.xlu0 %v5856
        %v5858 = vpop.xlane.xlu0 %5857
        %vm5859 = vcmp.eq.f32.partialorder %v5795, %v5813
        %vm5860 = vcmp.eq.f32.partialorder %v5796, %v5816
        %vm5861 = vcmp.eq.f32.partialorder %v5797, %v5819
        %vm5862 = vcmp.eq.f32.partialorder %v5798, %v5822
        %vm5863 = vcmp.eq.f32.partialorder %v5799, %v5825
        %vm5864 = vcmp.eq.f32.partialorder %v5800, %v5828
        %vm5865 = vcmp.eq.f32.partialorder %v5801, %v5831
        %vm5866 = vcmp.eq.f32.partialorder %v5802, %v5834
        %vm5867 = vcmp.eq.f32.partialorder %v5803, %v5837
        %vm5868 = vcmp.eq.f32.partialorder %v5804, %v5840
        %vm5869 = vcmp.eq.f32.partialorder %v5805, %v5843
        %vm5870 = vcmp.eq.f32.partialorder %v5806, %v5846
        %vm5871 = vcmp.eq.f32.partialorder %v5807, %v5849
        %vm5872 = vcmp.eq.f32.partialorder %v5808, %v5852
        %vm5873 = vcmp.eq.f32.partialorder %v5809, %v5855
        %vm5874 = vcmp.eq.f32.partialorder %v5810, %v5858
        %v5875 = vsel %vm5859, %v385, 16
        %v5876 = vsel %vm5860, %v385, 16
        %v5877 = vsel %vm5861, %v385, 16
        %v5878 = vsel %vm5862, %v385, 16
        %v5879 = vsel %vm5863, %v385, 16
        %v5880 = vsel %vm5864, %v385, 16
        %v5881 = vsel %vm5865, %v385, 16
        %v5882 = vsel %vm5866, %v385, 16
        %v5883 = vsel %vm5867, %v385, 16
        %v5884 = vsel %vm5868, %v385, 16
        %v5885 = vsel %vm5869, %v385, 16
        %v5886 = vsel %vm5870, %v385, 16
        %v5887 = vsel %vm5871, %v385, 16
        %v5888 = vsel %vm5872, %v385, 16
        %v5889 = vsel %vm5873, %v385, 16
        %v5890 = vsel %vm5874, %v385, 16
        %v5891 = vsel %vm580, %v5875, 2147483647
        %v5892 = vand.u32 %v5891, 65535
        %v5893 = vshra.s32 %v5891, 16
        %v5894 = vcvt.s32.f32 %v5892
        %v5895 = vcvt.s32.f32 %v5893
        %5896 = vmin.xlane.f32.xlu0 %v5895
        %v5897 = vpop.xlane.xlu0 %5896
        %vm5898 = vcmp.eq.f32.partialorder %v5895, %v5897
        %v5899 = vsel %vm5898, %v5894, inf
        %5900 = vmin.xlane.f32.xlu0 %v5899
        %v5901 = vpop.xlane.xlu0 %5900
        %v5902 = vcvt.f32.s32 %v5901
        %v5903 = vcvt.f32.s32 %v5897
        %v5904 = vshll.u32 %v5903, 16
        %v5905 = vadd.s32 %v5904, %v5902
        %v5906 = vsel %vm580, %v5876, 2147483647
        %v5907 = vand.u32 %v5906, 65535
        %v5908 = vshra.s32 %v5906, 16
        %v5909 = vcvt.s32.f32 %v5907
        %v5910 = vcvt.s32.f32 %v5908
        %5911 = vmin.xlane.f32.xlu0 %v5910
        %v5912 = vpop.xlane.xlu0 %5911
        %vm5913 = vcmp.eq.f32.partialorder %v5910, %v5912
        %v5914 = vsel %vm5913, %v5909, inf
        %5915 = vmin.xlane.f32.xlu0 %v5914
        %v5916 = vpop.xlane.xlu0 %5915
        %v5917 = vcvt.f32.s32 %v5916
        %v5918 = vcvt.f32.s32 %v5912
        %v5919 = vshll.u32 %v5918, 16
        %v5920 = vadd.s32 %v5919, %v5917
        %v5921 = vsel %vm580, %v5877, 2147483647
        %v5922 = vand.u32 %v5921, 65535
        %v5923 = vshra.s32 %v5921, 16
        %v5924 = vcvt.s32.f32 %v5922
        %v5925 = vcvt.s32.f32 %v5923
        %5926 = vmin.xlane.f32.xlu0 %v5925
        %v5927 = vpop.xlane.xlu0 %5926
        %vm5928 = vcmp.eq.f32.partialorder %v5925, %v5927
        %v5929 = vsel %vm5928, %v5924, inf
        %5930 = vmin.xlane.f32.xlu0 %v5929
        %v5931 = vpop.xlane.xlu0 %5930
        %v5932 = vcvt.f32.s32 %v5931
        %v5933 = vcvt.f32.s32 %v5927
        %v5934 = vshll.u32 %v5933, 16
        %v5935 = vadd.s32 %v5934, %v5932
        %v5936 = vsel %vm580, %v5878, 2147483647
        %v5937 = vand.u32 %v5936, 65535
        %v5938 = vshra.s32 %v5936, 16
        %v5939 = vcvt.s32.f32 %v5937
        %v5940 = vcvt.s32.f32 %v5938
        %5941 = vmin.xlane.f32.xlu0 %v5940
        %v5942 = vpop.xlane.xlu0 %5941
        %vm5943 = vcmp.eq.f32.partialorder %v5940, %v5942
        %v5944 = vsel %vm5943, %v5939, inf
        %5945 = vmin.xlane.f32.xlu0 %v5944
        %v5946 = vpop.xlane.xlu0 %5945
        %v5947 = vcvt.f32.s32 %v5946
        %v5948 = vcvt.f32.s32 %v5942
        %v5949 = vshll.u32 %v5948, 16
        %v5950 = vadd.s32 %v5949, %v5947
        %v5951 = vsel %vm580, %v5879, 2147483647
        %v5952 = vand.u32 %v5951, 65535
        %v5953 = vshra.s32 %v5951, 16
        %v5954 = vcvt.s32.f32 %v5952
        %v5955 = vcvt.s32.f32 %v5953
        %5956 = vmin.xlane.f32.xlu0 %v5955
        %v5957 = vpop.xlane.xlu0 %5956
        %vm5958 = vcmp.eq.f32.partialorder %v5955, %v5957
        %v5959 = vsel %vm5958, %v5954, inf
        %5960 = vmin.xlane.f32.xlu0 %v5959
        %v5961 = vpop.xlane.xlu0 %5960
        %v5962 = vcvt.f32.s32 %v5961
        %v5963 = vcvt.f32.s32 %v5957
        %v5964 = vshll.u32 %v5963, 16
        %v5965 = vadd.s32 %v5964, %v5962
        %v5966 = vsel %vm580, %v5880, 2147483647
        %v5967 = vand.u32 %v5966, 65535
        %v5968 = vshra.s32 %v5966, 16
        %v5969 = vcvt.s32.f32 %v5967
        %v5970 = vcvt.s32.f32 %v5968
        %5971 = vmin.xlane.f32.xlu0 %v5970
        %v5972 = vpop.xlane.xlu0 %5971
        %vm5973 = vcmp.eq.f32.partialorder %v5970, %v5972
        %v5974 = vsel %vm5973, %v5969, inf
        %5975 = vmin.xlane.f32.xlu0 %v5974
        %v5976 = vpop.xlane.xlu0 %5975
        %v5977 = vcvt.f32.s32 %v5976
        %v5978 = vcvt.f32.s32 %v5972
        %v5979 = vshll.u32 %v5978, 16
        %v5980 = vadd.s32 %v5979, %v5977
        %v5981 = vsel %vm580, %v5881, 2147483647
        %v5982 = vand.u32 %v5981, 65535
        %v5983 = vshra.s32 %v5981, 16
        %v5984 = vcvt.s32.f32 %v5982
        %v5985 = vcvt.s32.f32 %v5983
        %5986 = vmin.xlane.f32.xlu0 %v5985
        %v5987 = vpop.xlane.xlu0 %5986
        %vm5988 = vcmp.eq.f32.partialorder %v5985, %v5987
        %v5989 = vsel %vm5988, %v5984, inf
        %5990 = vmin.xlane.f32.xlu0 %v5989
        %v5991 = vpop.xlane.xlu0 %5990
        %v5992 = vcvt.f32.s32 %v5991
        %v5993 = vcvt.f32.s32 %v5987
        %v5994 = vshll.u32 %v5993, 16
        %v5995 = vadd.s32 %v5994, %v5992
        %v5996 = vsel %vm580, %v5882, 2147483647
        %v5997 = vand.u32 %v5996, 65535
        %v5998 = vshra.s32 %v5996, 16
        %v5999 = vcvt.s32.f32 %v5997
        %v6000 = vcvt.s32.f32 %v5998
        %6001 = vmin.xlane.f32.xlu0 %v6000
        %v6002 = vpop.xlane.xlu0 %6001
        %vm6003 = vcmp.eq.f32.partialorder %v6000, %v6002
        %v6004 = vsel %vm6003, %v5999, inf
        %6005 = vmin.xlane.f32.xlu0 %v6004
        %v6006 = vpop.xlane.xlu0 %6005
        %v6007 = vcvt.f32.s32 %v6006
        %v6008 = vcvt.f32.s32 %v6002
        %v6009 = vshll.u32 %v6008, 16
        %v6010 = vadd.s32 %v6009, %v6007
        %v6011 = vsel %vm580, %v5883, 2147483647
        %v6012 = vand.u32 %v6011, 65535
        %v6013 = vshra.s32 %v6011, 16
        %v6014 = vcvt.s32.f32 %v6012
        %v6015 = vcvt.s32.f32 %v6013
        %6016 = vmin.xlane.f32.xlu0 %v6015
        %v6017 = vpop.xlane.xlu0 %6016
        %vm6018 = vcmp.eq.f32.partialorder %v6015, %v6017
        %v6019 = vsel %vm6018, %v6014, inf
        %6020 = vmin.xlane.f32.xlu0 %v6019
        %v6021 = vpop.xlane.xlu0 %6020
        %v6022 = vcvt.f32.s32 %v6021
        %v6023 = vcvt.f32.s32 %v6017
        %v6024 = vshll.u32 %v6023, 16
        %v6025 = vadd.s32 %v6024, %v6022
        %v6026 = vsel %vm580, %v5884, 2147483647
        %v6027 = vand.u32 %v6026, 65535
        %v6028 = vshra.s32 %v6026, 16
        %v6029 = vcvt.s32.f32 %v6027
        %v6030 = vcvt.s32.f32 %v6028
        %6031 = vmin.xlane.f32.xlu0 %v6030
        %v6032 = vpop.xlane.xlu0 %6031
        %vm6033 = vcmp.eq.f32.partialorder %v6030, %v6032
        %v6034 = vsel %vm6033, %v6029, inf
        %6035 = vmin.xlane.f32.xlu0 %v6034
        %v6036 = vpop.xlane.xlu0 %6035
        %v6037 = vcvt.f32.s32 %v6036
        %v6038 = vcvt.f32.s32 %v6032
        %v6039 = vshll.u32 %v6038, 16
        %v6040 = vadd.s32 %v6039, %v6037
        %v6041 = vsel %vm580, %v5885, 2147483647
        %v6042 = vand.u32 %v6041, 65535
        %v6043 = vshra.s32 %v6041, 16
        %v6044 = vcvt.s32.f32 %v6042
        %v6045 = vcvt.s32.f32 %v6043
        %6046 = vmin.xlane.f32.xlu0 %v6045
        %v6047 = vpop.xlane.xlu0 %6046
        %vm6048 = vcmp.eq.f32.partialorder %v6045, %v6047
        %v6049 = vsel %vm6048, %v6044, inf
        %6050 = vmin.xlane.f32.xlu0 %v6049
        %v6051 = vpop.xlane.xlu0 %6050
        %v6052 = vcvt.f32.s32 %v6051
        %v6053 = vcvt.f32.s32 %v6047
        %v6054 = vshll.u32 %v6053, 16
        %v6055 = vadd.s32 %v6054, %v6052
        %v6056 = vsel %vm580, %v5886, 2147483647
        %v6057 = vand.u32 %v6056, 65535
        %v6058 = vshra.s32 %v6056, 16
        %v6059 = vcvt.s32.f32 %v6057
        %v6060 = vcvt.s32.f32 %v6058
        %6061 = vmin.xlane.f32.xlu0 %v6060
        %v6062 = vpop.xlane.xlu0 %6061
        %vm6063 = vcmp.eq.f32.partialorder %v6060, %v6062
        %v6064 = vsel %vm6063, %v6059, inf
        %6065 = vmin.xlane.f32.xlu0 %v6064
        %v6066 = vpop.xlane.xlu0 %6065
        %v6067 = vcvt.f32.s32 %v6066
        %v6068 = vcvt.f32.s32 %v6062
        %v6069 = vshll.u32 %v6068, 16
        %v6070 = vadd.s32 %v6069, %v6067
        %v6071 = vsel %vm580, %v5887, 2147483647
        %v6072 = vand.u32 %v6071, 65535
        %v6073 = vshra.s32 %v6071, 16
        %v6074 = vcvt.s32.f32 %v6072
        %v6075 = vcvt.s32.f32 %v6073
        %6076 = vmin.xlane.f32.xlu0 %v6075
        %v6077 = vpop.xlane.xlu0 %6076
        %vm6078 = vcmp.eq.f32.partialorder %v6075, %v6077
        %v6079 = vsel %vm6078, %v6074, inf
        %6080 = vmin.xlane.f32.xlu0 %v6079
        %v6081 = vpop.xlane.xlu0 %6080
        %v6082 = vcvt.f32.s32 %v6081
        %v6083 = vcvt.f32.s32 %v6077
        %v6084 = vshll.u32 %v6083, 16
        %v6085 = vadd.s32 %v6084, %v6082
        %v6086 = vsel %vm580, %v5888, 2147483647
        %v6087 = vand.u32 %v6086, 65535
        %v6088 = vshra.s32 %v6086, 16
        %v6089 = vcvt.s32.f32 %v6087
        %v6090 = vcvt.s32.f32 %v6088
        %6091 = vmin.xlane.f32.xlu0 %v6090
        %v6092 = vpop.xlane.xlu0 %6091
        %vm6093 = vcmp.eq.f32.partialorder %v6090, %v6092
        %v6094 = vsel %vm6093, %v6089, inf
        %6095 = vmin.xlane.f32.xlu0 %v6094
        %v6096 = vpop.xlane.xlu0 %6095
        %v6097 = vcvt.f32.s32 %v6096
        %v6098 = vcvt.f32.s32 %v6092
        %v6099 = vshll.u32 %v6098, 16
        %v6100 = vadd.s32 %v6099, %v6097
        %v6101 = vsel %vm580, %v5889, 2147483647
        %v6102 = vand.u32 %v6101, 65535
        %v6103 = vshra.s32 %v6101, 16
        %v6104 = vcvt.s32.f32 %v6102
        %v6105 = vcvt.s32.f32 %v6103
        %6106 = vmin.xlane.f32.xlu0 %v6105
        %v6107 = vpop.xlane.xlu0 %6106
        %vm6108 = vcmp.eq.f32.partialorder %v6105, %v6107
        %v6109 = vsel %vm6108, %v6104, inf
        %6110 = vmin.xlane.f32.xlu0 %v6109
        %v6111 = vpop.xlane.xlu0 %6110
        %v6112 = vcvt.f32.s32 %v6111
        %v6113 = vcvt.f32.s32 %v6107
        %v6114 = vshll.u32 %v6113, 16
        %v6115 = vadd.s32 %v6114, %v6112
        %v6116 = vsel %vm580, %v5890, 2147483647
        %v6117 = vand.u32 %v6116, 65535
        %v6118 = vshra.s32 %v6116, 16
        %v6119 = vcvt.s32.f32 %v6117
        %v6120 = vcvt.s32.f32 %v6118
        %6121 = vmin.xlane.f32.xlu0 %v6120
        %v6122 = vpop.xlane.xlu0 %6121
        %vm6123 = vcmp.eq.f32.partialorder %v6120, %v6122
        %v6124 = vsel %vm6123, %v6119, inf
        %6125 = vmin.xlane.f32.xlu0 %v6124
        %v6126 = vpop.xlane.xlu0 %6125
        %v6127 = vcvt.f32.s32 %v6126
        %v6128 = vcvt.f32.s32 %v6122
        %v6129 = vshll.u32 %v6128, 16
        %v6130 = vadd.s32 %v6129, %v6127
        %6131 = vst.msk [vmem:[%s4593] sm:$0xff] %vm2633, %v5813
        %6132 = vst.msk [vmem:[%s4593 + $0x8] sm:$0xff] %vm2633, %v5816
        %6133 = vst.msk [vmem:[%s4593 + $0x10] sm:$0xff] %vm2633, %v5819
        %6134 = vst.msk [vmem:[%s4593 + $0x18] sm:$0xff] %vm2633, %v5822
        %6135 = vst.msk [vmem:[%s4593 + $0x20] sm:$0xff] %vm2633, %v5825
        %6136 = vst.msk [vmem:[%s4593 + $0x28] sm:$0xff] %vm2633, %v5828
        %6137 = vst.msk [vmem:[%s4593 + $0x30] sm:$0xff] %vm2633, %v5831
        %6138 = vst.msk [vmem:[%s4593 + $0x38] sm:$0xff] %vm2633, %v5834
        %6139 = vst.msk [vmem:[%s4593 + $0x40] sm:$0xff] %vm2633, %v5837
        %6140 = vst.msk [vmem:[%s4593 + $0x48] sm:$0xff] %vm2633, %v5840
        %6141 = vst.msk [vmem:[%s4593 + $0x50] sm:$0xff] %vm2633, %v5843
        %6142 = vst.msk [vmem:[%s4593 + $0x58] sm:$0xff] %vm2633, %v5846
        %6143 = vst.msk [vmem:[%s4593 + $0x60] sm:$0xff] %vm2633, %v5849
        %6144 = vst.msk [vmem:[%s4593 + $0x68] sm:$0xff] %vm2633, %v5852
        %6145 = vst.msk [vmem:[%s4593 + $0x70] sm:$0xff] %vm2633, %v5855
        %6146 = vst.msk [vmem:[%s4593 + $0x78] sm:$0xff] %vm2633, %v5858
        %6147 = vst.msk [vmem:[%s4610] sm:$0xff] %vm2633, %v5905
        %6148 = vst.msk [vmem:[%s4610 + $0x8] sm:$0xff] %vm2633, %v5920
        %6149 = vst.msk [vmem:[%s4610 + $0x10] sm:$0xff] %vm2633, %v5935
        %6150 = vst.msk [vmem:[%s4610 + $0x18] sm:$0xff] %vm2633, %v5950
        %6151 = vst.msk [vmem:[%s4610 + $0x20] sm:$0xff] %vm2633, %v5965
        %6152 = vst.msk [vmem:[%s4610 + $0x28] sm:$0xff] %vm2633, %v5980
        %6153 = vst.msk [vmem:[%s4610 + $0x30] sm:$0xff] %vm2633, %v5995
        %6154 = vst.msk [vmem:[%s4610 + $0x38] sm:$0xff] %vm2633, %v6010
        %6155 = vst.msk [vmem:[%s4610 + $0x40] sm:$0xff] %vm2633, %v6025
        %6156 = vst.msk [vmem:[%s4610 + $0x48] sm:$0xff] %vm2633, %v6040
        %6157 = vst.msk [vmem:[%s4610 + $0x50] sm:$0xff] %vm2633, %v6055
        %6158 = vst.msk [vmem:[%s4610 + $0x58] sm:$0xff] %vm2633, %v6070
        %6159 = vst.msk [vmem:[%s4610 + $0x60] sm:$0xff] %vm2633, %v6085
        %6160 = vst.msk [vmem:[%s4610 + $0x68] sm:$0xff] %vm2633, %v6100
        %6161 = vst.msk [vmem:[%s4610 + $0x70] sm:$0xff] %vm2633, %v6115
        %6162 = vst.msk [vmem:[%s4610 + $0x78] sm:$0xff] %vm2633, %v6130
        %vm6163 = vcmp.eq.s32.totalorder %v385, %v5905
        %vm6164 = vcmp.eq.s32.totalorder %v385, %v5920
        %vm6165 = vcmp.eq.s32.totalorder %v385, %v5935
        %vm6166 = vcmp.eq.s32.totalorder %v385, %v5950
        %vm6167 = vcmp.eq.s32.totalorder %v385, %v5965
        %vm6168 = vcmp.eq.s32.totalorder %v385, %v5980
        %vm6169 = vcmp.eq.s32.totalorder %v385, %v5995
        %vm6170 = vcmp.eq.s32.totalorder %v385, %v6010
        %vm6171 = vcmp.eq.s32.totalorder %v385, %v6025
        %vm6172 = vcmp.eq.s32.totalorder %v385, %v6040
        %vm6173 = vcmp.eq.s32.totalorder %v385, %v6055
        %vm6174 = vcmp.eq.s32.totalorder %v385, %v6070
        %vm6175 = vcmp.eq.s32.totalorder %v385, %v6085
        %vm6176 = vcmp.eq.s32.totalorder %v385, %v6100
        %vm6177 = vcmp.eq.s32.totalorder %v385, %v6115
        %vm6178 = vcmp.eq.s32.totalorder %v385, %v6130
        %v6179 = vsel %vm6163, -inf, %v5795
        %v6180 = vsel %vm6164, -inf, %v5796
        %v6181 = vsel %vm6165, -inf, %v5797
        %v6182 = vsel %vm6166, -inf, %v5798
        %v6183 = vsel %vm6167, -inf, %v5799
        %v6184 = vsel %vm6168, -inf, %v5800
        %v6185 = vsel %vm6169, -inf, %v5801
        %v6186 = vsel %vm6170, -inf, %v5802
        %v6187 = vsel %vm6171, -inf, %v5803
        %v6188 = vsel %vm6172, -inf, %v5804
        %v6189 = vsel %vm6173, -inf, %v5805
        %v6190 = vsel %vm6174, -inf, %v5806
        %v6191 = vsel %vm6175, -inf, %v5807
        %v6192 = vsel %vm6176, -inf, %v5808
        %v6193 = vsel %vm6177, -inf, %v5809
        %v6194 = vsel %vm6178, -inf, %v5810
        %v6195 = vsel %vm580, %v6179, -inf
        %6196 = vmax.xlane.f32.xlu0 %v6195
        %v6197 = vpop.xlane.xlu0 %6196
        %v6198 = vsel %vm580, %v6180, -inf
        %6199 = vmax.xlane.f32.xlu0 %v6198
        %v6200 = vpop.xlane.xlu0 %6199
        %v6201 = vsel %vm580, %v6181, -inf
        %6202 = vmax.xlane.f32.xlu0 %v6201
        %v6203 = vpop.xlane.xlu0 %6202
        %v6204 = vsel %vm580, %v6182, -inf
        %6205 = vmax.xlane.f32.xlu0 %v6204
        %v6206 = vpop.xlane.xlu0 %6205
        %v6207 = vsel %vm580, %v6183, -inf
        %6208 = vmax.xlane.f32.xlu0 %v6207
        %v6209 = vpop.xlane.xlu0 %6208
        %v6210 = vsel %vm580, %v6184, -inf
        %6211 = vmax.xlane.f32.xlu0 %v6210
        %v6212 = vpop.xlane.xlu0 %6211
        %v6213 = vsel %vm580, %v6185, -inf
        %6214 = vmax.xlane.f32.xlu0 %v6213
        %v6215 = vpop.xlane.xlu0 %6214
        %v6216 = vsel %vm580, %v6186, -inf
        %6217 = vmax.xlane.f32.xlu0 %v6216
        %v6218 = vpop.xlane.xlu0 %6217
        %v6219 = vsel %vm580, %v6187, -inf
        %6220 = vmax.xlane.f32.xlu0 %v6219
        %v6221 = vpop.xlane.xlu0 %6220
        %v6222 = vsel %vm580, %v6188, -inf
        %6223 = vmax.xlane.f32.xlu0 %v6222
        %v6224 = vpop.xlane.xlu0 %6223
        %v6225 = vsel %vm580, %v6189, -inf
        %6226 = vmax.xlane.f32.xlu0 %v6225
        %v6227 = vpop.xlane.xlu0 %6226
        %v6228 = vsel %vm580, %v6190, -inf
        %6229 = vmax.xlane.f32.xlu0 %v6228
        %v6230 = vpop.xlane.xlu0 %6229
        %v6231 = vsel %vm580, %v6191, -inf
        %6232 = vmax.xlane.f32.xlu0 %v6231
        %v6233 = vpop.xlane.xlu0 %6232
        %v6234 = vsel %vm580, %v6192, -inf
        %6235 = vmax.xlane.f32.xlu0 %v6234
        %v6236 = vpop.xlane.xlu0 %6235
        %v6237 = vsel %vm580, %v6193, -inf
        %6238 = vmax.xlane.f32.xlu0 %v6237
        %v6239 = vpop.xlane.xlu0 %6238
        %v6240 = vsel %vm580, %v6194, -inf
        %6241 = vmax.xlane.f32.xlu0 %v6240
        %v6242 = vpop.xlane.xlu0 %6241
        %vm6243 = vcmp.eq.f32.partialorder %v6179, %v6197
        %vm6244 = vcmp.eq.f32.partialorder %v6180, %v6200
        %vm6245 = vcmp.eq.f32.partialorder %v6181, %v6203
        %vm6246 = vcmp.eq.f32.partialorder %v6182, %v6206
        %vm6247 = vcmp.eq.f32.partialorder %v6183, %v6209
        %vm6248 = vcmp.eq.f32.partialorder %v6184, %v6212
        %vm6249 = vcmp.eq.f32.partialorder %v6185, %v6215
        %vm6250 = vcmp.eq.f32.partialorder %v6186, %v6218
        %vm6251 = vcmp.eq.f32.partialorder %v6187, %v6221
        %vm6252 = vcmp.eq.f32.partialorder %v6188, %v6224
        %vm6253 = vcmp.eq.f32.partialorder %v6189, %v6227
        %vm6254 = vcmp.eq.f32.partialorder %v6190, %v6230
        %vm6255 = vcmp.eq.f32.partialorder %v6191, %v6233
        %vm6256 = vcmp.eq.f32.partialorder %v6192, %v6236
        %vm6257 = vcmp.eq.f32.partialorder %v6193, %v6239
        %vm6258 = vcmp.eq.f32.partialorder %v6194, %v6242
        %v6259 = vsel %vm6243, %v385, 16
        %v6260 = vsel %vm6244, %v385, 16
        %v6261 = vsel %vm6245, %v385, 16
        %v6262 = vsel %vm6246, %v385, 16
        %v6263 = vsel %vm6247, %v385, 16
        %v6264 = vsel %vm6248, %v385, 16
        %v6265 = vsel %vm6249, %v385, 16
        %v6266 = vsel %vm6250, %v385, 16
        %v6267 = vsel %vm6251, %v385, 16
        %v6268 = vsel %vm6252, %v385, 16
        %v6269 = vsel %vm6253, %v385, 16
        %v6270 = vsel %vm6254, %v385, 16
        %v6271 = vsel %vm6255, %v385, 16
        %v6272 = vsel %vm6256, %v385, 16
        %v6273 = vsel %vm6257, %v385, 16
        %v6274 = vsel %vm6258, %v385, 16
        %v6275 = vsel %vm580, %v6259, 2147483647
        %v6276 = vand.u32 %v6275, 65535
        %v6277 = vshra.s32 %v6275, 16
        %v6278 = vcvt.s32.f32 %v6276
        %v6279 = vcvt.s32.f32 %v6277
        %6280 = vmin.xlane.f32.xlu0 %v6279
        %v6281 = vpop.xlane.xlu0 %6280
        %vm6282 = vcmp.eq.f32.partialorder %v6279, %v6281
        %v6283 = vsel %vm6282, %v6278, inf
        %6284 = vmin.xlane.f32.xlu0 %v6283
        %v6285 = vpop.xlane.xlu0 %6284
        %v6286 = vcvt.f32.s32 %v6285
        %v6287 = vcvt.f32.s32 %v6281
        %v6288 = vshll.u32 %v6287, 16
        %v6289 = vadd.s32 %v6288, %v6286
        %v6290 = vsel %vm580, %v6260, 2147483647
        %v6291 = vand.u32 %v6290, 65535
        %v6292 = vshra.s32 %v6290, 16
        %v6293 = vcvt.s32.f32 %v6291
        %v6294 = vcvt.s32.f32 %v6292
        %6295 = vmin.xlane.f32.xlu0 %v6294
        %v6296 = vpop.xlane.xlu0 %6295
        %vm6297 = vcmp.eq.f32.partialorder %v6294, %v6296
        %v6298 = vsel %vm6297, %v6293, inf
        %6299 = vmin.xlane.f32.xlu0 %v6298
        %v6300 = vpop.xlane.xlu0 %6299
        %v6301 = vcvt.f32.s32 %v6300
        %v6302 = vcvt.f32.s32 %v6296
        %v6303 = vshll.u32 %v6302, 16
        %v6304 = vadd.s32 %v6303, %v6301
        %v6305 = vsel %vm580, %v6261, 2147483647
        %v6306 = vand.u32 %v6305, 65535
        %v6307 = vshra.s32 %v6305, 16
        %v6308 = vcvt.s32.f32 %v6306
        %v6309 = vcvt.s32.f32 %v6307
        %6310 = vmin.xlane.f32.xlu0 %v6309
        %v6311 = vpop.xlane.xlu0 %6310
        %vm6312 = vcmp.eq.f32.partialorder %v6309, %v6311
        %v6313 = vsel %vm6312, %v6308, inf
        %6314 = vmin.xlane.f32.xlu0 %v6313
        %v6315 = vpop.xlane.xlu0 %6314
        %v6316 = vcvt.f32.s32 %v6315
        %v6317 = vcvt.f32.s32 %v6311
        %v6318 = vshll.u32 %v6317, 16
        %v6319 = vadd.s32 %v6318, %v6316
        %v6320 = vsel %vm580, %v6262, 2147483647
        %v6321 = vand.u32 %v6320, 65535
        %v6322 = vshra.s32 %v6320, 16
        %v6323 = vcvt.s32.f32 %v6321
        %v6324 = vcvt.s32.f32 %v6322
        %6325 = vmin.xlane.f32.xlu0 %v6324
        %v6326 = vpop.xlane.xlu0 %6325
        %vm6327 = vcmp.eq.f32.partialorder %v6324, %v6326
        %v6328 = vsel %vm6327, %v6323, inf
        %6329 = vmin.xlane.f32.xlu0 %v6328
        %v6330 = vpop.xlane.xlu0 %6329
        %v6331 = vcvt.f32.s32 %v6330
        %v6332 = vcvt.f32.s32 %v6326
        %v6333 = vshll.u32 %v6332, 16
        %v6334 = vadd.s32 %v6333, %v6331
        %v6335 = vsel %vm580, %v6263, 2147483647
        %v6336 = vand.u32 %v6335, 65535
        %v6337 = vshra.s32 %v6335, 16
        %v6338 = vcvt.s32.f32 %v6336
        %v6339 = vcvt.s32.f32 %v6337
        %6340 = vmin.xlane.f32.xlu0 %v6339
        %v6341 = vpop.xlane.xlu0 %6340
        %vm6342 = vcmp.eq.f32.partialorder %v6339, %v6341
        %v6343 = vsel %vm6342, %v6338, inf
        %6344 = vmin.xlane.f32.xlu0 %v6343
        %v6345 = vpop.xlane.xlu0 %6344
        %v6346 = vcvt.f32.s32 %v6345
        %v6347 = vcvt.f32.s32 %v6341
        %v6348 = vshll.u32 %v6347, 16
        %v6349 = vadd.s32 %v6348, %v6346
        %v6350 = vsel %vm580, %v6264, 2147483647
        %v6351 = vand.u32 %v6350, 65535
        %v6352 = vshra.s32 %v6350, 16
        %v6353 = vcvt.s32.f32 %v6351
        %v6354 = vcvt.s32.f32 %v6352
        %6355 = vmin.xlane.f32.xlu0 %v6354
        %v6356 = vpop.xlane.xlu0 %6355
        %vm6357 = vcmp.eq.f32.partialorder %v6354, %v6356
        %v6358 = vsel %vm6357, %v6353, inf
        %6359 = vmin.xlane.f32.xlu0 %v6358
        %v6360 = vpop.xlane.xlu0 %6359
        %v6361 = vcvt.f32.s32 %v6360
        %v6362 = vcvt.f32.s32 %v6356
        %v6363 = vshll.u32 %v6362, 16
        %v6364 = vadd.s32 %v6363, %v6361
        %v6365 = vsel %vm580, %v6265, 2147483647
        %v6366 = vand.u32 %v6365, 65535
        %v6367 = vshra.s32 %v6365, 16
        %v6368 = vcvt.s32.f32 %v6366
        %v6369 = vcvt.s32.f32 %v6367
        %6370 = vmin.xlane.f32.xlu0 %v6369
        %v6371 = vpop.xlane.xlu0 %6370
        %vm6372 = vcmp.eq.f32.partialorder %v6369, %v6371
        %v6373 = vsel %vm6372, %v6368, inf
        %6374 = vmin.xlane.f32.xlu0 %v6373
        %v6375 = vpop.xlane.xlu0 %6374
        %v6376 = vcvt.f32.s32 %v6375
        %v6377 = vcvt.f32.s32 %v6371
        %v6378 = vshll.u32 %v6377, 16
        %v6379 = vadd.s32 %v6378, %v6376
        %v6380 = vsel %vm580, %v6266, 2147483647
        %v6381 = vand.u32 %v6380, 65535
        %v6382 = vshra.s32 %v6380, 16
        %v6383 = vcvt.s32.f32 %v6381
        %v6384 = vcvt.s32.f32 %v6382
        %6385 = vmin.xlane.f32.xlu0 %v6384
        %v6386 = vpop.xlane.xlu0 %6385
        %vm6387 = vcmp.eq.f32.partialorder %v6384, %v6386
        %v6388 = vsel %vm6387, %v6383, inf
        %6389 = vmin.xlane.f32.xlu0 %v6388
        %v6390 = vpop.xlane.xlu0 %6389
        %v6391 = vcvt.f32.s32 %v6390
        %v6392 = vcvt.f32.s32 %v6386
        %v6393 = vshll.u32 %v6392, 16
        %v6394 = vadd.s32 %v6393, %v6391
        %v6395 = vsel %vm580, %v6267, 2147483647
        %v6396 = vand.u32 %v6395, 65535
        %v6397 = vshra.s32 %v6395, 16
        %v6398 = vcvt.s32.f32 %v6396
        %v6399 = vcvt.s32.f32 %v6397
        %6400 = vmin.xlane.f32.xlu0 %v6399
        %v6401 = vpop.xlane.xlu0 %6400
        %vm6402 = vcmp.eq.f32.partialorder %v6399, %v6401
        %v6403 = vsel %vm6402, %v6398, inf
        %6404 = vmin.xlane.f32.xlu0 %v6403
        %v6405 = vpop.xlane.xlu0 %6404
        %v6406 = vcvt.f32.s32 %v6405
        %v6407 = vcvt.f32.s32 %v6401
        %v6408 = vshll.u32 %v6407, 16
        %v6409 = vadd.s32 %v6408, %v6406
        %v6410 = vsel %vm580, %v6268, 2147483647
        %v6411 = vand.u32 %v6410, 65535
        %v6412 = vshra.s32 %v6410, 16
        %v6413 = vcvt.s32.f32 %v6411
        %v6414 = vcvt.s32.f32 %v6412
        %6415 = vmin.xlane.f32.xlu0 %v6414
        %v6416 = vpop.xlane.xlu0 %6415
        %vm6417 = vcmp.eq.f32.partialorder %v6414, %v6416
        %v6418 = vsel %vm6417, %v6413, inf
        %6419 = vmin.xlane.f32.xlu0 %v6418
        %v6420 = vpop.xlane.xlu0 %6419
        %v6421 = vcvt.f32.s32 %v6420
        %v6422 = vcvt.f32.s32 %v6416
        %v6423 = vshll.u32 %v6422, 16
        %v6424 = vadd.s32 %v6423, %v6421
        %v6425 = vsel %vm580, %v6269, 2147483647
        %v6426 = vand.u32 %v6425, 65535
        %v6427 = vshra.s32 %v6425, 16
        %v6428 = vcvt.s32.f32 %v6426
        %v6429 = vcvt.s32.f32 %v6427
        %6430 = vmin.xlane.f32.xlu0 %v6429
        %v6431 = vpop.xlane.xlu0 %6430
        %vm6432 = vcmp.eq.f32.partialorder %v6429, %v6431
        %v6433 = vsel %vm6432, %v6428, inf
        %6434 = vmin.xlane.f32.xlu0 %v6433
        %v6435 = vpop.xlane.xlu0 %6434
        %v6436 = vcvt.f32.s32 %v6435
        %v6437 = vcvt.f32.s32 %v6431
        %v6438 = vshll.u32 %v6437, 16
        %v6439 = vadd.s32 %v6438, %v6436
        %v6440 = vsel %vm580, %v6270, 2147483647
        %v6441 = vand.u32 %v6440, 65535
        %v6442 = vshra.s32 %v6440, 16
        %v6443 = vcvt.s32.f32 %v6441
        %v6444 = vcvt.s32.f32 %v6442
        %6445 = vmin.xlane.f32.xlu0 %v6444
        %v6446 = vpop.xlane.xlu0 %6445
        %vm6447 = vcmp.eq.f32.partialorder %v6444, %v6446
        %v6448 = vsel %vm6447, %v6443, inf
        %6449 = vmin.xlane.f32.xlu0 %v6448
        %v6450 = vpop.xlane.xlu0 %6449
        %v6451 = vcvt.f32.s32 %v6450
        %v6452 = vcvt.f32.s32 %v6446
        %v6453 = vshll.u32 %v6452, 16
        %v6454 = vadd.s32 %v6453, %v6451
        %v6455 = vsel %vm580, %v6271, 2147483647
        %v6456 = vand.u32 %v6455, 65535
        %v6457 = vshra.s32 %v6455, 16
        %v6458 = vcvt.s32.f32 %v6456
        %v6459 = vcvt.s32.f32 %v6457
        %6460 = vmin.xlane.f32.xlu0 %v6459
        %v6461 = vpop.xlane.xlu0 %6460
        %vm6462 = vcmp.eq.f32.partialorder %v6459, %v6461
        %v6463 = vsel %vm6462, %v6458, inf
        %6464 = vmin.xlane.f32.xlu0 %v6463
        %v6465 = vpop.xlane.xlu0 %6464
        %v6466 = vcvt.f32.s32 %v6465
        %v6467 = vcvt.f32.s32 %v6461
        %v6468 = vshll.u32 %v6467, 16
        %v6469 = vadd.s32 %v6468, %v6466
        %v6470 = vsel %vm580, %v6272, 2147483647
        %v6471 = vand.u32 %v6470, 65535
        %v6472 = vshra.s32 %v6470, 16
        %v6473 = vcvt.s32.f32 %v6471
        %v6474 = vcvt.s32.f32 %v6472
        %6475 = vmin.xlane.f32.xlu0 %v6474
        %v6476 = vpop.xlane.xlu0 %6475
        %vm6477 = vcmp.eq.f32.partialorder %v6474, %v6476
        %v6478 = vsel %vm6477, %v6473, inf
        %6479 = vmin.xlane.f32.xlu0 %v6478
        %v6480 = vpop.xlane.xlu0 %6479
        %v6481 = vcvt.f32.s32 %v6480
        %v6482 = vcvt.f32.s32 %v6476
        %v6483 = vshll.u32 %v6482, 16
        %v6484 = vadd.s32 %v6483, %v6481
        %v6485 = vsel %vm580, %v6273, 2147483647
        %v6486 = vand.u32 %v6485, 65535
        %v6487 = vshra.s32 %v6485, 16
        %v6488 = vcvt.s32.f32 %v6486
        %v6489 = vcvt.s32.f32 %v6487
        %6490 = vmin.xlane.f32.xlu0 %v6489
        %v6491 = vpop.xlane.xlu0 %6490
        %vm6492 = vcmp.eq.f32.partialorder %v6489, %v6491
        %v6493 = vsel %vm6492, %v6488, inf
        %6494 = vmin.xlane.f32.xlu0 %v6493
        %v6495 = vpop.xlane.xlu0 %6494
        %v6496 = vcvt.f32.s32 %v6495
        %v6497 = vcvt.f32.s32 %v6491
        %v6498 = vshll.u32 %v6497, 16
        %v6499 = vadd.s32 %v6498, %v6496
        %v6500 = vsel %vm580, %v6274, 2147483647
        %v6501 = vand.u32 %v6500, 65535
        %v6502 = vshra.s32 %v6500, 16
        %v6503 = vcvt.s32.f32 %v6501
        %v6504 = vcvt.s32.f32 %v6502
        %6505 = vmin.xlane.f32.xlu0 %v6504
        %v6506 = vpop.xlane.xlu0 %6505
        %vm6507 = vcmp.eq.f32.partialorder %v6504, %v6506
        %v6508 = vsel %vm6507, %v6503, inf
        %6509 = vmin.xlane.f32.xlu0 %v6508
        %v6510 = vpop.xlane.xlu0 %6509
        %v6511 = vcvt.f32.s32 %v6510
        %v6512 = vcvt.f32.s32 %v6506
        %v6513 = vshll.u32 %v6512, 16
        %v6514 = vadd.s32 %v6513, %v6511
        %6515 = vst.msk [vmem:[%s4593] sm:$0xff] %vm3018, %v6197
        %6516 = vst.msk [vmem:[%s4593 + $0x8] sm:$0xff] %vm3018, %v6200
        %6517 = vst.msk [vmem:[%s4593 + $0x10] sm:$0xff] %vm3018, %v6203
        %6518 = vst.msk [vmem:[%s4593 + $0x18] sm:$0xff] %vm3018, %v6206
        %6519 = vst.msk [vmem:[%s4593 + $0x20] sm:$0xff] %vm3018, %v6209
        %6520 = vst.msk [vmem:[%s4593 + $0x28] sm:$0xff] %vm3018, %v6212
        %6521 = vst.msk [vmem:[%s4593 + $0x30] sm:$0xff] %vm3018, %v6215
        %6522 = vst.msk [vmem:[%s4593 + $0x38] sm:$0xff] %vm3018, %v6218
        %6523 = vst.msk [vmem:[%s4593 + $0x40] sm:$0xff] %vm3018, %v6221
        %6524 = vst.msk [vmem:[%s4593 + $0x48] sm:$0xff] %vm3018, %v6224
        %6525 = vst.msk [vmem:[%s4593 + $0x50] sm:$0xff] %vm3018, %v6227
        %6526 = vst.msk [vmem:[%s4593 + $0x58] sm:$0xff] %vm3018, %v6230
        %6527 = vst.msk [vmem:[%s4593 + $0x60] sm:$0xff] %vm3018, %v6233
        %6528 = vst.msk [vmem:[%s4593 + $0x68] sm:$0xff] %vm3018, %v6236
        %6529 = vst.msk [vmem:[%s4593 + $0x70] sm:$0xff] %vm3018, %v6239
        %6530 = vst.msk [vmem:[%s4593 + $0x78] sm:$0xff] %vm3018, %v6242
        %6531 = vst.msk [vmem:[%s4610] sm:$0xff] %vm3018, %v6289
        %6532 = vst.msk [vmem:[%s4610 + $0x8] sm:$0xff] %vm3018, %v6304
        %6533 = vst.msk [vmem:[%s4610 + $0x10] sm:$0xff] %vm3018, %v6319
        %6534 = vst.msk [vmem:[%s4610 + $0x18] sm:$0xff] %vm3018, %v6334
        %6535 = vst.msk [vmem:[%s4610 + $0x20] sm:$0xff] %vm3018, %v6349
        %6536 = vst.msk [vmem:[%s4610 + $0x28] sm:$0xff] %vm3018, %v6364
        %6537 = vst.msk [vmem:[%s4610 + $0x30] sm:$0xff] %vm3018, %v6379
        %6538 = vst.msk [vmem:[%s4610 + $0x38] sm:$0xff] %vm3018, %v6394
        %6539 = vst.msk [vmem:[%s4610 + $0x40] sm:$0xff] %vm3018, %v6409
        %6540 = vst.msk [vmem:[%s4610 + $0x48] sm:$0xff] %vm3018, %v6424
        %6541 = vst.msk [vmem:[%s4610 + $0x50] sm:$0xff] %vm3018, %v6439
        %6542 = vst.msk [vmem:[%s4610 + $0x58] sm:$0xff] %vm3018, %v6454
        %6543 = vst.msk [vmem:[%s4610 + $0x60] sm:$0xff] %vm3018, %v6469
        %6544 = vst.msk [vmem:[%s4610 + $0x68] sm:$0xff] %vm3018, %v6484
        %6545 = vst.msk [vmem:[%s4610 + $0x70] sm:$0xff] %vm3018, %v6499
        %6546 = vst.msk [vmem:[%s4610 + $0x78] sm:$0xff] %vm3018, %v6514
        %vm6547 = vcmp.eq.s32.totalorder %v385, %v6289
        %vm6548 = vcmp.eq.s32.totalorder %v385, %v6304
        %vm6549 = vcmp.eq.s32.totalorder %v385, %v6319
        %vm6550 = vcmp.eq.s32.totalorder %v385, %v6334
        %vm6551 = vcmp.eq.s32.totalorder %v385, %v6349
        %vm6552 = vcmp.eq.s32.totalorder %v385, %v6364
        %vm6553 = vcmp.eq.s32.totalorder %v385, %v6379
        %vm6554 = vcmp.eq.s32.totalorder %v385, %v6394
        %vm6555 = vcmp.eq.s32.totalorder %v385, %v6409
        %vm6556 = vcmp.eq.s32.totalorder %v385, %v6424
        %vm6557 = vcmp.eq.s32.totalorder %v385, %v6439
        %vm6558 = vcmp.eq.s32.totalorder %v385, %v6454
        %vm6559 = vcmp.eq.s32.totalorder %v385, %v6469
        %vm6560 = vcmp.eq.s32.totalorder %v385, %v6484
        %vm6561 = vcmp.eq.s32.totalorder %v385, %v6499
        %vm6562 = vcmp.eq.s32.totalorder %v385, %v6514
        %v6563 = vsel %vm6547, -inf, %v6179
        %v6564 = vsel %vm6548, -inf, %v6180
        %v6565 = vsel %vm6549, -inf, %v6181
        %v6566 = vsel %vm6550, -inf, %v6182
        %v6567 = vsel %vm6551, -inf, %v6183
        %v6568 = vsel %vm6552, -inf, %v6184
        %v6569 = vsel %vm6553, -inf, %v6185
        %v6570 = vsel %vm6554, -inf, %v6186
        %v6571 = vsel %vm6555, -inf, %v6187
        %v6572 = vsel %vm6556, -inf, %v6188
        %v6573 = vsel %vm6557, -inf, %v6189
        %v6574 = vsel %vm6558, -inf, %v6190
        %v6575 = vsel %vm6559, -inf, %v6191
        %v6576 = vsel %vm6560, -inf, %v6192
        %v6577 = vsel %vm6561, -inf, %v6193
        %v6578 = vsel %vm6562, -inf, %v6194
        %v6579 = vsel %vm580, %v6563, -inf
        %6580 = vmax.xlane.f32.xlu0 %v6579
        %v6581 = vpop.xlane.xlu0 %6580
        %v6582 = vsel %vm580, %v6564, -inf
        %6583 = vmax.xlane.f32.xlu0 %v6582
        %v6584 = vpop.xlane.xlu0 %6583
        %v6585 = vsel %vm580, %v6565, -inf
        %6586 = vmax.xlane.f32.xlu0 %v6585
        %v6587 = vpop.xlane.xlu0 %6586
        %v6588 = vsel %vm580, %v6566, -inf
        %6589 = vmax.xlane.f32.xlu0 %v6588
        %v6590 = vpop.xlane.xlu0 %6589
        %v6591 = vsel %vm580, %v6567, -inf
        %6592 = vmax.xlane.f32.xlu0 %v6591
        %v6593 = vpop.xlane.xlu0 %6592
        %v6594 = vsel %vm580, %v6568, -inf
        %6595 = vmax.xlane.f32.xlu0 %v6594
        %v6596 = vpop.xlane.xlu0 %6595
        %v6597 = vsel %vm580, %v6569, -inf
        %6598 = vmax.xlane.f32.xlu0 %v6597
        %v6599 = vpop.xlane.xlu0 %6598
        %v6600 = vsel %vm580, %v6570, -inf
        %6601 = vmax.xlane.f32.xlu0 %v6600
        %v6602 = vpop.xlane.xlu0 %6601
        %v6603 = vsel %vm580, %v6571, -inf
        %6604 = vmax.xlane.f32.xlu0 %v6603
        %v6605 = vpop.xlane.xlu0 %6604
        %v6606 = vsel %vm580, %v6572, -inf
        %6607 = vmax.xlane.f32.xlu0 %v6606
        %v6608 = vpop.xlane.xlu0 %6607
        %v6609 = vsel %vm580, %v6573, -inf
        %6610 = vmax.xlane.f32.xlu0 %v6609
        %v6611 = vpop.xlane.xlu0 %6610
        %v6612 = vsel %vm580, %v6574, -inf
        %6613 = vmax.xlane.f32.xlu0 %v6612
        %v6614 = vpop.xlane.xlu0 %6613
        %v6615 = vsel %vm580, %v6575, -inf
        %6616 = vmax.xlane.f32.xlu0 %v6615
        %v6617 = vpop.xlane.xlu0 %6616
        %v6618 = vsel %vm580, %v6576, -inf
        %6619 = vmax.xlane.f32.xlu0 %v6618
        %v6620 = vpop.xlane.xlu0 %6619
        %v6621 = vsel %vm580, %v6577, -inf
        %6622 = vmax.xlane.f32.xlu0 %v6621
        %v6623 = vpop.xlane.xlu0 %6622
        %v6624 = vsel %vm580, %v6578, -inf
        %6625 = vmax.xlane.f32.xlu0 %v6624
        %v6626 = vpop.xlane.xlu0 %6625
        %vm6627 = vcmp.eq.f32.partialorder %v6563, %v6581
        %vm6628 = vcmp.eq.f32.partialorder %v6564, %v6584
        %vm6629 = vcmp.eq.f32.partialorder %v6565, %v6587
        %vm6630 = vcmp.eq.f32.partialorder %v6566, %v6590
        %vm6631 = vcmp.eq.f32.partialorder %v6567, %v6593
        %vm6632 = vcmp.eq.f32.partialorder %v6568, %v6596
        %vm6633 = vcmp.eq.f32.partialorder %v6569, %v6599
        %vm6634 = vcmp.eq.f32.partialorder %v6570, %v6602
        %vm6635 = vcmp.eq.f32.partialorder %v6571, %v6605
        %vm6636 = vcmp.eq.f32.partialorder %v6572, %v6608
        %vm6637 = vcmp.eq.f32.partialorder %v6573, %v6611
        %vm6638 = vcmp.eq.f32.partialorder %v6574, %v6614
        %vm6639 = vcmp.eq.f32.partialorder %v6575, %v6617
        %vm6640 = vcmp.eq.f32.partialorder %v6576, %v6620
        %vm6641 = vcmp.eq.f32.partialorder %v6577, %v6623
        %vm6642 = vcmp.eq.f32.partialorder %v6578, %v6626
        %v6643 = vsel %vm6627, %v385, 16
        %v6644 = vsel %vm6628, %v385, 16
        %v6645 = vsel %vm6629, %v385, 16
        %v6646 = vsel %vm6630, %v385, 16
        %v6647 = vsel %vm6631, %v385, 16
        %v6648 = vsel %vm6632, %v385, 16
        %v6649 = vsel %vm6633, %v385, 16
        %v6650 = vsel %vm6634, %v385, 16
        %v6651 = vsel %vm6635, %v385, 16
        %v6652 = vsel %vm6636, %v385, 16
        %v6653 = vsel %vm6637, %v385, 16
        %v6654 = vsel %vm6638, %v385, 16
        %v6655 = vsel %vm6639, %v385, 16
        %v6656 = vsel %vm6640, %v385, 16
        %v6657 = vsel %vm6641, %v385, 16
        %v6658 = vsel %vm6642, %v385, 16
        %v6659 = vsel %vm580, %v6643, 2147483647
        %v6660 = vand.u32 %v6659, 65535
        %v6661 = vshra.s32 %v6659, 16
        %v6662 = vcvt.s32.f32 %v6660
        %v6663 = vcvt.s32.f32 %v6661
        %6664 = vmin.xlane.f32.xlu0 %v6663
        %v6665 = vpop.xlane.xlu0 %6664
        %vm6666 = vcmp.eq.f32.partialorder %v6663, %v6665
        %v6667 = vsel %vm6666, %v6662, inf
        %6668 = vmin.xlane.f32.xlu0 %v6667
        %v6669 = vpop.xlane.xlu0 %6668
        %v6670 = vcvt.f32.s32 %v6669
        %v6671 = vcvt.f32.s32 %v6665
        %v6672 = vshll.u32 %v6671, 16
        %v6673 = vadd.s32 %v6672, %v6670
        %v6674 = vsel %vm580, %v6644, 2147483647
        %v6675 = vand.u32 %v6674, 65535
        %v6676 = vshra.s32 %v6674, 16
        %v6677 = vcvt.s32.f32 %v6675
        %v6678 = vcvt.s32.f32 %v6676
        %6679 = vmin.xlane.f32.xlu0 %v6678
        %v6680 = vpop.xlane.xlu0 %6679
        %vm6681 = vcmp.eq.f32.partialorder %v6678, %v6680
        %v6682 = vsel %vm6681, %v6677, inf
        %6683 = vmin.xlane.f32.xlu0 %v6682
        %v6684 = vpop.xlane.xlu0 %6683
        %v6685 = vcvt.f32.s32 %v6684
        %v6686 = vcvt.f32.s32 %v6680
        %v6687 = vshll.u32 %v6686, 16
        %v6688 = vadd.s32 %v6687, %v6685
        %v6689 = vsel %vm580, %v6645, 2147483647
        %v6690 = vand.u32 %v6689, 65535
        %v6691 = vshra.s32 %v6689, 16
        %v6692 = vcvt.s32.f32 %v6690
        %v6693 = vcvt.s32.f32 %v6691
        %6694 = vmin.xlane.f32.xlu0 %v6693
        %v6695 = vpop.xlane.xlu0 %6694
        %vm6696 = vcmp.eq.f32.partialorder %v6693, %v6695
        %v6697 = vsel %vm6696, %v6692, inf
        %6698 = vmin.xlane.f32.xlu0 %v6697
        %v6699 = vpop.xlane.xlu0 %6698
        %v6700 = vcvt.f32.s32 %v6699
        %v6701 = vcvt.f32.s32 %v6695
        %v6702 = vshll.u32 %v6701, 16
        %v6703 = vadd.s32 %v6702, %v6700
        %v6704 = vsel %vm580, %v6646, 2147483647
        %v6705 = vand.u32 %v6704, 65535
        %v6706 = vshra.s32 %v6704, 16
        %v6707 = vcvt.s32.f32 %v6705
        %v6708 = vcvt.s32.f32 %v6706
        %6709 = vmin.xlane.f32.xlu0 %v6708
        %v6710 = vpop.xlane.xlu0 %6709
        %vm6711 = vcmp.eq.f32.partialorder %v6708, %v6710
        %v6712 = vsel %vm6711, %v6707, inf
        %6713 = vmin.xlane.f32.xlu0 %v6712
        %v6714 = vpop.xlane.xlu0 %6713
        %v6715 = vcvt.f32.s32 %v6714
        %v6716 = vcvt.f32.s32 %v6710
        %v6717 = vshll.u32 %v6716, 16
        %v6718 = vadd.s32 %v6717, %v6715
        %v6719 = vsel %vm580, %v6647, 2147483647
        %v6720 = vand.u32 %v6719, 65535
        %v6721 = vshra.s32 %v6719, 16
        %v6722 = vcvt.s32.f32 %v6720
        %v6723 = vcvt.s32.f32 %v6721
        %6724 = vmin.xlane.f32.xlu0 %v6723
        %v6725 = vpop.xlane.xlu0 %6724
        %vm6726 = vcmp.eq.f32.partialorder %v6723, %v6725
        %v6727 = vsel %vm6726, %v6722, inf
        %6728 = vmin.xlane.f32.xlu0 %v6727
        %v6729 = vpop.xlane.xlu0 %6728
        %v6730 = vcvt.f32.s32 %v6729
        %v6731 = vcvt.f32.s32 %v6725
        %v6732 = vshll.u32 %v6731, 16
        %v6733 = vadd.s32 %v6732, %v6730
        %v6734 = vsel %vm580, %v6648, 2147483647
        %v6735 = vand.u32 %v6734, 65535
        %v6736 = vshra.s32 %v6734, 16
        %v6737 = vcvt.s32.f32 %v6735
        %v6738 = vcvt.s32.f32 %v6736
        %6739 = vmin.xlane.f32.xlu0 %v6738
        %v6740 = vpop.xlane.xlu0 %6739
        %vm6741 = vcmp.eq.f32.partialorder %v6738, %v6740
        %v6742 = vsel %vm6741, %v6737, inf
        %6743 = vmin.xlane.f32.xlu0 %v6742
        %v6744 = vpop.xlane.xlu0 %6743
        %v6745 = vcvt.f32.s32 %v6744
        %v6746 = vcvt.f32.s32 %v6740
        %v6747 = vshll.u32 %v6746, 16
        %v6748 = vadd.s32 %v6747, %v6745
        %v6749 = vsel %vm580, %v6649, 2147483647
        %v6750 = vand.u32 %v6749, 65535
        %v6751 = vshra.s32 %v6749, 16
        %v6752 = vcvt.s32.f32 %v6750
        %v6753 = vcvt.s32.f32 %v6751
        %6754 = vmin.xlane.f32.xlu0 %v6753
        %v6755 = vpop.xlane.xlu0 %6754
        %vm6756 = vcmp.eq.f32.partialorder %v6753, %v6755
        %v6757 = vsel %vm6756, %v6752, inf
        %6758 = vmin.xlane.f32.xlu0 %v6757
        %v6759 = vpop.xlane.xlu0 %6758
        %v6760 = vcvt.f32.s32 %v6759
        %v6761 = vcvt.f32.s32 %v6755
        %v6762 = vshll.u32 %v6761, 16
        %v6763 = vadd.s32 %v6762, %v6760
        %v6764 = vsel %vm580, %v6650, 2147483647
        %v6765 = vand.u32 %v6764, 65535
        %v6766 = vshra.s32 %v6764, 16
        %v6767 = vcvt.s32.f32 %v6765
        %v6768 = vcvt.s32.f32 %v6766
        %6769 = vmin.xlane.f32.xlu0 %v6768
        %v6770 = vpop.xlane.xlu0 %6769
        %vm6771 = vcmp.eq.f32.partialorder %v6768, %v6770
        %v6772 = vsel %vm6771, %v6767, inf
        %6773 = vmin.xlane.f32.xlu0 %v6772
        %v6774 = vpop.xlane.xlu0 %6773
        %v6775 = vcvt.f32.s32 %v6774
        %v6776 = vcvt.f32.s32 %v6770
        %v6777 = vshll.u32 %v6776, 16
        %v6778 = vadd.s32 %v6777, %v6775
        %v6779 = vsel %vm580, %v6651, 2147483647
        %v6780 = vand.u32 %v6779, 65535
        %v6781 = vshra.s32 %v6779, 16
        %v6782 = vcvt.s32.f32 %v6780
        %v6783 = vcvt.s32.f32 %v6781
        %6784 = vmin.xlane.f32.xlu0 %v6783
        %v6785 = vpop.xlane.xlu0 %6784
        %vm6786 = vcmp.eq.f32.partialorder %v6783, %v6785
        %v6787 = vsel %vm6786, %v6782, inf
        %6788 = vmin.xlane.f32.xlu0 %v6787
        %v6789 = vpop.xlane.xlu0 %6788
        %v6790 = vcvt.f32.s32 %v6789
        %v6791 = vcvt.f32.s32 %v6785
        %v6792 = vshll.u32 %v6791, 16
        %v6793 = vadd.s32 %v6792, %v6790
        %v6794 = vsel %vm580, %v6652, 2147483647
        %v6795 = vand.u32 %v6794, 65535
        %v6796 = vshra.s32 %v6794, 16
        %v6797 = vcvt.s32.f32 %v6795
        %v6798 = vcvt.s32.f32 %v6796
        %6799 = vmin.xlane.f32.xlu0 %v6798
        %v6800 = vpop.xlane.xlu0 %6799
        %vm6801 = vcmp.eq.f32.partialorder %v6798, %v6800
        %v6802 = vsel %vm6801, %v6797, inf
        %6803 = vmin.xlane.f32.xlu0 %v6802
        %v6804 = vpop.xlane.xlu0 %6803
        %v6805 = vcvt.f32.s32 %v6804
        %v6806 = vcvt.f32.s32 %v6800
        %v6807 = vshll.u32 %v6806, 16
        %v6808 = vadd.s32 %v6807, %v6805
        %v6809 = vsel %vm580, %v6653, 2147483647
        %v6810 = vand.u32 %v6809, 65535
        %v6811 = vshra.s32 %v6809, 16
        %v6812 = vcvt.s32.f32 %v6810
        %v6813 = vcvt.s32.f32 %v6811
        %6814 = vmin.xlane.f32.xlu0 %v6813
        %v6815 = vpop.xlane.xlu0 %6814
        %vm6816 = vcmp.eq.f32.partialorder %v6813, %v6815
        %v6817 = vsel %vm6816, %v6812, inf
        %6818 = vmin.xlane.f32.xlu0 %v6817
        %v6819 = vpop.xlane.xlu0 %6818
        %v6820 = vcvt.f32.s32 %v6819
        %v6821 = vcvt.f32.s32 %v6815
        %v6822 = vshll.u32 %v6821, 16
        %v6823 = vadd.s32 %v6822, %v6820
        %v6824 = vsel %vm580, %v6654, 2147483647
        %v6825 = vand.u32 %v6824, 65535
        %v6826 = vshra.s32 %v6824, 16
        %v6827 = vcvt.s32.f32 %v6825
        %v6828 = vcvt.s32.f32 %v6826
        %6829 = vmin.xlane.f32.xlu0 %v6828
        %v6830 = vpop.xlane.xlu0 %6829
        %vm6831 = vcmp.eq.f32.partialorder %v6828, %v6830
        %v6832 = vsel %vm6831, %v6827, inf
        %6833 = vmin.xlane.f32.xlu0 %v6832
        %v6834 = vpop.xlane.xlu0 %6833
        %v6835 = vcvt.f32.s32 %v6834
        %v6836 = vcvt.f32.s32 %v6830
        %v6837 = vshll.u32 %v6836, 16
        %v6838 = vadd.s32 %v6837, %v6835
        %v6839 = vsel %vm580, %v6655, 2147483647
        %v6840 = vand.u32 %v6839, 65535
        %v6841 = vshra.s32 %v6839, 16
        %v6842 = vcvt.s32.f32 %v6840
        %v6843 = vcvt.s32.f32 %v6841
        %6844 = vmin.xlane.f32.xlu0 %v6843
        %v6845 = vpop.xlane.xlu0 %6844
        %vm6846 = vcmp.eq.f32.partialorder %v6843, %v6845
        %v6847 = vsel %vm6846, %v6842, inf
        %6848 = vmin.xlane.f32.xlu0 %v6847
        %v6849 = vpop.xlane.xlu0 %6848
        %v6850 = vcvt.f32.s32 %v6849
        %v6851 = vcvt.f32.s32 %v6845
        %v6852 = vshll.u32 %v6851, 16
        %v6853 = vadd.s32 %v6852, %v6850
        %v6854 = vsel %vm580, %v6656, 2147483647
        %v6855 = vand.u32 %v6854, 65535
        %v6856 = vshra.s32 %v6854, 16
        %v6857 = vcvt.s32.f32 %v6855
        %v6858 = vcvt.s32.f32 %v6856
        %6859 = vmin.xlane.f32.xlu0 %v6858
        %v6860 = vpop.xlane.xlu0 %6859
        %vm6861 = vcmp.eq.f32.partialorder %v6858, %v6860
        %v6862 = vsel %vm6861, %v6857, inf
        %6863 = vmin.xlane.f32.xlu0 %v6862
        %v6864 = vpop.xlane.xlu0 %6863
        %v6865 = vcvt.f32.s32 %v6864
        %v6866 = vcvt.f32.s32 %v6860
        %v6867 = vshll.u32 %v6866, 16
        %v6868 = vadd.s32 %v6867, %v6865
        %v6869 = vsel %vm580, %v6657, 2147483647
        %v6870 = vand.u32 %v6869, 65535
        %v6871 = vshra.s32 %v6869, 16
        %v6872 = vcvt.s32.f32 %v6870
        %v6873 = vcvt.s32.f32 %v6871
        %6874 = vmin.xlane.f32.xlu0 %v6873
        %v6875 = vpop.xlane.xlu0 %6874
        %vm6876 = vcmp.eq.f32.partialorder %v6873, %v6875
        %v6877 = vsel %vm6876, %v6872, inf
        %6878 = vmin.xlane.f32.xlu0 %v6877
        %v6879 = vpop.xlane.xlu0 %6878
        %v6880 = vcvt.f32.s32 %v6879
        %v6881 = vcvt.f32.s32 %v6875
        %v6882 = vshll.u32 %v6881, 16
        %v6883 = vadd.s32 %v6882, %v6880
        %v6884 = vsel %vm580, %v6658, 2147483647
        %v6885 = vand.u32 %v6884, 65535
        %v6886 = vshra.s32 %v6884, 16
        %v6887 = vcvt.s32.f32 %v6885
        %v6888 = vcvt.s32.f32 %v6886
        %6889 = vmin.xlane.f32.xlu0 %v6888
        %v6890 = vpop.xlane.xlu0 %6889
        %vm6891 = vcmp.eq.f32.partialorder %v6888, %v6890
        %v6892 = vsel %vm6891, %v6887, inf
        %6893 = vmin.xlane.f32.xlu0 %v6892
        %v6894 = vpop.xlane.xlu0 %6893
        %v6895 = vcvt.f32.s32 %v6894
        %v6896 = vcvt.f32.s32 %v6890
        %v6897 = vshll.u32 %v6896, 16
        %v6898 = vadd.s32 %v6897, %v6895
        %6899 = vst.msk [vmem:[%s4593] sm:$0xff] %vm3403, %v6581
        %6900 = vst.msk [vmem:[%s4593 + $0x8] sm:$0xff] %vm3403, %v6584
        %6901 = vst.msk [vmem:[%s4593 + $0x10] sm:$0xff] %vm3403, %v6587
        %6902 = vst.msk [vmem:[%s4593 + $0x18] sm:$0xff] %vm3403, %v6590
        %6903 = vst.msk [vmem:[%s4593 + $0x20] sm:$0xff] %vm3403, %v6593
        %6904 = vst.msk [vmem:[%s4593 + $0x28] sm:$0xff] %vm3403, %v6596
        %6905 = vst.msk [vmem:[%s4593 + $0x30] sm:$0xff] %vm3403, %v6599
        %6906 = vst.msk [vmem:[%s4593 + $0x38] sm:$0xff] %vm3403, %v6602
        %6907 = vst.msk [vmem:[%s4593 + $0x40] sm:$0xff] %vm3403, %v6605
        %6908 = vst.msk [vmem:[%s4593 + $0x48] sm:$0xff] %vm3403, %v6608
        %6909 = vst.msk [vmem:[%s4593 + $0x50] sm:$0xff] %vm3403, %v6611
        %6910 = vst.msk [vmem:[%s4593 + $0x58] sm:$0xff] %vm3403, %v6614
        %6911 = vst.msk [vmem:[%s4593 + $0x60] sm:$0xff] %vm3403, %v6617
        %6912 = vst.msk [vmem:[%s4593 + $0x68] sm:$0xff] %vm3403, %v6620
        %6913 = vst.msk [vmem:[%s4593 + $0x70] sm:$0xff] %vm3403, %v6623
        %6914 = vst.msk [vmem:[%s4593 + $0x78] sm:$0xff] %vm3403, %v6626
        %6915 = vst.msk [vmem:[%s4610] sm:$0xff] %vm3403, %v6673
        %6916 = vst.msk [vmem:[%s4610 + $0x8] sm:$0xff] %vm3403, %v6688
        %6917 = vst.msk [vmem:[%s4610 + $0x10] sm:$0xff] %vm3403, %v6703
        %6918 = vst.msk [vmem:[%s4610 + $0x18] sm:$0xff] %vm3403, %v6718
        %6919 = vst.msk [vmem:[%s4610 + $0x20] sm:$0xff] %vm3403, %v6733
        %6920 = vst.msk [vmem:[%s4610 + $0x28] sm:$0xff] %vm3403, %v6748
        %6921 = vst.msk [vmem:[%s4610 + $0x30] sm:$0xff] %vm3403, %v6763
        %6922 = vst.msk [vmem:[%s4610 + $0x38] sm:$0xff] %vm3403, %v6778
        %6923 = vst.msk [vmem:[%s4610 + $0x40] sm:$0xff] %vm3403, %v6793
        %6924 = vst.msk [vmem:[%s4610 + $0x48] sm:$0xff] %vm3403, %v6808
        %6925 = vst.msk [vmem:[%s4610 + $0x50] sm:$0xff] %vm3403, %v6823
        %6926 = vst.msk [vmem:[%s4610 + $0x58] sm:$0xff] %vm3403, %v6838
        %6927 = vst.msk [vmem:[%s4610 + $0x60] sm:$0xff] %vm3403, %v6853
        %6928 = vst.msk [vmem:[%s4610 + $0x68] sm:$0xff] %vm3403, %v6868
        %6929 = vst.msk [vmem:[%s4610 + $0x70] sm:$0xff] %vm3403, %v6883
        %6930 = vst.msk [vmem:[%s4610 + $0x78] sm:$0xff] %vm3403, %v6898
        %vm6931 = vcmp.eq.s32.totalorder %v385, %v6673
        %vm6932 = vcmp.eq.s32.totalorder %v385, %v6688
        %vm6933 = vcmp.eq.s32.totalorder %v385, %v6703
        %vm6934 = vcmp.eq.s32.totalorder %v385, %v6718
        %vm6935 = vcmp.eq.s32.totalorder %v385, %v6733
        %vm6936 = vcmp.eq.s32.totalorder %v385, %v6748
        %vm6937 = vcmp.eq.s32.totalorder %v385, %v6763
        %vm6938 = vcmp.eq.s32.totalorder %v385, %v6778
        %vm6939 = vcmp.eq.s32.totalorder %v385, %v6793
        %vm6940 = vcmp.eq.s32.totalorder %v385, %v6808
        %vm6941 = vcmp.eq.s32.totalorder %v385, %v6823
        %vm6942 = vcmp.eq.s32.totalorder %v385, %v6838
        %vm6943 = vcmp.eq.s32.totalorder %v385, %v6853
        %vm6944 = vcmp.eq.s32.totalorder %v385, %v6868
        %vm6945 = vcmp.eq.s32.totalorder %v385, %v6883
        %vm6946 = vcmp.eq.s32.totalorder %v385, %v6898
        %v6947 = vsel %vm6931, -inf, %v6563
        %v6948 = vsel %vm6932, -inf, %v6564
        %v6949 = vsel %vm6933, -inf, %v6565
        %v6950 = vsel %vm6934, -inf, %v6566
        %v6951 = vsel %vm6935, -inf, %v6567
        %v6952 = vsel %vm6936, -inf, %v6568
        %v6953 = vsel %vm6937, -inf, %v6569
        %v6954 = vsel %vm6938, -inf, %v6570
        %v6955 = vsel %vm6939, -inf, %v6571
        %v6956 = vsel %vm6940, -inf, %v6572
        %v6957 = vsel %vm6941, -inf, %v6573
        %v6958 = vsel %vm6942, -inf, %v6574
        %v6959 = vsel %vm6943, -inf, %v6575
        %v6960 = vsel %vm6944, -inf, %v6576
        %v6961 = vsel %vm6945, -inf, %v6577
        %v6962 = vsel %vm6946, -inf, %v6578
        %v6963 = vsel %vm580, %v6947, -inf
        %6964 = vmax.xlane.f32.xlu0 %v6963
        %v6965 = vpop.xlane.xlu0 %6964
        %v6966 = vsel %vm580, %v6948, -inf
        %6967 = vmax.xlane.f32.xlu0 %v6966
        %v6968 = vpop.xlane.xlu0 %6967
        %v6969 = vsel %vm580, %v6949, -inf
        %6970 = vmax.xlane.f32.xlu0 %v6969
        %v6971 = vpop.xlane.xlu0 %6970
        %v6972 = vsel %vm580, %v6950, -inf
        %6973 = vmax.xlane.f32.xlu0 %v6972
        %v6974 = vpop.xlane.xlu0 %6973
        %v6975 = vsel %vm580, %v6951, -inf
        %6976 = vmax.xlane.f32.xlu0 %v6975
        %v6977 = vpop.xlane.xlu0 %6976
        %v6978 = vsel %vm580, %v6952, -inf
        %6979 = vmax.xlane.f32.xlu0 %v6978
        %v6980 = vpop.xlane.xlu0 %6979
        %v6981 = vsel %vm580, %v6953, -inf
        %6982 = vmax.xlane.f32.xlu0 %v6981
        %v6983 = vpop.xlane.xlu0 %6982
        %v6984 = vsel %vm580, %v6954, -inf
        %6985 = vmax.xlane.f32.xlu0 %v6984
        %v6986 = vpop.xlane.xlu0 %6985
        %v6987 = vsel %vm580, %v6955, -inf
        %6988 = vmax.xlane.f32.xlu0 %v6987
        %v6989 = vpop.xlane.xlu0 %6988
        %v6990 = vsel %vm580, %v6956, -inf
        %6991 = vmax.xlane.f32.xlu0 %v6990
        %v6992 = vpop.xlane.xlu0 %6991
        %v6993 = vsel %vm580, %v6957, -inf
        %6994 = vmax.xlane.f32.xlu0 %v6993
        %v6995 = vpop.xlane.xlu0 %6994
        %v6996 = vsel %vm580, %v6958, -inf
        %6997 = vmax.xlane.f32.xlu0 %v6996
        %v6998 = vpop.xlane.xlu0 %6997
        %v6999 = vsel %vm580, %v6959, -inf
        %7000 = vmax.xlane.f32.xlu0 %v6999
        %v7001 = vpop.xlane.xlu0 %7000
        %v7002 = vsel %vm580, %v6960, -inf
        %7003 = vmax.xlane.f32.xlu0 %v7002
        %v7004 = vpop.xlane.xlu0 %7003
        %v7005 = vsel %vm580, %v6961, -inf
        %7006 = vmax.xlane.f32.xlu0 %v7005
        %v7007 = vpop.xlane.xlu0 %7006
        %v7008 = vsel %vm580, %v6962, -inf
        %7009 = vmax.xlane.f32.xlu0 %v7008
        %v7010 = vpop.xlane.xlu0 %7009
        %vm7011 = vcmp.eq.f32.partialorder %v6947, %v6965
        %vm7012 = vcmp.eq.f32.partialorder %v6948, %v6968
        %vm7013 = vcmp.eq.f32.partialorder %v6949, %v6971
        %vm7014 = vcmp.eq.f32.partialorder %v6950, %v6974
        %vm7015 = vcmp.eq.f32.partialorder %v6951, %v6977
        %vm7016 = vcmp.eq.f32.partialorder %v6952, %v6980
        %vm7017 = vcmp.eq.f32.partialorder %v6953, %v6983
        %vm7018 = vcmp.eq.f32.partialorder %v6954, %v6986
        %vm7019 = vcmp.eq.f32.partialorder %v6955, %v6989
        %vm7020 = vcmp.eq.f32.partialorder %v6956, %v6992
        %vm7021 = vcmp.eq.f32.partialorder %v6957, %v6995
        %vm7022 = vcmp.eq.f32.partialorder %v6958, %v6998
        %vm7023 = vcmp.eq.f32.partialorder %v6959, %v7001
        %vm7024 = vcmp.eq.f32.partialorder %v6960, %v7004
        %vm7025 = vcmp.eq.f32.partialorder %v6961, %v7007
        %vm7026 = vcmp.eq.f32.partialorder %v6962, %v7010
        %v7027 = vsel %vm7011, %v385, 16
        %v7028 = vsel %vm7012, %v385, 16
        %v7029 = vsel %vm7013, %v385, 16
        %v7030 = vsel %vm7014, %v385, 16
        %v7031 = vsel %vm7015, %v385, 16
        %v7032 = vsel %vm7016, %v385, 16
        %v7033 = vsel %vm7017, %v385, 16
        %v7034 = vsel %vm7018, %v385, 16
        %v7035 = vsel %vm7019, %v385, 16
        %v7036 = vsel %vm7020, %v385, 16
        %v7037 = vsel %vm7021, %v385, 16
        %v7038 = vsel %vm7022, %v385, 16
        %v7039 = vsel %vm7023, %v385, 16
        %v7040 = vsel %vm7024, %v385, 16
        %v7041 = vsel %vm7025, %v385, 16
        %v7042 = vsel %vm7026, %v385, 16
        %v7043 = vsel %vm580, %v7027, 2147483647
        %v7044 = vand.u32 %v7043, 65535
        %v7045 = vshra.s32 %v7043, 16
        %v7046 = vcvt.s32.f32 %v7044
        %v7047 = vcvt.s32.f32 %v7045
        %7048 = vmin.xlane.f32.xlu0 %v7047
        %v7049 = vpop.xlane.xlu0 %7048
        %vm7050 = vcmp.eq.f32.partialorder %v7047, %v7049
        %v7051 = vsel %vm7050, %v7046, inf
        %7052 = vmin.xlane.f32.xlu0 %v7051
        %v7053 = vpop.xlane.xlu0 %7052
        %v7054 = vcvt.f32.s32 %v7053
        %v7055 = vcvt.f32.s32 %v7049
        %v7056 = vshll.u32 %v7055, 16
        %v7057 = vadd.s32 %v7056, %v7054
        %v7058 = vsel %vm580, %v7028, 2147483647
        %v7059 = vand.u32 %v7058, 65535
        %v7060 = vshra.s32 %v7058, 16
        %v7061 = vcvt.s32.f32 %v7059
        %v7062 = vcvt.s32.f32 %v7060
        %7063 = vmin.xlane.f32.xlu0 %v7062
        %v7064 = vpop.xlane.xlu0 %7063
        %vm7065 = vcmp.eq.f32.partialorder %v7062, %v7064
        %v7066 = vsel %vm7065, %v7061, inf
        %7067 = vmin.xlane.f32.xlu0 %v7066
        %v7068 = vpop.xlane.xlu0 %7067
        %v7069 = vcvt.f32.s32 %v7068
        %v7070 = vcvt.f32.s32 %v7064
        %v7071 = vshll.u32 %v7070, 16
        %v7072 = vadd.s32 %v7071, %v7069
        %v7073 = vsel %vm580, %v7029, 2147483647
        %v7074 = vand.u32 %v7073, 65535
        %v7075 = vshra.s32 %v7073, 16
        %v7076 = vcvt.s32.f32 %v7074
        %v7077 = vcvt.s32.f32 %v7075
        %7078 = vmin.xlane.f32.xlu0 %v7077
        %v7079 = vpop.xlane.xlu0 %7078
        %vm7080 = vcmp.eq.f32.partialorder %v7077, %v7079
        %v7081 = vsel %vm7080, %v7076, inf
        %7082 = vmin.xlane.f32.xlu0 %v7081
        %v7083 = vpop.xlane.xlu0 %7082
        %v7084 = vcvt.f32.s32 %v7083
        %v7085 = vcvt.f32.s32 %v7079
        %v7086 = vshll.u32 %v7085, 16
        %v7087 = vadd.s32 %v7086, %v7084
        %v7088 = vsel %vm580, %v7030, 2147483647
        %v7089 = vand.u32 %v7088, 65535
        %v7090 = vshra.s32 %v7088, 16
        %v7091 = vcvt.s32.f32 %v7089
        %v7092 = vcvt.s32.f32 %v7090
        %7093 = vmin.xlane.f32.xlu0 %v7092
        %v7094 = vpop.xlane.xlu0 %7093
        %vm7095 = vcmp.eq.f32.partialorder %v7092, %v7094
        %v7096 = vsel %vm7095, %v7091, inf
        %7097 = vmin.xlane.f32.xlu0 %v7096
        %v7098 = vpop.xlane.xlu0 %7097
        %v7099 = vcvt.f32.s32 %v7098
        %v7100 = vcvt.f32.s32 %v7094
        %v7101 = vshll.u32 %v7100, 16
        %v7102 = vadd.s32 %v7101, %v7099
        %v7103 = vsel %vm580, %v7031, 2147483647
        %v7104 = vand.u32 %v7103, 65535
        %v7105 = vshra.s32 %v7103, 16
        %v7106 = vcvt.s32.f32 %v7104
        %v7107 = vcvt.s32.f32 %v7105
        %7108 = vmin.xlane.f32.xlu0 %v7107
        %v7109 = vpop.xlane.xlu0 %7108
        %vm7110 = vcmp.eq.f32.partialorder %v7107, %v7109
        %v7111 = vsel %vm7110, %v7106, inf
        %7112 = vmin.xlane.f32.xlu0 %v7111
        %v7113 = vpop.xlane.xlu0 %7112
        %v7114 = vcvt.f32.s32 %v7113
        %v7115 = vcvt.f32.s32 %v7109
        %v7116 = vshll.u32 %v7115, 16
        %v7117 = vadd.s32 %v7116, %v7114
        %v7118 = vsel %vm580, %v7032, 2147483647
        %v7119 = vand.u32 %v7118, 65535
        %v7120 = vshra.s32 %v7118, 16
        %v7121 = vcvt.s32.f32 %v7119
        %v7122 = vcvt.s32.f32 %v7120
        %7123 = vmin.xlane.f32.xlu0 %v7122
        %v7124 = vpop.xlane.xlu0 %7123
        %vm7125 = vcmp.eq.f32.partialorder %v7122, %v7124
        %v7126 = vsel %vm7125, %v7121, inf
        %7127 = vmin.xlane.f32.xlu0 %v7126
        %v7128 = vpop.xlane.xlu0 %7127
        %v7129 = vcvt.f32.s32 %v7128
        %v7130 = vcvt.f32.s32 %v7124
        %v7131 = vshll.u32 %v7130, 16
        %v7132 = vadd.s32 %v7131, %v7129
        %v7133 = vsel %vm580, %v7033, 2147483647
        %v7134 = vand.u32 %v7133, 65535
        %v7135 = vshra.s32 %v7133, 16
        %v7136 = vcvt.s32.f32 %v7134
        %v7137 = vcvt.s32.f32 %v7135
        %7138 = vmin.xlane.f32.xlu0 %v7137
        %v7139 = vpop.xlane.xlu0 %7138
        %vm7140 = vcmp.eq.f32.partialorder %v7137, %v7139
        %v7141 = vsel %vm7140, %v7136, inf
        %7142 = vmin.xlane.f32.xlu0 %v7141
        %v7143 = vpop.xlane.xlu0 %7142
        %v7144 = vcvt.f32.s32 %v7143
        %v7145 = vcvt.f32.s32 %v7139
        %v7146 = vshll.u32 %v7145, 16
        %v7147 = vadd.s32 %v7146, %v7144
        %v7148 = vsel %vm580, %v7034, 2147483647
        %v7149 = vand.u32 %v7148, 65535
        %v7150 = vshra.s32 %v7148, 16
        %v7151 = vcvt.s32.f32 %v7149
        %v7152 = vcvt.s32.f32 %v7150
        %7153 = vmin.xlane.f32.xlu0 %v7152
        %v7154 = vpop.xlane.xlu0 %7153
        %vm7155 = vcmp.eq.f32.partialorder %v7152, %v7154
        %v7156 = vsel %vm7155, %v7151, inf
        %7157 = vmin.xlane.f32.xlu0 %v7156
        %v7158 = vpop.xlane.xlu0 %7157
        %v7159 = vcvt.f32.s32 %v7158
        %v7160 = vcvt.f32.s32 %v7154
        %v7161 = vshll.u32 %v7160, 16
        %v7162 = vadd.s32 %v7161, %v7159
        %v7163 = vsel %vm580, %v7035, 2147483647
        %v7164 = vand.u32 %v7163, 65535
        %v7165 = vshra.s32 %v7163, 16
        %v7166 = vcvt.s32.f32 %v7164
        %v7167 = vcvt.s32.f32 %v7165
        %7168 = vmin.xlane.f32.xlu0 %v7167
        %v7169 = vpop.xlane.xlu0 %7168
        %vm7170 = vcmp.eq.f32.partialorder %v7167, %v7169
        %v7171 = vsel %vm7170, %v7166, inf
        %7172 = vmin.xlane.f32.xlu0 %v7171
        %v7173 = vpop.xlane.xlu0 %7172
        %v7174 = vcvt.f32.s32 %v7173
        %v7175 = vcvt.f32.s32 %v7169
        %v7176 = vshll.u32 %v7175, 16
        %v7177 = vadd.s32 %v7176, %v7174
        %v7178 = vsel %vm580, %v7036, 2147483647
        %v7179 = vand.u32 %v7178, 65535
        %v7180 = vshra.s32 %v7178, 16
        %v7181 = vcvt.s32.f32 %v7179
        %v7182 = vcvt.s32.f32 %v7180
        %7183 = vmin.xlane.f32.xlu0 %v7182
        %v7184 = vpop.xlane.xlu0 %7183
        %vm7185 = vcmp.eq.f32.partialorder %v7182, %v7184
        %v7186 = vsel %vm7185, %v7181, inf
        %7187 = vmin.xlane.f32.xlu0 %v7186
        %v7188 = vpop.xlane.xlu0 %7187
        %v7189 = vcvt.f32.s32 %v7188
        %v7190 = vcvt.f32.s32 %v7184
        %v7191 = vshll.u32 %v7190, 16
        %v7192 = vadd.s32 %v7191, %v7189
        %v7193 = vsel %vm580, %v7037, 2147483647
        %v7194 = vand.u32 %v7193, 65535
        %v7195 = vshra.s32 %v7193, 16
        %v7196 = vcvt.s32.f32 %v7194
        %v7197 = vcvt.s32.f32 %v7195
        %7198 = vmin.xlane.f32.xlu0 %v7197
        %v7199 = vpop.xlane.xlu0 %7198
        %vm7200 = vcmp.eq.f32.partialorder %v7197, %v7199
        %v7201 = vsel %vm7200, %v7196, inf
        %7202 = vmin.xlane.f32.xlu0 %v7201
        %v7203 = vpop.xlane.xlu0 %7202
        %v7204 = vcvt.f32.s32 %v7203
        %v7205 = vcvt.f32.s32 %v7199
        %v7206 = vshll.u32 %v7205, 16
        %v7207 = vadd.s32 %v7206, %v7204
        %v7208 = vsel %vm580, %v7038, 2147483647
        %v7209 = vand.u32 %v7208, 65535
        %v7210 = vshra.s32 %v7208, 16
        %v7211 = vcvt.s32.f32 %v7209
        %v7212 = vcvt.s32.f32 %v7210
        %7213 = vmin.xlane.f32.xlu0 %v7212
        %v7214 = vpop.xlane.xlu0 %7213
        %vm7215 = vcmp.eq.f32.partialorder %v7212, %v7214
        %v7216 = vsel %vm7215, %v7211, inf
        %7217 = vmin.xlane.f32.xlu0 %v7216
        %v7218 = vpop.xlane.xlu0 %7217
        %v7219 = vcvt.f32.s32 %v7218
        %v7220 = vcvt.f32.s32 %v7214
        %v7221 = vshll.u32 %v7220, 16
        %v7222 = vadd.s32 %v7221, %v7219
        %v7223 = vsel %vm580, %v7039, 2147483647
        %v7224 = vand.u32 %v7223, 65535
        %v7225 = vshra.s32 %v7223, 16
        %v7226 = vcvt.s32.f32 %v7224
        %v7227 = vcvt.s32.f32 %v7225
        %7228 = vmin.xlane.f32.xlu0 %v7227
        %v7229 = vpop.xlane.xlu0 %7228
        %vm7230 = vcmp.eq.f32.partialorder %v7227, %v7229
        %v7231 = vsel %vm7230, %v7226, inf
        %7232 = vmin.xlane.f32.xlu0 %v7231
        %v7233 = vpop.xlane.xlu0 %7232
        %v7234 = vcvt.f32.s32 %v7233
        %v7235 = vcvt.f32.s32 %v7229
        %v7236 = vshll.u32 %v7235, 16
        %v7237 = vadd.s32 %v7236, %v7234
        %v7238 = vsel %vm580, %v7040, 2147483647
        %v7239 = vand.u32 %v7238, 65535
        %v7240 = vshra.s32 %v7238, 16
        %v7241 = vcvt.s32.f32 %v7239
        %v7242 = vcvt.s32.f32 %v7240
        %7243 = vmin.xlane.f32.xlu0 %v7242
        %v7244 = vpop.xlane.xlu0 %7243
        %vm7245 = vcmp.eq.f32.partialorder %v7242, %v7244
        %v7246 = vsel %vm7245, %v7241, inf
        %7247 = vmin.xlane.f32.xlu0 %v7246
        %v7248 = vpop.xlane.xlu0 %7247
        %v7249 = vcvt.f32.s32 %v7248
        %v7250 = vcvt.f32.s32 %v7244
        %v7251 = vshll.u32 %v7250, 16
        %v7252 = vadd.s32 %v7251, %v7249
        %v7253 = vsel %vm580, %v7041, 2147483647
        %v7254 = vand.u32 %v7253, 65535
        %v7255 = vshra.s32 %v7253, 16
        %v7256 = vcvt.s32.f32 %v7254
        %v7257 = vcvt.s32.f32 %v7255
        %7258 = vmin.xlane.f32.xlu0 %v7257
        %v7259 = vpop.xlane.xlu0 %7258
        %vm7260 = vcmp.eq.f32.partialorder %v7257, %v7259
        %v7261 = vsel %vm7260, %v7256, inf
        %7262 = vmin.xlane.f32.xlu0 %v7261
        %v7263 = vpop.xlane.xlu0 %7262
        %v7264 = vcvt.f32.s32 %v7263
        %v7265 = vcvt.f32.s32 %v7259
        %v7266 = vshll.u32 %v7265, 16
        %v7267 = vadd.s32 %v7266, %v7264
        %v7268 = vsel %vm580, %v7042, 2147483647
        %v7269 = vand.u32 %v7268, 65535
        %v7270 = vshra.s32 %v7268, 16
        %v7271 = vcvt.s32.f32 %v7269
        %v7272 = vcvt.s32.f32 %v7270
        %7273 = vmin.xlane.f32.xlu0 %v7272
        %v7274 = vpop.xlane.xlu0 %7273
        %vm7275 = vcmp.eq.f32.partialorder %v7272, %v7274
        %v7276 = vsel %vm7275, %v7271, inf
        %7277 = vmin.xlane.f32.xlu0 %v7276
        %v7278 = vpop.xlane.xlu0 %7277
        %v7279 = vcvt.f32.s32 %v7278
        %v7280 = vcvt.f32.s32 %v7274
        %v7281 = vshll.u32 %v7280, 16
        %v7282 = vadd.s32 %v7281, %v7279
        %7283 = vst.msk [vmem:[%s4593] sm:$0xff] %vm3788, %v6965
        %7284 = vst.msk [vmem:[%s4593 + $0x8] sm:$0xff] %vm3788, %v6968
        %7285 = vst.msk [vmem:[%s4593 + $0x10] sm:$0xff] %vm3788, %v6971
        %7286 = vst.msk [vmem:[%s4593 + $0x18] sm:$0xff] %vm3788, %v6974
        %7287 = vst.msk [vmem:[%s4593 + $0x20] sm:$0xff] %vm3788, %v6977
        %7288 = vst.msk [vmem:[%s4593 + $0x28] sm:$0xff] %vm3788, %v6980
        %7289 = vst.msk [vmem:[%s4593 + $0x30] sm:$0xff] %vm3788, %v6983
        %7290 = vst.msk [vmem:[%s4593 + $0x38] sm:$0xff] %vm3788, %v6986
        %7291 = vst.msk [vmem:[%s4593 + $0x40] sm:$0xff] %vm3788, %v6989
        %7292 = vst.msk [vmem:[%s4593 + $0x48] sm:$0xff] %vm3788, %v6992
        %7293 = vst.msk [vmem:[%s4593 + $0x50] sm:$0xff] %vm3788, %v6995
        %7294 = vst.msk [vmem:[%s4593 + $0x58] sm:$0xff] %vm3788, %v6998
        %7295 = vst.msk [vmem:[%s4593 + $0x60] sm:$0xff] %vm3788, %v7001
        %7296 = vst.msk [vmem:[%s4593 + $0x68] sm:$0xff] %vm3788, %v7004
        %7297 = vst.msk [vmem:[%s4593 + $0x70] sm:$0xff] %vm3788, %v7007
        %7298 = vst.msk [vmem:[%s4593 + $0x78] sm:$0xff] %vm3788, %v7010
        %7299 = vst.msk [vmem:[%s4610] sm:$0xff] %vm3788, %v7057
        %7300 = vst.msk [vmem:[%s4610 + $0x8] sm:$0xff] %vm3788, %v7072
        %7301 = vst.msk [vmem:[%s4610 + $0x10] sm:$0xff] %vm3788, %v7087
        %7302 = vst.msk [vmem:[%s4610 + $0x18] sm:$0xff] %vm3788, %v7102
        %7303 = vst.msk [vmem:[%s4610 + $0x20] sm:$0xff] %vm3788, %v7117
        %7304 = vst.msk [vmem:[%s4610 + $0x28] sm:$0xff] %vm3788, %v7132
        %7305 = vst.msk [vmem:[%s4610 + $0x30] sm:$0xff] %vm3788, %v7147
        %7306 = vst.msk [vmem:[%s4610 + $0x38] sm:$0xff] %vm3788, %v7162
        %7307 = vst.msk [vmem:[%s4610 + $0x40] sm:$0xff] %vm3788, %v7177
        %7308 = vst.msk [vmem:[%s4610 + $0x48] sm:$0xff] %vm3788, %v7192
        %7309 = vst.msk [vmem:[%s4610 + $0x50] sm:$0xff] %vm3788, %v7207
        %7310 = vst.msk [vmem:[%s4610 + $0x58] sm:$0xff] %vm3788, %v7222
        %7311 = vst.msk [vmem:[%s4610 + $0x60] sm:$0xff] %vm3788, %v7237
        %7312 = vst.msk [vmem:[%s4610 + $0x68] sm:$0xff] %vm3788, %v7252
        %7313 = vst.msk [vmem:[%s4610 + $0x70] sm:$0xff] %vm3788, %v7267
        %7314 = vst.msk [vmem:[%s4610 + $0x78] sm:$0xff] %vm3788, %v7282
        %s7315 = smul.u32 16, %s16
        %p7316 = scmp.lt.s32.totalorder %s7315, 31
        %s7317 = scalar_select %p7316, %s7315, 31
        %s7318 = smul.addr %s7317, 8
        %s7319 = scalar_lea.vmem %s2, %s7318
        %s7320 = sand.u32 %s97, 1
        %s7321 = sand.u32 %s97, 1
        %s7322 = smul.addr %s7321, 256
        %s7323 = scalar_lea.vmem [#allocation3], %s7322
        %s7324 = sand.u32 %s123, 1
        %s7325 = sand.u32 %s123, 1
        %s7326 = smul.addr %s7325, 256
        %s7327 = scalar_lea.vmem [#allocation4], %s7326
        // Predicated region
        $region70: #{tpu_custom_call.1} parent=64 // pred_check
          %p7328 = pneg %p81
        $region71: #{tpu_custom_call.1} parent=64 // pred_check_branch
          %7330 = sbr.rel (%p7328) target = $region73
        $region72: #{tpu_custom_call.1} parent=64 // pred_region
          %s7331 = smul.u32 16, %s16
        $region73: #{tpu_custom_call.1} parent=64 // pred_fallthru
          _
        // Predicated region
        $region74: #{tpu_custom_call.1} parent=64 // pred_check
          %p7332 = pneg %p107
        $region75: #{tpu_custom_call.1} parent=64 // pred_check_branch
          %7334 = sbr.rel (%p7332) target = $region77
        $region76: #{tpu_custom_call.1} parent=64 // pred_region
          %s7335 = smul.u32 16, %s16
          %s7336 = smul.addr %s7335, 8
          %s7337 = scalar_lea.vmem %s3, %s7336
          // Predicated region
          $region78: #{tpu_custom_call.1} parent=76 // pred_check
            _
          $region79: #{tpu_custom_call.1} parent=76 // pred_check_branch
            %7339 = sbr.rel (0) target = $region81
          $region80: #{tpu_custom_call.1} parent=76 // pred_region
            // Predicated region
            $region82: #{tpu_custom_call.1} parent=80 // pred_check
              _
            $region83: #{tpu_custom_call.1} parent=80 // pred_check_branch
              %7341 = sbr.rel (0) target = $region85
            $region84: #{tpu_custom_call.1} parent=80 // pred_region
              // Predicated region
              $region97: #{tpu_custom_call.1} parent=84 // pred_check
                _
              $region98: #{tpu_custom_call.1} parent=84 // pred_check_branch
                %7419 = sbr.rel (0) target = $region100
              $region99: #{tpu_custom_call.1} parent=84 // pred_region
                loop: start=0, step=1, limit=1
                $region101: #{tpu_custom_call.1} parent=99 // loop_pre_header
                  _
                $region102: #{tpu_custom_call.1} parent=99 // loop_header
                  %s7421 = sphi 0, %s7425
                  %p7422 = scmp.ge.s32.totalorder %s7421, 1
                  %s7426 = sphi %s7323, %s7323
                  %s7427 = sphi %s7337, %s7337
                $region103: #{tpu_custom_call.1} parent=99 // loop_header_branch
                  %7424 = sbr.rel (%p7422) target = $region107
                $region104: #{tpu_custom_call.1} parent=99 // loop_body
                  %v7428 = vld [vmem:[%s7426] sm:$0xff]
                  %7429 = vst [vmem:[%s7427] sm:$0xff] %v7428
                  %v7430 = vld [vmem:[%s7426 + $0x8] sm:$0xff]
                  %7431 = vst [vmem:[%s7427 + $0x8] sm:$0xff] %v7430
                  %v7432 = vld [vmem:[%s7426 + $0x10] sm:$0xff]
                  %7433 = vst [vmem:[%s7427 + $0x10] sm:$0xff] %v7432
                  %v7434 = vld [vmem:[%s7426 + $0x18] sm:$0xff]
                  %7435 = vst [vmem:[%s7427 + $0x18] sm:$0xff] %v7434
                  %v7436 = vld [vmem:[%s7426 + $0x20] sm:$0xff]
                  %7437 = vst [vmem:[%s7427 + $0x20] sm:$0xff] %v7436
                  %v7438 = vld [vmem:[%s7426 + $0x28] sm:$0xff]
                  %7439 = vst [vmem:[%s7427 + $0x28] sm:$0xff] %v7438
                  %v7440 = vld [vmem:[%s7426 + $0x30] sm:$0xff]
                  %7441 = vst [vmem:[%s7427 + $0x30] sm:$0xff] %v7440
                  %v7442 = vld [vmem:[%s7426 + $0x38] sm:$0xff]
                  %7443 = vst [vmem:[%s7427 + $0x38] sm:$0xff] %v7442
                  %v7444 = vld [vmem:[%s7426 + $0x40] sm:$0xff]
                  %7445 = vst [vmem:[%s7427 + $0x40] sm:$0xff] %v7444
                  %v7446 = vld [vmem:[%s7426 + $0x48] sm:$0xff]
                  %7447 = vst [vmem:[%s7427 + $0x48] sm:$0xff] %v7446
                  %v7448 = vld [vmem:[%s7426 + $0x50] sm:$0xff]
                  %7449 = vst [vmem:[%s7427 + $0x50] sm:$0xff] %v7448
                  %v7450 = vld [vmem:[%s7426 + $0x58] sm:$0xff]
                  %7451 = vst [vmem:[%s7427 + $0x58] sm:$0xff] %v7450
                  %v7452 = vld [vmem:[%s7426 + $0x60] sm:$0xff]
                  %7453 = vst [vmem:[%s7427 + $0x60] sm:$0xff] %v7452
                  %v7454 = vld [vmem:[%s7426 + $0x68] sm:$0xff]
                  %7455 = vst [vmem:[%s7427 + $0x68] sm:$0xff] %v7454
                  %v7456 = vld [vmem:[%s7426 + $0x70] sm:$0xff]
                  %7457 = vst [vmem:[%s7427 + $0x70] sm:$0xff] %v7456
                  %v7458 = vld [vmem:[%s7426 + $0x78] sm:$0xff]
                  %7459 = vst [vmem:[%s7427 + $0x78] sm:$0xff] %v7458
                  %v7460 = vld [vmem:[%s7426 + $0x80] sm:$0xff]
                  %7461 = vst [vmem:[%s7427 + $0x100] sm:$0xff] %v7460
                  %v7462 = vld [vmem:[%s7426 + $0x88] sm:$0xff]
                  %7463 = vst [vmem:[%s7427 + $0x108] sm:$0xff] %v7462
                  %v7464 = vld [vmem:[%s7426 + $0x90] sm:$0xff]
                  %7465 = vst [vmem:[%s7427 + $0x110] sm:$0xff] %v7464
                  %v7466 = vld [vmem:[%s7426 + $0x98] sm:$0xff]
                  %7467 = vst [vmem:[%s7427 + $0x118] sm:$0xff] %v7466
                  %v7468 = vld [vmem:[%s7426 + $0xa0] sm:$0xff]
                  %7469 = vst [vmem:[%s7427 + $0x120] sm:$0xff] %v7468
                  %v7470 = vld [vmem:[%s7426 + $0xa8] sm:$0xff]
                  %7471 = vst [vmem:[%s7427 + $0x128] sm:$0xff] %v7470
                  %v7472 = vld [vmem:[%s7426 + $0xb0] sm:$0xff]
                  %7473 = vst [vmem:[%s7427 + $0x130] sm:$0xff] %v7472
                  %v7474 = vld [vmem:[%s7426 + $0xb8] sm:$0xff]
                  %7475 = vst [vmem:[%s7427 + $0x138] sm:$0xff] %v7474
                  %v7476 = vld [vmem:[%s7426 + $0xc0] sm:$0xff]
                  %7477 = vst [vmem:[%s7427 + $0x140] sm:$0xff] %v7476
                  %v7478 = vld [vmem:[%s7426 + $0xc8] sm:$0xff]
                  %7479 = vst [vmem:[%s7427 + $0x148] sm:$0xff] %v7478
                  %v7480 = vld [vmem:[%s7426 + $0xd0] sm:$0xff]
                  %7481 = vst [vmem:[%s7427 + $0x150] sm:$0xff] %v7480
                  %v7482 = vld [vmem:[%s7426 + $0xd8] sm:$0xff]
                  %7483 = vst [vmem:[%s7427 + $0x158] sm:$0xff] %v7482
                  %v7484 = vld [vmem:[%s7426 + $0xe0] sm:$0xff]
                  %7485 = vst [vmem:[%s7427 + $0x160] sm:$0xff] %v7484
                  %v7486 = vld [vmem:[%s7426 + $0xe8] sm:$0xff]
                  %7487 = vst [vmem:[%s7427 + $0x168] sm:$0xff] %v7486
                  %v7488 = vld [vmem:[%s7426 + $0xf0] sm:$0xff]
                  %7489 = vst [vmem:[%s7427 + $0x170] sm:$0xff] %v7488
                  %v7490 = vld [vmem:[%s7426 + $0xf8] sm:$0xff]
                  %7491 = vst [vmem:[%s7427 + $0x178] sm:$0xff] %v7490
                $region105: #{tpu_custom_call.1} parent=99 // loop_footer
                  %s7425 = sadd.s32 1, %s7421
                $region106: #{tpu_custom_call.1} parent=99 // loop_footer_branch
                  %7420 = sbr.rel target = $region102
                $region107: #{tpu_custom_call.1} parent=99 // loop_exit
                  _
              $region100: #{tpu_custom_call.1} parent=84 // pred_fallthru
                _
              // Predicated region
              $region108: #{tpu_custom_call.1} parent=84 // pred_check
                _
              $region109: #{tpu_custom_call.1} parent=84 // pred_check_branch
                %7493 = sbr.rel target = $region111
              $region110: #{tpu_custom_call.1} parent=84 // pred_region
                _
              $region111: #{tpu_custom_call.1} parent=84 // pred_fallthru
                _
            $region85: #{tpu_custom_call.1} parent=80 // pred_fallthru
              _
            // Predicated region
            $region86: #{tpu_custom_call.1} parent=80 // pred_check
              _
            $region87: #{tpu_custom_call.1} parent=80 // pred_check_branch
              %7343 = sbr.rel target = $region89
            $region88: #{tpu_custom_call.1} parent=80 // pred_region
              %s7345 = ssub.s32 256, 1
              loop: start=0, step=1, limit=1
              $region90: #{tpu_custom_call.1} parent=88 // loop_pre_header
                _
              $region91: #{tpu_custom_call.1} parent=88 // loop_header
                %s7347 = sphi 0, %s7351
                %p7348 = scmp.ge.s32.totalorder %s7347, 1
                %s7352 = sphi %s7323, %s7323
                %s7353 = sphi %s7337, %s7337
              $region92: #{tpu_custom_call.1} parent=88 // loop_header_branch
                %7350 = sbr.rel (%p7348) target = $region96
              $region93: #{tpu_custom_call.1} parent=88 // loop_body
                %v7354 = vld [vmem:[%s7352] sm:%s7345]
                %7355 = vst [vmem:[%s7353] sm:%s7345] %v7354
                %v7356 = vld [vmem:[%s7352 + $0x8] sm:%s7345]
                %7357 = vst [vmem:[%s7353 + $0x8] sm:%s7345] %v7356
                %v7358 = vld [vmem:[%s7352 + $0x10] sm:%s7345]
                %7359 = vst [vmem:[%s7353 + $0x10] sm:%s7345] %v7358
                %v7360 = vld [vmem:[%s7352 + $0x18] sm:%s7345]
                %7361 = vst [vmem:[%s7353 + $0x18] sm:%s7345] %v7360
                %v7362 = vld [vmem:[%s7352 + $0x20] sm:%s7345]
                %7363 = vst [vmem:[%s7353 + $0x20] sm:%s7345] %v7362
                %v7364 = vld [vmem:[%s7352 + $0x28] sm:%s7345]
                %7365 = vst [vmem:[%s7353 + $0x28] sm:%s7345] %v7364
                %v7366 = vld [vmem:[%s7352 + $0x30] sm:%s7345]
                %7367 = vst [vmem:[%s7353 + $0x30] sm:%s7345] %v7366
                %v7368 = vld [vmem:[%s7352 + $0x38] sm:%s7345]
                %7369 = vst [vmem:[%s7353 + $0x38] sm:%s7345] %v7368
                %v7370 = vld [vmem:[%s7352 + $0x40] sm:%s7345]
                %7371 = vst [vmem:[%s7353 + $0x40] sm:%s7345] %v7370
                %v7372 = vld [vmem:[%s7352 + $0x48] sm:%s7345]
                %7373 = vst [vmem:[%s7353 + $0x48] sm:%s7345] %v7372
                %v7374 = vld [vmem:[%s7352 + $0x50] sm:%s7345]
                %7375 = vst [vmem:[%s7353 + $0x50] sm:%s7345] %v7374
                %v7376 = vld [vmem:[%s7352 + $0x58] sm:%s7345]
                %7377 = vst [vmem:[%s7353 + $0x58] sm:%s7345] %v7376
                %v7378 = vld [vmem:[%s7352 + $0x60] sm:%s7345]
                %7379 = vst [vmem:[%s7353 + $0x60] sm:%s7345] %v7378
                %v7380 = vld [vmem:[%s7352 + $0x68] sm:%s7345]
                %7381 = vst [vmem:[%s7353 + $0x68] sm:%s7345] %v7380
                %v7382 = vld [vmem:[%s7352 + $0x70] sm:%s7345]
                %7383 = vst [vmem:[%s7353 + $0x70] sm:%s7345] %v7382
                %v7384 = vld [vmem:[%s7352 + $0x78] sm:%s7345]
                %7385 = vst [vmem:[%s7353 + $0x78] sm:%s7345] %v7384
                %v7386 = vld [vmem:[%s7352 + $0x80] sm:%s7345]
                %7387 = vst [vmem:[%s7353 + $0x100] sm:%s7345] %v7386
                %v7388 = vld [vmem:[%s7352 + $0x88] sm:%s7345]
                %7389 = vst [vmem:[%s7353 + $0x108] sm:%s7345] %v7388
                %v7390 = vld [vmem:[%s7352 + $0x90] sm:%s7345]
                %7391 = vst [vmem:[%s7353 + $0x110] sm:%s7345] %v7390
                %v7392 = vld [vmem:[%s7352 + $0x98] sm:%s7345]
                %7393 = vst [vmem:[%s7353 + $0x118] sm:%s7345] %v7392
                %v7394 = vld [vmem:[%s7352 + $0xa0] sm:%s7345]
                %7395 = vst [vmem:[%s7353 + $0x120] sm:%s7345] %v7394
                %v7396 = vld [vmem:[%s7352 + $0xa8] sm:%s7345]
                %7397 = vst [vmem:[%s7353 + $0x128] sm:%s7345] %v7396
                %v7398 = vld [vmem:[%s7352 + $0xb0] sm:%s7345]
                %7399 = vst [vmem:[%s7353 + $0x130] sm:%s7345] %v7398
                %v7400 = vld [vmem:[%s7352 + $0xb8] sm:%s7345]
                %7401 = vst [vmem:[%s7353 + $0x138] sm:%s7345] %v7400
                %v7402 = vld [vmem:[%s7352 + $0xc0] sm:%s7345]
                %7403 = vst [vmem:[%s7353 + $0x140] sm:%s7345] %v7402
                %v7404 = vld [vmem:[%s7352 + $0xc8] sm:%s7345]
                %7405 = vst [vmem:[%s7353 + $0x148] sm:%s7345] %v7404
                %v7406 = vld [vmem:[%s7352 + $0xd0] sm:%s7345]
                %7407 = vst [vmem:[%s7353 + $0x150] sm:%s7345] %v7406
                %v7408 = vld [vmem:[%s7352 + $0xd8] sm:%s7345]
                %7409 = vst [vmem:[%s7353 + $0x158] sm:%s7345] %v7408
                %v7410 = vld [vmem:[%s7352 + $0xe0] sm:%s7345]
                %7411 = vst [vmem:[%s7353 + $0x160] sm:%s7345] %v7410
                %v7412 = vld [vmem:[%s7352 + $0xe8] sm:%s7345]
                %7413 = vst [vmem:[%s7353 + $0x168] sm:%s7345] %v7412
                %v7414 = vld [vmem:[%s7352 + $0xf0] sm:%s7345]
                %7415 = vst [vmem:[%s7353 + $0x170] sm:%s7345] %v7414
                %v7416 = vld [vmem:[%s7352 + $0xf8] sm:%s7345]
                %7417 = vst [vmem:[%s7353 + $0x178] sm:%s7345] %v7416
              $region94: #{tpu_custom_call.1} parent=88 // loop_footer
                %s7351 = sadd.s32 1, %s7347
              $region95: #{tpu_custom_call.1} parent=88 // loop_footer_branch
                %7346 = sbr.rel target = $region91
              $region96: #{tpu_custom_call.1} parent=88 // loop_exit
                _
            $region89: #{tpu_custom_call.1} parent=80 // pred_fallthru
              _
          $region81: #{tpu_custom_call.1} parent=76 // pred_fallthru
            _
          %7494 = vnop
        $region77: #{tpu_custom_call.1} parent=64 // pred_fallthru
          _
        // Predicated region
        $region112: #{tpu_custom_call.1} parent=64 // pred_check
          %p7495 = pneg %p133
        $region113: #{tpu_custom_call.1} parent=64 // pred_check_branch
          %7497 = sbr.rel (%p7495) target = $region115
        $region114: #{tpu_custom_call.1} parent=64 // pred_region
          %s7498 = smul.u32 16, %s16
          %s7499 = smul.addr %s7498, 8
          %s7500 = scalar_lea.vmem %s4, %s7499
          // Predicated region
          $region116: #{tpu_custom_call.1} parent=114 // pred_check
            _
          $region117: #{tpu_custom_call.1} parent=114 // pred_check_branch
            %7502 = sbr.rel (0) target = $region119
          $region118: #{tpu_custom_call.1} parent=114 // pred_region
            // Predicated region
            $region120: #{tpu_custom_call.1} parent=118 // pred_check
              _
            $region121: #{tpu_custom_call.1} parent=118 // pred_check_branch
              %7504 = sbr.rel (0) target = $region123
            $region122: #{tpu_custom_call.1} parent=118 // pred_region
              // Predicated region
              $region135: #{tpu_custom_call.1} parent=122 // pred_check
                _
              $region136: #{tpu_custom_call.1} parent=122 // pred_check_branch
                %7582 = sbr.rel (0) target = $region138
              $region137: #{tpu_custom_call.1} parent=122 // pred_region
                loop: start=0, step=1, limit=1
                $region139: #{tpu_custom_call.1} parent=137 // loop_pre_header
                  _
                $region140: #{tpu_custom_call.1} parent=137 // loop_header
                  %s7584 = sphi 0, %s7588
                  %p7585 = scmp.ge.s32.totalorder %s7584, 1
                  %s7589 = sphi %s7327, %s7327
                  %s7590 = sphi %s7500, %s7500
                $region141: #{tpu_custom_call.1} parent=137 // loop_header_branch
                  %7587 = sbr.rel (%p7585) target = $region145
                $region142: #{tpu_custom_call.1} parent=137 // loop_body
                  %v7591 = vld [vmem:[%s7589] sm:$0xff]
                  %7592 = vst [vmem:[%s7590] sm:$0xff] %v7591
                  %v7593 = vld [vmem:[%s7589 + $0x8] sm:$0xff]
                  %7594 = vst [vmem:[%s7590 + $0x8] sm:$0xff] %v7593
                  %v7595 = vld [vmem:[%s7589 + $0x10] sm:$0xff]
                  %7596 = vst [vmem:[%s7590 + $0x10] sm:$0xff] %v7595
                  %v7597 = vld [vmem:[%s7589 + $0x18] sm:$0xff]
                  %7598 = vst [vmem:[%s7590 + $0x18] sm:$0xff] %v7597
                  %v7599 = vld [vmem:[%s7589 + $0x20] sm:$0xff]
                  %7600 = vst [vmem:[%s7590 + $0x20] sm:$0xff] %v7599
                  %v7601 = vld [vmem:[%s7589 + $0x28] sm:$0xff]
                  %7602 = vst [vmem:[%s7590 + $0x28] sm:$0xff] %v7601
                  %v7603 = vld [vmem:[%s7589 + $0x30] sm:$0xff]
                  %7604 = vst [vmem:[%s7590 + $0x30] sm:$0xff] %v7603
                  %v7605 = vld [vmem:[%s7589 + $0x38] sm:$0xff]
                  %7606 = vst [vmem:[%s7590 + $0x38] sm:$0xff] %v7605
                  %v7607 = vld [vmem:[%s7589 + $0x40] sm:$0xff]
                  %7608 = vst [vmem:[%s7590 + $0x40] sm:$0xff] %v7607
                  %v7609 = vld [vmem:[%s7589 + $0x48] sm:$0xff]
                  %7610 = vst [vmem:[%s7590 + $0x48] sm:$0xff] %v7609
                  %v7611 = vld [vmem:[%s7589 + $0x50] sm:$0xff]
                  %7612 = vst [vmem:[%s7590 + $0x50] sm:$0xff] %v7611
                  %v7613 = vld [vmem:[%s7589 + $0x58] sm:$0xff]
                  %7614 = vst [vmem:[%s7590 + $0x58] sm:$0xff] %v7613
                  %v7615 = vld [vmem:[%s7589 + $0x60] sm:$0xff]
                  %7616 = vst [vmem:[%s7590 + $0x60] sm:$0xff] %v7615
                  %v7617 = vld [vmem:[%s7589 + $0x68] sm:$0xff]
                  %7618 = vst [vmem:[%s7590 + $0x68] sm:$0xff] %v7617
                  %v7619 = vld [vmem:[%s7589 + $0x70] sm:$0xff]
                  %7620 = vst [vmem:[%s7590 + $0x70] sm:$0xff] %v7619
                  %v7621 = vld [vmem:[%s7589 + $0x78] sm:$0xff]
                  %7622 = vst [vmem:[%s7590 + $0x78] sm:$0xff] %v7621
                  %v7623 = vld [vmem:[%s7589 + $0x80] sm:$0xff]
                  %7624 = vst [vmem:[%s7590 + $0x100] sm:$0xff] %v7623
                  %v7625 = vld [vmem:[%s7589 + $0x88] sm:$0xff]
                  %7626 = vst [vmem:[%s7590 + $0x108] sm:$0xff] %v7625
                  %v7627 = vld [vmem:[%s7589 + $0x90] sm:$0xff]
                  %7628 = vst [vmem:[%s7590 + $0x110] sm:$0xff] %v7627
                  %v7629 = vld [vmem:[%s7589 + $0x98] sm:$0xff]
                  %7630 = vst [vmem:[%s7590 + $0x118] sm:$0xff] %v7629
                  %v7631 = vld [vmem:[%s7589 + $0xa0] sm:$0xff]
                  %7632 = vst [vmem:[%s7590 + $0x120] sm:$0xff] %v7631
                  %v7633 = vld [vmem:[%s7589 + $0xa8] sm:$0xff]
                  %7634 = vst [vmem:[%s7590 + $0x128] sm:$0xff] %v7633
                  %v7635 = vld [vmem:[%s7589 + $0xb0] sm:$0xff]
                  %7636 = vst [vmem:[%s7590 + $0x130] sm:$0xff] %v7635
                  %v7637 = vld [vmem:[%s7589 + $0xb8] sm:$0xff]
                  %7638 = vst [vmem:[%s7590 + $0x138] sm:$0xff] %v7637
                  %v7639 = vld [vmem:[%s7589 + $0xc0] sm:$0xff]
                  %7640 = vst [vmem:[%s7590 + $0x140] sm:$0xff] %v7639
                  %v7641 = vld [vmem:[%s7589 + $0xc8] sm:$0xff]
                  %7642 = vst [vmem:[%s7590 + $0x148] sm:$0xff] %v7641
                  %v7643 = vld [vmem:[%s7589 + $0xd0] sm:$0xff]
                  %7644 = vst [vmem:[%s7590 + $0x150] sm:$0xff] %v7643
                  %v7645 = vld [vmem:[%s7589 + $0xd8] sm:$0xff]
                  %7646 = vst [vmem:[%s7590 + $0x158] sm:$0xff] %v7645
                  %v7647 = vld [vmem:[%s7589 + $0xe0] sm:$0xff]
                  %7648 = vst [vmem:[%s7590 + $0x160] sm:$0xff] %v7647
                  %v7649 = vld [vmem:[%s7589 + $0xe8] sm:$0xff]
                  %7650 = vst [vmem:[%s7590 + $0x168] sm:$0xff] %v7649
                  %v7651 = vld [vmem:[%s7589 + $0xf0] sm:$0xff]
                  %7652 = vst [vmem:[%s7590 + $0x170] sm:$0xff] %v7651
                  %v7653 = vld [vmem:[%s7589 + $0xf8] sm:$0xff]
                  %7654 = vst [vmem:[%s7590 + $0x178] sm:$0xff] %v7653
                $region143: #{tpu_custom_call.1} parent=137 // loop_footer
                  %s7588 = sadd.s32 1, %s7584
                $region144: #{tpu_custom_call.1} parent=137 // loop_footer_branch
                  %7583 = sbr.rel target = $region140
                $region145: #{tpu_custom_call.1} parent=137 // loop_exit
                  _
              $region138: #{tpu_custom_call.1} parent=122 // pred_fallthru
                _
              // Predicated region
              $region146: #{tpu_custom_call.1} parent=122 // pred_check
                _
              $region147: #{tpu_custom_call.1} parent=122 // pred_check_branch
                %7656 = sbr.rel target = $region149
              $region148: #{tpu_custom_call.1} parent=122 // pred_region
                _
              $region149: #{tpu_custom_call.1} parent=122 // pred_fallthru
                _
            $region123: #{tpu_custom_call.1} parent=118 // pred_fallthru
              _
            // Predicated region
            $region124: #{tpu_custom_call.1} parent=118 // pred_check
              _
            $region125: #{tpu_custom_call.1} parent=118 // pred_check_branch
              %7506 = sbr.rel target = $region127
            $region126: #{tpu_custom_call.1} parent=118 // pred_region
              %s7508 = ssub.s32 256, 1
              loop: start=0, step=1, limit=1
              $region128: #{tpu_custom_call.1} parent=126 // loop_pre_header
                _
              $region129: #{tpu_custom_call.1} parent=126 // loop_header
                %s7510 = sphi 0, %s7514
                %p7511 = scmp.ge.s32.totalorder %s7510, 1
                %s7515 = sphi %s7327, %s7327
                %s7516 = sphi %s7500, %s7500
              $region130: #{tpu_custom_call.1} parent=126 // loop_header_branch
                %7513 = sbr.rel (%p7511) target = $region134
              $region131: #{tpu_custom_call.1} parent=126 // loop_body
                %v7517 = vld [vmem:[%s7515] sm:%s7508]
                %7518 = vst [vmem:[%s7516] sm:%s7508] %v7517
                %v7519 = vld [vmem:[%s7515 + $0x8] sm:%s7508]
                %7520 = vst [vmem:[%s7516 + $0x8] sm:%s7508] %v7519
                %v7521 = vld [vmem:[%s7515 + $0x10] sm:%s7508]
                %7522 = vst [vmem:[%s7516 + $0x10] sm:%s7508] %v7521
                %v7523 = vld [vmem:[%s7515 + $0x18] sm:%s7508]
                %7524 = vst [vmem:[%s7516 + $0x18] sm:%s7508] %v7523
                %v7525 = vld [vmem:[%s7515 + $0x20] sm:%s7508]
                %7526 = vst [vmem:[%s7516 + $0x20] sm:%s7508] %v7525
                %v7527 = vld [vmem:[%s7515 + $0x28] sm:%s7508]
                %7528 = vst [vmem:[%s7516 + $0x28] sm:%s7508] %v7527
                %v7529 = vld [vmem:[%s7515 + $0x30] sm:%s7508]
                %7530 = vst [vmem:[%s7516 + $0x30] sm:%s7508] %v7529
                %v7531 = vld [vmem:[%s7515 + $0x38] sm:%s7508]
                %7532 = vst [vmem:[%s7516 + $0x38] sm:%s7508] %v7531
                %v7533 = vld [vmem:[%s7515 + $0x40] sm:%s7508]
                %7534 = vst [vmem:[%s7516 + $0x40] sm:%s7508] %v7533
                %v7535 = vld [vmem:[%s7515 + $0x48] sm:%s7508]
                %7536 = vst [vmem:[%s7516 + $0x48] sm:%s7508] %v7535
                %v7537 = vld [vmem:[%s7515 + $0x50] sm:%s7508]
                %7538 = vst [vmem:[%s7516 + $0x50] sm:%s7508] %v7537
                %v7539 = vld [vmem:[%s7515 + $0x58] sm:%s7508]
                %7540 = vst [vmem:[%s7516 + $0x58] sm:%s7508] %v7539
                %v7541 = vld [vmem:[%s7515 + $0x60] sm:%s7508]
                %7542 = vst [vmem:[%s7516 + $0x60] sm:%s7508] %v7541
                %v7543 = vld [vmem:[%s7515 + $0x68] sm:%s7508]
                %7544 = vst [vmem:[%s7516 + $0x68] sm:%s7508] %v7543
                %v7545 = vld [vmem:[%s7515 + $0x70] sm:%s7508]
                %7546 = vst [vmem:[%s7516 + $0x70] sm:%s7508] %v7545
                %v7547 = vld [vmem:[%s7515 + $0x78] sm:%s7508]
                %7548 = vst [vmem:[%s7516 + $0x78] sm:%s7508] %v7547
                %v7549 = vld [vmem:[%s7515 + $0x80] sm:%s7508]
                %7550 = vst [vmem:[%s7516 + $0x100] sm:%s7508] %v7549
                %v7551 = vld [vmem:[%s7515 + $0x88] sm:%s7508]
                %7552 = vst [vmem:[%s7516 + $0x108] sm:%s7508] %v7551
                %v7553 = vld [vmem:[%s7515 + $0x90] sm:%s7508]
                %7554 = vst [vmem:[%s7516 + $0x110] sm:%s7508] %v7553
                %v7555 = vld [vmem:[%s7515 + $0x98] sm:%s7508]
                %7556 = vst [vmem:[%s7516 + $0x118] sm:%s7508] %v7555
                %v7557 = vld [vmem:[%s7515 + $0xa0] sm:%s7508]
                %7558 = vst [vmem:[%s7516 + $0x120] sm:%s7508] %v7557
                %v7559 = vld [vmem:[%s7515 + $0xa8] sm:%s7508]
                %7560 = vst [vmem:[%s7516 + $0x128] sm:%s7508] %v7559
                %v7561 = vld [vmem:[%s7515 + $0xb0] sm:%s7508]
                %7562 = vst [vmem:[%s7516 + $0x130] sm:%s7508] %v7561
                %v7563 = vld [vmem:[%s7515 + $0xb8] sm:%s7508]
                %7564 = vst [vmem:[%s7516 + $0x138] sm:%s7508] %v7563
                %v7565 = vld [vmem:[%s7515 + $0xc0] sm:%s7508]
                %7566 = vst [vmem:[%s7516 + $0x140] sm:%s7508] %v7565
                %v7567 = vld [vmem:[%s7515 + $0xc8] sm:%s7508]
                %7568 = vst [vmem:[%s7516 + $0x148] sm:%s7508] %v7567
                %v7569 = vld [vmem:[%s7515 + $0xd0] sm:%s7508]
                %7570 = vst [vmem:[%s7516 + $0x150] sm:%s7508] %v7569
                %v7571 = vld [vmem:[%s7515 + $0xd8] sm:%s7508]
                %7572 = vst [vmem:[%s7516 + $0x158] sm:%s7508] %v7571
                %v7573 = vld [vmem:[%s7515 + $0xe0] sm:%s7508]
                %7574 = vst [vmem:[%s7516 + $0x160] sm:%s7508] %v7573
                %v7575 = vld [vmem:[%s7515 + $0xe8] sm:%s7508]
                %7576 = vst [vmem:[%s7516 + $0x168] sm:%s7508] %v7575
                %v7577 = vld [vmem:[%s7515 + $0xf0] sm:%s7508]
                %7578 = vst [vmem:[%s7516 + $0x170] sm:%s7508] %v7577
                %v7579 = vld [vmem:[%s7515 + $0xf8] sm:%s7508]
                %7580 = vst [vmem:[%s7516 + $0x178] sm:%s7508] %v7579
              $region132: #{tpu_custom_call.1} parent=126 // loop_footer
                %s7514 = sadd.s32 1, %s7510
              $region133: #{tpu_custom_call.1} parent=126 // loop_footer_branch
                %7509 = sbr.rel target = $region129
              $region134: #{tpu_custom_call.1} parent=126 // loop_exit
                _
            $region127: #{tpu_custom_call.1} parent=118 // pred_fallthru
              _
          $region119: #{tpu_custom_call.1} parent=114 // pred_fallthru
            _
          %7657 = vnop
        $region115: #{tpu_custom_call.1} parent=64 // pred_fallthru
          _
      $region65: #{tpu_custom_call.1} parent=5 // pred_fallthru
        _
      %p7658 = scmp.le.s32.totalorder 2, %s11
      // Predicated region
      $region150: #{tpu_custom_call.1} parent=5 // pred_check
        %p7659 = pneg %p7658
      $region151: #{tpu_custom_call.1} parent=5 // pred_check_branch
        %7661 = sbr.rel (%p7659) target = $region153
      $region152: #{tpu_custom_call.1} parent=5 // pred_region
        %s7662 = ssub.s32 %s11, 2
        // Predicated region
        $region154: #{tpu_custom_call.1} parent=152 // pred_check
          %p7663 = pneg %p87
        $region155: #{tpu_custom_call.1} parent=152 // pred_check_branch
          %7665 = sbr.rel (%p7663) target = $region157
        $region156: #{tpu_custom_call.1} parent=152 // pred_region
          %s7666 = smul.u32 16, %s17
          %p7667 = scmp.lt.s32.totalorder %s7666, 31
          %s7668 = scalar_select %p7667, %s7666, 31
          %s7669 = smul.addr %s7668, 8
          %s7670 = scalar_lea.vmem %s2, %s7669
        $region157: #{tpu_custom_call.1} parent=152 // pred_fallthru
          _
        // Predicated region
        $region158: #{tpu_custom_call.1} parent=152 // pred_check
          %p7671 = pneg %p113
        $region159: #{tpu_custom_call.1} parent=152 // pred_check_branch
          %7673 = sbr.rel (%p7671) target = $region161
        $region160: #{tpu_custom_call.1} parent=152 // pred_region
          %s7674 = sand.u32 %s98, 1
          %s7675 = sand.u32 %s98, 1
          %s7676 = smul.addr %s7675, 256
          %s7677 = scalar_lea.vmem [#allocation3], %s7676
        $region161: #{tpu_custom_call.1} parent=152 // pred_fallthru
          _
        // Predicated region
        $region162: #{tpu_custom_call.1} parent=152 // pred_check
          %p7678 = pneg %p139
        $region163: #{tpu_custom_call.1} parent=152 // pred_check_branch
          %7680 = sbr.rel (%p7678) target = $region165
        $region164: #{tpu_custom_call.1} parent=152 // pred_region
          %s7681 = sand.u32 %s124, 1
          %s7682 = sand.u32 %s124, 1
          %s7683 = smul.addr %s7682, 256
          %s7684 = scalar_lea.vmem [#allocation4], %s7683
        $region165: #{tpu_custom_call.1} parent=152 // pred_fallthru
          _
      $region153: #{tpu_custom_call.1} parent=5 // pred_fallthru
        _
    $region6: #{tpu_custom_call.1} parent=1 // loop_footer
      %s15 = sadd.s32 1, %s11
    $region7: #{tpu_custom_call.1} parent=1 // loop_footer_branch
      %10 = sbr.rel target = $region3
    $region8: #{tpu_custom_call.1} parent=1 // loop_exit
      _

</llo_original>
